<compile_context>
chip_gen: v7x
topology: tpu7x:2x2x1
jax: 0.10.0
libtpu: 0.0.40
codegen_flags: <defaults>
</compile_context>

<pallas_src>
import jax
import jax.numpy as jnp
from jax.experimental import pallas as pl
from jax.experimental.pallas import tpu as pltpu

SRC_CHUNK = 128  # masked max/min processes the source axis in <=128-lane chunks


def pna_kernel(adj_ref, x_ref, w_in_ref, b_in_ref, w1_ref, b1_ref,
               w2_ref, b2_ref, w_out_ref, b_out_ref, o_ref):
    adj = adj_ref[...]                                   # [N_dst, N_src], adj[dst, src] in {0, 1}
    n_dst, n_src = adj.shape
    hf = b1_ref.shape[1]                                 # h_feats

    # In-degree on the MXU (adj @ ones) instead of an XLU lane reduce — the XLU is what the
    # masked max/min below leans on, while the MXU is idle here.
    ones_cols = jnp.ones((n_src, hf), jnp.float32)
    deg = jnp.dot(adj, ones_cols, preferred_element_type=jnp.float32)[:, 0:1]   # [N_dst, 1]
    has_nbr = deg > 0.0
    inv_deg = jnp.where(has_nbr, 1.0 / jnp.maximum(deg, 1.0), 0.0)

    # Neighbour mask hoisted out of the per-layer function (JAX does not CSE it across layers).
    nbr = adj[:, None, :] != 0.0                         # [N_dst, 1, N_src]

    # input_linear
    h = jnp.dot(x_ref[...], w_in_ref[...], preferred_element_type=jnp.float32) + b_in_ref[...]

    def principal_aggregate(h, w_ref, b_ref):
        # Fused mean / mean-of-squares aggregation: ONE adjacency matmul over a 2*hf-wide
        # operand, then a single 1/deg row scale on the 64-lane result.
        agg = jnp.dot(adj, jnp.concatenate([h, h * h], axis=1),
                      preferred_element_type=jnp.float32) * inv_deg             # [N_dst, 2*hf]
        mean = agg[:, :hf]
        mean_sq = agg[:, hf:]
        std = jnp.sqrt(jnp.maximum(mean_sq - mean * mean, 0.0) + 1e-5)

        # Masked max / min over incoming neighbours: sources on the lane axis, reduced over
        # the last dim, with the src axis chunked so the broadcast intermediate is capped at
        # [N_dst, hf, SRC_CHUNK] (one chunk at N=64).
        h_t = h.T                                        # [hf, N_src]
        run_max = jnp.full((n_dst, hf), -jnp.inf, jnp.float32)
        run_min = jnp.full((n_dst, hf), jnp.inf, jnp.float32)
        for c0 in range(0, n_src, SRC_CHUNK):
            c1 = min(c0 + SRC_CHUNK, n_src)
            m = nbr[:, :, c0:c1]                         # [N_dst, 1, chunk]
            hv = h_t[None, :, c0:c1]                     # [1, hf, chunk]
            run_max = jnp.maximum(run_max, jnp.max(jnp.where(m, hv, -jnp.inf), axis=-1))
            run_min = jnp.minimum(run_min, jnp.min(jnp.where(m, hv, jnp.inf), axis=-1))
        h_max = jnp.where(has_nbr, run_max, 0.0)         # isolated nodes -> 0 (DGL default)
        h_min = jnp.where(has_nbr, run_min, 0.0)

        # Per-layer Linear with the weight pre-split into four [hf, hf] blocks:
        # z = mean@Wm + max@Wx + min@Wn + std@Ws + b — no concat scratch, no masked partial
        # stores, no VMEM store->reload before the MXU.
        z = (jnp.dot(mean, w_ref[0], preferred_element_type=jnp.float32)
             + jnp.dot(h_max, w_ref[1], preferred_element_type=jnp.float32)
             + jnp.dot(h_min, w_ref[2], preferred_element_type=jnp.float32)
             + jnp.dot(std, w_ref[3], preferred_element_type=jnp.float32)
             + b_ref[...])
        return jnp.maximum(z, 0.0)                       # ReLU activation

    h = principal_aggregate(h, w1_ref, b1_ref)
    h = principal_aggregate(h, w2_ref, b2_ref)

    # output_linear, written as a 128-lane-wide slab (unmasked stores); wrapper slices classes.
    o_ref[...] = jnp.dot(h, w_out_ref[...], preferred_element_type=jnp.float32) + b_out_ref[...]


def pna_forward(adj, x, w_in, b_in, w1_stack, b1, w2_stack, b2, w_out_pad, b_out_pad,
                num_classes):
    n = x.shape[0]
    padded_classes = w_out_pad.shape[1]
    vmem = pl.BlockSpec(memory_space=pltpu.MemorySpace.VMEM)
    out_pad = pl.pallas_call(
        pna_kernel,
        out_shape=jax.ShapeDtypeStruct((n, padded_classes), jnp.float32),
        in_specs=[vmem] * 10,
        out_specs=vmem,
    )(adj, x, w_in, b_in, w1_stack, b1, w2_stack, b2, w_out_pad, b_out_pad)
    # Slice the real classes outside the kernel (lane-dense store inside).
    return out_pad[:, :num_classes]


def pna_reference(adj, x, w_in, b_in, w1, b1, w2, b2, w_out, b_out):
    """Pure-JAX reference with identical PNA semantics (flat concat weights)."""
    deg = adj.sum(axis=1, keepdims=True)
    has = deg > 0.0
    inv_deg = jnp.where(has, 1.0 / jnp.maximum(deg, 1.0), 0.0)
    h = x @ w_in + b_in
    for w, b in ((w1, b1), (w2, b2)):
        mean = (adj @ h) * inv_deg
        mean_sq = (adj @ (h * h)) * inv_deg
        std = jnp.sqrt(jnp.maximum(mean_sq - mean * mean, 0.0) + 1e-5)
        mask = adj[:, :, None] != 0.0
        h_max = jnp.where(has, jnp.where(mask, h[None, :, :], -jnp.inf).max(axis=1), 0.0)
        h_min = jnp.where(has, jnp.where(mask, h[None, :, :], jnp.inf).min(axis=1), 0.0)
        h = jnp.maximum(jnp.concatenate([mean, h_max, h_min, std], axis=1) @ w + b, 0.0)
    return h @ w_out + b_out


def build_adjacency(key, n):
    """Random symmetric 0/1 graph with self-loops; adj[dst, src] = 1 per edge."""
    r = jax.random.uniform(key, (n, n))
    adj = ((r + r.T) > 1.4).astype(jnp.float32)
    return jnp.maximum(adj, jnp.eye(n, dtype=jnp.float32))


def glorot(key, shape):
    fan_in, fan_out = shape
    limit = (6.0 / (fan_in + fan_out)) ** 0.5
    return jax.random.uniform(key, shape, jnp.float32, -limit, limit)


if __name__ == "__main__":
    # Module-consistent toy shapes: N nodes, in_feats=16, h_feats=32, num_classes=2,
    # num_layers=2 PrincipalAggregate layers with aggregators [mean, max, min, std].
    N, in_feats, h_feats, num_classes = 64, 16, 32, 2
    PADDED_CLASSES = 128   # lane-dense classifier slab; real classes sliced in the wrapper

    key = jax.random.PRNGKey(0)
    ks = jax.random.split(key, 10)

    adj = build_adjacency(ks[0], N)
    x = jax.random.normal(ks[1], (N, in_feats), jnp.float32)

    # Linear weights stored as (in, out) so the kernel computes x @ W (math-equivalent to torch).
    w_in = glorot(ks[2], (in_feats, h_feats))
    b_in = jax.random.uniform(ks[3], (1, h_feats), jnp.float32, -0.1, 0.1)
    w1 = glorot(ks[4], (4 * h_feats, h_feats))            # rows ordered [mean; max; min; std]
    b1 = jax.random.uniform(ks[5], (1, h_feats), jnp.float32, -0.1, 0.1)
    w2 = glorot(ks[6], (4 * h_feats, h_feats))
    b2 = jax.random.uniform(ks[7], (1, h_feats), jnp.float32, -0.1, 0.1)
    w_out = glorot(ks[8], (h_feats, num_classes))
    b_out = jax.random.uniform(ks[9], (1, num_classes), jnp.float32, -0.1, 0.1)

    # Pre-split the per-layer weights into four [h_feats, h_feats] blocks (row-major reshape
    # keeps the [mean; max; min; std] block order of the flat concat weight).
    w1_stack = w1.reshape(4, h_feats, h_feats)
    w2_stack = w2.reshape(4, h_feats, h_feats)

    # Zero-pad the classifier to 128 output lanes (zero columns cannot leak into real outputs).
    w_out_pad = jnp.zeros((h_feats, PADDED_CLASSES), jnp.float32).at[:, :num_classes].set(w_out)
    b_out_pad = jnp.zeros((1, PADDED_CLASSES), jnp.float32).at[:, :num_classes].set(b_out)

    out = pna_forward(adj, x, w_in, b_in, w1_stack, b1, w2_stack, b2,
                      w_out_pad, b_out_pad, num_classes)
    out = jax.block_until_ready(out)

    ref = pna_reference(adj, x, w_in, b_in, w1, b1, w2, b2, w_out, b_out)
    assert out.shape == (N, num_classes)
    assert jnp.allclose(out, ref, atol=5e-4, rtol=5e-4), float(jnp.max(jnp.abs(out - ref)))

    # TODO(synk): for large N, add a row-tiled BlockSpec grid over the dense adjacency
    # (dst axis "parallel" for megacore/v7x 2-TC sharding, src/reduction axis last and
    # "arbitrary"), store the 0/1 adjacency in bf16 for the MXU operand, and size tiles for
    # v7x's 64 MiB physical / 32 MiB scoped VMEM (set vmem_limit_bytes explicitly).
    print("KERNEL_OK")
</pallas_src>

<mosaic_0001>
module attributes {stable_mosaic.version = 11 : i64} {
  func.func @pna_kernel(%arg0: memref<64x64xf32, #tpu.memory_space<vmem>>, %arg1: memref<64x16xf32, #tpu.memory_space<vmem>>, %arg2: memref<16x32xf32, #tpu.memory_space<vmem>>, %arg3: memref<1x32xf32, #tpu.memory_space<vmem>>, %arg4: memref<4x32x32xf32, #tpu.memory_space<vmem>>, %arg5: memref<1x32xf32, #tpu.memory_space<vmem>>, %arg6: memref<4x32x32xf32, #tpu.memory_space<vmem>>, %arg7: memref<1x32xf32, #tpu.memory_space<vmem>>, %arg8: memref<32x128xf32, #tpu.memory_space<vmem>>, %arg9: memref<1x128xf32, #tpu.memory_space<vmem>>, %arg10: memref<64x128xf32, #tpu.memory_space<vmem>>) attributes {dimension_semantics = [], scalar_prefetch = 0 : i64, scratch_operands = 0 : i64, tpu.core_type = #tpu.core_type<tc>} {
    %c0 = arith.constant 0 : index
    %c0_0 = arith.constant 0 : index
    %0 = vector.load %arg0[%c0, %c0_0] : memref<64x64xf32, #tpu.memory_space<vmem>>, vector<64x64xf32>
    %cst = arith.constant 1.000000e+00 : f32
    %1 = vector.broadcast %cst : f32 to vector<64x32xf32>
    %cst_1 = arith.constant dense<0.000000e+00> : vector<64x32xf32>
    %2 = tpu.matmul %0, %1, %cst_1 {dimension_numbers = #tpu.dot_dimension_numbers<[1], [0], [0], [1], [0, 0, 1, 1], [], []>} : vector<64x64xf32>, vector<64x32xf32>, vector<64x32xf32> -> vector<64x32xf32>
    %3 = vector.extract_strided_slice %2 {offsets = [0, 0], sizes = [64, 1], strides = [1, 1]} : vector<64x32xf32> to vector<64x1xf32>
    %cst_2 = arith.constant 0.000000e+00 : f32
    %4 = vector.broadcast %cst_2 : f32 to vector<64x1xf32>
    %5 = arith.cmpf ogt, %3, %4 : vector<64x1xf32>
    %cst_3 = arith.constant 1.000000e+00 : f32
    %6 = vector.broadcast %cst_3 : f32 to vector<64x1xf32>
    %7 = arith.maximumf %3, %6 : vector<64x1xf32>
    %cst_4 = arith.constant 1.000000e+00 : f32
    %8 = vector.broadcast %cst_4 : f32 to vector<64x1xf32>
    %9 = arith.divf %8, %7 : vector<64x1xf32>
    %cst_5 = arith.constant 0.000000e+00 : f32
    %10 = vector.broadcast %cst_5 : f32 to vector<64x1xf32>
    %11 = arith.select %5, %9, %10 : vector<64x1xi1>, vector<64x1xf32>
    %12 = vector.shape_cast %0 : vector<64x64xf32> to vector<64x1x64xf32>
    %cst_6 = arith.constant 0.000000e+00 : f32
    %13 = vector.broadcast %cst_6 : f32 to vector<64x1x64xf32>
    %14 = arith.cmpf one, %12, %13 : vector<64x1x64xf32>
    %c0_7 = arith.constant 0 : index
    %c0_8 = arith.constant 0 : index
    %15 = vector.load %arg1[%c0_7, %c0_8] : memref<64x16xf32, #tpu.memory_space<vmem>>, vector<64x16xf32>
    %c0_9 = arith.constant 0 : index
    %c0_10 = arith.constant 0 : index
    %16 = vector.load %arg2[%c0_9, %c0_10] : memref<16x32xf32, #tpu.memory_space<vmem>>, vector<16x32xf32>
    %cst_11 = arith.constant dense<0.000000e+00> : vector<64x32xf32>
    %17 = tpu.matmul %15, %16, %cst_11 {dimension_numbers = #tpu.dot_dimension_numbers<[1], [0], [0], [1], [0, 0, 1, 1], [], []>} : vector<64x16xf32>, vector<16x32xf32>, vector<64x32xf32> -> vector<64x32xf32>
    %c0_12 = arith.constant 0 : index
    %c0_13 = arith.constant 0 : index
    %18 = vector.load %arg3[%c0_12, %c0_13] : memref<1x32xf32, #tpu.memory_space<vmem>>, vector<1x32xf32>
    %19 = vector.broadcast %18 : vector<1x32xf32> to vector<64x32xf32>
    %20 = arith.addf %17, %19 : vector<64x32xf32>
    %21 = arith.mulf %20, %20 : vector<64x32xf32>
    %22 = tpu.concatenate %20, %21 in 1 : vector<64x32xf32>, vector<64x32xf32> -> vector<64x64xf32>
    %cst_14 = arith.constant dense<0.000000e+00> : vector<64x64xf32>
    %23 = tpu.matmul %0, %22, %cst_14 {dimension_numbers = #tpu.dot_dimension_numbers<[1], [0], [0], [1], [0, 0, 1, 1], [], []>} : vector<64x64xf32>, vector<64x64xf32>, vector<64x64xf32> -> vector<64x64xf32>
    %24 = vector.broadcast %11 : vector<64x1xf32> to vector<64x64xf32>
    %25 = arith.mulf %23, %24 : vector<64x64xf32>
    %26 = vector.extract_strided_slice %25 {offsets = [0, 0], sizes = [64, 32], strides = [1, 1]} : vector<64x64xf32> to vector<64x32xf32>
    %27 = vector.extract_strided_slice %25 {offsets = [0, 32], sizes = [64, 32], strides = [1, 1]} : vector<64x64xf32> to vector<64x32xf32>
    %28 = arith.mulf %26, %26 : vector<64x32xf32>
    %29 = arith.subf %27, %28 : vector<64x32xf32>
    %cst_15 = arith.constant 0.000000e+00 : f32
    %30 = vector.broadcast %cst_15 : f32 to vector<64x32xf32>
    %31 = arith.maximumf %29, %30 : vector<64x32xf32>
    %cst_16 = arith.constant 9.99999974E-6 : f32
    %32 = vector.broadcast %cst_16 : f32 to vector<64x32xf32>
    %33 = arith.addf %31, %32 : vector<64x32xf32>
    %34 = math.sqrt %33 : vector<64x32xf32>
    %35 = tpu.transpose %20, [1, 0] : vector<64x32xf32> -> vector<32x64xf32>
    %cst_17 = arith.constant 0xFF800000 : f32
    %36 = vector.broadcast %cst_17 : f32 to vector<64x32xf32>
    %cst_18 = arith.constant 0x7F800000 : f32
    %37 = vector.broadcast %cst_18 : f32 to vector<64x32xf32>
    %38 = vector.shape_cast %35 : vector<32x64xf32> to vector<1x32x64xf32>
    %cst_19 = arith.constant 0xFF800000 : f32
    %39 = vector.shape_cast %14 : vector<64x1x64xi1> to vector<64x1x64xi1>
    %40 = vector.broadcast %39 : vector<64x1x64xi1> to vector<64x32x64xi1>
    %41 = vector.shape_cast %38 : vector<1x32x64xf32> to vector<1x32x64xf32>
    %42 = vector.broadcast %41 : vector<1x32x64xf32> to vector<64x32x64xf32>
    %43 = vector.broadcast %cst_19 : f32 to vector<64x32x64xf32>
    %44 = arith.select %40, %42, %43 : vector<64x32x64xi1>, vector<64x32x64xf32>
    %cst_20 = arith.constant dense<0xFF800000> : vector<64x32xf32>
    %45 = vector.multi_reduction <maximumf>, %44, %cst_20 [2] : vector<64x32x64xf32> to vector<64x32xf32>
    %46 = arith.maximumf %36, %45 : vector<64x32xf32>
    %cst_21 = arith.constant 0x7F800000 : f32
    %47 = vector.shape_cast %14 : vector<64x1x64xi1> to vector<64x1x64xi1>
    %48 = vector.broadcast %47 : vector<64x1x64xi1> to vector<64x32x64xi1>
    %49 = vector.shape_cast %38 : vector<1x32x64xf32> to vector<1x32x64xf32>
    %50 = vector.broadcast %49 : vector<1x32x64xf32> to vector<64x32x64xf32>
    %51 = vector.broadcast %cst_21 : f32 to vector<64x32x64xf32>
    %52 = arith.select %48, %50, %51 : vector<64x32x64xi1>, vector<64x32x64xf32>
    %cst_22 = arith.constant dense<0x7F800000> : vector<64x32xf32>
    %53 = vector.multi_reduction <minimumf>, %52, %cst_22 [2] : vector<64x32x64xf32> to vector<64x32xf32>
    %54 = arith.minimumf %37, %53 : vector<64x32xf32>
    %cst_23 = arith.constant 0.000000e+00 : f32
    %55 = vector.shape_cast %5 : vector<64x1xi1> to vector<64x1xi1>
    %56 = vector.broadcast %55 : vector<64x1xi1> to vector<64x32xi1>
    %57 = vector.broadcast %cst_23 : f32 to vector<64x32xf32>
    %58 = arith.select %56, %46, %57 : vector<64x32xi1>, vector<64x32xf32>
    %cst_24 = arith.constant 0.000000e+00 : f32
    %59 = vector.shape_cast %5 : vector<64x1xi1> to vector<64x1xi1>
    %60 = vector.broadcast %59 : vector<64x1xi1> to vector<64x32xi1>
    %61 = vector.broadcast %cst_24 : f32 to vector<64x32xf32>
    %62 = arith.select %60, %54, %61 : vector<64x32xi1>, vector<64x32xf32>
    %c0_25 = arith.constant 0 : index
    %c0_26 = arith.constant 0 : index
    %c0_27 = arith.constant 0 : index
    %63 = vector.load %arg4[%c0_25, %c0_26, %c0_27] : memref<4x32x32xf32, #tpu.memory_space<vmem>>, vector<1x32x32xf32>
    %64 = vector.shape_cast %63 : vector<1x32x32xf32> to vector<32x32xf32>
    %cst_28 = arith.constant dense<0.000000e+00> : vector<64x32xf32>
    %65 = tpu.matmul %26, %64, %cst_28 {dimension_numbers = #tpu.dot_dimension_numbers<[1], [0], [0], [1], [0, 0, 1, 1], [], []>} : vector<64x32xf32>, vector<32x32xf32>, vector<64x32xf32> -> vector<64x32xf32>
    %c1 = arith.constant 1 : index
    %c0_29 = arith.constant 0 : index
    %c0_30 = arith.constant 0 : index
    %66 = vector.load %arg4[%c1, %c0_29, %c0_30] : memref<4x32x32xf32, #tpu.memory_space<vmem>>, vector<1x32x32xf32>
    %67 = vector.shape_cast %66 : vector<1x32x32xf32> to vector<32x32xf32>
    %cst_31 = arith.constant dense<0.000000e+00> : vector<64x32xf32>
    %68 = tpu.matmul %58, %67, %cst_31 {dimension_numbers = #tpu.dot_dimension_numbers<[1], [0], [0], [1], [0, 0, 1, 1], [], []>} : vector<64x32xf32>, vector<32x32xf32>, vector<64x32xf32> -> vector<64x32xf32>
    %69 = arith.addf %65, %68 : vector<64x32xf32>
    %c2 = arith.constant 2 : index
    %c0_32 = arith.constant 0 : index
    %c0_33 = arith.constant 0 : index
    %70 = vector.load %arg4[%c2, %c0_32, %c0_33] : memref<4x32x32xf32, #tpu.memory_space<vmem>>, vector<1x32x32xf32>
    %71 = vector.shape_cast %70 : vector<1x32x32xf32> to vector<32x32xf32>
    %cst_34 = arith.constant dense<0.000000e+00> : vector<64x32xf32>
    %72 = tpu.matmul %62, %71, %cst_34 {dimension_numbers = #tpu.dot_dimension_numbers<[1], [0], [0], [1], [0, 0, 1, 1], [], []>} : vector<64x32xf32>, vector<32x32xf32>, vector<64x32xf32> -> vector<64x32xf32>
    %73 = arith.addf %69, %72 : vector<64x32xf32>
    %c3 = arith.constant 3 : index
    %c0_35 = arith.constant 0 : index
    %c0_36 = arith.constant 0 : index
    %74 = vector.load %arg4[%c3, %c0_35, %c0_36] : memref<4x32x32xf32, #tpu.memory_space<vmem>>, vector<1x32x32xf32>
    %75 = vector.shape_cast %74 : vector<1x32x32xf32> to vector<32x32xf32>
    %cst_37 = arith.constant dense<0.000000e+00> : vector<64x32xf32>
    %76 = tpu.matmul %34, %75, %cst_37 {dimension_numbers = #tpu.dot_dimension_numbers<[1], [0], [0], [1], [0, 0, 1, 1], [], []>} : vector<64x32xf32>, vector<32x32xf32>, vector<64x32xf32> -> vector<64x32xf32>
    %77 = arith.addf %73, %76 : vector<64x32xf32>
    %c0_38 = arith.constant 0 : index
    %c0_39 = arith.constant 0 : index
    %78 = vector.load %arg5[%c0_38, %c0_39] : memref<1x32xf32, #tpu.memory_space<vmem>>, vector<1x32xf32>
    %79 = vector.broadcast %78 : vector<1x32xf32> to vector<64x32xf32>
    %80 = arith.addf %77, %79 : vector<64x32xf32>
    %cst_40 = arith.constant 0.000000e+00 : f32
    %81 = vector.broadcast %cst_40 : f32 to vector<64x32xf32>
    %82 = arith.maximumf %80, %81 : vector<64x32xf32>
    %83 = arith.mulf %82, %82 : vector<64x32xf32>
    %84 = tpu.concatenate %82, %83 in 1 : vector<64x32xf32>, vector<64x32xf32> -> vector<64x64xf32>
    %cst_41 = arith.constant dense<0.000000e+00> : vector<64x64xf32>
    %85 = tpu.matmul %0, %84, %cst_41 {dimension_numbers = #tpu.dot_dimension_numbers<[1], [0], [0], [1], [0, 0, 1, 1], [], []>} : vector<64x64xf32>, vector<64x64xf32>, vector<64x64xf32> -> vector<64x64xf32>
    %86 = vector.broadcast %11 : vector<64x1xf32> to vector<64x64xf32>
    %87 = arith.mulf %85, %86 : vector<64x64xf32>
    %88 = vector.extract_strided_slice %87 {offsets = [0, 0], sizes = [64, 32], strides = [1, 1]} : vector<64x64xf32> to vector<64x32xf32>
    %89 = vector.extract_strided_slice %87 {offsets = [0, 32], sizes = [64, 32], strides = [1, 1]} : vector<64x64xf32> to vector<64x32xf32>
    %90 = arith.mulf %88, %88 : vector<64x32xf32>
    %91 = arith.subf %89, %90 : vector<64x32xf32>
    %cst_42 = arith.constant 0.000000e+00 : f32
    %92 = vector.broadcast %cst_42 : f32 to vector<64x32xf32>
    %93 = arith.maximumf %91, %92 : vector<64x32xf32>
    %cst_43 = arith.constant 9.99999974E-6 : f32
    %94 = vector.broadcast %cst_43 : f32 to vector<64x32xf32>
    %95 = arith.addf %93, %94 : vector<64x32xf32>
    %96 = math.sqrt %95 : vector<64x32xf32>
    %97 = tpu.transpose %82, [1, 0] : vector<64x32xf32> -> vector<32x64xf32>
    %cst_44 = arith.constant 0xFF800000 : f32
    %98 = vector.broadcast %cst_44 : f32 to vector<64x32xf32>
    %cst_45 = arith.constant 0x7F800000 : f32
    %99 = vector.broadcast %cst_45 : f32 to vector<64x32xf32>
    %100 = vector.shape_cast %97 : vector<32x64xf32> to vector<1x32x64xf32>
    %cst_46 = arith.constant 0xFF800000 : f32
    %101 = vector.shape_cast %14 : vector<64x1x64xi1> to vector<64x1x64xi1>
    %102 = vector.broadcast %101 : vector<64x1x64xi1> to vector<64x32x64xi1>
    %103 = vector.shape_cast %100 : vector<1x32x64xf32> to vector<1x32x64xf32>
    %104 = vector.broadcast %103 : vector<1x32x64xf32> to vector<64x32x64xf32>
    %105 = vector.broadcast %cst_46 : f32 to vector<64x32x64xf32>
    %106 = arith.select %102, %104, %105 : vector<64x32x64xi1>, vector<64x32x64xf32>
    %cst_47 = arith.constant dense<0xFF800000> : vector<64x32xf32>
    %107 = vector.multi_reduction <maximumf>, %106, %cst_47 [2] : vector<64x32x64xf32> to vector<64x32xf32>
    %108 = arith.maximumf %98, %107 : vector<64x32xf32>
    %cst_48 = arith.constant 0x7F800000 : f32
    %109 = vector.shape_cast %14 : vector<64x1x64xi1> to vector<64x1x64xi1>
    %110 = vector.broadcast %109 : vector<64x1x64xi1> to vector<64x32x64xi1>
    %111 = vector.shape_cast %100 : vector<1x32x64xf32> to vector<1x32x64xf32>
    %112 = vector.broadcast %111 : vector<1x32x64xf32> to vector<64x32x64xf32>
    %113 = vector.broadcast %cst_48 : f32 to vector<64x32x64xf32>
    %114 = arith.select %110, %112, %113 : vector<64x32x64xi1>, vector<64x32x64xf32>
    %cst_49 = arith.constant dense<0x7F800000> : vector<64x32xf32>
    %115 = vector.multi_reduction <minimumf>, %114, %cst_49 [2] : vector<64x32x64xf32> to vector<64x32xf32>
    %116 = arith.minimumf %99, %115 : vector<64x32xf32>
    %cst_50 = arith.constant 0.000000e+00 : f32
    %117 = vector.shape_cast %5 : vector<64x1xi1> to vector<64x1xi1>
    %118 = vector.broadcast %117 : vector<64x1xi1> to vector<64x32xi1>
    %119 = vector.broadcast %cst_50 : f32 to vector<64x32xf32>
    %120 = arith.select %118, %108, %119 : vector<64x32xi1>, vector<64x32xf32>
    %cst_51 = arith.constant 0.000000e+00 : f32
    %121 = vector.shape_cast %5 : vector<64x1xi1> to vector<64x1xi1>
    %122 = vector.broadcast %121 : vector<64x1xi1> to vector<64x32xi1>
    %123 = vector.broadcast %cst_51 : f32 to vector<64x32xf32>
    %124 = arith.select %122, %116, %123 : vector<64x32xi1>, vector<64x32xf32>
    %c0_52 = arith.constant 0 : index
    %c0_53 = arith.constant 0 : index
    %c0_54 = arith.constant 0 : index
    %125 = vector.load %arg6[%c0_52, %c0_53, %c0_54] : memref<4x32x32xf32, #tpu.memory_space<vmem>>, vector<1x32x32xf32>
    %126 = vector.shape_cast %125 : vector<1x32x32xf32> to vector<32x32xf32>
    %cst_55 = arith.constant dense<0.000000e+00> : vector<64x32xf32>
    %127 = tpu.matmul %88, %126, %cst_55 {dimension_numbers = #tpu.dot_dimension_numbers<[1], [0], [0], [1], [0, 0, 1, 1], [], []>} : vector<64x32xf32>, vector<32x32xf32>, vector<64x32xf32> -> vector<64x32xf32>
    %c1_56 = arith.constant 1 : index
    %c0_57 = arith.constant 0 : index
    %c0_58 = arith.constant 0 : index
    %128 = vector.load %arg6[%c1_56, %c0_57, %c0_58] : memref<4x32x32xf32, #tpu.memory_space<vmem>>, vector<1x32x32xf32>
    %129 = vector.shape_cast %128 : vector<1x32x32xf32> to vector<32x32xf32>
    %cst_59 = arith.constant dense<0.000000e+00> : vector<64x32xf32>
    %130 = tpu.matmul %120, %129, %cst_59 {dimension_numbers = #tpu.dot_dimension_numbers<[1], [0], [0], [1], [0, 0, 1, 1], [], []>} : vector<64x32xf32>, vector<32x32xf32>, vector<64x32xf32> -> vector<64x32xf32>
    %131 = arith.addf %127, %130 : vector<64x32xf32>
    %c2_60 = arith.constant 2 : index
    %c0_61 = arith.constant 0 : index
    %c0_62 = arith.constant 0 : index
    %132 = vector.load %arg6[%c2_60, %c0_61, %c0_62] : memref<4x32x32xf32, #tpu.memory_space<vmem>>, vector<1x32x32xf32>
    %133 = vector.shape_cast %132 : vector<1x32x32xf32> to vector<32x32xf32>
    %cst_63 = arith.constant dense<0.000000e+00> : vector<64x32xf32>
    %134 = tpu.matmul %124, %133, %cst_63 {dimension_numbers = #tpu.dot_dimension_numbers<[1], [0], [0], [1], [0, 0, 1, 1], [], []>} : vector<64x32xf32>, vector<32x32xf32>, vector<64x32xf32> -> vector<64x32xf32>
    %135 = arith.addf %131, %134 : vector<64x32xf32>
    %c3_64 = arith.constant 3 : index
    %c0_65 = arith.constant 0 : index
    %c0_66 = arith.constant 0 : index
    %136 = vector.load %arg6[%c3_64, %c0_65, %c0_66] : memref<4x32x32xf32, #tpu.memory_space<vmem>>, vector<1x32x32xf32>
    %137 = vector.shape_cast %136 : vector<1x32x32xf32> to vector<32x32xf32>
    %cst_67 = arith.constant dense<0.000000e+00> : vector<64x32xf32>
    %138 = tpu.matmul %96, %137, %cst_67 {dimension_numbers = #tpu.dot_dimension_numbers<[1], [0], [0], [1], [0, 0, 1, 1], [], []>} : vector<64x32xf32>, vector<32x32xf32>, vector<64x32xf32> -> vector<64x32xf32>
    %139 = arith.addf %135, %138 : vector<64x32xf32>
    %c0_68 = arith.constant 0 : index
    %c0_69 = arith.constant 0 : index
    %140 = vector.load %arg7[%c0_68, %c0_69] : memref<1x32xf32, #tpu.memory_space<vmem>>, vector<1x32xf32>
    %141 = vector.broadcast %140 : vector<1x32xf32> to vector<64x32xf32>
    %142 = arith.addf %139, %141 : vector<64x32xf32>
    %cst_70 = arith.constant 0.000000e+00 : f32
    %143 = vector.broadcast %cst_70 : f32 to vector<64x32xf32>
    %144 = arith.maximumf %142, %143 : vector<64x32xf32>
    %c0_71 = arith.constant 0 : index
    %c0_72 = arith.constant 0 : index
    %145 = vector.load %arg8[%c0_71, %c0_72] : memref<32x128xf32, #tpu.memory_space<vmem>>, vector<32x128xf32>
    %cst_73 = arith.constant dense<0.000000e+00> : vector<64x128xf32>
    %146 = tpu.matmul %144, %145, %cst_73 {dimension_numbers = #tpu.dot_dimension_numbers<[1], [0], [0], [1], [0, 0, 1, 1], [], []>} : vector<64x32xf32>, vector<32x128xf32>, vector<64x128xf32> -> vector<64x128xf32>
    %c0_74 = arith.constant 0 : index
    %c0_75 = arith.constant 0 : index
    %147 = vector.load %arg9[%c0_74, %c0_75] : memref<1x128xf32, #tpu.memory_space<vmem>>, vector<1x128xf32>
    %148 = vector.broadcast %147 : vector<1x128xf32> to vector<64x128xf32>
    %149 = arith.addf %146, %148 : vector<64x128xf32>
    %c0_76 = arith.constant 0 : index
    %c0_77 = arith.constant 0 : index
    %150 = vector.load %arg10[%c0_76, %c0_77] : memref<64x128xf32, #tpu.memory_space<vmem>>, vector<64x128xf32>
    tpu.vector_store %arg10[%c0_76, %c0_77], %149 {strides = array<i32>} : memref<64x128xf32, #tpu.memory_space<vmem>>, vector<64x128xf32>,
    return
  }
}

</mosaic_0001>

<llo_original>
// kernel: tpu_custom_call.1
$region0: #{tpu_custom_call.1}
  #allocation0 [shape = 'u32[]', space=smem, size = 0x4, offset = 0x4, fixed_abs, tag = 'smem constant byte address 0x4 - core index']
  #allocation1 [shape = 'u32[144,128]{1,0:T(1,128)}', space=vmem, size = 0x12000, scoped, tag = 'internal scratch']
  %s0 = inlined_call_operand.vmem [shape: f32[64,64], index: 0, kind: input, shape index: {}]
  %s1 = inlined_call_operand.vmem [shape: f32[64,16], index: 1, kind: input, shape index: {}]
  %s2 = inlined_call_operand.hbm [shape: f32[16,32], index: 2, kind: input, shape index: {}]
  %s3 = inlined_call_operand.vmem [shape: f32[1,32], index: 3, kind: input, shape index: {}]
  %s4 = inlined_call_operand.hbm [shape: f32[4,32,32], index: 4, kind: input, shape index: {}]
  %s5 = inlined_call_operand.vmem [shape: f32[1,32], index: 5, kind: input, shape index: {}]
  %s6 = inlined_call_operand.hbm [shape: f32[4,32,32], index: 6, kind: input, shape index: {}]
  %s7 = inlined_call_operand.vmem [shape: f32[1,32], index: 7, kind: input, shape index: {}]
  %s8 = inlined_call_operand.vmem [shape: f32[32,128], index: 8, kind: input, shape index: {}]
  %s9 = inlined_call_operand.vmem [shape: f32[1,128], index: 9, kind: input, shape index: {}]
  %s10 = inlined_call_operand.hbm [shape: f32[64,128], index: 10, kind: output, shape index: {}]
  %s11 = sld [smem:[#allocation0]]
  $region62: #{tpu_custom_call.1} parent=0
    _
  %s13 = ssub.s32 1, %s11
  %s14 = scalar_select 0, %s13, %s11
  $region1: #{tpu_custom_call.1} parent=0
    #allocation2 [shape = 'u8[8192]{0}', space=vmem, size = 0x2000, scoped, tag = 'input window, operand 2, single buffered']
    #allocation3 [shape = 's32[1]{0}', space=sflag, size = 0x4, scoped, tag = 'scoped memory for tpu_custom_call.1']
    #allocation4 [shape = 's32[1]{0}', space=sflag, size = 0x4, scoped, tag = 'scoped memory for tpu_custom_call.1']
    #allocation5 [shape = 'u8[65536]{0}', space=vmem, size = 0x10000, scoped, tag = 'input window, operand 4, single buffered']
    #allocation6 [shape = 's32[1]{0}', space=sflag, size = 0x4, scoped, tag = 'scoped memory for tpu_custom_call.1']
    #allocation7 [shape = 'u8[65536]{0}', space=vmem, size = 0x10000, scoped, tag = 'input window, operand 6, single buffered']
    #allocation8 [shape = 'u8[32768]{0}', space=vmem, size = 0x8000, scoped, tag = 'output window, operand 0, single buffered']
    %15 = vsyncpa [#allocation3], 0
    %16 = vsyncpa [#allocation6], 0
    %17 = vsyncpa [#allocation4], 0
    // Predicated region
    $region2: #{tpu_custom_call.1} parent=1 // pred_check
      _
    $region3: #{tpu_custom_call.1} parent=1 // pred_check_branch
      %19 = sbr.rel (0) target = $region5
    $region4: #{tpu_custom_call.1} parent=1 // pred_region
      _
    $region5: #{tpu_custom_call.1} parent=1 // pred_fallthru
      _
    // Predicated region
    $region6: #{tpu_custom_call.1} parent=1 // pred_check
      _
    $region7: #{tpu_custom_call.1} parent=1 // pred_check_branch
      %21 = sbr.rel (0) target = $region9
    $region8: #{tpu_custom_call.1} parent=1 // pred_region
      _
    $region9: #{tpu_custom_call.1} parent=1 // pred_fallthru
      _
    // Predicated region
    $region10: #{tpu_custom_call.1} parent=1 // pred_check
      _
    $region11: #{tpu_custom_call.1} parent=1 // pred_check_branch
      %23 = sbr.rel (0) target = $region13
    $region12: #{tpu_custom_call.1} parent=1 // pred_region
      %s25 = ssub.s32 256, 256
      %26 = vsyncadd [#allocation3], %s25
      %s27 = sshll.u32 [#allocation2], 4
      %s28 = int_to_ptr.vmem [resolvable:$true] %s27
      %33 = dma.hbm_to_vmem [thread:$0]  %s2, 256, %s28, [#allocation3], 128, 128, 8
    $region13: #{tpu_custom_call.1} parent=1 // pred_fallthru
      _
    // Predicated region
    $region14: #{tpu_custom_call.1} parent=1 // pred_check
      _
    $region15: #{tpu_custom_call.1} parent=1 // pred_check_branch
      %35 = sbr.rel (0) target = $region17
    $region16: #{tpu_custom_call.1} parent=1 // pred_region
      _
    $region17: #{tpu_custom_call.1} parent=1 // pred_fallthru
      _
    // Predicated region
    $region18: #{tpu_custom_call.1} parent=1 // pred_check
      _
    $region19: #{tpu_custom_call.1} parent=1 // pred_check_branch
      %37 = sbr.rel (0) target = $region21
    $region20: #{tpu_custom_call.1} parent=1 // pred_region
      %s39 = ssub.s32 2048, 2048
      %40 = vsyncadd [#allocation6], %s39
      %s41 = sshll.u32 [#allocation5], 4
      %s42 = int_to_ptr.vmem [resolvable:$true] %s41
      %47 = dma.hbm_to_vmem [thread:$0]  %s4, 2048, %s42, [#allocation6], 128, 128, 8
    $region21: #{tpu_custom_call.1} parent=1 // pred_fallthru
      _
    // Predicated region
    $region22: #{tpu_custom_call.1} parent=1 // pred_check
      _
    $region23: #{tpu_custom_call.1} parent=1 // pred_check_branch
      %49 = sbr.rel (0) target = $region25
    $region24: #{tpu_custom_call.1} parent=1 // pred_region
      _
    $region25: #{tpu_custom_call.1} parent=1 // pred_fallthru
      _
    // Predicated region
    $region26: #{tpu_custom_call.1} parent=1 // pred_check
      _
    $region27: #{tpu_custom_call.1} parent=1 // pred_check_branch
      %51 = sbr.rel (0) target = $region29
    $region28: #{tpu_custom_call.1} parent=1 // pred_region
      %s53 = ssub.s32 2048, 2048
      %54 = vsyncadd [#allocation6], %s53
      %s55 = sshll.u32 [#allocation7], 4
      %s56 = int_to_ptr.vmem [resolvable:$true] %s55
      %61 = dma.hbm_to_vmem [thread:$0]  %s6, 2048, %s56, [#allocation6], 128, 128, 8
    $region29: #{tpu_custom_call.1} parent=1 // pred_fallthru
      _
    // Predicated region
    $region30: #{tpu_custom_call.1} parent=1 // pred_check
      _
    $region31: #{tpu_custom_call.1} parent=1 // pred_check_branch
      %63 = sbr.rel (0) target = $region33
    $region32: #{tpu_custom_call.1} parent=1 // pred_region
      _
    $region33: #{tpu_custom_call.1} parent=1 // pred_fallthru
      _
    // Predicated region
    $region34: #{tpu_custom_call.1} parent=1 // pred_check
      _
    $region35: #{tpu_custom_call.1} parent=1 // pred_check_branch
      %65 = sbr.rel (0) target = $region37
    $region36: #{tpu_custom_call.1} parent=1 // pred_region
      _
    $region37: #{tpu_custom_call.1} parent=1 // pred_fallthru
      _
    // Predicated region
    $region38: #{tpu_custom_call.1} parent=1 // pred_check
      _
    $region39: #{tpu_custom_call.1} parent=1 // pred_check_branch
      %67 = sbr.rel (0) target = $region41
    $region40: #{tpu_custom_call.1} parent=1 // pred_region
      _
    $region41: #{tpu_custom_call.1} parent=1 // pred_fallthru
      _
    // Predicated region
    $region42: #{tpu_custom_call.1} parent=1 // pred_check
      _
    $region43: #{tpu_custom_call.1} parent=1 // pred_check_branch
      %69 = sbr.rel (0) target = $region45
    $region44: #{tpu_custom_call.1} parent=1 // pred_region
      %70 = dma.done [#allocation3], 256
    $region45: #{tpu_custom_call.1} parent=1 // pred_fallthru
      _
    // Predicated region
    $region46: #{tpu_custom_call.1} parent=1 // pred_check
      _
    $region47: #{tpu_custom_call.1} parent=1 // pred_check_branch
      %72 = sbr.rel (0) target = $region49
    $region48: #{tpu_custom_call.1} parent=1 // pred_region
      %73 = dma.done [#allocation6], 2048
    $region49: #{tpu_custom_call.1} parent=1 // pred_fallthru
      _
    // Predicated region
    $region50: #{tpu_custom_call.1} parent=1 // pred_check
      _
    $region51: #{tpu_custom_call.1} parent=1 // pred_check_branch
      %75 = sbr.rel (0) target = $region53
    $region52: #{tpu_custom_call.1} parent=1 // pred_region
      %76 = dma.done [#allocation6], 2048
    $region53: #{tpu_custom_call.1} parent=1 // pred_fallthru
      _
    %v77 = vld [vmem:[%s0] sm:$0xff]
    %v78 = vld [vmem:[%s0 + $0x8] sm:$0xff]
    %v79 = vld [vmem:[%s0 + $0x10] sm:$0xff]
    %v80 = vld [vmem:[%s0 + $0x18] sm:$0xff]
    %v81 = vld [vmem:[%s0 + $0x20] sm:$0xff]
    %v82 = vld [vmem:[%s0 + $0x28] sm:$0xff]
    %v83 = vld [vmem:[%s0 + $0x30] sm:$0xff]
    %v84 = vld [vmem:[%s0 + $0x38] sm:$0xff]
    %vm85 = vcmask 523264
    %v87 = vsel %vm85, %v77, 0
    %v90 = vsel %vm85, %v78, 0
    %v93 = vsel %vm85, %v79, 0
    %v96 = vsel %vm85, %v80, 0
    %v99 = vsel %vm85, %v81, 0
    %v102 = vsel %vm85, %v82, 0
    %v105 = vsel %vm85, %v83, 0
    %v108 = vsel %vm85, %v84, 0
    %110 = vmatprep.subr.mxu0 0.0
    %111 = vmatpush1.msra.mxu0 1.0
    %112 = vmatprep.subr.mxu0 0.0
    %113 = vmatpush1.msra.mxu0 1.0
    %114 = vmatprep.subr.mxu0 0.0
    %115 = vmatpush1.msra.mxu0 1.0
    %116 = vmatprep.subr.mxu0 0.0
    %117 = vmatpush1.msra.mxu0 1.0
    %118 = vmatprep.subr.mxu0 0.0
    %119 = vmatpush1.msra.mxu0 1.0
    %120 = vmatprep.subr.mxu0 0.0
    %121 = vmatpush1.msra.mxu0 1.0
    %122 = vmatprep.subr.mxu0 0.0
    %123 = vmatpush1.msra.mxu0 1.0
    %124 = vmatprep.subr.mxu0 0.0
    %125 = vmatpush1.msra.mxu0 1.0
    %126 = vmatprep.subr.mxu0 0.0
    %127 = vmatpush1.msra.mxu0 0.0
    %128 = vmatprep.subr.mxu0 0.0
    %129 = vmatpush1.msra.mxu0 0.0
    %130 = vmatprep.subr.mxu0 0.0
    %131 = vmatpush1.msra.mxu0 0.0
    %132 = vmatprep.subr.mxu0 0.0
    %133 = vmatpush1.msra.mxu0 0.0
    %134 = vmatprep.subr.mxu0 0.0
    %135 = vmatpush1.msra.mxu0 0.0
    %136 = vmatprep.subr.mxu0 0.0
    %137 = vmatpush1.msra.mxu0 0.0
    %138 = vmatprep.subr.mxu0 0.0
    %139 = vmatpush1.msra.mxu0 0.0
    %140 = vmatprep.subr.mxu0 0.0
    %141 = vmatpush1.msra.mxu0 0.0
    %142 = vmatprep.subr.mxu0 0.0
    %143 = vmatpush1.msra.mxu0 0.0
    %144 = vmatprep.subr.mxu0 0.0
    %145 = vmatpush1.msra.mxu0 0.0
    %146 = vmatprep.subr.mxu0 0.0
    %147 = vmatpush1.msra.mxu0 0.0
    %148 = vmatprep.subr.mxu0 0.0
    %149 = vmatpush1.msra.mxu0 0.0
    %150 = vmatprep.subr.mxu0 0.0
    %151 = vmatpush1.msra.mxu0 0.0
    %152 = vmatprep.subr.mxu0 0.0
    %153 = vmatpush1.msra.mxu0 0.0
    %154 = vmatprep.subr.mxu0 0.0
    %155 = vmatpush1.msra.mxu0 0.0
    %156 = vmatprep.subr.mxu0 0.0
    %157 = vmatpush1.msra.mxu0 0.0
    %158 = vmatprep.subr.mxu0 0.0
    %159 = vmatpush1.msra.mxu0 0.0
    %160 = vmatprep.subr.mxu0 0.0
    %161 = vmatpush1.msra.mxu0 0.0
    %162 = vmatprep.subr.mxu0 0.0
    %163 = vmatpush1.msra.mxu0 0.0
    %164 = vmatprep.subr.mxu0 0.0
    %165 = vmatpush1.msra.mxu0 0.0
    %166 = vmatprep.subr.mxu0 0.0
    %167 = vmatpush1.msra.mxu0 0.0
    %168 = vmatprep.subr.mxu0 0.0
    %169 = vmatpush1.msra.mxu0 0.0
    %170 = vmatprep.subr.mxu0 0.0
    %171 = vmatpush1.msra.mxu0 0.0
    %172 = vmatprep.subr.mxu0 0.0
    %173 = vmatpush1.msra.mxu0 0.0
    %174 = vmatprep.mubr.f32.mxu0 0.0
    %175 = vmatmul.mubr.f32.gmra.mrb[0].mxu0 %v87
    %v176 = vpop.f32.mrb[0].mxu0
    %v177 = vadd.f32 0.0, %v176
    %v178 = vpop.f32.mrb[0].mxu0
    %179 = vmatprep.mubr.f32.mxu0 0.0
    %180 = vmatmul.mubr.f32.gmra.mrb[0].mxu0 %v90
    %v181 = vpop.f32.mrb[0].mxu0
    %v182 = vadd.f32 0.0, %v181
    %v183 = vpop.f32.mrb[0].mxu0
    %184 = vmatprep.mubr.f32.mxu0 0.0
    %185 = vmatmul.mubr.f32.gmra.mrb[0].mxu0 %v93
    %v186 = vpop.f32.mrb[0].mxu0
    %v187 = vadd.f32 0.0, %v186
    %v188 = vpop.f32.mrb[0].mxu0
    %189 = vmatprep.mubr.f32.mxu0 0.0
    %190 = vmatmul.mubr.f32.gmra.mrb[0].mxu0 %v96
    %v191 = vpop.f32.mrb[0].mxu0
    %v192 = vadd.f32 0.0, %v191
    %v193 = vpop.f32.mrb[0].mxu0
    %194 = vmatprep.mubr.f32.mxu0 0.0
    %195 = vmatmul.mubr.f32.gmra.mrb[0].mxu0 %v99
    %v196 = vpop.f32.mrb[0].mxu0
    %v197 = vadd.f32 0.0, %v196
    %v198 = vpop.f32.mrb[0].mxu0
    %199 = vmatprep.mubr.f32.mxu0 0.0
    %200 = vmatmul.mubr.f32.gmra.mrb[0].mxu0 %v102
    %v201 = vpop.f32.mrb[0].mxu0
    %v202 = vadd.f32 0.0, %v201
    %v203 = vpop.f32.mrb[0].mxu0
    %204 = vmatprep.mubr.f32.mxu0 0.0
    %205 = vmatmul.mubr.f32.gmra.mrb[0].mxu0 %v105
    %v206 = vpop.f32.mrb[0].mxu0
    %v207 = vadd.f32 0.0, %v206
    %v208 = vpop.f32.mrb[0].mxu0
    %209 = vmatprep.mubr.f32.mxu0 0.0
    %210 = vmatmul.mubr.f32.gmra.mrb[0].mxu0 %v108
    %v211 = vpop.f32.mrb[0].mxu0
    %v212 = vadd.f32 0.0, %v211
    %v213 = vpop.f32.mrb[0].mxu0
    %214 = vdwg.mxu0
    %vm215 = vcmp.gt.f32.partialorder %v177, 0.0
    %vm216 = vcmp.gt.f32.partialorder %v182, 0.0
    %vm217 = vcmp.gt.f32.partialorder %v187, 0.0
    %vm218 = vcmp.gt.f32.partialorder %v192, 0.0
    %vm219 = vcmp.gt.f32.partialorder %v197, 0.0
    %vm220 = vcmp.gt.f32.partialorder %v202, 0.0
    %vm221 = vcmp.gt.f32.partialorder %v207, 0.0
    %vm222 = vcmp.gt.f32.partialorder %v212, 0.0
    %v223 = vmax.f32 %v177, 1.0
    %v224 = vmax.f32 %v182, 1.0
    %v225 = vmax.f32 %v187, 1.0
    %v226 = vmax.f32 %v192, 1.0
    %v227 = vmax.f32 %v197, 1.0
    %v228 = vmax.f32 %v202, 1.0
    %v229 = vmax.f32 %v207, 1.0
    %v230 = vmax.f32 %v212, 1.0
    %v231 = vrcp.pop %v223
    %v232 = vmul.f32 1.0, %v231
    %v233 = vrcp.pop %v224
    %v234 = vmul.f32 1.0, %v233
    %v235 = vrcp.pop %v225
    %v236 = vmul.f32 1.0, %v235
    %v237 = vrcp.pop %v226
    %v238 = vmul.f32 1.0, %v237
    %v239 = vrcp.pop %v227
    %v240 = vmul.f32 1.0, %v239
    %v241 = vrcp.pop %v228
    %v242 = vmul.f32 1.0, %v241
    %v243 = vrcp.pop %v229
    %v244 = vmul.f32 1.0, %v243
    %v245 = vrcp.pop %v230
    %v246 = vmul.f32 1.0, %v245
    %v247 = vsel %vm215, %v232, 0.0
    %v248 = vsel %vm216, %v234, 0.0
    %v249 = vsel %vm217, %v236, 0.0
    %v250 = vsel %vm218, %v238, 0.0
    %v251 = vsel %vm219, %v240, 0.0
    %v252 = vsel %vm220, %v242, 0.0
    %v253 = vsel %vm221, %v244, 0.0
    %v254 = vsel %vm222, %v246, 0.0
    %v255 = vcombine.high %v77, %v77
    %v257 = vunpack.c.l.s4 1966171168
    %v258 = vunpack.c.0.s8 %v257
    %v259 = vlaneseq
    %v260 = vshrl.u32 %v259, 7
    %v261 = vsub.s32 %v258, %v260
    %v262 = vrot.slane %v77, %v261
    %v264 = vunpack.c.l.s4 1966171168
    %v265 = vunpack.c.0.s8 %v264
    %v266 = vlaneseq
    %v267 = vshrl.u32 %v266, 7
    %v268 = vsub.s32 %v265, %v267
    %v269 = vrot.slane %v255, %v268
    %v270 = vcombine.high %v262, %v262
    %v271 = vcombine.high %v269, %v269
    %v273 = vunpack.c.l.s4 1966171168
    %v274 = vunpack.c.0.s8 %v273
    %v275 = vlaneseq
    %v276 = vshrl.u32 %v275, 7
    %v277 = vsub.s32 %v274, %v276
    %v278 = vrot.slane %v262, %v277
    %v280 = vunpack.c.l.s4 1966171168
    %v281 = vunpack.c.0.s8 %v280
    %v282 = vlaneseq
    %v283 = vshrl.u32 %v282, 7
    %v284 = vsub.s32 %v281, %v283
    %v285 = vrot.slane %v269, %v284
    %v287 = vunpack.c.l.s4 1966171168
    %v288 = vunpack.c.0.s8 %v287
    %v289 = vlaneseq
    %v290 = vshrl.u32 %v289, 7
    %v291 = vsub.s32 %v288, %v290
    %v292 = vrot.slane %v270, %v291
    %v294 = vunpack.c.l.s4 1966171168
    %v295 = vunpack.c.0.s8 %v294
    %v296 = vlaneseq
    %v297 = vshrl.u32 %v296, 7
    %v298 = vsub.s32 %v295, %v297
    %v299 = vrot.slane %v271, %v298
    %v300 = vcombine.high %v278, %v278
    %v301 = vcombine.high %v285, %v285
    %v302 = vcombine.high %v292, %v292
    %v303 = vcombine.high %v299, %v299
    %v304 = vcombine.high %v78, %v78
    %v306 = vunpack.c.l.s4 1966171168
    %v307 = vunpack.c.0.s8 %v306
    %v308 = vlaneseq
    %v309 = vshrl.u32 %v308, 7
    %v310 = vsub.s32 %v307, %v309
    %v311 = vrot.slane %v78, %v310
    %v313 = vunpack.c.l.s4 1966171168
    %v314 = vunpack.c.0.s8 %v313
    %v315 = vlaneseq
    %v316 = vshrl.u32 %v315, 7
    %v317 = vsub.s32 %v314, %v316
    %v318 = vrot.slane %v304, %v317
    %v319 = vcombine.high %v311, %v311
    %v320 = vcombine.high %v318, %v318
    %v322 = vunpack.c.l.s4 1966171168
    %v323 = vunpack.c.0.s8 %v322
    %v324 = vlaneseq
    %v325 = vshrl.u32 %v324, 7
    %v326 = vsub.s32 %v323, %v325
    %v327 = vrot.slane %v311, %v326
    %v329 = vunpack.c.l.s4 1966171168
    %v330 = vunpack.c.0.s8 %v329
    %v331 = vlaneseq
    %v332 = vshrl.u32 %v331, 7
    %v333 = vsub.s32 %v330, %v332
    %v334 = vrot.slane %v318, %v333
    %v336 = vunpack.c.l.s4 1966171168
    %v337 = vunpack.c.0.s8 %v336
    %v338 = vlaneseq
    %v339 = vshrl.u32 %v338, 7
    %v340 = vsub.s32 %v337, %v339
    %v341 = vrot.slane %v319, %v340
    %v343 = vunpack.c.l.s4 1966171168
    %v344 = vunpack.c.0.s8 %v343
    %v345 = vlaneseq
    %v346 = vshrl.u32 %v345, 7
    %v347 = vsub.s32 %v344, %v346
    %v348 = vrot.slane %v320, %v347
    %v349 = vcombine.high %v327, %v327
    %v350 = vcombine.high %v334, %v334
    %v351 = vcombine.high %v341, %v341
    %v352 = vcombine.high %v348, %v348
    %v353 = vcombine.high %v79, %v79
    %v355 = vunpack.c.l.s4 1966171168
    %v356 = vunpack.c.0.s8 %v355
    %v357 = vlaneseq
    %v358 = vshrl.u32 %v357, 7
    %v359 = vsub.s32 %v356, %v358
    %v360 = vrot.slane %v79, %v359
    %v362 = vunpack.c.l.s4 1966171168
    %v363 = vunpack.c.0.s8 %v362
    %v364 = vlaneseq
    %v365 = vshrl.u32 %v364, 7
    %v366 = vsub.s32 %v363, %v365
    %v367 = vrot.slane %v353, %v366
    %v368 = vcombine.high %v360, %v360
    %v369 = vcombine.high %v367, %v367
    %v371 = vunpack.c.l.s4 1966171168
    %v372 = vunpack.c.0.s8 %v371
    %v373 = vlaneseq
    %v374 = vshrl.u32 %v373, 7
    %v375 = vsub.s32 %v372, %v374
    %v376 = vrot.slane %v360, %v375
    %v378 = vunpack.c.l.s4 1966171168
    %v379 = vunpack.c.0.s8 %v378
    %v380 = vlaneseq
    %v381 = vshrl.u32 %v380, 7
    %v382 = vsub.s32 %v379, %v381
    %v383 = vrot.slane %v367, %v382
    %v385 = vunpack.c.l.s4 1966171168
    %v386 = vunpack.c.0.s8 %v385
    %v387 = vlaneseq
    %v388 = vshrl.u32 %v387, 7
    %v389 = vsub.s32 %v386, %v388
    %v390 = vrot.slane %v368, %v389
    %v392 = vunpack.c.l.s4 1966171168
    %v393 = vunpack.c.0.s8 %v392
    %v394 = vlaneseq
    %v395 = vshrl.u32 %v394, 7
    %v396 = vsub.s32 %v393, %v395
    %v397 = vrot.slane %v369, %v396
    %v398 = vcombine.high %v376, %v376
    %v399 = vcombine.high %v383, %v383
    %v400 = vcombine.high %v390, %v390
    %v401 = vcombine.high %v397, %v397
    %v402 = vcombine.high %v80, %v80
    %v404 = vunpack.c.l.s4 1966171168
    %v405 = vunpack.c.0.s8 %v404
    %v406 = vlaneseq
    %v407 = vshrl.u32 %v406, 7
    %v408 = vsub.s32 %v405, %v407
    %v409 = vrot.slane %v80, %v408
    %v411 = vunpack.c.l.s4 1966171168
    %v412 = vunpack.c.0.s8 %v411
    %v413 = vlaneseq
    %v414 = vshrl.u32 %v413, 7
    %v415 = vsub.s32 %v412, %v414
    %v416 = vrot.slane %v402, %v415
    %v417 = vcombine.high %v409, %v409
    %v418 = vcombine.high %v416, %v416
    %v420 = vunpack.c.l.s4 1966171168
    %v421 = vunpack.c.0.s8 %v420
    %v422 = vlaneseq
    %v423 = vshrl.u32 %v422, 7
    %v424 = vsub.s32 %v421, %v423
    %v425 = vrot.slane %v409, %v424
    %v427 = vunpack.c.l.s4 1966171168
    %v428 = vunpack.c.0.s8 %v427
    %v429 = vlaneseq
    %v430 = vshrl.u32 %v429, 7
    %v431 = vsub.s32 %v428, %v430
    %v432 = vrot.slane %v416, %v431
    %v434 = vunpack.c.l.s4 1966171168
    %v435 = vunpack.c.0.s8 %v434
    %v436 = vlaneseq
    %v437 = vshrl.u32 %v436, 7
    %v438 = vsub.s32 %v435, %v437
    %v439 = vrot.slane %v417, %v438
    %v441 = vunpack.c.l.s4 1966171168
    %v442 = vunpack.c.0.s8 %v441
    %v443 = vlaneseq
    %v444 = vshrl.u32 %v443, 7
    %v445 = vsub.s32 %v442, %v444
    %v446 = vrot.slane %v418, %v445
    %v447 = vcombine.high %v425, %v425
    %v448 = vcombine.high %v432, %v432
    %v449 = vcombine.high %v439, %v439
    %v450 = vcombine.high %v446, %v446
    %v451 = vcombine.high %v81, %v81
    %v453 = vunpack.c.l.s4 1966171168
    %v454 = vunpack.c.0.s8 %v453
    %v455 = vlaneseq
    %v456 = vshrl.u32 %v455, 7
    %v457 = vsub.s32 %v454, %v456
    %v458 = vrot.slane %v81, %v457
    %v460 = vunpack.c.l.s4 1966171168
    %v461 = vunpack.c.0.s8 %v460
    %v462 = vlaneseq
    %v463 = vshrl.u32 %v462, 7
    %v464 = vsub.s32 %v461, %v463
    %v465 = vrot.slane %v451, %v464
    %v466 = vcombine.high %v458, %v458
    %v467 = vcombine.high %v465, %v465
    %v469 = vunpack.c.l.s4 1966171168
    %v470 = vunpack.c.0.s8 %v469
    %v471 = vlaneseq
    %v472 = vshrl.u32 %v471, 7
    %v473 = vsub.s32 %v470, %v472
    %v474 = vrot.slane %v458, %v473
    %v476 = vunpack.c.l.s4 1966171168
    %v477 = vunpack.c.0.s8 %v476
    %v478 = vlaneseq
    %v479 = vshrl.u32 %v478, 7
    %v480 = vsub.s32 %v477, %v479
    %v481 = vrot.slane %v465, %v480
    %v483 = vunpack.c.l.s4 1966171168
    %v484 = vunpack.c.0.s8 %v483
    %v485 = vlaneseq
    %v486 = vshrl.u32 %v485, 7
    %v487 = vsub.s32 %v484, %v486
    %v488 = vrot.slane %v466, %v487
    %v490 = vunpack.c.l.s4 1966171168
    %v491 = vunpack.c.0.s8 %v490
    %v492 = vlaneseq
    %v493 = vshrl.u32 %v492, 7
    %v494 = vsub.s32 %v491, %v493
    %v495 = vrot.slane %v467, %v494
    %v496 = vcombine.high %v474, %v474
    %v497 = vcombine.high %v481, %v481
    %v498 = vcombine.high %v488, %v488
    %v499 = vcombine.high %v495, %v495
    %v500 = vcombine.high %v82, %v82
    %v502 = vunpack.c.l.s4 1966171168
    %v503 = vunpack.c.0.s8 %v502
    %v504 = vlaneseq
    %v505 = vshrl.u32 %v504, 7
    %v506 = vsub.s32 %v503, %v505
    %v507 = vrot.slane %v82, %v506
    %v509 = vunpack.c.l.s4 1966171168
    %v510 = vunpack.c.0.s8 %v509
    %v511 = vlaneseq
    %v512 = vshrl.u32 %v511, 7
    %v513 = vsub.s32 %v510, %v512
    %v514 = vrot.slane %v500, %v513
    %v515 = vcombine.high %v507, %v507
    %v516 = vcombine.high %v514, %v514
    %v518 = vunpack.c.l.s4 1966171168
    %v519 = vunpack.c.0.s8 %v518
    %v520 = vlaneseq
    %v521 = vshrl.u32 %v520, 7
    %v522 = vsub.s32 %v519, %v521
    %v523 = vrot.slane %v507, %v522
    %v525 = vunpack.c.l.s4 1966171168
    %v526 = vunpack.c.0.s8 %v525
    %v527 = vlaneseq
    %v528 = vshrl.u32 %v527, 7
    %v529 = vsub.s32 %v526, %v528
    %v530 = vrot.slane %v514, %v529
    %v532 = vunpack.c.l.s4 1966171168
    %v533 = vunpack.c.0.s8 %v532
    %v534 = vlaneseq
    %v535 = vshrl.u32 %v534, 7
    %v536 = vsub.s32 %v533, %v535
    %v537 = vrot.slane %v515, %v536
    %v539 = vunpack.c.l.s4 1966171168
    %v540 = vunpack.c.0.s8 %v539
    %v541 = vlaneseq
    %v542 = vshrl.u32 %v541, 7
    %v543 = vsub.s32 %v540, %v542
    %v544 = vrot.slane %v516, %v543
    %v545 = vcombine.high %v523, %v523
    %v546 = vcombine.high %v530, %v530
    %v547 = vcombine.high %v537, %v537
    %v548 = vcombine.high %v544, %v544
    %v549 = vcombine.high %v83, %v83
    %v551 = vunpack.c.l.s4 1966171168
    %v552 = vunpack.c.0.s8 %v551
    %v553 = vlaneseq
    %v554 = vshrl.u32 %v553, 7
    %v555 = vsub.s32 %v552, %v554
    %v556 = vrot.slane %v83, %v555
    %v558 = vunpack.c.l.s4 1966171168
    %v559 = vunpack.c.0.s8 %v558
    %v560 = vlaneseq
    %v561 = vshrl.u32 %v560, 7
    %v562 = vsub.s32 %v559, %v561
    %v563 = vrot.slane %v549, %v562
    %v564 = vcombine.high %v556, %v556
    %v565 = vcombine.high %v563, %v563
    %v567 = vunpack.c.l.s4 1966171168
    %v568 = vunpack.c.0.s8 %v567
    %v569 = vlaneseq
    %v570 = vshrl.u32 %v569, 7
    %v571 = vsub.s32 %v568, %v570
    %v572 = vrot.slane %v556, %v571
    %v574 = vunpack.c.l.s4 1966171168
    %v575 = vunpack.c.0.s8 %v574
    %v576 = vlaneseq
    %v577 = vshrl.u32 %v576, 7
    %v578 = vsub.s32 %v575, %v577
    %v579 = vrot.slane %v563, %v578
    %v581 = vunpack.c.l.s4 1966171168
    %v582 = vunpack.c.0.s8 %v581
    %v583 = vlaneseq
    %v584 = vshrl.u32 %v583, 7
    %v585 = vsub.s32 %v582, %v584
    %v586 = vrot.slane %v564, %v585
    %v588 = vunpack.c.l.s4 1966171168
    %v589 = vunpack.c.0.s8 %v588
    %v590 = vlaneseq
    %v591 = vshrl.u32 %v590, 7
    %v592 = vsub.s32 %v589, %v591
    %v593 = vrot.slane %v565, %v592
    %v594 = vcombine.high %v572, %v572
    %v595 = vcombine.high %v579, %v579
    %v596 = vcombine.high %v586, %v586
    %v597 = vcombine.high %v593, %v593
    %v598 = vcombine.high %v84, %v84
    %v600 = vunpack.c.l.s4 1966171168
    %v601 = vunpack.c.0.s8 %v600
    %v602 = vlaneseq
    %v603 = vshrl.u32 %v602, 7
    %v604 = vsub.s32 %v601, %v603
    %v605 = vrot.slane %v84, %v604
    %v607 = vunpack.c.l.s4 1966171168
    %v608 = vunpack.c.0.s8 %v607
    %v609 = vlaneseq
    %v610 = vshrl.u32 %v609, 7
    %v611 = vsub.s32 %v608, %v610
    %v612 = vrot.slane %v598, %v611
    %v613 = vcombine.high %v605, %v605
    %v614 = vcombine.high %v612, %v612
    %v616 = vunpack.c.l.s4 1966171168
    %v617 = vunpack.c.0.s8 %v616
    %v618 = vlaneseq
    %v619 = vshrl.u32 %v618, 7
    %v620 = vsub.s32 %v617, %v619
    %v621 = vrot.slane %v605, %v620
    %v623 = vunpack.c.l.s4 1966171168
    %v624 = vunpack.c.0.s8 %v623
    %v625 = vlaneseq
    %v626 = vshrl.u32 %v625, 7
    %v627 = vsub.s32 %v624, %v626
    %v628 = vrot.slane %v612, %v627
    %v630 = vunpack.c.l.s4 1966171168
    %v631 = vunpack.c.0.s8 %v630
    %v632 = vlaneseq
    %v633 = vshrl.u32 %v632, 7
    %v634 = vsub.s32 %v631, %v633
    %v635 = vrot.slane %v613, %v634
    %v637 = vunpack.c.l.s4 1966171168
    %v638 = vunpack.c.0.s8 %v637
    %v639 = vlaneseq
    %v640 = vshrl.u32 %v639, 7
    %v641 = vsub.s32 %v638, %v640
    %v642 = vrot.slane %v614, %v641
    %v643 = vcombine.high %v621, %v621
    %v644 = vcombine.high %v628, %v628
    %v645 = vcombine.high %v635, %v635
    %v646 = vcombine.high %v642, %v642
    %vm711 = vcmp.ne.f32.partialorder %v278, 0.0
    %vm712 = vcmp.ne.f32.partialorder %v292, 0.0
    %vm713 = vcmp.ne.f32.partialorder %v300, 0.0
    %vm714 = vcmp.ne.f32.partialorder %v302, 0.0
    %vm715 = vcmp.ne.f32.partialorder %v285, 0.0
    %vm716 = vcmp.ne.f32.partialorder %v299, 0.0
    %vm717 = vcmp.ne.f32.partialorder %v301, 0.0
    %vm718 = vcmp.ne.f32.partialorder %v303, 0.0
    %vm719 = vcmp.ne.f32.partialorder %v327, 0.0
    %vm720 = vcmp.ne.f32.partialorder %v341, 0.0
    %vm721 = vcmp.ne.f32.partialorder %v349, 0.0
    %vm722 = vcmp.ne.f32.partialorder %v351, 0.0
    %vm723 = vcmp.ne.f32.partialorder %v334, 0.0
    %vm724 = vcmp.ne.f32.partialorder %v348, 0.0
    %vm725 = vcmp.ne.f32.partialorder %v350, 0.0
    %vm726 = vcmp.ne.f32.partialorder %v352, 0.0
    %vm727 = vcmp.ne.f32.partialorder %v376, 0.0
    %vm728 = vcmp.ne.f32.partialorder %v390, 0.0
    %vm729 = vcmp.ne.f32.partialorder %v398, 0.0
    %vm730 = vcmp.ne.f32.partialorder %v400, 0.0
    %vm731 = vcmp.ne.f32.partialorder %v383, 0.0
    %vm732 = vcmp.ne.f32.partialorder %v397, 0.0
    %vm733 = vcmp.ne.f32.partialorder %v399, 0.0
    %vm734 = vcmp.ne.f32.partialorder %v401, 0.0
    %vm735 = vcmp.ne.f32.partialorder %v425, 0.0
    %vm736 = vcmp.ne.f32.partialorder %v439, 0.0
    %vm737 = vcmp.ne.f32.partialorder %v447, 0.0
    %vm738 = vcmp.ne.f32.partialorder %v449, 0.0
    %vm739 = vcmp.ne.f32.partialorder %v432, 0.0
    %vm740 = vcmp.ne.f32.partialorder %v446, 0.0
    %vm741 = vcmp.ne.f32.partialorder %v448, 0.0
    %vm742 = vcmp.ne.f32.partialorder %v450, 0.0
    %vm743 = vcmp.ne.f32.partialorder %v474, 0.0
    %vm744 = vcmp.ne.f32.partialorder %v488, 0.0
    %vm745 = vcmp.ne.f32.partialorder %v496, 0.0
    %vm746 = vcmp.ne.f32.partialorder %v498, 0.0
    %vm747 = vcmp.ne.f32.partialorder %v481, 0.0
    %vm748 = vcmp.ne.f32.partialorder %v495, 0.0
    %vm749 = vcmp.ne.f32.partialorder %v497, 0.0
    %vm750 = vcmp.ne.f32.partialorder %v499, 0.0
    %vm751 = vcmp.ne.f32.partialorder %v523, 0.0
    %vm752 = vcmp.ne.f32.partialorder %v537, 0.0
    %vm753 = vcmp.ne.f32.partialorder %v545, 0.0
    %vm754 = vcmp.ne.f32.partialorder %v547, 0.0
    %vm755 = vcmp.ne.f32.partialorder %v530, 0.0
    %vm756 = vcmp.ne.f32.partialorder %v544, 0.0
    %vm757 = vcmp.ne.f32.partialorder %v546, 0.0
    %vm758 = vcmp.ne.f32.partialorder %v548, 0.0
    %vm759 = vcmp.ne.f32.partialorder %v572, 0.0
    %vm760 = vcmp.ne.f32.partialorder %v586, 0.0
    %vm761 = vcmp.ne.f32.partialorder %v594, 0.0
    %vm762 = vcmp.ne.f32.partialorder %v596, 0.0
    %vm763 = vcmp.ne.f32.partialorder %v579, 0.0
    %vm764 = vcmp.ne.f32.partialorder %v593, 0.0
    %vm765 = vcmp.ne.f32.partialorder %v595, 0.0
    %vm766 = vcmp.ne.f32.partialorder %v597, 0.0
    %vm767 = vcmp.ne.f32.partialorder %v621, 0.0
    %vm768 = vcmp.ne.f32.partialorder %v635, 0.0
    %vm769 = vcmp.ne.f32.partialorder %v643, 0.0
    %vm770 = vcmp.ne.f32.partialorder %v645, 0.0
    %vm771 = vcmp.ne.f32.partialorder %v628, 0.0
    %vm772 = vcmp.ne.f32.partialorder %v642, 0.0
    %vm773 = vcmp.ne.f32.partialorder %v644, 0.0
    %vm774 = vcmp.ne.f32.partialorder %v646, 0.0
    %v775 = vld [vmem:[%s1] sm:$0xff]
    %v776 = vld [vmem:[%s1 + $0x8] sm:$0xff]
    %v777 = vld [vmem:[%s1 + $0x10] sm:$0xff]
    %v778 = vld [vmem:[%s1 + $0x18] sm:$0xff]
    %v779 = vld [vmem:[%s1 + $0x20] sm:$0xff]
    %v780 = vld [vmem:[%s1 + $0x28] sm:$0xff]
    %v781 = vld [vmem:[%s1 + $0x30] sm:$0xff]
    %v782 = vld [vmem:[%s1 + $0x38] sm:$0xff]
    %v783 = vld [vmem:[#allocation2] sm:$0xff]
    %v784 = vld [vmem:[#allocation2 + $0x8] sm:$0xff]
    %v785 = vld [vmem:[%s3] sm:$0x1]
    %v787 = vlaneseq
    %v788 = vshrl.u32 %v787, 7
    %v789 = vsub.s32 0, %v788
    %v790 = vrot.slane %v785, %v789
    %vm792 = vcmask 130048
    %v794 = vsel %vm792, %v775, 0
    %v797 = vsel %vm792, %v776, 0
    %v800 = vsel %vm792, %v777, 0
    %v803 = vsel %vm792, %v778, 0
    %v806 = vsel %vm792, %v779, 0
    %v809 = vsel %vm792, %v780, 0
    %v812 = vsel %vm792, %v781, 0
    %v815 = vsel %vm792, %v782, 0
    %817 = vmatprep.subr.mxu0 0.0
    %818 = vmatpush1.msra.mxu0 %v783
    %819 = vmatprep.subr.mxu0 0.0
    %820 = vmatpush1.msra.mxu0 %v784
    %821 = vmatprep.subr.mxu0 0.0
    %822 = vmatpush1.msra.mxu0 0.0
    %823 = vmatprep.subr.mxu0 0.0
    %824 = vmatpush1.msra.mxu0 0.0
    %825 = vmatprep.subr.mxu0 0.0
    %826 = vmatpush1.msra.mxu0 0.0
    %827 = vmatprep.subr.mxu0 0.0
    %828 = vmatpush1.msra.mxu0 0.0
    %829 = vmatprep.subr.mxu0 0.0
    %830 = vmatpush1.msra.mxu0 0.0
    %831 = vmatprep.subr.mxu0 0.0
    %832 = vmatpush1.msra.mxu0 0.0
    %833 = vmatprep.subr.mxu0 0.0
    %834 = vmatpush1.msra.mxu0 0.0
    %835 = vmatprep.subr.mxu0 0.0
    %836 = vmatpush1.msra.mxu0 0.0
    %837 = vmatprep.subr.mxu0 0.0
    %838 = vmatpush1.msra.mxu0 0.0
    %839 = vmatprep.subr.mxu0 0.0
    %840 = vmatpush1.msra.mxu0 0.0
    %841 = vmatprep.subr.mxu0 0.0
    %842 = vmatpush1.msra.mxu0 0.0
    %843 = vmatprep.subr.mxu0 0.0
    %844 = vmatpush1.msra.mxu0 0.0
    %845 = vmatprep.subr.mxu0 0.0
    %846 = vmatpush1.msra.mxu0 0.0
    %847 = vmatprep.subr.mxu0 0.0
    %848 = vmatpush1.msra.mxu0 0.0
    %849 = vmatprep.subr.mxu0 0.0
    %850 = vmatpush1.msra.mxu0 0.0
    %851 = vmatprep.subr.mxu0 0.0
    %852 = vmatpush1.msra.mxu0 0.0
    %853 = vmatprep.subr.mxu0 0.0
    %854 = vmatpush1.msra.mxu0 0.0
    %855 = vmatprep.subr.mxu0 0.0
    %856 = vmatpush1.msra.mxu0 0.0
    %857 = vmatprep.subr.mxu0 0.0
    %858 = vmatpush1.msra.mxu0 0.0
    %859 = vmatprep.subr.mxu0 0.0
    %860 = vmatpush1.msra.mxu0 0.0
    %861 = vmatprep.subr.mxu0 0.0
    %862 = vmatpush1.msra.mxu0 0.0
    %863 = vmatprep.subr.mxu0 0.0
    %864 = vmatpush1.msra.mxu0 0.0
    %865 = vmatprep.subr.mxu0 0.0
    %866 = vmatpush1.msra.mxu0 0.0
    %867 = vmatprep.subr.mxu0 0.0
    %868 = vmatpush1.msra.mxu0 0.0
    %869 = vmatprep.subr.mxu0 0.0
    %870 = vmatpush1.msra.mxu0 0.0
    %871 = vmatprep.subr.mxu0 0.0
    %872 = vmatpush1.msra.mxu0 0.0
    %873 = vmatprep.subr.mxu0 0.0
    %874 = vmatpush1.msra.mxu0 0.0
    %875 = vmatprep.subr.mxu0 0.0
    %876 = vmatpush1.msra.mxu0 0.0
    %877 = vmatprep.subr.mxu0 0.0
    %878 = vmatpush1.msra.mxu0 0.0
    %879 = vmatprep.subr.mxu0 0.0
    %880 = vmatpush1.msra.mxu0 0.0
    %881 = vmatprep.mubr.f32.mxu0 0.0
    %882 = vmatmul.mubr.f32.gmra.mrb[0].mxu0 %v794
    %v883 = vpop.f32.mrb[0].mxu0
    %v884 = vadd.f32 %v790, %v883
    %v885 = vpop.f32.mrb[0].mxu0
    %886 = vmatprep.mubr.f32.mxu0 0.0
    %887 = vmatmul.mubr.f32.gmra.mrb[0].mxu0 %v797
    %v888 = vpop.f32.mrb[0].mxu0
    %v889 = vadd.f32 %v790, %v888
    %v890 = vpop.f32.mrb[0].mxu0
    %891 = vmatprep.mubr.f32.mxu0 0.0
    %892 = vmatmul.mubr.f32.gmra.mrb[0].mxu0 %v800
    %v893 = vpop.f32.mrb[0].mxu0
    %v894 = vadd.f32 %v790, %v893
    %v895 = vpop.f32.mrb[0].mxu0
    %896 = vmatprep.mubr.f32.mxu0 0.0
    %897 = vmatmul.mubr.f32.gmra.mrb[0].mxu0 %v803
    %v898 = vpop.f32.mrb[0].mxu0
    %v899 = vadd.f32 %v790, %v898
    %v900 = vpop.f32.mrb[0].mxu0
    %901 = vmatprep.mubr.f32.mxu0 0.0
    %902 = vmatmul.mubr.f32.gmra.mrb[0].mxu0 %v806
    %v903 = vpop.f32.mrb[0].mxu0
    %v904 = vadd.f32 %v790, %v903
    %v905 = vpop.f32.mrb[0].mxu0
    %906 = vmatprep.mubr.f32.mxu0 0.0
    %907 = vmatmul.mubr.f32.gmra.mrb[0].mxu0 %v809
    %v908 = vpop.f32.mrb[0].mxu0
    %v909 = vadd.f32 %v790, %v908
    %v910 = vpop.f32.mrb[0].mxu0
    %911 = vmatprep.mubr.f32.mxu0 0.0
    %912 = vmatmul.mubr.f32.gmra.mrb[0].mxu0 %v812
    %v913 = vpop.f32.mrb[0].mxu0
    %v914 = vadd.f32 %v790, %v913
    %v915 = vpop.f32.mrb[0].mxu0
    %916 = vmatprep.mubr.f32.mxu0 0.0
    %917 = vmatmul.mubr.f32.gmra.mrb[0].mxu0 %v815
    %v918 = vpop.f32.mrb[0].mxu0
    %v919 = vadd.f32 %v790, %v918
    %v920 = vpop.f32.mrb[0].mxu0
    %921 = vdwg.mxu0
    %v922 = vmul.f32 %v884, %v884
    %v923 = vmul.f32 %v889, %v889
    %v924 = vmul.f32 %v894, %v894
    %v925 = vmul.f32 %v899, %v899
    %v926 = vmul.f32 %v904, %v904
    %v927 = vmul.f32 %v909, %v909
    %v928 = vmul.f32 %v914, %v914
    %v929 = vmul.f32 %v919, %v919
    %938 = vrot.lane.b32.xlu0 %v922, 32
    %v939 = vpop.permute.xlu0 %938
    %940 = vrot.lane.b32.xlu0 %v923, 32
    %v941 = vpop.permute.xlu0 %940
    %942 = vrot.lane.b32.xlu0 %v924, 32
    %v943 = vpop.permute.xlu0 %942
    %944 = vrot.lane.b32.xlu0 %v925, 32
    %v945 = vpop.permute.xlu0 %944
    %946 = vrot.lane.b32.xlu0 %v926, 32
    %v947 = vpop.permute.xlu0 %946
    %948 = vrot.lane.b32.xlu0 %v927, 32
    %v949 = vpop.permute.xlu0 %948
    %950 = vrot.lane.b32.xlu0 %v928, 32
    %v951 = vpop.permute.xlu0 %950
    %952 = vrot.lane.b32.xlu0 %v929, 32
    %v953 = vpop.permute.xlu0 %952
    %vm962 = vcmask 261120
    %v963 = vsel %vm962, %v884, %v939
    %v964 = vsel %vm962, %v889, %v941
    %v965 = vsel %vm962, %v894, %v943
    %v966 = vsel %vm962, %v899, %v945
    %v967 = vsel %vm962, %v904, %v947
    %v968 = vsel %vm962, %v909, %v949
    %v969 = vsel %vm962, %v914, %v951
    %v970 = vsel %vm962, %v919, %v953
    %971 = vmatprep.subr.mxu0 0.0
    %972 = vmatpush1.msra.mxu0 %v963
    %973 = vmatprep.subr.mxu0 0.0
    %974 = vmatpush1.msra.mxu0 %v964
    %975 = vmatprep.subr.mxu0 0.0
    %976 = vmatpush1.msra.mxu0 %v965
    %977 = vmatprep.subr.mxu0 0.0
    %978 = vmatpush1.msra.mxu0 %v966
    %979 = vmatprep.subr.mxu0 0.0
    %980 = vmatpush1.msra.mxu0 %v967
    %981 = vmatprep.subr.mxu0 0.0
    %982 = vmatpush1.msra.mxu0 %v968
    %983 = vmatprep.subr.mxu0 0.0
    %984 = vmatpush1.msra.mxu0 %v969
    %985 = vmatprep.subr.mxu0 0.0
    %986 = vmatpush1.msra.mxu0 %v970
    %987 = vmatprep.subr.mxu0 0.0
    %988 = vmatpush1.msra.mxu0 0.0
    %989 = vmatprep.subr.mxu0 0.0
    %990 = vmatpush1.msra.mxu0 0.0
    %991 = vmatprep.subr.mxu0 0.0
    %992 = vmatpush1.msra.mxu0 0.0
    %993 = vmatprep.subr.mxu0 0.0
    %994 = vmatpush1.msra.mxu0 0.0
    %995 = vmatprep.subr.mxu0 0.0
    %996 = vmatpush1.msra.mxu0 0.0
    %997 = vmatprep.subr.mxu0 0.0
    %998 = vmatpush1.msra.mxu0 0.0
    %999 = vmatprep.subr.mxu0 0.0
    %1000 = vmatpush1.msra.mxu0 0.0
    %1001 = vmatprep.subr.mxu0 0.0
    %1002 = vmatpush1.msra.mxu0 0.0
    %1003 = vmatprep.subr.mxu0 0.0
    %1004 = vmatpush1.msra.mxu0 0.0
    %1005 = vmatprep.subr.mxu0 0.0
    %1006 = vmatpush1.msra.mxu0 0.0
    %1007 = vmatprep.subr.mxu0 0.0
    %1008 = vmatpush1.msra.mxu0 0.0
    %1009 = vmatprep.subr.mxu0 0.0
    %1010 = vmatpush1.msra.mxu0 0.0
    %1011 = vmatprep.subr.mxu0 0.0
    %1012 = vmatpush1.msra.mxu0 0.0
    %1013 = vmatprep.subr.mxu0 0.0
    %1014 = vmatpush1.msra.mxu0 0.0
    %1015 = vmatprep.subr.mxu0 0.0
    %1016 = vmatpush1.msra.mxu0 0.0
    %1017 = vmatprep.subr.mxu0 0.0
    %1018 = vmatpush1.msra.mxu0 0.0
    %1019 = vmatprep.subr.mxu0 0.0
    %1020 = vmatpush1.msra.mxu0 0.0
    %1021 = vmatprep.subr.mxu0 0.0
    %1022 = vmatpush1.msra.mxu0 0.0
    %1023 = vmatprep.subr.mxu0 0.0
    %1024 = vmatpush1.msra.mxu0 0.0
    %1025 = vmatprep.subr.mxu0 0.0
    %1026 = vmatpush1.msra.mxu0 0.0
    %1027 = vmatprep.subr.mxu0 0.0
    %1028 = vmatpush1.msra.mxu0 0.0
    %1029 = vmatprep.subr.mxu0 0.0
    %1030 = vmatpush1.msra.mxu0 0.0
    %1031 = vmatprep.subr.mxu0 0.0
    %1032 = vmatpush1.msra.mxu0 0.0
    %1033 = vmatprep.subr.mxu0 0.0
    %1034 = vmatpush1.msra.mxu0 0.0
    %1035 = vmatprep.mubr.f32.mxu0 0.0
    %1036 = vmatmul.mubr.f32.gmra.mrb[0].mxu0 %v87
    %v1037 = vpop.f32.mrb[0].mxu0
    %v1038 = vadd.f32 0.0, %v1037
    %v1039 = vpop.f32.mrb[0].mxu0
    %1040 = vmatprep.mubr.f32.mxu0 0.0
    %1041 = vmatmul.mubr.f32.gmra.mrb[0].mxu0 %v90
    %v1042 = vpop.f32.mrb[0].mxu0
    %v1043 = vadd.f32 0.0, %v1042
    %v1044 = vpop.f32.mrb[0].mxu0
    %1045 = vmatprep.mubr.f32.mxu0 0.0
    %1046 = vmatmul.mubr.f32.gmra.mrb[0].mxu0 %v93
    %v1047 = vpop.f32.mrb[0].mxu0
    %v1048 = vadd.f32 0.0, %v1047
    %v1049 = vpop.f32.mrb[0].mxu0
    %1050 = vmatprep.mubr.f32.mxu0 0.0
    %1051 = vmatmul.mubr.f32.gmra.mrb[0].mxu0 %v96
    %v1052 = vpop.f32.mrb[0].mxu0
    %v1053 = vadd.f32 0.0, %v1052
    %v1054 = vpop.f32.mrb[0].mxu0
    %1055 = vmatprep.mubr.f32.mxu0 0.0
    %1056 = vmatmul.mubr.f32.gmra.mrb[0].mxu0 %v99
    %v1057 = vpop.f32.mrb[0].mxu0
    %v1058 = vadd.f32 0.0, %v1057
    %v1059 = vpop.f32.mrb[0].mxu0
    %1060 = vmatprep.mubr.f32.mxu0 0.0
    %1061 = vmatmul.mubr.f32.gmra.mrb[0].mxu0 %v102
    %v1062 = vpop.f32.mrb[0].mxu0
    %v1063 = vadd.f32 0.0, %v1062
    %v1064 = vpop.f32.mrb[0].mxu0
    %1065 = vmatprep.mubr.f32.mxu0 0.0
    %1066 = vmatmul.mubr.f32.gmra.mrb[0].mxu0 %v105
    %v1067 = vpop.f32.mrb[0].mxu0
    %v1068 = vadd.f32 0.0, %v1067
    %v1069 = vpop.f32.mrb[0].mxu0
    %1070 = vmatprep.mubr.f32.mxu0 0.0
    %1071 = vmatmul.mubr.f32.gmra.mrb[0].mxu0 %v108
    %v1072 = vpop.f32.mrb[0].mxu0
    %v1073 = vadd.f32 0.0, %v1072
    %v1074 = vpop.f32.mrb[0].mxu0
    %1075 = vdwg.mxu0
    %1077 = vset.pattern.permute.xlu0 0
    %1078 = vperm.xlu0 %1077, %v247
    %v1079 = vpop.permute.xlu0 %1078
    %1082 = vset.pattern.permute.xlu0 0
    %1083 = vperm.xlu0 %1082, %v248
    %v1084 = vpop.permute.xlu0 %1083
    %1087 = vset.pattern.permute.xlu0 0
    %1088 = vperm.xlu0 %1087, %v249
    %v1089 = vpop.permute.xlu0 %1088
    %1092 = vset.pattern.permute.xlu0 0
    %1093 = vperm.xlu0 %1092, %v250
    %v1094 = vpop.permute.xlu0 %1093
    %1097 = vset.pattern.permute.xlu0 0
    %1098 = vperm.xlu0 %1097, %v251
    %v1099 = vpop.permute.xlu0 %1098
    %1102 = vset.pattern.permute.xlu0 0
    %1103 = vperm.xlu0 %1102, %v252
    %v1104 = vpop.permute.xlu0 %1103
    %1107 = vset.pattern.permute.xlu0 0
    %1108 = vperm.xlu0 %1107, %v253
    %v1109 = vpop.permute.xlu0 %1108
    %1112 = vset.pattern.permute.xlu0 0
    %1113 = vperm.xlu0 %1112, %v254
    %v1114 = vpop.permute.xlu0 %1113
    %v1116 = vmul.f32 %v1038, %v1079
    %v1117 = vmul.f32 %v1043, %v1084
    %v1118 = vmul.f32 %v1048, %v1089
    %v1119 = vmul.f32 %v1053, %v1094
    %v1120 = vmul.f32 %v1058, %v1099
    %v1121 = vmul.f32 %v1063, %v1104
    %v1122 = vmul.f32 %v1068, %v1109
    %v1123 = vmul.f32 %v1073, %v1114
    %v1124 = vmul.f32 %v1116, %v1116
    %v1125 = vmul.f32 %v1117, %v1117
    %v1126 = vmul.f32 %v1118, %v1118
    %v1127 = vmul.f32 %v1119, %v1119
    %v1128 = vmul.f32 %v1120, %v1120
    %v1129 = vmul.f32 %v1121, %v1121
    %v1130 = vmul.f32 %v1122, %v1122
    %v1131 = vmul.f32 %v1123, %v1123
    %1140 = vrot.lane.b32.xlu0 %v1124, 32
    %v1141 = vpop.permute.xlu0 %1140
    %1142 = vrot.lane.b32.xlu0 %v1125, 32
    %v1143 = vpop.permute.xlu0 %1142
    %1144 = vrot.lane.b32.xlu0 %v1126, 32
    %v1145 = vpop.permute.xlu0 %1144
    %1146 = vrot.lane.b32.xlu0 %v1127, 32
    %v1147 = vpop.permute.xlu0 %1146
    %1148 = vrot.lane.b32.xlu0 %v1128, 32
    %v1149 = vpop.permute.xlu0 %1148
    %1150 = vrot.lane.b32.xlu0 %v1129, 32
    %v1151 = vpop.permute.xlu0 %1150
    %1152 = vrot.lane.b32.xlu0 %v1130, 32
    %v1153 = vpop.permute.xlu0 %1152
    %1154 = vrot.lane.b32.xlu0 %v1131, 32
    %v1155 = vpop.permute.xlu0 %1154
    %v1164 = vsub.f32 %v1116, %v1141
    %v1165 = vsub.f32 %v1117, %v1143
    %v1166 = vsub.f32 %v1118, %v1145
    %v1167 = vsub.f32 %v1119, %v1147
    %v1168 = vsub.f32 %v1120, %v1149
    %v1169 = vsub.f32 %v1121, %v1151
    %v1170 = vsub.f32 %v1122, %v1153
    %v1171 = vsub.f32 %v1123, %v1155
    %v1172 = vmax.f32 %v1164, 0.0
    %v1173 = vmax.f32 %v1165, 0.0
    %v1174 = vmax.f32 %v1166, 0.0
    %v1175 = vmax.f32 %v1167, 0.0
    %v1176 = vmax.f32 %v1168, 0.0
    %v1177 = vmax.f32 %v1169, 0.0
    %v1178 = vmax.f32 %v1170, 0.0
    %v1179 = vmax.f32 %v1171, 0.0
    %v1180 = vadd.f32 %v1172, 1e-05
    %v1181 = vadd.f32 %v1173, 1e-05
    %v1182 = vadd.f32 %v1174, 1e-05
    %v1183 = vadd.f32 %v1175, 1e-05
    %v1184 = vadd.f32 %v1176, 1e-05
    %v1185 = vadd.f32 %v1177, 1e-05
    %v1186 = vadd.f32 %v1178, 1e-05
    %v1187 = vadd.f32 %v1179, 1e-05
    %v1188 = vrsqrt.pop %v1180
    %v1189 = vmul.f32 %v1180, %v1188
    %vm1190 = vcmp.eq.f32.partialorder %v1180, inf
    %v1191 = vsel %vm1190, %v1180, %v1189
    %vm1192 = vcmp.eq.f32.partialorder %v1180, 0.0
    %v1193 = vand.u32 %v1180, 2147483648
    %v1194 = vsel %vm1192, %v1193, %v1191
    %v1195 = vrsqrt.pop %v1181
    %v1196 = vmul.f32 %v1181, %v1195
    %vm1197 = vcmp.eq.f32.partialorder %v1181, inf
    %v1198 = vsel %vm1197, %v1181, %v1196
    %vm1199 = vcmp.eq.f32.partialorder %v1181, 0.0
    %v1200 = vand.u32 %v1181, 2147483648
    %v1201 = vsel %vm1199, %v1200, %v1198
    %v1202 = vrsqrt.pop %v1182
    %v1203 = vmul.f32 %v1182, %v1202
    %vm1204 = vcmp.eq.f32.partialorder %v1182, inf
    %v1205 = vsel %vm1204, %v1182, %v1203
    %vm1206 = vcmp.eq.f32.partialorder %v1182, 0.0
    %v1207 = vand.u32 %v1182, 2147483648
    %v1208 = vsel %vm1206, %v1207, %v1205
    %v1209 = vrsqrt.pop %v1183
    %v1210 = vmul.f32 %v1183, %v1209
    %vm1211 = vcmp.eq.f32.partialorder %v1183, inf
    %v1212 = vsel %vm1211, %v1183, %v1210
    %vm1213 = vcmp.eq.f32.partialorder %v1183, 0.0
    %v1214 = vand.u32 %v1183, 2147483648
    %v1215 = vsel %vm1213, %v1214, %v1212
    %v1216 = vrsqrt.pop %v1184
    %v1217 = vmul.f32 %v1184, %v1216
    %vm1218 = vcmp.eq.f32.partialorder %v1184, inf
    %v1219 = vsel %vm1218, %v1184, %v1217
    %vm1220 = vcmp.eq.f32.partialorder %v1184, 0.0
    %v1221 = vand.u32 %v1184, 2147483648
    %v1222 = vsel %vm1220, %v1221, %v1219
    %v1223 = vrsqrt.pop %v1185
    %v1224 = vmul.f32 %v1185, %v1223
    %vm1225 = vcmp.eq.f32.partialorder %v1185, inf
    %v1226 = vsel %vm1225, %v1185, %v1224
    %vm1227 = vcmp.eq.f32.partialorder %v1185, 0.0
    %v1228 = vand.u32 %v1185, 2147483648
    %v1229 = vsel %vm1227, %v1228, %v1226
    %v1230 = vrsqrt.pop %v1186
    %v1231 = vmul.f32 %v1186, %v1230
    %vm1232 = vcmp.eq.f32.partialorder %v1186, inf
    %v1233 = vsel %vm1232, %v1186, %v1231
    %vm1234 = vcmp.eq.f32.partialorder %v1186, 0.0
    %v1235 = vand.u32 %v1186, 2147483648
    %v1236 = vsel %vm1234, %v1235, %v1233
    %v1237 = vrsqrt.pop %v1187
    %v1238 = vmul.f32 %v1187, %v1237
    %vm1239 = vcmp.eq.f32.partialorder %v1187, inf
    %v1240 = vsel %vm1239, %v1187, %v1238
    %vm1241 = vcmp.eq.f32.partialorder %v1187, 0.0
    %v1242 = vand.u32 %v1187, 2147483648
    %v1243 = vsel %vm1241, %v1242, %v1240
    %1244 = vxpose.xlu0.b32.start [1/16] %v884, 128
    %1245 = vxpose.xlu0.b32.cont [2/16] %v889, 128
    %1246 = vxpose.xlu0.b32.cont [3/16] %v894, 128
    %1247 = vxpose.xlu0.b32.cont [4/16] %v899, 128
    %1248 = vxpose.xlu0.b32.cont [5/16] %v904, 128
    %1249 = vxpose.xlu0.b32.cont [6/16] %v909, 128
    %1250 = vxpose.xlu0.b32.cont [7/16] %v914, 128
    %1251 = vxpose.xlu0.b32.cont [8/16] %v919, 128
    %1252 = vxpose.xlu0.b32.cont [9/16] 0.0, 128
    %1253 = vxpose.xlu0.b32.cont [10/16] 0.0, 128
    %1254 = vxpose.xlu0.b32.cont [11/16] 0.0, 128
    %1255 = vxpose.xlu0.b32.cont [12/16] 0.0, 128
    %1256 = vxpose.xlu0.b32.cont [13/16] 0.0, 128
    %1257 = vxpose.xlu0.b32.cont [14/16] 0.0, 128
    %1258 = vxpose.xlu0.b32.cont [15/16] 0.0, 128
    %1259 = vxpose.xlu0.b32.end [16/16] 0.0, 128
    %v1260 = vpop.trf.xlu0
    %v1261 = vpop.trf.xlu0
    %v1262 = vpop.trf.xlu0
    %v1263 = vpop.trf.xlu0
    %v1264 = vpop.trf.xlu0
    %v1265 = vpop.trf.xlu0
    %v1266 = vpop.trf.xlu0
    %v1267 = vpop.trf.xlu0
    %v1268 = vpop.trf.xlu0
    %v1269 = vpop.trf.xlu0
    %v1270 = vpop.trf.xlu0
    %v1271 = vpop.trf.xlu0
    %v1272 = vpop.trf.xlu0
    %v1273 = vpop.trf.xlu0
    %v1274 = vpop.trf.xlu0
    %v1275 = vpop.trf.xlu0
    %v1276 = vsel %vm711, 1, 0
    %v1277 = vsel %vm712, 1, 0
    %v1278 = vsel %vm713, 1, 0
    %v1279 = vsel %vm714, 1, 0
    %v1280 = vsel %vm715, 1, 0
    %v1281 = vsel %vm716, 1, 0
    %v1282 = vsel %vm717, 1, 0
    %v1283 = vsel %vm718, 1, 0
    %v1284 = vsel %vm719, 1, 0
    %v1285 = vsel %vm720, 1, 0
    %v1286 = vsel %vm721, 1, 0
    %v1287 = vsel %vm722, 1, 0
    %v1288 = vsel %vm723, 1, 0
    %v1289 = vsel %vm724, 1, 0
    %v1290 = vsel %vm725, 1, 0
    %v1291 = vsel %vm726, 1, 0
    %v1292 = vsel %vm727, 1, 0
    %v1293 = vsel %vm728, 1, 0
    %v1294 = vsel %vm729, 1, 0
    %v1295 = vsel %vm730, 1, 0
    %v1296 = vsel %vm731, 1, 0
    %v1297 = vsel %vm732, 1, 0
    %v1298 = vsel %vm733, 1, 0
    %v1299 = vsel %vm734, 1, 0
    %v1300 = vsel %vm735, 1, 0
    %v1301 = vsel %vm736, 1, 0
    %v1302 = vsel %vm737, 1, 0
    %v1303 = vsel %vm738, 1, 0
    %v1304 = vsel %vm739, 1, 0
    %v1305 = vsel %vm740, 1, 0
    %v1306 = vsel %vm741, 1, 0
    %v1307 = vsel %vm742, 1, 0
    %v1308 = vsel %vm743, 1, 0
    %v1309 = vsel %vm744, 1, 0
    %v1310 = vsel %vm745, 1, 0
    %v1311 = vsel %vm746, 1, 0
    %v1312 = vsel %vm747, 1, 0
    %v1313 = vsel %vm748, 1, 0
    %v1314 = vsel %vm749, 1, 0
    %v1315 = vsel %vm750, 1, 0
    %v1316 = vsel %vm751, 1, 0
    %v1317 = vsel %vm752, 1, 0
    %v1318 = vsel %vm753, 1, 0
    %v1319 = vsel %vm754, 1, 0
    %v1320 = vsel %vm755, 1, 0
    %v1321 = vsel %vm756, 1, 0
    %v1322 = vsel %vm757, 1, 0
    %v1323 = vsel %vm758, 1, 0
    %v1324 = vsel %vm759, 1, 0
    %v1325 = vsel %vm760, 1, 0
    %v1326 = vsel %vm761, 1, 0
    %v1327 = vsel %vm762, 1, 0
    %v1328 = vsel %vm763, 1, 0
    %v1329 = vsel %vm764, 1, 0
    %v1330 = vsel %vm765, 1, 0
    %v1331 = vsel %vm766, 1, 0
    %v1332 = vsel %vm767, 1, 0
    %v1333 = vsel %vm768, 1, 0
    %v1334 = vsel %vm769, 1, 0
    %v1335 = vsel %vm770, 1, 0
    %v1336 = vsel %vm771, 1, 0
    %v1337 = vsel %vm772, 1, 0
    %v1338 = vsel %vm773, 1, 0
    %v1339 = vsel %vm774, 1, 0
    %v1340 = vlaneseq
    %v1341 = vshrl.u32 %v1340, 7
    %v1342 = vsub.s32 0, %v1341
    %v1343 = vrot.slane %v1276, %v1342
    %v1344 = vlaneseq
    %v1345 = vshrl.u32 %v1344, 7
    %v1346 = vsub.s32 0, %v1345
    %v1347 = vrot.slane %v1277, %v1346
    %v1348 = vlaneseq
    %v1349 = vshrl.u32 %v1348, 7
    %v1350 = vsub.s32 0, %v1349
    %v1351 = vrot.slane %v1278, %v1350
    %v1352 = vlaneseq
    %v1353 = vshrl.u32 %v1352, 7
    %v1354 = vsub.s32 0, %v1353
    %v1355 = vrot.slane %v1279, %v1354
    %v1356 = vlaneseq
    %v1357 = vshrl.u32 %v1356, 7
    %v1358 = vsub.s32 0, %v1357
    %v1359 = vrot.slane %v1280, %v1358
    %v1360 = vlaneseq
    %v1361 = vshrl.u32 %v1360, 7
    %v1362 = vsub.s32 0, %v1361
    %v1363 = vrot.slane %v1281, %v1362
    %v1364 = vlaneseq
    %v1365 = vshrl.u32 %v1364, 7
    %v1366 = vsub.s32 0, %v1365
    %v1367 = vrot.slane %v1282, %v1366
    %v1368 = vlaneseq
    %v1369 = vshrl.u32 %v1368, 7
    %v1370 = vsub.s32 0, %v1369
    %v1371 = vrot.slane %v1283, %v1370
    %v1372 = vlaneseq
    %v1373 = vshrl.u32 %v1372, 7
    %v1374 = vsub.s32 0, %v1373
    %v1375 = vrot.slane %v1284, %v1374
    %v1376 = vlaneseq
    %v1377 = vshrl.u32 %v1376, 7
    %v1378 = vsub.s32 0, %v1377
    %v1379 = vrot.slane %v1285, %v1378
    %v1380 = vlaneseq
    %v1381 = vshrl.u32 %v1380, 7
    %v1382 = vsub.s32 0, %v1381
    %v1383 = vrot.slane %v1286, %v1382
    %v1384 = vlaneseq
    %v1385 = vshrl.u32 %v1384, 7
    %v1386 = vsub.s32 0, %v1385
    %v1387 = vrot.slane %v1287, %v1386
    %v1388 = vlaneseq
    %v1389 = vshrl.u32 %v1388, 7
    %v1390 = vsub.s32 0, %v1389
    %v1391 = vrot.slane %v1288, %v1390
    %v1392 = vlaneseq
    %v1393 = vshrl.u32 %v1392, 7
    %v1394 = vsub.s32 0, %v1393
    %v1395 = vrot.slane %v1289, %v1394
    %v1396 = vlaneseq
    %v1397 = vshrl.u32 %v1396, 7
    %v1398 = vsub.s32 0, %v1397
    %v1399 = vrot.slane %v1290, %v1398
    %v1400 = vlaneseq
    %v1401 = vshrl.u32 %v1400, 7
    %v1402 = vsub.s32 0, %v1401
    %v1403 = vrot.slane %v1291, %v1402
    %v1404 = vlaneseq
    %v1405 = vshrl.u32 %v1404, 7
    %v1406 = vsub.s32 0, %v1405
    %v1407 = vrot.slane %v1292, %v1406
    %v1408 = vlaneseq
    %v1409 = vshrl.u32 %v1408, 7
    %v1410 = vsub.s32 0, %v1409
    %v1411 = vrot.slane %v1293, %v1410
    %v1412 = vlaneseq
    %v1413 = vshrl.u32 %v1412, 7
    %v1414 = vsub.s32 0, %v1413
    %v1415 = vrot.slane %v1294, %v1414
    %v1416 = vlaneseq
    %v1417 = vshrl.u32 %v1416, 7
    %v1418 = vsub.s32 0, %v1417
    %v1419 = vrot.slane %v1295, %v1418
    %v1420 = vlaneseq
    %v1421 = vshrl.u32 %v1420, 7
    %v1422 = vsub.s32 0, %v1421
    %v1423 = vrot.slane %v1296, %v1422
    %v1424 = vlaneseq
    %v1425 = vshrl.u32 %v1424, 7
    %v1426 = vsub.s32 0, %v1425
    %v1427 = vrot.slane %v1297, %v1426
    %v1428 = vlaneseq
    %v1429 = vshrl.u32 %v1428, 7
    %v1430 = vsub.s32 0, %v1429
    %v1431 = vrot.slane %v1298, %v1430
    %v1432 = vlaneseq
    %v1433 = vshrl.u32 %v1432, 7
    %v1434 = vsub.s32 0, %v1433
    %v1435 = vrot.slane %v1299, %v1434
    %v1436 = vlaneseq
    %v1437 = vshrl.u32 %v1436, 7
    %v1438 = vsub.s32 0, %v1437
    %v1439 = vrot.slane %v1300, %v1438
    %v1440 = vlaneseq
    %v1441 = vshrl.u32 %v1440, 7
    %v1442 = vsub.s32 0, %v1441
    %v1443 = vrot.slane %v1301, %v1442
    %v1444 = vlaneseq
    %v1445 = vshrl.u32 %v1444, 7
    %v1446 = vsub.s32 0, %v1445
    %v1447 = vrot.slane %v1302, %v1446
    %v1448 = vlaneseq
    %v1449 = vshrl.u32 %v1448, 7
    %v1450 = vsub.s32 0, %v1449
    %v1451 = vrot.slane %v1303, %v1450
    %v1452 = vlaneseq
    %v1453 = vshrl.u32 %v1452, 7
    %v1454 = vsub.s32 0, %v1453
    %v1455 = vrot.slane %v1304, %v1454
    %v1456 = vlaneseq
    %v1457 = vshrl.u32 %v1456, 7
    %v1458 = vsub.s32 0, %v1457
    %v1459 = vrot.slane %v1305, %v1458
    %v1460 = vlaneseq
    %v1461 = vshrl.u32 %v1460, 7
    %v1462 = vsub.s32 0, %v1461
    %v1463 = vrot.slane %v1306, %v1462
    %v1464 = vlaneseq
    %v1465 = vshrl.u32 %v1464, 7
    %v1466 = vsub.s32 0, %v1465
    %v1467 = vrot.slane %v1307, %v1466
    %v1468 = vlaneseq
    %v1469 = vshrl.u32 %v1468, 7
    %v1470 = vsub.s32 0, %v1469
    %v1471 = vrot.slane %v1308, %v1470
    %v1472 = vlaneseq
    %v1473 = vshrl.u32 %v1472, 7
    %v1474 = vsub.s32 0, %v1473
    %v1475 = vrot.slane %v1309, %v1474
    %v1476 = vlaneseq
    %v1477 = vshrl.u32 %v1476, 7
    %v1478 = vsub.s32 0, %v1477
    %v1479 = vrot.slane %v1310, %v1478
    %v1480 = vlaneseq
    %v1481 = vshrl.u32 %v1480, 7
    %v1482 = vsub.s32 0, %v1481
    %v1483 = vrot.slane %v1311, %v1482
    %v1484 = vlaneseq
    %v1485 = vshrl.u32 %v1484, 7
    %v1486 = vsub.s32 0, %v1485
    %v1487 = vrot.slane %v1312, %v1486
    %v1488 = vlaneseq
    %v1489 = vshrl.u32 %v1488, 7
    %v1490 = vsub.s32 0, %v1489
    %v1491 = vrot.slane %v1313, %v1490
    %v1492 = vlaneseq
    %v1493 = vshrl.u32 %v1492, 7
    %v1494 = vsub.s32 0, %v1493
    %v1495 = vrot.slane %v1314, %v1494
    %v1496 = vlaneseq
    %v1497 = vshrl.u32 %v1496, 7
    %v1498 = vsub.s32 0, %v1497
    %v1499 = vrot.slane %v1315, %v1498
    %v1500 = vlaneseq
    %v1501 = vshrl.u32 %v1500, 7
    %v1502 = vsub.s32 0, %v1501
    %v1503 = vrot.slane %v1316, %v1502
    %v1504 = vlaneseq
    %v1505 = vshrl.u32 %v1504, 7
    %v1506 = vsub.s32 0, %v1505
    %v1507 = vrot.slane %v1317, %v1506
    %v1508 = vlaneseq
    %v1509 = vshrl.u32 %v1508, 7
    %v1510 = vsub.s32 0, %v1509
    %v1511 = vrot.slane %v1318, %v1510
    %v1512 = vlaneseq
    %v1513 = vshrl.u32 %v1512, 7
    %v1514 = vsub.s32 0, %v1513
    %v1515 = vrot.slane %v1319, %v1514
    %v1516 = vlaneseq
    %v1517 = vshrl.u32 %v1516, 7
    %v1518 = vsub.s32 0, %v1517
    %v1519 = vrot.slane %v1320, %v1518
    %v1520 = vlaneseq
    %v1521 = vshrl.u32 %v1520, 7
    %v1522 = vsub.s32 0, %v1521
    %v1523 = vrot.slane %v1321, %v1522
    %v1524 = vlaneseq
    %v1525 = vshrl.u32 %v1524, 7
    %v1526 = vsub.s32 0, %v1525
    %v1527 = vrot.slane %v1322, %v1526
    %v1528 = vlaneseq
    %v1529 = vshrl.u32 %v1528, 7
    %v1530 = vsub.s32 0, %v1529
    %v1531 = vrot.slane %v1323, %v1530
    %v1532 = vlaneseq
    %v1533 = vshrl.u32 %v1532, 7
    %v1534 = vsub.s32 0, %v1533
    %v1535 = vrot.slane %v1324, %v1534
    %v1536 = vlaneseq
    %v1537 = vshrl.u32 %v1536, 7
    %v1538 = vsub.s32 0, %v1537
    %v1539 = vrot.slane %v1325, %v1538
    %v1540 = vlaneseq
    %v1541 = vshrl.u32 %v1540, 7
    %v1542 = vsub.s32 0, %v1541
    %v1543 = vrot.slane %v1326, %v1542
    %v1544 = vlaneseq
    %v1545 = vshrl.u32 %v1544, 7
    %v1546 = vsub.s32 0, %v1545
    %v1547 = vrot.slane %v1327, %v1546
    %v1548 = vlaneseq
    %v1549 = vshrl.u32 %v1548, 7
    %v1550 = vsub.s32 0, %v1549
    %v1551 = vrot.slane %v1328, %v1550
    %v1552 = vlaneseq
    %v1553 = vshrl.u32 %v1552, 7
    %v1554 = vsub.s32 0, %v1553
    %v1555 = vrot.slane %v1329, %v1554
    %v1556 = vlaneseq
    %v1557 = vshrl.u32 %v1556, 7
    %v1558 = vsub.s32 0, %v1557
    %v1559 = vrot.slane %v1330, %v1558
    %v1560 = vlaneseq
    %v1561 = vshrl.u32 %v1560, 7
    %v1562 = vsub.s32 0, %v1561
    %v1563 = vrot.slane %v1331, %v1562
    %v1564 = vlaneseq
    %v1565 = vshrl.u32 %v1564, 7
    %v1566 = vsub.s32 0, %v1565
    %v1567 = vrot.slane %v1332, %v1566
    %v1568 = vlaneseq
    %v1569 = vshrl.u32 %v1568, 7
    %v1570 = vsub.s32 0, %v1569
    %v1571 = vrot.slane %v1333, %v1570
    %v1572 = vlaneseq
    %v1573 = vshrl.u32 %v1572, 7
    %v1574 = vsub.s32 0, %v1573
    %v1575 = vrot.slane %v1334, %v1574
    %v1576 = vlaneseq
    %v1577 = vshrl.u32 %v1576, 7
    %v1578 = vsub.s32 0, %v1577
    %v1579 = vrot.slane %v1335, %v1578
    %v1580 = vlaneseq
    %v1581 = vshrl.u32 %v1580, 7
    %v1582 = vsub.s32 0, %v1581
    %v1583 = vrot.slane %v1336, %v1582
    %v1584 = vlaneseq
    %v1585 = vshrl.u32 %v1584, 7
    %v1586 = vsub.s32 0, %v1585
    %v1587 = vrot.slane %v1337, %v1586
    %v1588 = vlaneseq
    %v1589 = vshrl.u32 %v1588, 7
    %v1590 = vsub.s32 0, %v1589
    %v1591 = vrot.slane %v1338, %v1590
    %v1592 = vlaneseq
    %v1593 = vshrl.u32 %v1592, 7
    %v1594 = vsub.s32 0, %v1593
    %v1595 = vrot.slane %v1339, %v1594
    %vm1596 = vcmp.eq.s32.totalorder %v1343, 1
    %vm1597 = vcmp.eq.s32.totalorder %v1347, 1
    %vm1598 = vcmp.eq.s32.totalorder %v1351, 1
    %vm1599 = vcmp.eq.s32.totalorder %v1355, 1
    %vm1600 = vcmp.eq.s32.totalorder %v1359, 1
    %vm1601 = vcmp.eq.s32.totalorder %v1363, 1
    %vm1602 = vcmp.eq.s32.totalorder %v1367, 1
    %vm1603 = vcmp.eq.s32.totalorder %v1371, 1
    %vm1604 = vcmp.eq.s32.totalorder %v1375, 1
    %vm1605 = vcmp.eq.s32.totalorder %v1379, 1
    %vm1606 = vcmp.eq.s32.totalorder %v1383, 1
    %vm1607 = vcmp.eq.s32.totalorder %v1387, 1
    %vm1608 = vcmp.eq.s32.totalorder %v1391, 1
    %vm1609 = vcmp.eq.s32.totalorder %v1395, 1
    %vm1610 = vcmp.eq.s32.totalorder %v1399, 1
    %vm1611 = vcmp.eq.s32.totalorder %v1403, 1
    %vm1612 = vcmp.eq.s32.totalorder %v1407, 1
    %vm1613 = vcmp.eq.s32.totalorder %v1411, 1
    %vm1614 = vcmp.eq.s32.totalorder %v1415, 1
    %vm1615 = vcmp.eq.s32.totalorder %v1419, 1
    %vm1616 = vcmp.eq.s32.totalorder %v1423, 1
    %vm1617 = vcmp.eq.s32.totalorder %v1427, 1
    %vm1618 = vcmp.eq.s32.totalorder %v1431, 1
    %vm1619 = vcmp.eq.s32.totalorder %v1435, 1
    %vm1620 = vcmp.eq.s32.totalorder %v1439, 1
    %vm1621 = vcmp.eq.s32.totalorder %v1443, 1
    %vm1622 = vcmp.eq.s32.totalorder %v1447, 1
    %vm1623 = vcmp.eq.s32.totalorder %v1451, 1
    %vm1624 = vcmp.eq.s32.totalorder %v1455, 1
    %vm1625 = vcmp.eq.s32.totalorder %v1459, 1
    %vm1626 = vcmp.eq.s32.totalorder %v1463, 1
    %vm1627 = vcmp.eq.s32.totalorder %v1467, 1
    %vm1628 = vcmp.eq.s32.totalorder %v1471, 1
    %vm1629 = vcmp.eq.s32.totalorder %v1475, 1
    %vm1630 = vcmp.eq.s32.totalorder %v1479, 1
    %vm1631 = vcmp.eq.s32.totalorder %v1483, 1
    %vm1632 = vcmp.eq.s32.totalorder %v1487, 1
    %vm1633 = vcmp.eq.s32.totalorder %v1491, 1
    %vm1634 = vcmp.eq.s32.totalorder %v1495, 1
    %vm1635 = vcmp.eq.s32.totalorder %v1499, 1
    %vm1636 = vcmp.eq.s32.totalorder %v1503, 1
    %vm1637 = vcmp.eq.s32.totalorder %v1507, 1
    %vm1638 = vcmp.eq.s32.totalorder %v1511, 1
    %vm1639 = vcmp.eq.s32.totalorder %v1515, 1
    %vm1640 = vcmp.eq.s32.totalorder %v1519, 1
    %vm1641 = vcmp.eq.s32.totalorder %v1523, 1
    %vm1642 = vcmp.eq.s32.totalorder %v1527, 1
    %vm1643 = vcmp.eq.s32.totalorder %v1531, 1
    %vm1644 = vcmp.eq.s32.totalorder %v1535, 1
    %vm1645 = vcmp.eq.s32.totalorder %v1539, 1
    %vm1646 = vcmp.eq.s32.totalorder %v1543, 1
    %vm1647 = vcmp.eq.s32.totalorder %v1547, 1
    %vm1648 = vcmp.eq.s32.totalorder %v1551, 1
    %vm1649 = vcmp.eq.s32.totalorder %v1555, 1
    %vm1650 = vcmp.eq.s32.totalorder %v1559, 1
    %vm1651 = vcmp.eq.s32.totalorder %v1563, 1
    %vm1652 = vcmp.eq.s32.totalorder %v1567, 1
    %vm1653 = vcmp.eq.s32.totalorder %v1571, 1
    %vm1654 = vcmp.eq.s32.totalorder %v1575, 1
    %vm1655 = vcmp.eq.s32.totalorder %v1579, 1
    %vm1656 = vcmp.eq.s32.totalorder %v1583, 1
    %vm1657 = vcmp.eq.s32.totalorder %v1587, 1
    %vm1658 = vcmp.eq.s32.totalorder %v1591, 1
    %vm1659 = vcmp.eq.s32.totalorder %v1595, 1
    %v1660 = vsel %vm1596, %v1260, -inf
    %v1661 = vsel %vm1596, %v1261, -inf
    %v1662 = vsel %vm1596, %v1262, -inf
    %v1663 = vsel %vm1596, %v1263, -inf
    %v1664 = vsel %vm1597, %v1260, -inf
    %v1665 = vsel %vm1597, %v1261, -inf
    %v1666 = vsel %vm1597, %v1262, -inf
    %v1667 = vsel %vm1597, %v1263, -inf
    %v1668 = vsel %vm1598, %v1260, -inf
    %v1669 = vsel %vm1598, %v1261, -inf
    %v1670 = vsel %vm1598, %v1262, -inf
    %v1671 = vsel %vm1598, %v1263, -inf
    %v1672 = vsel %vm1599, %v1260, -inf
    %v1673 = vsel %vm1599, %v1261, -inf
    %v1674 = vsel %vm1599, %v1262, -inf
    %v1675 = vsel %vm1599, %v1263, -inf
    %v1676 = vsel %vm1600, %v1260, -inf
    %v1677 = vsel %vm1600, %v1261, -inf
    %v1678 = vsel %vm1600, %v1262, -inf
    %v1679 = vsel %vm1600, %v1263, -inf
    %v1680 = vsel %vm1601, %v1260, -inf
    %v1681 = vsel %vm1601, %v1261, -inf
    %v1682 = vsel %vm1601, %v1262, -inf
    %v1683 = vsel %vm1601, %v1263, -inf
    %v1684 = vsel %vm1602, %v1260, -inf
    %v1685 = vsel %vm1602, %v1261, -inf
    %v1686 = vsel %vm1602, %v1262, -inf
    %v1687 = vsel %vm1602, %v1263, -inf
    %v1688 = vsel %vm1603, %v1260, -inf
    %v1689 = vsel %vm1603, %v1261, -inf
    %v1690 = vsel %vm1603, %v1262, -inf
    %v1691 = vsel %vm1603, %v1263, -inf
    %v1692 = vsel %vm1604, %v1260, -inf
    %v1693 = vsel %vm1604, %v1261, -inf
    %v1694 = vsel %vm1604, %v1262, -inf
    %v1695 = vsel %vm1604, %v1263, -inf
    %v1696 = vsel %vm1605, %v1260, -inf
    %v1697 = vsel %vm1605, %v1261, -inf
    %v1698 = vsel %vm1605, %v1262, -inf
    %v1699 = vsel %vm1605, %v1263, -inf
    %v1700 = vsel %vm1606, %v1260, -inf
    %v1701 = vsel %vm1606, %v1261, -inf
    %v1702 = vsel %vm1606, %v1262, -inf
    %v1703 = vsel %vm1606, %v1263, -inf
    %v1704 = vsel %vm1607, %v1260, -inf
    %v1705 = vsel %vm1607, %v1261, -inf
    %v1706 = vsel %vm1607, %v1262, -inf
    %v1707 = vsel %vm1607, %v1263, -inf
    %v1708 = vsel %vm1608, %v1260, -inf
    %v1709 = vsel %vm1608, %v1261, -inf
    %v1710 = vsel %vm1608, %v1262, -inf
    %v1711 = vsel %vm1608, %v1263, -inf
    %v1712 = vsel %vm1609, %v1260, -inf
    %v1713 = vsel %vm1609, %v1261, -inf
    %v1714 = vsel %vm1609, %v1262, -inf
    %v1715 = vsel %vm1609, %v1263, -inf
    %v1716 = vsel %vm1610, %v1260, -inf
    %v1717 = vsel %vm1610, %v1261, -inf
    %v1718 = vsel %vm1610, %v1262, -inf
    %v1719 = vsel %vm1610, %v1263, -inf
    %v1720 = vsel %vm1611, %v1260, -inf
    %v1721 = vsel %vm1611, %v1261, -inf
    %v1722 = vsel %vm1611, %v1262, -inf
    %v1723 = vsel %vm1611, %v1263, -inf
    %v1724 = vsel %vm1612, %v1260, -inf
    %v1725 = vsel %vm1612, %v1261, -inf
    %v1726 = vsel %vm1612, %v1262, -inf
    %v1727 = vsel %vm1612, %v1263, -inf
    %v1728 = vsel %vm1613, %v1260, -inf
    %v1729 = vsel %vm1613, %v1261, -inf
    %v1730 = vsel %vm1613, %v1262, -inf
    %v1731 = vsel %vm1613, %v1263, -inf
    %v1732 = vsel %vm1614, %v1260, -inf
    %v1733 = vsel %vm1614, %v1261, -inf
    %v1734 = vsel %vm1614, %v1262, -inf
    %v1735 = vsel %vm1614, %v1263, -inf
    %v1736 = vsel %vm1615, %v1260, -inf
    %v1737 = vsel %vm1615, %v1261, -inf
    %v1738 = vsel %vm1615, %v1262, -inf
    %v1739 = vsel %vm1615, %v1263, -inf
    %v1740 = vsel %vm1616, %v1260, -inf
    %v1741 = vsel %vm1616, %v1261, -inf
    %v1742 = vsel %vm1616, %v1262, -inf
    %v1743 = vsel %vm1616, %v1263, -inf
    %v1744 = vsel %vm1617, %v1260, -inf
    %v1745 = vsel %vm1617, %v1261, -inf
    %v1746 = vsel %vm1617, %v1262, -inf
    %v1747 = vsel %vm1617, %v1263, -inf
    %v1748 = vsel %vm1618, %v1260, -inf
    %v1749 = vsel %vm1618, %v1261, -inf
    %v1750 = vsel %vm1618, %v1262, -inf
    %v1751 = vsel %vm1618, %v1263, -inf
    %v1752 = vsel %vm1619, %v1260, -inf
    %v1753 = vsel %vm1619, %v1261, -inf
    %v1754 = vsel %vm1619, %v1262, -inf
    %v1755 = vsel %vm1619, %v1263, -inf
    %v1756 = vsel %vm1620, %v1260, -inf
    %v1757 = vsel %vm1620, %v1261, -inf
    %v1758 = vsel %vm1620, %v1262, -inf
    %v1759 = vsel %vm1620, %v1263, -inf
    %v1760 = vsel %vm1621, %v1260, -inf
    %v1761 = vsel %vm1621, %v1261, -inf
    %v1762 = vsel %vm1621, %v1262, -inf
    %v1763 = vsel %vm1621, %v1263, -inf
    %v1764 = vsel %vm1622, %v1260, -inf
    %v1765 = vsel %vm1622, %v1261, -inf
    %v1766 = vsel %vm1622, %v1262, -inf
    %v1767 = vsel %vm1622, %v1263, -inf
    %v1768 = vsel %vm1623, %v1260, -inf
    %v1769 = vsel %vm1623, %v1261, -inf
    %v1770 = vsel %vm1623, %v1262, -inf
    %v1771 = vsel %vm1623, %v1263, -inf
    %v1772 = vsel %vm1624, %v1260, -inf
    %v1773 = vsel %vm1624, %v1261, -inf
    %v1774 = vsel %vm1624, %v1262, -inf
    %v1775 = vsel %vm1624, %v1263, -inf
    %v1776 = vsel %vm1625, %v1260, -inf
    %v1777 = vsel %vm1625, %v1261, -inf
    %v1778 = vsel %vm1625, %v1262, -inf
    %v1779 = vsel %vm1625, %v1263, -inf
    %v1780 = vsel %vm1626, %v1260, -inf
    %v1781 = vsel %vm1626, %v1261, -inf
    %v1782 = vsel %vm1626, %v1262, -inf
    %v1783 = vsel %vm1626, %v1263, -inf
    %v1784 = vsel %vm1627, %v1260, -inf
    %v1785 = vsel %vm1627, %v1261, -inf
    %v1786 = vsel %vm1627, %v1262, -inf
    %v1787 = vsel %vm1627, %v1263, -inf
    %v1788 = vsel %vm1628, %v1260, -inf
    %v1789 = vsel %vm1628, %v1261, -inf
    %v1790 = vsel %vm1628, %v1262, -inf
    %v1791 = vsel %vm1628, %v1263, -inf
    %v1792 = vsel %vm1629, %v1260, -inf
    %v1793 = vsel %vm1629, %v1261, -inf
    %v1794 = vsel %vm1629, %v1262, -inf
    %v1795 = vsel %vm1629, %v1263, -inf
    %v1796 = vsel %vm1630, %v1260, -inf
    %v1797 = vsel %vm1630, %v1261, -inf
    %v1798 = vsel %vm1630, %v1262, -inf
    %v1799 = vsel %vm1630, %v1263, -inf
    %v1800 = vsel %vm1631, %v1260, -inf
    %v1801 = vsel %vm1631, %v1261, -inf
    %v1802 = vsel %vm1631, %v1262, -inf
    %v1803 = vsel %vm1631, %v1263, -inf
    %v1804 = vsel %vm1632, %v1260, -inf
    %v1805 = vsel %vm1632, %v1261, -inf
    %v1806 = vsel %vm1632, %v1262, -inf
    %v1807 = vsel %vm1632, %v1263, -inf
    %v1808 = vsel %vm1633, %v1260, -inf
    %v1809 = vsel %vm1633, %v1261, -inf
    %v1810 = vsel %vm1633, %v1262, -inf
    %v1811 = vsel %vm1633, %v1263, -inf
    %v1812 = vsel %vm1634, %v1260, -inf
    %v1813 = vsel %vm1634, %v1261, -inf
    %v1814 = vsel %vm1634, %v1262, -inf
    %v1815 = vsel %vm1634, %v1263, -inf
    %v1816 = vsel %vm1635, %v1260, -inf
    %v1817 = vsel %vm1635, %v1261, -inf
    %v1818 = vsel %vm1635, %v1262, -inf
    %v1819 = vsel %vm1635, %v1263, -inf
    %v1820 = vsel %vm1636, %v1260, -inf
    %v1821 = vsel %vm1636, %v1261, -inf
    %v1822 = vsel %vm1636, %v1262, -inf
    %v1823 = vsel %vm1636, %v1263, -inf
    %v1824 = vsel %vm1637, %v1260, -inf
    %v1825 = vsel %vm1637, %v1261, -inf
    %v1826 = vsel %vm1637, %v1262, -inf
    %v1827 = vsel %vm1637, %v1263, -inf
    %v1828 = vsel %vm1638, %v1260, -inf
    %v1829 = vsel %vm1638, %v1261, -inf
    %v1830 = vsel %vm1638, %v1262, -inf
    %v1831 = vsel %vm1638, %v1263, -inf
    %v1832 = vsel %vm1639, %v1260, -inf
    %v1833 = vsel %vm1639, %v1261, -inf
    %v1834 = vsel %vm1639, %v1262, -inf
    %v1835 = vsel %vm1639, %v1263, -inf
    %v1836 = vsel %vm1640, %v1260, -inf
    %v1837 = vsel %vm1640, %v1261, -inf
    %v1838 = vsel %vm1640, %v1262, -inf
    %v1839 = vsel %vm1640, %v1263, -inf
    %v1840 = vsel %vm1641, %v1260, -inf
    %v1841 = vsel %vm1641, %v1261, -inf
    %v1842 = vsel %vm1641, %v1262, -inf
    %v1843 = vsel %vm1641, %v1263, -inf
    %v1844 = vsel %vm1642, %v1260, -inf
    %v1845 = vsel %vm1642, %v1261, -inf
    %v1846 = vsel %vm1642, %v1262, -inf
    %v1847 = vsel %vm1642, %v1263, -inf
    %v1848 = vsel %vm1643, %v1260, -inf
    %v1849 = vsel %vm1643, %v1261, -inf
    %v1850 = vsel %vm1643, %v1262, -inf
    %v1851 = vsel %vm1643, %v1263, -inf
    %v1852 = vsel %vm1644, %v1260, -inf
    %v1853 = vsel %vm1644, %v1261, -inf
    %v1854 = vsel %vm1644, %v1262, -inf
    %v1855 = vsel %vm1644, %v1263, -inf
    %v1856 = vsel %vm1645, %v1260, -inf
    %v1857 = vsel %vm1645, %v1261, -inf
    %v1858 = vsel %vm1645, %v1262, -inf
    %v1859 = vsel %vm1645, %v1263, -inf
    %v1860 = vsel %vm1646, %v1260, -inf
    %v1861 = vsel %vm1646, %v1261, -inf
    %v1862 = vsel %vm1646, %v1262, -inf
    %v1863 = vsel %vm1646, %v1263, -inf
    %v1864 = vsel %vm1647, %v1260, -inf
    %v1865 = vsel %vm1647, %v1261, -inf
    %v1866 = vsel %vm1647, %v1262, -inf
    %v1867 = vsel %vm1647, %v1263, -inf
    %v1868 = vsel %vm1648, %v1260, -inf
    %v1869 = vsel %vm1648, %v1261, -inf
    %v1870 = vsel %vm1648, %v1262, -inf
    %v1871 = vsel %vm1648, %v1263, -inf
    %v1872 = vsel %vm1649, %v1260, -inf
    %v1873 = vsel %vm1649, %v1261, -inf
    %v1874 = vsel %vm1649, %v1262, -inf
    %v1875 = vsel %vm1649, %v1263, -inf
    %v1876 = vsel %vm1650, %v1260, -inf
    %v1877 = vsel %vm1650, %v1261, -inf
    %v1878 = vsel %vm1650, %v1262, -inf
    %v1879 = vsel %vm1650, %v1263, -inf
    %v1880 = vsel %vm1651, %v1260, -inf
    %v1881 = vsel %vm1651, %v1261, -inf
    %v1882 = vsel %vm1651, %v1262, -inf
    %v1883 = vsel %vm1651, %v1263, -inf
    %v1884 = vsel %vm1652, %v1260, -inf
    %v1885 = vsel %vm1652, %v1261, -inf
    %v1886 = vsel %vm1652, %v1262, -inf
    %v1887 = vsel %vm1652, %v1263, -inf
    %v1888 = vsel %vm1653, %v1260, -inf
    %v1889 = vsel %vm1653, %v1261, -inf
    %v1890 = vsel %vm1653, %v1262, -inf
    %v1891 = vsel %vm1653, %v1263, -inf
    %v1892 = vsel %vm1654, %v1260, -inf
    %v1893 = vsel %vm1654, %v1261, -inf
    %v1894 = vsel %vm1654, %v1262, -inf
    %v1895 = vsel %vm1654, %v1263, -inf
    %v1896 = vsel %vm1655, %v1260, -inf
    %v1897 = vsel %vm1655, %v1261, -inf
    %v1898 = vsel %vm1655, %v1262, -inf
    %v1899 = vsel %vm1655, %v1263, -inf
    %v1900 = vsel %vm1656, %v1260, -inf
    %v1901 = vsel %vm1656, %v1261, -inf
    %v1902 = vsel %vm1656, %v1262, -inf
    %v1903 = vsel %vm1656, %v1263, -inf
    %v1904 = vsel %vm1657, %v1260, -inf
    %v1905 = vsel %vm1657, %v1261, -inf
    %v1906 = vsel %vm1657, %v1262, -inf
    %v1907 = vsel %vm1657, %v1263, -inf
    %v1908 = vsel %vm1658, %v1260, -inf
    %v1909 = vsel %vm1658, %v1261, -inf
    %v1910 = vsel %vm1658, %v1262, -inf
    %v1911 = vsel %vm1658, %v1263, -inf
    %v1912 = vsel %vm1659, %v1260, -inf
    %v1913 = vsel %vm1659, %v1261, -inf
    %v1914 = vsel %vm1659, %v1262, -inf
    %v1915 = vsel %vm1659, %v1263, -inf
    %v1916 = vsel %vm85, %v1660, -inf
    %1917 = vmax.xlane.f32.xlu0 %v1916
    %v1918 = vpop.xlane.xlu0 %1917
    %v1919 = vsel %vm85, %v1661, -inf
    %1920 = vmax.xlane.f32.xlu0 %v1919
    %v1921 = vpop.xlane.xlu0 %1920
    %v1922 = vsel %vm85, %v1662, -inf
    %1923 = vmax.xlane.f32.xlu0 %v1922
    %v1924 = vpop.xlane.xlu0 %1923
    %v1925 = vsel %vm85, %v1663, -inf
    %1926 = vmax.xlane.f32.xlu0 %v1925
    %v1927 = vpop.xlane.xlu0 %1926
    %v1928 = vsel %vm85, %v1664, -inf
    %1929 = vmax.xlane.f32.xlu0 %v1928
    %v1930 = vpop.xlane.xlu0 %1929
    %v1931 = vsel %vm85, %v1665, -inf
    %1932 = vmax.xlane.f32.xlu0 %v1931
    %v1933 = vpop.xlane.xlu0 %1932
    %v1934 = vsel %vm85, %v1666, -inf
    %1935 = vmax.xlane.f32.xlu0 %v1934
    %v1936 = vpop.xlane.xlu0 %1935
    %v1937 = vsel %vm85, %v1667, -inf
    %1938 = vmax.xlane.f32.xlu0 %v1937
    %v1939 = vpop.xlane.xlu0 %1938
    %v1940 = vsel %vm85, %v1668, -inf
    %1941 = vmax.xlane.f32.xlu0 %v1940
    %v1942 = vpop.xlane.xlu0 %1941
    %v1943 = vsel %vm85, %v1669, -inf
    %1944 = vmax.xlane.f32.xlu0 %v1943
    %v1945 = vpop.xlane.xlu0 %1944
    %v1946 = vsel %vm85, %v1670, -inf
    %1947 = vmax.xlane.f32.xlu0 %v1946
    %v1948 = vpop.xlane.xlu0 %1947
    %v1949 = vsel %vm85, %v1671, -inf
    %1950 = vmax.xlane.f32.xlu0 %v1949
    %v1951 = vpop.xlane.xlu0 %1950
    %v1952 = vsel %vm85, %v1672, -inf
    %1953 = vmax.xlane.f32.xlu0 %v1952
    %v1954 = vpop.xlane.xlu0 %1953
    %v1955 = vsel %vm85, %v1673, -inf
    %1956 = vmax.xlane.f32.xlu0 %v1955
    %v1957 = vpop.xlane.xlu0 %1956
    %v1958 = vsel %vm85, %v1674, -inf
    %1959 = vmax.xlane.f32.xlu0 %v1958
    %v1960 = vpop.xlane.xlu0 %1959
    %v1961 = vsel %vm85, %v1675, -inf
    %1962 = vmax.xlane.f32.xlu0 %v1961
    %v1963 = vpop.xlane.xlu0 %1962
    %v1964 = vsel %vm85, %v1676, -inf
    %1965 = vmax.xlane.f32.xlu0 %v1964
    %v1966 = vpop.xlane.xlu0 %1965
    %v1967 = vsel %vm85, %v1677, -inf
    %1968 = vmax.xlane.f32.xlu0 %v1967
    %v1969 = vpop.xlane.xlu0 %1968
    %v1970 = vsel %vm85, %v1678, -inf
    %1971 = vmax.xlane.f32.xlu0 %v1970
    %v1972 = vpop.xlane.xlu0 %1971
    %v1973 = vsel %vm85, %v1679, -inf
    %1974 = vmax.xlane.f32.xlu0 %v1973
    %v1975 = vpop.xlane.xlu0 %1974
    %v1976 = vsel %vm85, %v1680, -inf
    %1977 = vmax.xlane.f32.xlu0 %v1976
    %v1978 = vpop.xlane.xlu0 %1977
    %v1979 = vsel %vm85, %v1681, -inf
    %1980 = vmax.xlane.f32.xlu0 %v1979
    %v1981 = vpop.xlane.xlu0 %1980
    %v1982 = vsel %vm85, %v1682, -inf
    %1983 = vmax.xlane.f32.xlu0 %v1982
    %v1984 = vpop.xlane.xlu0 %1983
    %v1985 = vsel %vm85, %v1683, -inf
    %1986 = vmax.xlane.f32.xlu0 %v1985
    %v1987 = vpop.xlane.xlu0 %1986
    %v1988 = vsel %vm85, %v1684, -inf
    %1989 = vmax.xlane.f32.xlu0 %v1988
    %v1990 = vpop.xlane.xlu0 %1989
    %v1991 = vsel %vm85, %v1685, -inf
    %1992 = vmax.xlane.f32.xlu0 %v1991
    %v1993 = vpop.xlane.xlu0 %1992
    %v1994 = vsel %vm85, %v1686, -inf
    %1995 = vmax.xlane.f32.xlu0 %v1994
    %v1996 = vpop.xlane.xlu0 %1995
    %v1997 = vsel %vm85, %v1687, -inf
    %1998 = vmax.xlane.f32.xlu0 %v1997
    %v1999 = vpop.xlane.xlu0 %1998
    %v2000 = vsel %vm85, %v1688, -inf
    %2001 = vmax.xlane.f32.xlu0 %v2000
    %v2002 = vpop.xlane.xlu0 %2001
    %v2003 = vsel %vm85, %v1689, -inf
    %2004 = vmax.xlane.f32.xlu0 %v2003
    %v2005 = vpop.xlane.xlu0 %2004
    %v2006 = vsel %vm85, %v1690, -inf
    %2007 = vmax.xlane.f32.xlu0 %v2006
    %v2008 = vpop.xlane.xlu0 %2007
    %v2009 = vsel %vm85, %v1691, -inf
    %2010 = vmax.xlane.f32.xlu0 %v2009
    %v2011 = vpop.xlane.xlu0 %2010
    %v2012 = vsel %vm85, %v1692, -inf
    %2013 = vmax.xlane.f32.xlu0 %v2012
    %v2014 = vpop.xlane.xlu0 %2013
    %v2015 = vsel %vm85, %v1693, -inf
    %2016 = vmax.xlane.f32.xlu0 %v2015
    %v2017 = vpop.xlane.xlu0 %2016
    %v2018 = vsel %vm85, %v1694, -inf
    %2019 = vmax.xlane.f32.xlu0 %v2018
    %v2020 = vpop.xlane.xlu0 %2019
    %v2021 = vsel %vm85, %v1695, -inf
    %2022 = vmax.xlane.f32.xlu0 %v2021
    %v2023 = vpop.xlane.xlu0 %2022
    %v2024 = vsel %vm85, %v1696, -inf
    %2025 = vmax.xlane.f32.xlu0 %v2024
    %v2026 = vpop.xlane.xlu0 %2025
    %v2027 = vsel %vm85, %v1697, -inf
    %2028 = vmax.xlane.f32.xlu0 %v2027
    %v2029 = vpop.xlane.xlu0 %2028
    %v2030 = vsel %vm85, %v1698, -inf
    %2031 = vmax.xlane.f32.xlu0 %v2030
    %v2032 = vpop.xlane.xlu0 %2031
    %v2033 = vsel %vm85, %v1699, -inf
    %2034 = vmax.xlane.f32.xlu0 %v2033
    %v2035 = vpop.xlane.xlu0 %2034
    %v2036 = vsel %vm85, %v1700, -inf
    %2037 = vmax.xlane.f32.xlu0 %v2036
    %v2038 = vpop.xlane.xlu0 %2037
    %v2039 = vsel %vm85, %v1701, -inf
    %2040 = vmax.xlane.f32.xlu0 %v2039
    %v2041 = vpop.xlane.xlu0 %2040
    %v2042 = vsel %vm85, %v1702, -inf
    %2043 = vmax.xlane.f32.xlu0 %v2042
    %v2044 = vpop.xlane.xlu0 %2043
    %v2045 = vsel %vm85, %v1703, -inf
    %2046 = vmax.xlane.f32.xlu0 %v2045
    %v2047 = vpop.xlane.xlu0 %2046
    %v2048 = vsel %vm85, %v1704, -inf
    %2049 = vmax.xlane.f32.xlu0 %v2048
    %v2050 = vpop.xlane.xlu0 %2049
    %v2051 = vsel %vm85, %v1705, -inf
    %2052 = vmax.xlane.f32.xlu0 %v2051
    %v2053 = vpop.xlane.xlu0 %2052
    %v2054 = vsel %vm85, %v1706, -inf
    %2055 = vmax.xlane.f32.xlu0 %v2054
    %v2056 = vpop.xlane.xlu0 %2055
    %v2057 = vsel %vm85, %v1707, -inf
    %2058 = vmax.xlane.f32.xlu0 %v2057
    %v2059 = vpop.xlane.xlu0 %2058
    %v2060 = vsel %vm85, %v1708, -inf
    %2061 = vmax.xlane.f32.xlu0 %v2060
    %v2062 = vpop.xlane.xlu0 %2061
    %v2063 = vsel %vm85, %v1709, -inf
    %2064 = vmax.xlane.f32.xlu0 %v2063
    %v2065 = vpop.xlane.xlu0 %2064
    %v2066 = vsel %vm85, %v1710, -inf
    %2067 = vmax.xlane.f32.xlu0 %v2066
    %v2068 = vpop.xlane.xlu0 %2067
    %v2069 = vsel %vm85, %v1711, -inf
    %2070 = vmax.xlane.f32.xlu0 %v2069
    %v2071 = vpop.xlane.xlu0 %2070
    %v2072 = vsel %vm85, %v1712, -inf
    %2073 = vmax.xlane.f32.xlu0 %v2072
    %v2074 = vpop.xlane.xlu0 %2073
    %v2075 = vsel %vm85, %v1713, -inf
    %2076 = vmax.xlane.f32.xlu0 %v2075
    %v2077 = vpop.xlane.xlu0 %2076
    %v2078 = vsel %vm85, %v1714, -inf
    %2079 = vmax.xlane.f32.xlu0 %v2078
    %v2080 = vpop.xlane.xlu0 %2079
    %v2081 = vsel %vm85, %v1715, -inf
    %2082 = vmax.xlane.f32.xlu0 %v2081
    %v2083 = vpop.xlane.xlu0 %2082
    %v2084 = vsel %vm85, %v1716, -inf
    %2085 = vmax.xlane.f32.xlu0 %v2084
    %v2086 = vpop.xlane.xlu0 %2085
    %v2087 = vsel %vm85, %v1717, -inf
    %2088 = vmax.xlane.f32.xlu0 %v2087
    %v2089 = vpop.xlane.xlu0 %2088
    %v2090 = vsel %vm85, %v1718, -inf
    %2091 = vmax.xlane.f32.xlu0 %v2090
    %v2092 = vpop.xlane.xlu0 %2091
    %v2093 = vsel %vm85, %v1719, -inf
    %2094 = vmax.xlane.f32.xlu0 %v2093
    %v2095 = vpop.xlane.xlu0 %2094
    %v2096 = vsel %vm85, %v1720, -inf
    %2097 = vmax.xlane.f32.xlu0 %v2096
    %v2098 = vpop.xlane.xlu0 %2097
    %v2099 = vsel %vm85, %v1721, -inf
    %2100 = vmax.xlane.f32.xlu0 %v2099
    %v2101 = vpop.xlane.xlu0 %2100
    %v2102 = vsel %vm85, %v1722, -inf
    %2103 = vmax.xlane.f32.xlu0 %v2102
    %v2104 = vpop.xlane.xlu0 %2103
    %v2105 = vsel %vm85, %v1723, -inf
    %2106 = vmax.xlane.f32.xlu0 %v2105
    %v2107 = vpop.xlane.xlu0 %2106
    %v2108 = vsel %vm85, %v1724, -inf
    %2109 = vmax.xlane.f32.xlu0 %v2108
    %v2110 = vpop.xlane.xlu0 %2109
    %v2111 = vsel %vm85, %v1725, -inf
    %2112 = vmax.xlane.f32.xlu0 %v2111
    %v2113 = vpop.xlane.xlu0 %2112
    %v2114 = vsel %vm85, %v1726, -inf
    %2115 = vmax.xlane.f32.xlu0 %v2114
    %v2116 = vpop.xlane.xlu0 %2115
    %v2117 = vsel %vm85, %v1727, -inf
    %2118 = vmax.xlane.f32.xlu0 %v2117
    %v2119 = vpop.xlane.xlu0 %2118
    %v2120 = vsel %vm85, %v1728, -inf
    %2121 = vmax.xlane.f32.xlu0 %v2120
    %v2122 = vpop.xlane.xlu0 %2121
    %v2123 = vsel %vm85, %v1729, -inf
    %2124 = vmax.xlane.f32.xlu0 %v2123
    %v2125 = vpop.xlane.xlu0 %2124
    %v2126 = vsel %vm85, %v1730, -inf
    %2127 = vmax.xlane.f32.xlu0 %v2126
    %v2128 = vpop.xlane.xlu0 %2127
    %v2129 = vsel %vm85, %v1731, -inf
    %2130 = vmax.xlane.f32.xlu0 %v2129
    %v2131 = vpop.xlane.xlu0 %2130
    %v2132 = vsel %vm85, %v1732, -inf
    %2133 = vmax.xlane.f32.xlu0 %v2132
    %v2134 = vpop.xlane.xlu0 %2133
    %v2135 = vsel %vm85, %v1733, -inf
    %2136 = vmax.xlane.f32.xlu0 %v2135
    %v2137 = vpop.xlane.xlu0 %2136
    %v2138 = vsel %vm85, %v1734, -inf
    %2139 = vmax.xlane.f32.xlu0 %v2138
    %v2140 = vpop.xlane.xlu0 %2139
    %v2141 = vsel %vm85, %v1735, -inf
    %2142 = vmax.xlane.f32.xlu0 %v2141
    %v2143 = vpop.xlane.xlu0 %2142
    %v2144 = vsel %vm85, %v1736, -inf
    %2145 = vmax.xlane.f32.xlu0 %v2144
    %v2146 = vpop.xlane.xlu0 %2145
    %v2147 = vsel %vm85, %v1737, -inf
    %2148 = vmax.xlane.f32.xlu0 %v2147
    %v2149 = vpop.xlane.xlu0 %2148
    %v2150 = vsel %vm85, %v1738, -inf
    %2151 = vmax.xlane.f32.xlu0 %v2150
    %v2152 = vpop.xlane.xlu0 %2151
    %v2153 = vsel %vm85, %v1739, -inf
    %2154 = vmax.xlane.f32.xlu0 %v2153
    %v2155 = vpop.xlane.xlu0 %2154
    %v2156 = vsel %vm85, %v1740, -inf
    %2157 = vmax.xlane.f32.xlu0 %v2156
    %v2158 = vpop.xlane.xlu0 %2157
    %v2159 = vsel %vm85, %v1741, -inf
    %2160 = vmax.xlane.f32.xlu0 %v2159
    %v2161 = vpop.xlane.xlu0 %2160
    %v2162 = vsel %vm85, %v1742, -inf
    %2163 = vmax.xlane.f32.xlu0 %v2162
    %v2164 = vpop.xlane.xlu0 %2163
    %v2165 = vsel %vm85, %v1743, -inf
    %2166 = vmax.xlane.f32.xlu0 %v2165
    %v2167 = vpop.xlane.xlu0 %2166
    %v2168 = vsel %vm85, %v1744, -inf
    %2169 = vmax.xlane.f32.xlu0 %v2168
    %v2170 = vpop.xlane.xlu0 %2169
    %v2171 = vsel %vm85, %v1745, -inf
    %2172 = vmax.xlane.f32.xlu0 %v2171
    %v2173 = vpop.xlane.xlu0 %2172
    %v2174 = vsel %vm85, %v1746, -inf
    %2175 = vmax.xlane.f32.xlu0 %v2174
    %v2176 = vpop.xlane.xlu0 %2175
    %v2177 = vsel %vm85, %v1747, -inf
    %2178 = vmax.xlane.f32.xlu0 %v2177
    %v2179 = vpop.xlane.xlu0 %2178
    %v2180 = vsel %vm85, %v1748, -inf
    %2181 = vmax.xlane.f32.xlu0 %v2180
    %v2182 = vpop.xlane.xlu0 %2181
    %v2183 = vsel %vm85, %v1749, -inf
    %2184 = vmax.xlane.f32.xlu0 %v2183
    %v2185 = vpop.xlane.xlu0 %2184
    %v2186 = vsel %vm85, %v1750, -inf
    %2187 = vmax.xlane.f32.xlu0 %v2186
    %v2188 = vpop.xlane.xlu0 %2187
    %v2189 = vsel %vm85, %v1751, -inf
    %2190 = vmax.xlane.f32.xlu0 %v2189
    %v2191 = vpop.xlane.xlu0 %2190
    %v2192 = vsel %vm85, %v1752, -inf
    %2193 = vmax.xlane.f32.xlu0 %v2192
    %v2194 = vpop.xlane.xlu0 %2193
    %v2195 = vsel %vm85, %v1753, -inf
    %2196 = vmax.xlane.f32.xlu0 %v2195
    %v2197 = vpop.xlane.xlu0 %2196
    %v2198 = vsel %vm85, %v1754, -inf
    %2199 = vmax.xlane.f32.xlu0 %v2198
    %v2200 = vpop.xlane.xlu0 %2199
    %v2201 = vsel %vm85, %v1755, -inf
    %2202 = vmax.xlane.f32.xlu0 %v2201
    %v2203 = vpop.xlane.xlu0 %2202
    %v2204 = vsel %vm85, %v1756, -inf
    %2205 = vmax.xlane.f32.xlu0 %v2204
    %v2206 = vpop.xlane.xlu0 %2205
    %v2207 = vsel %vm85, %v1757, -inf
    %2208 = vmax.xlane.f32.xlu0 %v2207
    %v2209 = vpop.xlane.xlu0 %2208
    %v2210 = vsel %vm85, %v1758, -inf
    %2211 = vmax.xlane.f32.xlu0 %v2210
    %v2212 = vpop.xlane.xlu0 %2211
    %v2213 = vsel %vm85, %v1759, -inf
    %2214 = vmax.xlane.f32.xlu0 %v2213
    %v2215 = vpop.xlane.xlu0 %2214
    %v2216 = vsel %vm85, %v1760, -inf
    %2217 = vmax.xlane.f32.xlu0 %v2216
    %v2218 = vpop.xlane.xlu0 %2217
    %v2219 = vsel %vm85, %v1761, -inf
    %2220 = vmax.xlane.f32.xlu0 %v2219
    %v2221 = vpop.xlane.xlu0 %2220
    %v2222 = vsel %vm85, %v1762, -inf
    %2223 = vmax.xlane.f32.xlu0 %v2222
    %v2224 = vpop.xlane.xlu0 %2223
    %v2225 = vsel %vm85, %v1763, -inf
    %2226 = vmax.xlane.f32.xlu0 %v2225
    %v2227 = vpop.xlane.xlu0 %2226
    %v2228 = vsel %vm85, %v1764, -inf
    %2229 = vmax.xlane.f32.xlu0 %v2228
    %v2230 = vpop.xlane.xlu0 %2229
    %v2231 = vsel %vm85, %v1765, -inf
    %2232 = vmax.xlane.f32.xlu0 %v2231
    %v2233 = vpop.xlane.xlu0 %2232
    %v2234 = vsel %vm85, %v1766, -inf
    %2235 = vmax.xlane.f32.xlu0 %v2234
    %v2236 = vpop.xlane.xlu0 %2235
    %v2237 = vsel %vm85, %v1767, -inf
    %2238 = vmax.xlane.f32.xlu0 %v2237
    %v2239 = vpop.xlane.xlu0 %2238
    %v2240 = vsel %vm85, %v1768, -inf
    %2241 = vmax.xlane.f32.xlu0 %v2240
    %v2242 = vpop.xlane.xlu0 %2241
    %v2243 = vsel %vm85, %v1769, -inf
    %2244 = vmax.xlane.f32.xlu0 %v2243
    %v2245 = vpop.xlane.xlu0 %2244
    %v2246 = vsel %vm85, %v1770, -inf
    %2247 = vmax.xlane.f32.xlu0 %v2246
    %v2248 = vpop.xlane.xlu0 %2247
    %v2249 = vsel %vm85, %v1771, -inf
    %2250 = vmax.xlane.f32.xlu0 %v2249
    %v2251 = vpop.xlane.xlu0 %2250
    %v2252 = vsel %vm85, %v1772, -inf
    %2253 = vmax.xlane.f32.xlu0 %v2252
    %v2254 = vpop.xlane.xlu0 %2253
    %v2255 = vsel %vm85, %v1773, -inf
    %2256 = vmax.xlane.f32.xlu0 %v2255
    %v2257 = vpop.xlane.xlu0 %2256
    %v2258 = vsel %vm85, %v1774, -inf
    %2259 = vmax.xlane.f32.xlu0 %v2258
    %v2260 = vpop.xlane.xlu0 %2259
    %v2261 = vsel %vm85, %v1775, -inf
    %2262 = vmax.xlane.f32.xlu0 %v2261
    %v2263 = vpop.xlane.xlu0 %2262
    %v2264 = vsel %vm85, %v1776, -inf
    %2265 = vmax.xlane.f32.xlu0 %v2264
    %v2266 = vpop.xlane.xlu0 %2265
    %v2267 = vsel %vm85, %v1777, -inf
    %2268 = vmax.xlane.f32.xlu0 %v2267
    %v2269 = vpop.xlane.xlu0 %2268
    %v2270 = vsel %vm85, %v1778, -inf
    %2271 = vmax.xlane.f32.xlu0 %v2270
    %v2272 = vpop.xlane.xlu0 %2271
    %v2273 = vsel %vm85, %v1779, -inf
    %2274 = vmax.xlane.f32.xlu0 %v2273
    %v2275 = vpop.xlane.xlu0 %2274
    %v2276 = vsel %vm85, %v1780, -inf
    %2277 = vmax.xlane.f32.xlu0 %v2276
    %v2278 = vpop.xlane.xlu0 %2277
    %v2279 = vsel %vm85, %v1781, -inf
    %2280 = vmax.xlane.f32.xlu0 %v2279
    %v2281 = vpop.xlane.xlu0 %2280
    %v2282 = vsel %vm85, %v1782, -inf
    %2283 = vmax.xlane.f32.xlu0 %v2282
    %v2284 = vpop.xlane.xlu0 %2283
    %v2285 = vsel %vm85, %v1783, -inf
    %2286 = vmax.xlane.f32.xlu0 %v2285
    %v2287 = vpop.xlane.xlu0 %2286
    %v2288 = vsel %vm85, %v1784, -inf
    %2289 = vmax.xlane.f32.xlu0 %v2288
    %v2290 = vpop.xlane.xlu0 %2289
    %v2291 = vsel %vm85, %v1785, -inf
    %2292 = vmax.xlane.f32.xlu0 %v2291
    %v2293 = vpop.xlane.xlu0 %2292
    %v2294 = vsel %vm85, %v1786, -inf
    %2295 = vmax.xlane.f32.xlu0 %v2294
    %v2296 = vpop.xlane.xlu0 %2295
    %v2297 = vsel %vm85, %v1787, -inf
    %2298 = vmax.xlane.f32.xlu0 %v2297
    %v2299 = vpop.xlane.xlu0 %2298
    %v2300 = vsel %vm85, %v1788, -inf
    %2301 = vmax.xlane.f32.xlu0 %v2300
    %v2302 = vpop.xlane.xlu0 %2301
    %v2303 = vsel %vm85, %v1789, -inf
    %2304 = vmax.xlane.f32.xlu0 %v2303
    %v2305 = vpop.xlane.xlu0 %2304
    %v2306 = vsel %vm85, %v1790, -inf
    %2307 = vmax.xlane.f32.xlu0 %v2306
    %v2308 = vpop.xlane.xlu0 %2307
    %v2309 = vsel %vm85, %v1791, -inf
    %2310 = vmax.xlane.f32.xlu0 %v2309
    %v2311 = vpop.xlane.xlu0 %2310
    %v2312 = vsel %vm85, %v1792, -inf
    %2313 = vmax.xlane.f32.xlu0 %v2312
    %v2314 = vpop.xlane.xlu0 %2313
    %v2315 = vsel %vm85, %v1793, -inf
    %2316 = vmax.xlane.f32.xlu0 %v2315
    %v2317 = vpop.xlane.xlu0 %2316
    %v2318 = vsel %vm85, %v1794, -inf
    %2319 = vmax.xlane.f32.xlu0 %v2318
    %v2320 = vpop.xlane.xlu0 %2319
    %v2321 = vsel %vm85, %v1795, -inf
    %2322 = vmax.xlane.f32.xlu0 %v2321
    %v2323 = vpop.xlane.xlu0 %2322
    %v2324 = vsel %vm85, %v1796, -inf
    %2325 = vmax.xlane.f32.xlu0 %v2324
    %v2326 = vpop.xlane.xlu0 %2325
    %v2327 = vsel %vm85, %v1797, -inf
    %2328 = vmax.xlane.f32.xlu0 %v2327
    %v2329 = vpop.xlane.xlu0 %2328
    %v2330 = vsel %vm85, %v1798, -inf
    %2331 = vmax.xlane.f32.xlu0 %v2330
    %v2332 = vpop.xlane.xlu0 %2331
    %v2333 = vsel %vm85, %v1799, -inf
    %2334 = vmax.xlane.f32.xlu0 %v2333
    %v2335 = vpop.xlane.xlu0 %2334
    %v2336 = vsel %vm85, %v1800, -inf
    %2337 = vmax.xlane.f32.xlu0 %v2336
    %v2338 = vpop.xlane.xlu0 %2337
    %v2339 = vsel %vm85, %v1801, -inf
    %2340 = vmax.xlane.f32.xlu0 %v2339
    %v2341 = vpop.xlane.xlu0 %2340
    %v2342 = vsel %vm85, %v1802, -inf
    %2343 = vmax.xlane.f32.xlu0 %v2342
    %v2344 = vpop.xlane.xlu0 %2343
    %v2345 = vsel %vm85, %v1803, -inf
    %2346 = vmax.xlane.f32.xlu0 %v2345
    %v2347 = vpop.xlane.xlu0 %2346
    %v2348 = vsel %vm85, %v1804, -inf
    %2349 = vmax.xlane.f32.xlu0 %v2348
    %v2350 = vpop.xlane.xlu0 %2349
    %v2351 = vsel %vm85, %v1805, -inf
    %2352 = vmax.xlane.f32.xlu0 %v2351
    %v2353 = vpop.xlane.xlu0 %2352
    %v2354 = vsel %vm85, %v1806, -inf
    %2355 = vmax.xlane.f32.xlu0 %v2354
    %v2356 = vpop.xlane.xlu0 %2355
    %v2357 = vsel %vm85, %v1807, -inf
    %2358 = vmax.xlane.f32.xlu0 %v2357
    %v2359 = vpop.xlane.xlu0 %2358
    %v2360 = vsel %vm85, %v1808, -inf
    %2361 = vmax.xlane.f32.xlu0 %v2360
    %v2362 = vpop.xlane.xlu0 %2361
    %v2363 = vsel %vm85, %v1809, -inf
    %2364 = vmax.xlane.f32.xlu0 %v2363
    %v2365 = vpop.xlane.xlu0 %2364
    %v2366 = vsel %vm85, %v1810, -inf
    %2367 = vmax.xlane.f32.xlu0 %v2366
    %v2368 = vpop.xlane.xlu0 %2367
    %v2369 = vsel %vm85, %v1811, -inf
    %2370 = vmax.xlane.f32.xlu0 %v2369
    %v2371 = vpop.xlane.xlu0 %2370
    %v2372 = vsel %vm85, %v1812, -inf
    %2373 = vmax.xlane.f32.xlu0 %v2372
    %v2374 = vpop.xlane.xlu0 %2373
    %v2375 = vsel %vm85, %v1813, -inf
    %2376 = vmax.xlane.f32.xlu0 %v2375
    %v2377 = vpop.xlane.xlu0 %2376
    %v2378 = vsel %vm85, %v1814, -inf
    %2379 = vmax.xlane.f32.xlu0 %v2378
    %v2380 = vpop.xlane.xlu0 %2379
    %v2381 = vsel %vm85, %v1815, -inf
    %2382 = vmax.xlane.f32.xlu0 %v2381
    %v2383 = vpop.xlane.xlu0 %2382
    %v2384 = vsel %vm85, %v1816, -inf
    %2385 = vmax.xlane.f32.xlu0 %v2384
    %v2386 = vpop.xlane.xlu0 %2385
    %v2387 = vsel %vm85, %v1817, -inf
    %2388 = vmax.xlane.f32.xlu0 %v2387
    %v2389 = vpop.xlane.xlu0 %2388
    %v2390 = vsel %vm85, %v1818, -inf
    %2391 = vmax.xlane.f32.xlu0 %v2390
    %v2392 = vpop.xlane.xlu0 %2391
    %v2393 = vsel %vm85, %v1819, -inf
    %2394 = vmax.xlane.f32.xlu0 %v2393
    %v2395 = vpop.xlane.xlu0 %2394
    %v2396 = vsel %vm85, %v1820, -inf
    %2397 = vmax.xlane.f32.xlu0 %v2396
    %v2398 = vpop.xlane.xlu0 %2397
    %v2399 = vsel %vm85, %v1821, -inf
    %2400 = vmax.xlane.f32.xlu0 %v2399
    %v2401 = vpop.xlane.xlu0 %2400
    %v2402 = vsel %vm85, %v1822, -inf
    %2403 = vmax.xlane.f32.xlu0 %v2402
    %v2404 = vpop.xlane.xlu0 %2403
    %v2405 = vsel %vm85, %v1823, -inf
    %2406 = vmax.xlane.f32.xlu0 %v2405
    %v2407 = vpop.xlane.xlu0 %2406
    %v2408 = vsel %vm85, %v1824, -inf
    %2409 = vmax.xlane.f32.xlu0 %v2408
    %v2410 = vpop.xlane.xlu0 %2409
    %v2411 = vsel %vm85, %v1825, -inf
    %2412 = vmax.xlane.f32.xlu0 %v2411
    %v2413 = vpop.xlane.xlu0 %2412
    %v2414 = vsel %vm85, %v1826, -inf
    %2415 = vmax.xlane.f32.xlu0 %v2414
    %v2416 = vpop.xlane.xlu0 %2415
    %v2417 = vsel %vm85, %v1827, -inf
    %2418 = vmax.xlane.f32.xlu0 %v2417
    %v2419 = vpop.xlane.xlu0 %2418
    %v2420 = vsel %vm85, %v1828, -inf
    %2421 = vmax.xlane.f32.xlu0 %v2420
    %v2422 = vpop.xlane.xlu0 %2421
    %v2423 = vsel %vm85, %v1829, -inf
    %2424 = vmax.xlane.f32.xlu0 %v2423
    %v2425 = vpop.xlane.xlu0 %2424
    %v2426 = vsel %vm85, %v1830, -inf
    %2427 = vmax.xlane.f32.xlu0 %v2426
    %v2428 = vpop.xlane.xlu0 %2427
    %v2429 = vsel %vm85, %v1831, -inf
    %2430 = vmax.xlane.f32.xlu0 %v2429
    %v2431 = vpop.xlane.xlu0 %2430
    %v2432 = vsel %vm85, %v1832, -inf
    %2433 = vmax.xlane.f32.xlu0 %v2432
    %v2434 = vpop.xlane.xlu0 %2433
    %v2435 = vsel %vm85, %v1833, -inf
    %2436 = vmax.xlane.f32.xlu0 %v2435
    %v2437 = vpop.xlane.xlu0 %2436
    %v2438 = vsel %vm85, %v1834, -inf
    %2439 = vmax.xlane.f32.xlu0 %v2438
    %v2440 = vpop.xlane.xlu0 %2439
    %v2441 = vsel %vm85, %v1835, -inf
    %2442 = vmax.xlane.f32.xlu0 %v2441
    %v2443 = vpop.xlane.xlu0 %2442
    %v2444 = vsel %vm85, %v1836, -inf
    %2445 = vmax.xlane.f32.xlu0 %v2444
    %v2446 = vpop.xlane.xlu0 %2445
    %v2447 = vsel %vm85, %v1837, -inf
    %2448 = vmax.xlane.f32.xlu0 %v2447
    %v2449 = vpop.xlane.xlu0 %2448
    %v2450 = vsel %vm85, %v1838, -inf
    %2451 = vmax.xlane.f32.xlu0 %v2450
    %v2452 = vpop.xlane.xlu0 %2451
    %v2453 = vsel %vm85, %v1839, -inf
    %2454 = vmax.xlane.f32.xlu0 %v2453
    %v2455 = vpop.xlane.xlu0 %2454
    %v2456 = vsel %vm85, %v1840, -inf
    %2457 = vmax.xlane.f32.xlu0 %v2456
    %v2458 = vpop.xlane.xlu0 %2457
    %v2459 = vsel %vm85, %v1841, -inf
    %2460 = vmax.xlane.f32.xlu0 %v2459
    %v2461 = vpop.xlane.xlu0 %2460
    %v2462 = vsel %vm85, %v1842, -inf
    %2463 = vmax.xlane.f32.xlu0 %v2462
    %v2464 = vpop.xlane.xlu0 %2463
    %v2465 = vsel %vm85, %v1843, -inf
    %2466 = vmax.xlane.f32.xlu0 %v2465
    %v2467 = vpop.xlane.xlu0 %2466
    %v2468 = vsel %vm85, %v1844, -inf
    %2469 = vmax.xlane.f32.xlu0 %v2468
    %v2470 = vpop.xlane.xlu0 %2469
    %v2471 = vsel %vm85, %v1845, -inf
    %2472 = vmax.xlane.f32.xlu0 %v2471
    %v2473 = vpop.xlane.xlu0 %2472
    %v2474 = vsel %vm85, %v1846, -inf
    %2475 = vmax.xlane.f32.xlu0 %v2474
    %v2476 = vpop.xlane.xlu0 %2475
    %v2477 = vsel %vm85, %v1847, -inf
    %2478 = vmax.xlane.f32.xlu0 %v2477
    %v2479 = vpop.xlane.xlu0 %2478
    %v2480 = vsel %vm85, %v1848, -inf
    %2481 = vmax.xlane.f32.xlu0 %v2480
    %v2482 = vpop.xlane.xlu0 %2481
    %v2483 = vsel %vm85, %v1849, -inf
    %2484 = vmax.xlane.f32.xlu0 %v2483
    %v2485 = vpop.xlane.xlu0 %2484
    %v2486 = vsel %vm85, %v1850, -inf
    %2487 = vmax.xlane.f32.xlu0 %v2486
    %v2488 = vpop.xlane.xlu0 %2487
    %v2489 = vsel %vm85, %v1851, -inf
    %2490 = vmax.xlane.f32.xlu0 %v2489
    %v2491 = vpop.xlane.xlu0 %2490
    %v2492 = vsel %vm85, %v1852, -inf
    %2493 = vmax.xlane.f32.xlu0 %v2492
    %v2494 = vpop.xlane.xlu0 %2493
    %v2495 = vsel %vm85, %v1853, -inf
    %2496 = vmax.xlane.f32.xlu0 %v2495
    %v2497 = vpop.xlane.xlu0 %2496
    %v2498 = vsel %vm85, %v1854, -inf
    %2499 = vmax.xlane.f32.xlu0 %v2498
    %v2500 = vpop.xlane.xlu0 %2499
    %v2501 = vsel %vm85, %v1855, -inf
    %2502 = vmax.xlane.f32.xlu0 %v2501
    %v2503 = vpop.xlane.xlu0 %2502
    %v2504 = vsel %vm85, %v1856, -inf
    %2505 = vmax.xlane.f32.xlu0 %v2504
    %v2506 = vpop.xlane.xlu0 %2505
    %v2507 = vsel %vm85, %v1857, -inf
    %2508 = vmax.xlane.f32.xlu0 %v2507
    %v2509 = vpop.xlane.xlu0 %2508
    %v2510 = vsel %vm85, %v1858, -inf
    %2511 = vmax.xlane.f32.xlu0 %v2510
    %v2512 = vpop.xlane.xlu0 %2511
    %v2513 = vsel %vm85, %v1859, -inf
    %2514 = vmax.xlane.f32.xlu0 %v2513
    %v2515 = vpop.xlane.xlu0 %2514
    %v2516 = vsel %vm85, %v1860, -inf
    %2517 = vmax.xlane.f32.xlu0 %v2516
    %v2518 = vpop.xlane.xlu0 %2517
    %v2519 = vsel %vm85, %v1861, -inf
    %2520 = vmax.xlane.f32.xlu0 %v2519
    %v2521 = vpop.xlane.xlu0 %2520
    %v2522 = vsel %vm85, %v1862, -inf
    %2523 = vmax.xlane.f32.xlu0 %v2522
    %v2524 = vpop.xlane.xlu0 %2523
    %v2525 = vsel %vm85, %v1863, -inf
    %2526 = vmax.xlane.f32.xlu0 %v2525
    %v2527 = vpop.xlane.xlu0 %2526
    %v2528 = vsel %vm85, %v1864, -inf
    %2529 = vmax.xlane.f32.xlu0 %v2528
    %v2530 = vpop.xlane.xlu0 %2529
    %v2531 = vsel %vm85, %v1865, -inf
    %2532 = vmax.xlane.f32.xlu0 %v2531
    %v2533 = vpop.xlane.xlu0 %2532
    %v2534 = vsel %vm85, %v1866, -inf
    %2535 = vmax.xlane.f32.xlu0 %v2534
    %v2536 = vpop.xlane.xlu0 %2535
    %v2537 = vsel %vm85, %v1867, -inf
    %2538 = vmax.xlane.f32.xlu0 %v2537
    %v2539 = vpop.xlane.xlu0 %2538
    %v2540 = vsel %vm85, %v1868, -inf
    %2541 = vmax.xlane.f32.xlu0 %v2540
    %v2542 = vpop.xlane.xlu0 %2541
    %v2543 = vsel %vm85, %v1869, -inf
    %2544 = vmax.xlane.f32.xlu0 %v2543
    %v2545 = vpop.xlane.xlu0 %2544
    %v2546 = vsel %vm85, %v1870, -inf
    %2547 = vmax.xlane.f32.xlu0 %v2546
    %v2548 = vpop.xlane.xlu0 %2547
    %v2549 = vsel %vm85, %v1871, -inf
    %2550 = vmax.xlane.f32.xlu0 %v2549
    %v2551 = vpop.xlane.xlu0 %2550
    %v2552 = vsel %vm85, %v1872, -inf
    %2553 = vmax.xlane.f32.xlu0 %v2552
    %v2554 = vpop.xlane.xlu0 %2553
    %v2555 = vsel %vm85, %v1873, -inf
    %2556 = vmax.xlane.f32.xlu0 %v2555
    %v2557 = vpop.xlane.xlu0 %2556
    %v2558 = vsel %vm85, %v1874, -inf
    %2559 = vmax.xlane.f32.xlu0 %v2558
    %v2560 = vpop.xlane.xlu0 %2559
    %v2561 = vsel %vm85, %v1875, -inf
    %2562 = vmax.xlane.f32.xlu0 %v2561
    %v2563 = vpop.xlane.xlu0 %2562
    %v2564 = vsel %vm85, %v1876, -inf
    %2565 = vmax.xlane.f32.xlu0 %v2564
    %v2566 = vpop.xlane.xlu0 %2565
    %v2567 = vsel %vm85, %v1877, -inf
    %2568 = vmax.xlane.f32.xlu0 %v2567
    %v2569 = vpop.xlane.xlu0 %2568
    %v2570 = vsel %vm85, %v1878, -inf
    %2571 = vmax.xlane.f32.xlu0 %v2570
    %v2572 = vpop.xlane.xlu0 %2571
    %v2573 = vsel %vm85, %v1879, -inf
    %2574 = vmax.xlane.f32.xlu0 %v2573
    %v2575 = vpop.xlane.xlu0 %2574
    %v2576 = vsel %vm85, %v1880, -inf
    %2577 = vmax.xlane.f32.xlu0 %v2576
    %v2578 = vpop.xlane.xlu0 %2577
    %v2579 = vsel %vm85, %v1881, -inf
    %2580 = vmax.xlane.f32.xlu0 %v2579
    %v2581 = vpop.xlane.xlu0 %2580
    %v2582 = vsel %vm85, %v1882, -inf
    %2583 = vmax.xlane.f32.xlu0 %v2582
    %v2584 = vpop.xlane.xlu0 %2583
    %v2585 = vsel %vm85, %v1883, -inf
    %2586 = vmax.xlane.f32.xlu0 %v2585
    %v2587 = vpop.xlane.xlu0 %2586
    %v2588 = vsel %vm85, %v1884, -inf
    %2589 = vmax.xlane.f32.xlu0 %v2588
    %v2590 = vpop.xlane.xlu0 %2589
    %v2591 = vsel %vm85, %v1885, -inf
    %2592 = vmax.xlane.f32.xlu0 %v2591
    %v2593 = vpop.xlane.xlu0 %2592
    %v2594 = vsel %vm85, %v1886, -inf
    %2595 = vmax.xlane.f32.xlu0 %v2594
    %v2596 = vpop.xlane.xlu0 %2595
    %v2597 = vsel %vm85, %v1887, -inf
    %2598 = vmax.xlane.f32.xlu0 %v2597
    %v2599 = vpop.xlane.xlu0 %2598
    %v2600 = vsel %vm85, %v1888, -inf
    %2601 = vmax.xlane.f32.xlu0 %v2600
    %v2602 = vpop.xlane.xlu0 %2601
    %v2603 = vsel %vm85, %v1889, -inf
    %2604 = vmax.xlane.f32.xlu0 %v2603
    %v2605 = vpop.xlane.xlu0 %2604
    %v2606 = vsel %vm85, %v1890, -inf
    %2607 = vmax.xlane.f32.xlu0 %v2606
    %v2608 = vpop.xlane.xlu0 %2607
    %v2609 = vsel %vm85, %v1891, -inf
    %2610 = vmax.xlane.f32.xlu0 %v2609
    %v2611 = vpop.xlane.xlu0 %2610
    %v2612 = vsel %vm85, %v1892, -inf
    %2613 = vmax.xlane.f32.xlu0 %v2612
    %v2614 = vpop.xlane.xlu0 %2613
    %v2615 = vsel %vm85, %v1893, -inf
    %2616 = vmax.xlane.f32.xlu0 %v2615
    %v2617 = vpop.xlane.xlu0 %2616
    %v2618 = vsel %vm85, %v1894, -inf
    %2619 = vmax.xlane.f32.xlu0 %v2618
    %v2620 = vpop.xlane.xlu0 %2619
    %v2621 = vsel %vm85, %v1895, -inf
    %2622 = vmax.xlane.f32.xlu0 %v2621
    %v2623 = vpop.xlane.xlu0 %2622
    %v2624 = vsel %vm85, %v1896, -inf
    %2625 = vmax.xlane.f32.xlu0 %v2624
    %v2626 = vpop.xlane.xlu0 %2625
    %v2627 = vsel %vm85, %v1897, -inf
    %2628 = vmax.xlane.f32.xlu0 %v2627
    %v2629 = vpop.xlane.xlu0 %2628
    %v2630 = vsel %vm85, %v1898, -inf
    %2631 = vmax.xlane.f32.xlu0 %v2630
    %v2632 = vpop.xlane.xlu0 %2631
    %v2633 = vsel %vm85, %v1899, -inf
    %2634 = vmax.xlane.f32.xlu0 %v2633
    %v2635 = vpop.xlane.xlu0 %2634
    %v2636 = vsel %vm85, %v1900, -inf
    %2637 = vmax.xlane.f32.xlu0 %v2636
    %v2638 = vpop.xlane.xlu0 %2637
    %v2639 = vsel %vm85, %v1901, -inf
    %2640 = vmax.xlane.f32.xlu0 %v2639
    %v2641 = vpop.xlane.xlu0 %2640
    %v2642 = vsel %vm85, %v1902, -inf
    %2643 = vmax.xlane.f32.xlu0 %v2642
    %v2644 = vpop.xlane.xlu0 %2643
    %v2645 = vsel %vm85, %v1903, -inf
    %2646 = vmax.xlane.f32.xlu0 %v2645
    %v2647 = vpop.xlane.xlu0 %2646
    %v2648 = vsel %vm85, %v1904, -inf
    %2649 = vmax.xlane.f32.xlu0 %v2648
    %v2650 = vpop.xlane.xlu0 %2649
    %v2651 = vsel %vm85, %v1905, -inf
    %2652 = vmax.xlane.f32.xlu0 %v2651
    %v2653 = vpop.xlane.xlu0 %2652
    %v2654 = vsel %vm85, %v1906, -inf
    %2655 = vmax.xlane.f32.xlu0 %v2654
    %v2656 = vpop.xlane.xlu0 %2655
    %v2657 = vsel %vm85, %v1907, -inf
    %2658 = vmax.xlane.f32.xlu0 %v2657
    %v2659 = vpop.xlane.xlu0 %2658
    %v2660 = vsel %vm85, %v1908, -inf
    %2661 = vmax.xlane.f32.xlu0 %v2660
    %v2662 = vpop.xlane.xlu0 %2661
    %v2663 = vsel %vm85, %v1909, -inf
    %2664 = vmax.xlane.f32.xlu0 %v2663
    %v2665 = vpop.xlane.xlu0 %2664
    %v2666 = vsel %vm85, %v1910, -inf
    %2667 = vmax.xlane.f32.xlu0 %v2666
    %v2668 = vpop.xlane.xlu0 %2667
    %v2669 = vsel %vm85, %v1911, -inf
    %2670 = vmax.xlane.f32.xlu0 %v2669
    %v2671 = vpop.xlane.xlu0 %2670
    %v2672 = vsel %vm85, %v1912, -inf
    %2673 = vmax.xlane.f32.xlu0 %v2672
    %v2674 = vpop.xlane.xlu0 %2673
    %v2675 = vsel %vm85, %v1913, -inf
    %2676 = vmax.xlane.f32.xlu0 %v2675
    %v2677 = vpop.xlane.xlu0 %2676
    %v2678 = vsel %vm85, %v1914, -inf
    %2679 = vmax.xlane.f32.xlu0 %v2678
    %v2680 = vpop.xlane.xlu0 %2679
    %v2681 = vsel %vm85, %v1915, -inf
    %2682 = vmax.xlane.f32.xlu0 %v2681
    %v2683 = vpop.xlane.xlu0 %2682
    %v2684 = vsel %vm1596, %v1260, inf
    %v2685 = vsel %vm1596, %v1261, inf
    %v2686 = vsel %vm1596, %v1262, inf
    %v2687 = vsel %vm1596, %v1263, inf
    %v2688 = vsel %vm1597, %v1260, inf
    %v2689 = vsel %vm1597, %v1261, inf
    %v2690 = vsel %vm1597, %v1262, inf
    %v2691 = vsel %vm1597, %v1263, inf
    %v2692 = vsel %vm1598, %v1260, inf
    %v2693 = vsel %vm1598, %v1261, inf
    %v2694 = vsel %vm1598, %v1262, inf
    %v2695 = vsel %vm1598, %v1263, inf
    %v2696 = vsel %vm1599, %v1260, inf
    %v2697 = vsel %vm1599, %v1261, inf
    %v2698 = vsel %vm1599, %v1262, inf
    %v2699 = vsel %vm1599, %v1263, inf
    %v2700 = vsel %vm1600, %v1260, inf
    %v2701 = vsel %vm1600, %v1261, inf
    %v2702 = vsel %vm1600, %v1262, inf
    %v2703 = vsel %vm1600, %v1263, inf
    %v2704 = vsel %vm1601, %v1260, inf
    %v2705 = vsel %vm1601, %v1261, inf
    %v2706 = vsel %vm1601, %v1262, inf
    %v2707 = vsel %vm1601, %v1263, inf
    %v2708 = vsel %vm1602, %v1260, inf
    %v2709 = vsel %vm1602, %v1261, inf
    %v2710 = vsel %vm1602, %v1262, inf
    %v2711 = vsel %vm1602, %v1263, inf
    %v2712 = vsel %vm1603, %v1260, inf
    %v2713 = vsel %vm1603, %v1261, inf
    %v2714 = vsel %vm1603, %v1262, inf
    %v2715 = vsel %vm1603, %v1263, inf
    %v2716 = vsel %vm1604, %v1260, inf
    %v2717 = vsel %vm1604, %v1261, inf
    %v2718 = vsel %vm1604, %v1262, inf
    %v2719 = vsel %vm1604, %v1263, inf
    %v2720 = vsel %vm1605, %v1260, inf
    %v2721 = vsel %vm1605, %v1261, inf
    %v2722 = vsel %vm1605, %v1262, inf
    %v2723 = vsel %vm1605, %v1263, inf
    %v2724 = vsel %vm1606, %v1260, inf
    %v2725 = vsel %vm1606, %v1261, inf
    %v2726 = vsel %vm1606, %v1262, inf
    %v2727 = vsel %vm1606, %v1263, inf
    %v2728 = vsel %vm1607, %v1260, inf
    %v2729 = vsel %vm1607, %v1261, inf
    %v2730 = vsel %vm1607, %v1262, inf
    %v2731 = vsel %vm1607, %v1263, inf
    %v2732 = vsel %vm1608, %v1260, inf
    %v2733 = vsel %vm1608, %v1261, inf
    %v2734 = vsel %vm1608, %v1262, inf
    %v2735 = vsel %vm1608, %v1263, inf
    %v2736 = vsel %vm1609, %v1260, inf
    %v2737 = vsel %vm1609, %v1261, inf
    %v2738 = vsel %vm1609, %v1262, inf
    %v2739 = vsel %vm1609, %v1263, inf
    %v2740 = vsel %vm1610, %v1260, inf
    %v2741 = vsel %vm1610, %v1261, inf
    %v2742 = vsel %vm1610, %v1262, inf
    %v2743 = vsel %vm1610, %v1263, inf
    %v2744 = vsel %vm1611, %v1260, inf
    %v2745 = vsel %vm1611, %v1261, inf
    %v2746 = vsel %vm1611, %v1262, inf
    %v2747 = vsel %vm1611, %v1263, inf
    %v2748 = vsel %vm1612, %v1260, inf
    %v2749 = vsel %vm1612, %v1261, inf
    %v2750 = vsel %vm1612, %v1262, inf
    %v2751 = vsel %vm1612, %v1263, inf
    %v2752 = vsel %vm1613, %v1260, inf
    %v2753 = vsel %vm1613, %v1261, inf
    %v2754 = vsel %vm1613, %v1262, inf
    %v2755 = vsel %vm1613, %v1263, inf
    %v2756 = vsel %vm1614, %v1260, inf
    %v2757 = vsel %vm1614, %v1261, inf
    %v2758 = vsel %vm1614, %v1262, inf
    %v2759 = vsel %vm1614, %v1263, inf
    %v2760 = vsel %vm1615, %v1260, inf
    %v2761 = vsel %vm1615, %v1261, inf
    %v2762 = vsel %vm1615, %v1262, inf
    %v2763 = vsel %vm1615, %v1263, inf
    %v2764 = vsel %vm1616, %v1260, inf
    %v2765 = vsel %vm1616, %v1261, inf
    %v2766 = vsel %vm1616, %v1262, inf
    %v2767 = vsel %vm1616, %v1263, inf
    %v2768 = vsel %vm1617, %v1260, inf
    %v2769 = vsel %vm1617, %v1261, inf
    %v2770 = vsel %vm1617, %v1262, inf
    %v2771 = vsel %vm1617, %v1263, inf
    %v2772 = vsel %vm1618, %v1260, inf
    %v2773 = vsel %vm1618, %v1261, inf
    %v2774 = vsel %vm1618, %v1262, inf
    %v2775 = vsel %vm1618, %v1263, inf
    %v2776 = vsel %vm1619, %v1260, inf
    %v2777 = vsel %vm1619, %v1261, inf
    %v2778 = vsel %vm1619, %v1262, inf
    %v2779 = vsel %vm1619, %v1263, inf
    %v2780 = vsel %vm1620, %v1260, inf
    %v2781 = vsel %vm1620, %v1261, inf
    %v2782 = vsel %vm1620, %v1262, inf
    %v2783 = vsel %vm1620, %v1263, inf
    %v2784 = vsel %vm1621, %v1260, inf
    %v2785 = vsel %vm1621, %v1261, inf
    %v2786 = vsel %vm1621, %v1262, inf
    %v2787 = vsel %vm1621, %v1263, inf
    %v2788 = vsel %vm1622, %v1260, inf
    %v2789 = vsel %vm1622, %v1261, inf
    %v2790 = vsel %vm1622, %v1262, inf
    %v2791 = vsel %vm1622, %v1263, inf
    %v2792 = vsel %vm1623, %v1260, inf
    %v2793 = vsel %vm1623, %v1261, inf
    %v2794 = vsel %vm1623, %v1262, inf
    %v2795 = vsel %vm1623, %v1263, inf
    %v2796 = vsel %vm1624, %v1260, inf
    %v2797 = vsel %vm1624, %v1261, inf
    %v2798 = vsel %vm1624, %v1262, inf
    %v2799 = vsel %vm1624, %v1263, inf
    %v2800 = vsel %vm1625, %v1260, inf
    %v2801 = vsel %vm1625, %v1261, inf
    %v2802 = vsel %vm1625, %v1262, inf
    %v2803 = vsel %vm1625, %v1263, inf
    %v2804 = vsel %vm1626, %v1260, inf
    %v2805 = vsel %vm1626, %v1261, inf
    %v2806 = vsel %vm1626, %v1262, inf
    %v2807 = vsel %vm1626, %v1263, inf
    %v2808 = vsel %vm1627, %v1260, inf
    %v2809 = vsel %vm1627, %v1261, inf
    %v2810 = vsel %vm1627, %v1262, inf
    %v2811 = vsel %vm1627, %v1263, inf
    %v2812 = vsel %vm1628, %v1260, inf
    %v2813 = vsel %vm1628, %v1261, inf
    %v2814 = vsel %vm1628, %v1262, inf
    %v2815 = vsel %vm1628, %v1263, inf
    %v2816 = vsel %vm1629, %v1260, inf
    %v2817 = vsel %vm1629, %v1261, inf
    %v2818 = vsel %vm1629, %v1262, inf
    %v2819 = vsel %vm1629, %v1263, inf
    %v2820 = vsel %vm1630, %v1260, inf
    %v2821 = vsel %vm1630, %v1261, inf
    %v2822 = vsel %vm1630, %v1262, inf
    %v2823 = vsel %vm1630, %v1263, inf
    %v2824 = vsel %vm1631, %v1260, inf
    %v2825 = vsel %vm1631, %v1261, inf
    %v2826 = vsel %vm1631, %v1262, inf
    %v2827 = vsel %vm1631, %v1263, inf
    %v2828 = vsel %vm1632, %v1260, inf
    %v2829 = vsel %vm1632, %v1261, inf
    %v2830 = vsel %vm1632, %v1262, inf
    %v2831 = vsel %vm1632, %v1263, inf
    %v2832 = vsel %vm1633, %v1260, inf
    %v2833 = vsel %vm1633, %v1261, inf
    %v2834 = vsel %vm1633, %v1262, inf
    %v2835 = vsel %vm1633, %v1263, inf
    %v2836 = vsel %vm1634, %v1260, inf
    %v2837 = vsel %vm1634, %v1261, inf
    %v2838 = vsel %vm1634, %v1262, inf
    %v2839 = vsel %vm1634, %v1263, inf
    %v2840 = vsel %vm1635, %v1260, inf
    %v2841 = vsel %vm1635, %v1261, inf
    %v2842 = vsel %vm1635, %v1262, inf
    %v2843 = vsel %vm1635, %v1263, inf
    %v2844 = vsel %vm1636, %v1260, inf
    %v2845 = vsel %vm1636, %v1261, inf
    %v2846 = vsel %vm1636, %v1262, inf
    %v2847 = vsel %vm1636, %v1263, inf
    %v2848 = vsel %vm1637, %v1260, inf
    %v2849 = vsel %vm1637, %v1261, inf
    %v2850 = vsel %vm1637, %v1262, inf
    %v2851 = vsel %vm1637, %v1263, inf
    %v2852 = vsel %vm1638, %v1260, inf
    %v2853 = vsel %vm1638, %v1261, inf
    %v2854 = vsel %vm1638, %v1262, inf
    %v2855 = vsel %vm1638, %v1263, inf
    %v2856 = vsel %vm1639, %v1260, inf
    %v2857 = vsel %vm1639, %v1261, inf
    %v2858 = vsel %vm1639, %v1262, inf
    %v2859 = vsel %vm1639, %v1263, inf
    %v2860 = vsel %vm1640, %v1260, inf
    %v2861 = vsel %vm1640, %v1261, inf
    %v2862 = vsel %vm1640, %v1262, inf
    %v2863 = vsel %vm1640, %v1263, inf
    %v2864 = vsel %vm1641, %v1260, inf
    %v2865 = vsel %vm1641, %v1261, inf
    %v2866 = vsel %vm1641, %v1262, inf
    %v2867 = vsel %vm1641, %v1263, inf
    %v2868 = vsel %vm1642, %v1260, inf
    %v2869 = vsel %vm1642, %v1261, inf
    %v2870 = vsel %vm1642, %v1262, inf
    %v2871 = vsel %vm1642, %v1263, inf
    %v2872 = vsel %vm1643, %v1260, inf
    %v2873 = vsel %vm1643, %v1261, inf
    %v2874 = vsel %vm1643, %v1262, inf
    %v2875 = vsel %vm1643, %v1263, inf
    %v2876 = vsel %vm1644, %v1260, inf
    %v2877 = vsel %vm1644, %v1261, inf
    %v2878 = vsel %vm1644, %v1262, inf
    %v2879 = vsel %vm1644, %v1263, inf
    %v2880 = vsel %vm1645, %v1260, inf
    %v2881 = vsel %vm1645, %v1261, inf
    %v2882 = vsel %vm1645, %v1262, inf
    %v2883 = vsel %vm1645, %v1263, inf
    %v2884 = vsel %vm1646, %v1260, inf
    %v2885 = vsel %vm1646, %v1261, inf
    %v2886 = vsel %vm1646, %v1262, inf
    %v2887 = vsel %vm1646, %v1263, inf
    %v2888 = vsel %vm1647, %v1260, inf
    %v2889 = vsel %vm1647, %v1261, inf
    %v2890 = vsel %vm1647, %v1262, inf
    %v2891 = vsel %vm1647, %v1263, inf
    %v2892 = vsel %vm1648, %v1260, inf
    %v2893 = vsel %vm1648, %v1261, inf
    %v2894 = vsel %vm1648, %v1262, inf
    %v2895 = vsel %vm1648, %v1263, inf
    %v2896 = vsel %vm1649, %v1260, inf
    %v2897 = vsel %vm1649, %v1261, inf
    %v2898 = vsel %vm1649, %v1262, inf
    %v2899 = vsel %vm1649, %v1263, inf
    %v2900 = vsel %vm1650, %v1260, inf
    %v2901 = vsel %vm1650, %v1261, inf
    %v2902 = vsel %vm1650, %v1262, inf
    %v2903 = vsel %vm1650, %v1263, inf
    %v2904 = vsel %vm1651, %v1260, inf
    %v2905 = vsel %vm1651, %v1261, inf
    %v2906 = vsel %vm1651, %v1262, inf
    %v2907 = vsel %vm1651, %v1263, inf
    %v2908 = vsel %vm1652, %v1260, inf
    %v2909 = vsel %vm1652, %v1261, inf
    %v2910 = vsel %vm1652, %v1262, inf
    %v2911 = vsel %vm1652, %v1263, inf
    %v2912 = vsel %vm1653, %v1260, inf
    %v2913 = vsel %vm1653, %v1261, inf
    %v2914 = vsel %vm1653, %v1262, inf
    %v2915 = vsel %vm1653, %v1263, inf
    %v2916 = vsel %vm1654, %v1260, inf
    %v2917 = vsel %vm1654, %v1261, inf
    %v2918 = vsel %vm1654, %v1262, inf
    %v2919 = vsel %vm1654, %v1263, inf
    %v2920 = vsel %vm1655, %v1260, inf
    %v2921 = vsel %vm1655, %v1261, inf
    %v2922 = vsel %vm1655, %v1262, inf
    %v2923 = vsel %vm1655, %v1263, inf
    %v2924 = vsel %vm1656, %v1260, inf
    %v2925 = vsel %vm1656, %v1261, inf
    %v2926 = vsel %vm1656, %v1262, inf
    %v2927 = vsel %vm1656, %v1263, inf
    %v2928 = vsel %vm1657, %v1260, inf
    %v2929 = vsel %vm1657, %v1261, inf
    %v2930 = vsel %vm1657, %v1262, inf
    %v2931 = vsel %vm1657, %v1263, inf
    %v2932 = vsel %vm1658, %v1260, inf
    %v2933 = vsel %vm1658, %v1261, inf
    %v2934 = vsel %vm1658, %v1262, inf
    %v2935 = vsel %vm1658, %v1263, inf
    %v2936 = vsel %vm1659, %v1260, inf
    %v2937 = vsel %vm1659, %v1261, inf
    %v2938 = vsel %vm1659, %v1262, inf
    %v2939 = vsel %vm1659, %v1263, inf
    %v2940 = vsel %vm85, %v2684, inf
    %2941 = vmin.xlane.f32.xlu0 %v2940
    %v2942 = vpop.xlane.xlu0 %2941
    %v2943 = vsel %vm85, %v2685, inf
    %2944 = vmin.xlane.f32.xlu0 %v2943
    %v2945 = vpop.xlane.xlu0 %2944
    %v2946 = vsel %vm85, %v2686, inf
    %2947 = vmin.xlane.f32.xlu0 %v2946
    %v2948 = vpop.xlane.xlu0 %2947
    %v2949 = vsel %vm85, %v2687, inf
    %2950 = vmin.xlane.f32.xlu0 %v2949
    %v2951 = vpop.xlane.xlu0 %2950
    %v2952 = vsel %vm85, %v2688, inf
    %2953 = vmin.xlane.f32.xlu0 %v2952
    %v2954 = vpop.xlane.xlu0 %2953
    %v2955 = vsel %vm85, %v2689, inf
    %2956 = vmin.xlane.f32.xlu0 %v2955
    %v2957 = vpop.xlane.xlu0 %2956
    %v2958 = vsel %vm85, %v2690, inf
    %2959 = vmin.xlane.f32.xlu0 %v2958
    %v2960 = vpop.xlane.xlu0 %2959
    %v2961 = vsel %vm85, %v2691, inf
    %2962 = vmin.xlane.f32.xlu0 %v2961
    %v2963 = vpop.xlane.xlu0 %2962
    %v2964 = vsel %vm85, %v2692, inf
    %2965 = vmin.xlane.f32.xlu0 %v2964
    %v2966 = vpop.xlane.xlu0 %2965
    %v2967 = vsel %vm85, %v2693, inf
    %2968 = vmin.xlane.f32.xlu0 %v2967
    %v2969 = vpop.xlane.xlu0 %2968
    %v2970 = vsel %vm85, %v2694, inf
    %2971 = vmin.xlane.f32.xlu0 %v2970
    %v2972 = vpop.xlane.xlu0 %2971
    %v2973 = vsel %vm85, %v2695, inf
    %2974 = vmin.xlane.f32.xlu0 %v2973
    %v2975 = vpop.xlane.xlu0 %2974
    %v2976 = vsel %vm85, %v2696, inf
    %2977 = vmin.xlane.f32.xlu0 %v2976
    %v2978 = vpop.xlane.xlu0 %2977
    %v2979 = vsel %vm85, %v2697, inf
    %2980 = vmin.xlane.f32.xlu0 %v2979
    %v2981 = vpop.xlane.xlu0 %2980
    %v2982 = vsel %vm85, %v2698, inf
    %2983 = vmin.xlane.f32.xlu0 %v2982
    %v2984 = vpop.xlane.xlu0 %2983
    %v2985 = vsel %vm85, %v2699, inf
    %2986 = vmin.xlane.f32.xlu0 %v2985
    %v2987 = vpop.xlane.xlu0 %2986
    %v2988 = vsel %vm85, %v2700, inf
    %2989 = vmin.xlane.f32.xlu0 %v2988
    %v2990 = vpop.xlane.xlu0 %2989
    %v2991 = vsel %vm85, %v2701, inf
    %2992 = vmin.xlane.f32.xlu0 %v2991
    %v2993 = vpop.xlane.xlu0 %2992
    %v2994 = vsel %vm85, %v2702, inf
    %2995 = vmin.xlane.f32.xlu0 %v2994
    %v2996 = vpop.xlane.xlu0 %2995
    %v2997 = vsel %vm85, %v2703, inf
    %2998 = vmin.xlane.f32.xlu0 %v2997
    %v2999 = vpop.xlane.xlu0 %2998
    %v3000 = vsel %vm85, %v2704, inf
    %3001 = vmin.xlane.f32.xlu0 %v3000
    %v3002 = vpop.xlane.xlu0 %3001
    %v3003 = vsel %vm85, %v2705, inf
    %3004 = vmin.xlane.f32.xlu0 %v3003
    %v3005 = vpop.xlane.xlu0 %3004
    %v3006 = vsel %vm85, %v2706, inf
    %3007 = vmin.xlane.f32.xlu0 %v3006
    %v3008 = vpop.xlane.xlu0 %3007
    %v3009 = vsel %vm85, %v2707, inf
    %3010 = vmin.xlane.f32.xlu0 %v3009
    %v3011 = vpop.xlane.xlu0 %3010
    %v3012 = vsel %vm85, %v2708, inf
    %3013 = vmin.xlane.f32.xlu0 %v3012
    %v3014 = vpop.xlane.xlu0 %3013
    %v3015 = vsel %vm85, %v2709, inf
    %3016 = vmin.xlane.f32.xlu0 %v3015
    %v3017 = vpop.xlane.xlu0 %3016
    %v3018 = vsel %vm85, %v2710, inf
    %3019 = vmin.xlane.f32.xlu0 %v3018
    %v3020 = vpop.xlane.xlu0 %3019
    %v3021 = vsel %vm85, %v2711, inf
    %3022 = vmin.xlane.f32.xlu0 %v3021
    %v3023 = vpop.xlane.xlu0 %3022
    %v3024 = vsel %vm85, %v2712, inf
    %3025 = vmin.xlane.f32.xlu0 %v3024
    %v3026 = vpop.xlane.xlu0 %3025
    %v3027 = vsel %vm85, %v2713, inf
    %3028 = vmin.xlane.f32.xlu0 %v3027
    %v3029 = vpop.xlane.xlu0 %3028
    %v3030 = vsel %vm85, %v2714, inf
    %3031 = vmin.xlane.f32.xlu0 %v3030
    %v3032 = vpop.xlane.xlu0 %3031
    %v3033 = vsel %vm85, %v2715, inf
    %3034 = vmin.xlane.f32.xlu0 %v3033
    %v3035 = vpop.xlane.xlu0 %3034
    %v3036 = vsel %vm85, %v2716, inf
    %3037 = vmin.xlane.f32.xlu0 %v3036
    %v3038 = vpop.xlane.xlu0 %3037
    %v3039 = vsel %vm85, %v2717, inf
    %3040 = vmin.xlane.f32.xlu0 %v3039
    %v3041 = vpop.xlane.xlu0 %3040
    %v3042 = vsel %vm85, %v2718, inf
    %3043 = vmin.xlane.f32.xlu0 %v3042
    %v3044 = vpop.xlane.xlu0 %3043
    %v3045 = vsel %vm85, %v2719, inf
    %3046 = vmin.xlane.f32.xlu0 %v3045
    %v3047 = vpop.xlane.xlu0 %3046
    %v3048 = vsel %vm85, %v2720, inf
    %3049 = vmin.xlane.f32.xlu0 %v3048
    %v3050 = vpop.xlane.xlu0 %3049
    %v3051 = vsel %vm85, %v2721, inf
    %3052 = vmin.xlane.f32.xlu0 %v3051
    %v3053 = vpop.xlane.xlu0 %3052
    %v3054 = vsel %vm85, %v2722, inf
    %3055 = vmin.xlane.f32.xlu0 %v3054
    %v3056 = vpop.xlane.xlu0 %3055
    %v3057 = vsel %vm85, %v2723, inf
    %3058 = vmin.xlane.f32.xlu0 %v3057
    %v3059 = vpop.xlane.xlu0 %3058
    %v3060 = vsel %vm85, %v2724, inf
    %3061 = vmin.xlane.f32.xlu0 %v3060
    %v3062 = vpop.xlane.xlu0 %3061
    %v3063 = vsel %vm85, %v2725, inf
    %3064 = vmin.xlane.f32.xlu0 %v3063
    %v3065 = vpop.xlane.xlu0 %3064
    %v3066 = vsel %vm85, %v2726, inf
    %3067 = vmin.xlane.f32.xlu0 %v3066
    %v3068 = vpop.xlane.xlu0 %3067
    %v3069 = vsel %vm85, %v2727, inf
    %3070 = vmin.xlane.f32.xlu0 %v3069
    %v3071 = vpop.xlane.xlu0 %3070
    %v3072 = vsel %vm85, %v2728, inf
    %3073 = vmin.xlane.f32.xlu0 %v3072
    %v3074 = vpop.xlane.xlu0 %3073
    %v3075 = vsel %vm85, %v2729, inf
    %3076 = vmin.xlane.f32.xlu0 %v3075
    %v3077 = vpop.xlane.xlu0 %3076
    %v3078 = vsel %vm85, %v2730, inf
    %3079 = vmin.xlane.f32.xlu0 %v3078
    %v3080 = vpop.xlane.xlu0 %3079
    %v3081 = vsel %vm85, %v2731, inf
    %3082 = vmin.xlane.f32.xlu0 %v3081
    %v3083 = vpop.xlane.xlu0 %3082
    %v3084 = vsel %vm85, %v2732, inf
    %3085 = vmin.xlane.f32.xlu0 %v3084
    %v3086 = vpop.xlane.xlu0 %3085
    %v3087 = vsel %vm85, %v2733, inf
    %3088 = vmin.xlane.f32.xlu0 %v3087
    %v3089 = vpop.xlane.xlu0 %3088
    %v3090 = vsel %vm85, %v2734, inf
    %3091 = vmin.xlane.f32.xlu0 %v3090
    %v3092 = vpop.xlane.xlu0 %3091
    %v3093 = vsel %vm85, %v2735, inf
    %3094 = vmin.xlane.f32.xlu0 %v3093
    %v3095 = vpop.xlane.xlu0 %3094
    %v3096 = vsel %vm85, %v2736, inf
    %3097 = vmin.xlane.f32.xlu0 %v3096
    %v3098 = vpop.xlane.xlu0 %3097
    %v3099 = vsel %vm85, %v2737, inf
    %3100 = vmin.xlane.f32.xlu0 %v3099
    %v3101 = vpop.xlane.xlu0 %3100
    %v3102 = vsel %vm85, %v2738, inf
    %3103 = vmin.xlane.f32.xlu0 %v3102
    %v3104 = vpop.xlane.xlu0 %3103
    %v3105 = vsel %vm85, %v2739, inf
    %3106 = vmin.xlane.f32.xlu0 %v3105
    %v3107 = vpop.xlane.xlu0 %3106
    %v3108 = vsel %vm85, %v2740, inf
    %3109 = vmin.xlane.f32.xlu0 %v3108
    %v3110 = vpop.xlane.xlu0 %3109
    %v3111 = vsel %vm85, %v2741, inf
    %3112 = vmin.xlane.f32.xlu0 %v3111
    %v3113 = vpop.xlane.xlu0 %3112
    %v3114 = vsel %vm85, %v2742, inf
    %3115 = vmin.xlane.f32.xlu0 %v3114
    %v3116 = vpop.xlane.xlu0 %3115
    %v3117 = vsel %vm85, %v2743, inf
    %3118 = vmin.xlane.f32.xlu0 %v3117
    %v3119 = vpop.xlane.xlu0 %3118
    %v3120 = vsel %vm85, %v2744, inf
    %3121 = vmin.xlane.f32.xlu0 %v3120
    %v3122 = vpop.xlane.xlu0 %3121
    %v3123 = vsel %vm85, %v2745, inf
    %3124 = vmin.xlane.f32.xlu0 %v3123
    %v3125 = vpop.xlane.xlu0 %3124
    %v3126 = vsel %vm85, %v2746, inf
    %3127 = vmin.xlane.f32.xlu0 %v3126
    %v3128 = vpop.xlane.xlu0 %3127
    %v3129 = vsel %vm85, %v2747, inf
    %3130 = vmin.xlane.f32.xlu0 %v3129
    %v3131 = vpop.xlane.xlu0 %3130
    %v3132 = vsel %vm85, %v2748, inf
    %3133 = vmin.xlane.f32.xlu0 %v3132
    %v3134 = vpop.xlane.xlu0 %3133
    %v3135 = vsel %vm85, %v2749, inf
    %3136 = vmin.xlane.f32.xlu0 %v3135
    %v3137 = vpop.xlane.xlu0 %3136
    %v3138 = vsel %vm85, %v2750, inf
    %3139 = vmin.xlane.f32.xlu0 %v3138
    %v3140 = vpop.xlane.xlu0 %3139
    %v3141 = vsel %vm85, %v2751, inf
    %3142 = vmin.xlane.f32.xlu0 %v3141
    %v3143 = vpop.xlane.xlu0 %3142
    %v3144 = vsel %vm85, %v2752, inf
    %3145 = vmin.xlane.f32.xlu0 %v3144
    %v3146 = vpop.xlane.xlu0 %3145
    %v3147 = vsel %vm85, %v2753, inf
    %3148 = vmin.xlane.f32.xlu0 %v3147
    %v3149 = vpop.xlane.xlu0 %3148
    %v3150 = vsel %vm85, %v2754, inf
    %3151 = vmin.xlane.f32.xlu0 %v3150
    %v3152 = vpop.xlane.xlu0 %3151
    %v3153 = vsel %vm85, %v2755, inf
    %3154 = vmin.xlane.f32.xlu0 %v3153
    %v3155 = vpop.xlane.xlu0 %3154
    %v3156 = vsel %vm85, %v2756, inf
    %3157 = vmin.xlane.f32.xlu0 %v3156
    %v3158 = vpop.xlane.xlu0 %3157
    %v3159 = vsel %vm85, %v2757, inf
    %3160 = vmin.xlane.f32.xlu0 %v3159
    %v3161 = vpop.xlane.xlu0 %3160
    %v3162 = vsel %vm85, %v2758, inf
    %3163 = vmin.xlane.f32.xlu0 %v3162
    %v3164 = vpop.xlane.xlu0 %3163
    %v3165 = vsel %vm85, %v2759, inf
    %3166 = vmin.xlane.f32.xlu0 %v3165
    %v3167 = vpop.xlane.xlu0 %3166
    %v3168 = vsel %vm85, %v2760, inf
    %3169 = vmin.xlane.f32.xlu0 %v3168
    %v3170 = vpop.xlane.xlu0 %3169
    %v3171 = vsel %vm85, %v2761, inf
    %3172 = vmin.xlane.f32.xlu0 %v3171
    %v3173 = vpop.xlane.xlu0 %3172
    %v3174 = vsel %vm85, %v2762, inf
    %3175 = vmin.xlane.f32.xlu0 %v3174
    %v3176 = vpop.xlane.xlu0 %3175
    %v3177 = vsel %vm85, %v2763, inf
    %3178 = vmin.xlane.f32.xlu0 %v3177
    %v3179 = vpop.xlane.xlu0 %3178
    %v3180 = vsel %vm85, %v2764, inf
    %3181 = vmin.xlane.f32.xlu0 %v3180
    %v3182 = vpop.xlane.xlu0 %3181
    %v3183 = vsel %vm85, %v2765, inf
    %3184 = vmin.xlane.f32.xlu0 %v3183
    %v3185 = vpop.xlane.xlu0 %3184
    %v3186 = vsel %vm85, %v2766, inf
    %3187 = vmin.xlane.f32.xlu0 %v3186
    %v3188 = vpop.xlane.xlu0 %3187
    %v3189 = vsel %vm85, %v2767, inf
    %3190 = vmin.xlane.f32.xlu0 %v3189
    %v3191 = vpop.xlane.xlu0 %3190
    %v3192 = vsel %vm85, %v2768, inf
    %3193 = vmin.xlane.f32.xlu0 %v3192
    %v3194 = vpop.xlane.xlu0 %3193
    %v3195 = vsel %vm85, %v2769, inf
    %3196 = vmin.xlane.f32.xlu0 %v3195
    %v3197 = vpop.xlane.xlu0 %3196
    %v3198 = vsel %vm85, %v2770, inf
    %3199 = vmin.xlane.f32.xlu0 %v3198
    %v3200 = vpop.xlane.xlu0 %3199
    %v3201 = vsel %vm85, %v2771, inf
    %3202 = vmin.xlane.f32.xlu0 %v3201
    %v3203 = vpop.xlane.xlu0 %3202
    %v3204 = vsel %vm85, %v2772, inf
    %3205 = vmin.xlane.f32.xlu0 %v3204
    %v3206 = vpop.xlane.xlu0 %3205
    %v3207 = vsel %vm85, %v2773, inf
    %3208 = vmin.xlane.f32.xlu0 %v3207
    %v3209 = vpop.xlane.xlu0 %3208
    %v3210 = vsel %vm85, %v2774, inf
    %3211 = vmin.xlane.f32.xlu0 %v3210
    %v3212 = vpop.xlane.xlu0 %3211
    %v3213 = vsel %vm85, %v2775, inf
    %3214 = vmin.xlane.f32.xlu0 %v3213
    %v3215 = vpop.xlane.xlu0 %3214
    %v3216 = vsel %vm85, %v2776, inf
    %3217 = vmin.xlane.f32.xlu0 %v3216
    %v3218 = vpop.xlane.xlu0 %3217
    %v3219 = vsel %vm85, %v2777, inf
    %3220 = vmin.xlane.f32.xlu0 %v3219
    %v3221 = vpop.xlane.xlu0 %3220
    %v3222 = vsel %vm85, %v2778, inf
    %3223 = vmin.xlane.f32.xlu0 %v3222
    %v3224 = vpop.xlane.xlu0 %3223
    %v3225 = vsel %vm85, %v2779, inf
    %3226 = vmin.xlane.f32.xlu0 %v3225
    %v3227 = vpop.xlane.xlu0 %3226
    %v3228 = vsel %vm85, %v2780, inf
    %3229 = vmin.xlane.f32.xlu0 %v3228
    %v3230 = vpop.xlane.xlu0 %3229
    %v3231 = vsel %vm85, %v2781, inf
    %3232 = vmin.xlane.f32.xlu0 %v3231
    %v3233 = vpop.xlane.xlu0 %3232
    %v3234 = vsel %vm85, %v2782, inf
    %3235 = vmin.xlane.f32.xlu0 %v3234
    %v3236 = vpop.xlane.xlu0 %3235
    %v3237 = vsel %vm85, %v2783, inf
    %3238 = vmin.xlane.f32.xlu0 %v3237
    %v3239 = vpop.xlane.xlu0 %3238
    %v3240 = vsel %vm85, %v2784, inf
    %3241 = vmin.xlane.f32.xlu0 %v3240
    %v3242 = vpop.xlane.xlu0 %3241
    %v3243 = vsel %vm85, %v2785, inf
    %3244 = vmin.xlane.f32.xlu0 %v3243
    %v3245 = vpop.xlane.xlu0 %3244
    %v3246 = vsel %vm85, %v2786, inf
    %3247 = vmin.xlane.f32.xlu0 %v3246
    %v3248 = vpop.xlane.xlu0 %3247
    %v3249 = vsel %vm85, %v2787, inf
    %3250 = vmin.xlane.f32.xlu0 %v3249
    %v3251 = vpop.xlane.xlu0 %3250
    %v3252 = vsel %vm85, %v2788, inf
    %3253 = vmin.xlane.f32.xlu0 %v3252
    %v3254 = vpop.xlane.xlu0 %3253
    %v3255 = vsel %vm85, %v2789, inf
    %3256 = vmin.xlane.f32.xlu0 %v3255
    %v3257 = vpop.xlane.xlu0 %3256
    %v3258 = vsel %vm85, %v2790, inf
    %3259 = vmin.xlane.f32.xlu0 %v3258
    %v3260 = vpop.xlane.xlu0 %3259
    %v3261 = vsel %vm85, %v2791, inf
    %3262 = vmin.xlane.f32.xlu0 %v3261
    %v3263 = vpop.xlane.xlu0 %3262
    %v3264 = vsel %vm85, %v2792, inf
    %3265 = vmin.xlane.f32.xlu0 %v3264
    %v3266 = vpop.xlane.xlu0 %3265
    %v3267 = vsel %vm85, %v2793, inf
    %3268 = vmin.xlane.f32.xlu0 %v3267
    %v3269 = vpop.xlane.xlu0 %3268
    %v3270 = vsel %vm85, %v2794, inf
    %3271 = vmin.xlane.f32.xlu0 %v3270
    %v3272 = vpop.xlane.xlu0 %3271
    %v3273 = vsel %vm85, %v2795, inf
    %3274 = vmin.xlane.f32.xlu0 %v3273
    %v3275 = vpop.xlane.xlu0 %3274
    %v3276 = vsel %vm85, %v2796, inf
    %3277 = vmin.xlane.f32.xlu0 %v3276
    %v3278 = vpop.xlane.xlu0 %3277
    %v3279 = vsel %vm85, %v2797, inf
    %3280 = vmin.xlane.f32.xlu0 %v3279
    %v3281 = vpop.xlane.xlu0 %3280
    %v3282 = vsel %vm85, %v2798, inf
    %3283 = vmin.xlane.f32.xlu0 %v3282
    %v3284 = vpop.xlane.xlu0 %3283
    %v3285 = vsel %vm85, %v2799, inf
    %3286 = vmin.xlane.f32.xlu0 %v3285
    %v3287 = vpop.xlane.xlu0 %3286
    %v3288 = vsel %vm85, %v2800, inf
    %3289 = vmin.xlane.f32.xlu0 %v3288
    %v3290 = vpop.xlane.xlu0 %3289
    %v3291 = vsel %vm85, %v2801, inf
    %3292 = vmin.xlane.f32.xlu0 %v3291
    %v3293 = vpop.xlane.xlu0 %3292
    %v3294 = vsel %vm85, %v2802, inf
    %3295 = vmin.xlane.f32.xlu0 %v3294
    %v3296 = vpop.xlane.xlu0 %3295
    %v3297 = vsel %vm85, %v2803, inf
    %3298 = vmin.xlane.f32.xlu0 %v3297
    %v3299 = vpop.xlane.xlu0 %3298
    %v3300 = vsel %vm85, %v2804, inf
    %3301 = vmin.xlane.f32.xlu0 %v3300
    %v3302 = vpop.xlane.xlu0 %3301
    %v3303 = vsel %vm85, %v2805, inf
    %3304 = vmin.xlane.f32.xlu0 %v3303
    %v3305 = vpop.xlane.xlu0 %3304
    %v3306 = vsel %vm85, %v2806, inf
    %3307 = vmin.xlane.f32.xlu0 %v3306
    %v3308 = vpop.xlane.xlu0 %3307
    %v3309 = vsel %vm85, %v2807, inf
    %3310 = vmin.xlane.f32.xlu0 %v3309
    %v3311 = vpop.xlane.xlu0 %3310
    %v3312 = vsel %vm85, %v2808, inf
    %3313 = vmin.xlane.f32.xlu0 %v3312
    %v3314 = vpop.xlane.xlu0 %3313
    %v3315 = vsel %vm85, %v2809, inf
    %3316 = vmin.xlane.f32.xlu0 %v3315
    %v3317 = vpop.xlane.xlu0 %3316
    %v3318 = vsel %vm85, %v2810, inf
    %3319 = vmin.xlane.f32.xlu0 %v3318
    %v3320 = vpop.xlane.xlu0 %3319
    %v3321 = vsel %vm85, %v2811, inf
    %3322 = vmin.xlane.f32.xlu0 %v3321
    %v3323 = vpop.xlane.xlu0 %3322
    %v3324 = vsel %vm85, %v2812, inf
    %3325 = vmin.xlane.f32.xlu0 %v3324
    %v3326 = vpop.xlane.xlu0 %3325
    %v3327 = vsel %vm85, %v2813, inf
    %3328 = vmin.xlane.f32.xlu0 %v3327
    %v3329 = vpop.xlane.xlu0 %3328
    %v3330 = vsel %vm85, %v2814, inf
    %3331 = vmin.xlane.f32.xlu0 %v3330
    %v3332 = vpop.xlane.xlu0 %3331
    %v3333 = vsel %vm85, %v2815, inf
    %3334 = vmin.xlane.f32.xlu0 %v3333
    %v3335 = vpop.xlane.xlu0 %3334
    %v3336 = vsel %vm85, %v2816, inf
    %3337 = vmin.xlane.f32.xlu0 %v3336
    %v3338 = vpop.xlane.xlu0 %3337
    %v3339 = vsel %vm85, %v2817, inf
    %3340 = vmin.xlane.f32.xlu0 %v3339
    %v3341 = vpop.xlane.xlu0 %3340
    %v3342 = vsel %vm85, %v2818, inf
    %3343 = vmin.xlane.f32.xlu0 %v3342
    %v3344 = vpop.xlane.xlu0 %3343
    %v3345 = vsel %vm85, %v2819, inf
    %3346 = vmin.xlane.f32.xlu0 %v3345
    %v3347 = vpop.xlane.xlu0 %3346
    %v3348 = vsel %vm85, %v2820, inf
    %3349 = vmin.xlane.f32.xlu0 %v3348
    %v3350 = vpop.xlane.xlu0 %3349
    %v3351 = vsel %vm85, %v2821, inf
    %3352 = vmin.xlane.f32.xlu0 %v3351
    %v3353 = vpop.xlane.xlu0 %3352
    %v3354 = vsel %vm85, %v2822, inf
    %3355 = vmin.xlane.f32.xlu0 %v3354
    %v3356 = vpop.xlane.xlu0 %3355
    %v3357 = vsel %vm85, %v2823, inf
    %3358 = vmin.xlane.f32.xlu0 %v3357
    %v3359 = vpop.xlane.xlu0 %3358
    %v3360 = vsel %vm85, %v2824, inf
    %3361 = vmin.xlane.f32.xlu0 %v3360
    %v3362 = vpop.xlane.xlu0 %3361
    %v3363 = vsel %vm85, %v2825, inf
    %3364 = vmin.xlane.f32.xlu0 %v3363
    %v3365 = vpop.xlane.xlu0 %3364
    %v3366 = vsel %vm85, %v2826, inf
    %3367 = vmin.xlane.f32.xlu0 %v3366
    %v3368 = vpop.xlane.xlu0 %3367
    %v3369 = vsel %vm85, %v2827, inf
    %3370 = vmin.xlane.f32.xlu0 %v3369
    %v3371 = vpop.xlane.xlu0 %3370
    %v3372 = vsel %vm85, %v2828, inf
    %3373 = vmin.xlane.f32.xlu0 %v3372
    %v3374 = vpop.xlane.xlu0 %3373
    %v3375 = vsel %vm85, %v2829, inf
    %3376 = vmin.xlane.f32.xlu0 %v3375
    %v3377 = vpop.xlane.xlu0 %3376
    %v3378 = vsel %vm85, %v2830, inf
    %3379 = vmin.xlane.f32.xlu0 %v3378
    %v3380 = vpop.xlane.xlu0 %3379
    %v3381 = vsel %vm85, %v2831, inf
    %3382 = vmin.xlane.f32.xlu0 %v3381
    %v3383 = vpop.xlane.xlu0 %3382
    %v3384 = vsel %vm85, %v2832, inf
    %3385 = vmin.xlane.f32.xlu0 %v3384
    %v3386 = vpop.xlane.xlu0 %3385
    %v3387 = vsel %vm85, %v2833, inf
    %3388 = vmin.xlane.f32.xlu0 %v3387
    %v3389 = vpop.xlane.xlu0 %3388
    %v3390 = vsel %vm85, %v2834, inf
    %3391 = vmin.xlane.f32.xlu0 %v3390
    %v3392 = vpop.xlane.xlu0 %3391
    %v3393 = vsel %vm85, %v2835, inf
    %3394 = vmin.xlane.f32.xlu0 %v3393
    %v3395 = vpop.xlane.xlu0 %3394
    %v3396 = vsel %vm85, %v2836, inf
    %3397 = vmin.xlane.f32.xlu0 %v3396
    %v3398 = vpop.xlane.xlu0 %3397
    %v3399 = vsel %vm85, %v2837, inf
    %3400 = vmin.xlane.f32.xlu0 %v3399
    %v3401 = vpop.xlane.xlu0 %3400
    %v3402 = vsel %vm85, %v2838, inf
    %3403 = vmin.xlane.f32.xlu0 %v3402
    %v3404 = vpop.xlane.xlu0 %3403
    %v3405 = vsel %vm85, %v2839, inf
    %3406 = vmin.xlane.f32.xlu0 %v3405
    %v3407 = vpop.xlane.xlu0 %3406
    %v3408 = vsel %vm85, %v2840, inf
    %3409 = vmin.xlane.f32.xlu0 %v3408
    %v3410 = vpop.xlane.xlu0 %3409
    %v3411 = vsel %vm85, %v2841, inf
    %3412 = vmin.xlane.f32.xlu0 %v3411
    %v3413 = vpop.xlane.xlu0 %3412
    %v3414 = vsel %vm85, %v2842, inf
    %3415 = vmin.xlane.f32.xlu0 %v3414
    %v3416 = vpop.xlane.xlu0 %3415
    %v3417 = vsel %vm85, %v2843, inf
    %3418 = vmin.xlane.f32.xlu0 %v3417
    %v3419 = vpop.xlane.xlu0 %3418
    %v3420 = vsel %vm85, %v2844, inf
    %3421 = vmin.xlane.f32.xlu0 %v3420
    %v3422 = vpop.xlane.xlu0 %3421
    %v3423 = vsel %vm85, %v2845, inf
    %3424 = vmin.xlane.f32.xlu0 %v3423
    %v3425 = vpop.xlane.xlu0 %3424
    %v3426 = vsel %vm85, %v2846, inf
    %3427 = vmin.xlane.f32.xlu0 %v3426
    %v3428 = vpop.xlane.xlu0 %3427
    %v3429 = vsel %vm85, %v2847, inf
    %3430 = vmin.xlane.f32.xlu0 %v3429
    %v3431 = vpop.xlane.xlu0 %3430
    %v3432 = vsel %vm85, %v2848, inf
    %3433 = vmin.xlane.f32.xlu0 %v3432
    %v3434 = vpop.xlane.xlu0 %3433
    %v3435 = vsel %vm85, %v2849, inf
    %3436 = vmin.xlane.f32.xlu0 %v3435
    %v3437 = vpop.xlane.xlu0 %3436
    %v3438 = vsel %vm85, %v2850, inf
    %3439 = vmin.xlane.f32.xlu0 %v3438
    %v3440 = vpop.xlane.xlu0 %3439
    %v3441 = vsel %vm85, %v2851, inf
    %3442 = vmin.xlane.f32.xlu0 %v3441
    %v3443 = vpop.xlane.xlu0 %3442
    %v3444 = vsel %vm85, %v2852, inf
    %3445 = vmin.xlane.f32.xlu0 %v3444
    %v3446 = vpop.xlane.xlu0 %3445
    %v3447 = vsel %vm85, %v2853, inf
    %3448 = vmin.xlane.f32.xlu0 %v3447
    %v3449 = vpop.xlane.xlu0 %3448
    %v3450 = vsel %vm85, %v2854, inf
    %3451 = vmin.xlane.f32.xlu0 %v3450
    %v3452 = vpop.xlane.xlu0 %3451
    %v3453 = vsel %vm85, %v2855, inf
    %3454 = vmin.xlane.f32.xlu0 %v3453
    %v3455 = vpop.xlane.xlu0 %3454
    %v3456 = vsel %vm85, %v2856, inf
    %3457 = vmin.xlane.f32.xlu0 %v3456
    %v3458 = vpop.xlane.xlu0 %3457
    %v3459 = vsel %vm85, %v2857, inf
    %3460 = vmin.xlane.f32.xlu0 %v3459
    %v3461 = vpop.xlane.xlu0 %3460
    %v3462 = vsel %vm85, %v2858, inf
    %3463 = vmin.xlane.f32.xlu0 %v3462
    %v3464 = vpop.xlane.xlu0 %3463
    %v3465 = vsel %vm85, %v2859, inf
    %3466 = vmin.xlane.f32.xlu0 %v3465
    %v3467 = vpop.xlane.xlu0 %3466
    %v3468 = vsel %vm85, %v2860, inf
    %3469 = vmin.xlane.f32.xlu0 %v3468
    %v3470 = vpop.xlane.xlu0 %3469
    %v3471 = vsel %vm85, %v2861, inf
    %3472 = vmin.xlane.f32.xlu0 %v3471
    %v3473 = vpop.xlane.xlu0 %3472
    %v3474 = vsel %vm85, %v2862, inf
    %3475 = vmin.xlane.f32.xlu0 %v3474
    %v3476 = vpop.xlane.xlu0 %3475
    %v3477 = vsel %vm85, %v2863, inf
    %3478 = vmin.xlane.f32.xlu0 %v3477
    %v3479 = vpop.xlane.xlu0 %3478
    %v3480 = vsel %vm85, %v2864, inf
    %3481 = vmin.xlane.f32.xlu0 %v3480
    %v3482 = vpop.xlane.xlu0 %3481
    %v3483 = vsel %vm85, %v2865, inf
    %3484 = vmin.xlane.f32.xlu0 %v3483
    %v3485 = vpop.xlane.xlu0 %3484
    %v3486 = vsel %vm85, %v2866, inf
    %3487 = vmin.xlane.f32.xlu0 %v3486
    %v3488 = vpop.xlane.xlu0 %3487
    %v3489 = vsel %vm85, %v2867, inf
    %3490 = vmin.xlane.f32.xlu0 %v3489
    %v3491 = vpop.xlane.xlu0 %3490
    %v3492 = vsel %vm85, %v2868, inf
    %3493 = vmin.xlane.f32.xlu0 %v3492
    %v3494 = vpop.xlane.xlu0 %3493
    %v3495 = vsel %vm85, %v2869, inf
    %3496 = vmin.xlane.f32.xlu0 %v3495
    %v3497 = vpop.xlane.xlu0 %3496
    %v3498 = vsel %vm85, %v2870, inf
    %3499 = vmin.xlane.f32.xlu0 %v3498
    %v3500 = vpop.xlane.xlu0 %3499
    %v3501 = vsel %vm85, %v2871, inf
    %3502 = vmin.xlane.f32.xlu0 %v3501
    %v3503 = vpop.xlane.xlu0 %3502
    %v3504 = vsel %vm85, %v2872, inf
    %3505 = vmin.xlane.f32.xlu0 %v3504
    %v3506 = vpop.xlane.xlu0 %3505
    %v3507 = vsel %vm85, %v2873, inf
    %3508 = vmin.xlane.f32.xlu0 %v3507
    %v3509 = vpop.xlane.xlu0 %3508
    %v3510 = vsel %vm85, %v2874, inf
    %3511 = vmin.xlane.f32.xlu0 %v3510
    %v3512 = vpop.xlane.xlu0 %3511
    %v3513 = vsel %vm85, %v2875, inf
    %3514 = vmin.xlane.f32.xlu0 %v3513
    %v3515 = vpop.xlane.xlu0 %3514
    %v3516 = vsel %vm85, %v2876, inf
    %3517 = vmin.xlane.f32.xlu0 %v3516
    %v3518 = vpop.xlane.xlu0 %3517
    %v3519 = vsel %vm85, %v2877, inf
    %3520 = vmin.xlane.f32.xlu0 %v3519
    %v3521 = vpop.xlane.xlu0 %3520
    %v3522 = vsel %vm85, %v2878, inf
    %3523 = vmin.xlane.f32.xlu0 %v3522
    %v3524 = vpop.xlane.xlu0 %3523
    %v3525 = vsel %vm85, %v2879, inf
    %3526 = vmin.xlane.f32.xlu0 %v3525
    %v3527 = vpop.xlane.xlu0 %3526
    %v3528 = vsel %vm85, %v2880, inf
    %3529 = vmin.xlane.f32.xlu0 %v3528
    %v3530 = vpop.xlane.xlu0 %3529
    %v3531 = vsel %vm85, %v2881, inf
    %3532 = vmin.xlane.f32.xlu0 %v3531
    %v3533 = vpop.xlane.xlu0 %3532
    %v3534 = vsel %vm85, %v2882, inf
    %3535 = vmin.xlane.f32.xlu0 %v3534
    %v3536 = vpop.xlane.xlu0 %3535
    %v3537 = vsel %vm85, %v2883, inf
    %3538 = vmin.xlane.f32.xlu0 %v3537
    %v3539 = vpop.xlane.xlu0 %3538
    %v3540 = vsel %vm85, %v2884, inf
    %3541 = vmin.xlane.f32.xlu0 %v3540
    %v3542 = vpop.xlane.xlu0 %3541
    %v3543 = vsel %vm85, %v2885, inf
    %3544 = vmin.xlane.f32.xlu0 %v3543
    %v3545 = vpop.xlane.xlu0 %3544
    %v3546 = vsel %vm85, %v2886, inf
    %3547 = vmin.xlane.f32.xlu0 %v3546
    %v3548 = vpop.xlane.xlu0 %3547
    %v3549 = vsel %vm85, %v2887, inf
    %3550 = vmin.xlane.f32.xlu0 %v3549
    %v3551 = vpop.xlane.xlu0 %3550
    %v3552 = vsel %vm85, %v2888, inf
    %3553 = vmin.xlane.f32.xlu0 %v3552
    %v3554 = vpop.xlane.xlu0 %3553
    %v3555 = vsel %vm85, %v2889, inf
    %3556 = vmin.xlane.f32.xlu0 %v3555
    %v3557 = vpop.xlane.xlu0 %3556
    %v3558 = vsel %vm85, %v2890, inf
    %3559 = vmin.xlane.f32.xlu0 %v3558
    %v3560 = vpop.xlane.xlu0 %3559
    %v3561 = vsel %vm85, %v2891, inf
    %3562 = vmin.xlane.f32.xlu0 %v3561
    %v3563 = vpop.xlane.xlu0 %3562
    %v3564 = vsel %vm85, %v2892, inf
    %3565 = vmin.xlane.f32.xlu0 %v3564
    %v3566 = vpop.xlane.xlu0 %3565
    %v3567 = vsel %vm85, %v2893, inf
    %3568 = vmin.xlane.f32.xlu0 %v3567
    %v3569 = vpop.xlane.xlu0 %3568
    %v3570 = vsel %vm85, %v2894, inf
    %3571 = vmin.xlane.f32.xlu0 %v3570
    %v3572 = vpop.xlane.xlu0 %3571
    %v3573 = vsel %vm85, %v2895, inf
    %3574 = vmin.xlane.f32.xlu0 %v3573
    %v3575 = vpop.xlane.xlu0 %3574
    %v3576 = vsel %vm85, %v2896, inf
    %3577 = vmin.xlane.f32.xlu0 %v3576
    %v3578 = vpop.xlane.xlu0 %3577
    %v3579 = vsel %vm85, %v2897, inf
    %3580 = vmin.xlane.f32.xlu0 %v3579
    %v3581 = vpop.xlane.xlu0 %3580
    %v3582 = vsel %vm85, %v2898, inf
    %3583 = vmin.xlane.f32.xlu0 %v3582
    %v3584 = vpop.xlane.xlu0 %3583
    %v3585 = vsel %vm85, %v2899, inf
    %3586 = vmin.xlane.f32.xlu0 %v3585
    %v3587 = vpop.xlane.xlu0 %3586
    %v3588 = vsel %vm85, %v2900, inf
    %3589 = vmin.xlane.f32.xlu0 %v3588
    %v3590 = vpop.xlane.xlu0 %3589
    %v3591 = vsel %vm85, %v2901, inf
    %3592 = vmin.xlane.f32.xlu0 %v3591
    %v3593 = vpop.xlane.xlu0 %3592
    %v3594 = vsel %vm85, %v2902, inf
    %3595 = vmin.xlane.f32.xlu0 %v3594
    %v3596 = vpop.xlane.xlu0 %3595
    %v3597 = vsel %vm85, %v2903, inf
    %3598 = vmin.xlane.f32.xlu0 %v3597
    %v3599 = vpop.xlane.xlu0 %3598
    %v3600 = vsel %vm85, %v2904, inf
    %3601 = vmin.xlane.f32.xlu0 %v3600
    %v3602 = vpop.xlane.xlu0 %3601
    %v3603 = vsel %vm85, %v2905, inf
    %3604 = vmin.xlane.f32.xlu0 %v3603
    %v3605 = vpop.xlane.xlu0 %3604
    %v3606 = vsel %vm85, %v2906, inf
    %3607 = vmin.xlane.f32.xlu0 %v3606
    %v3608 = vpop.xlane.xlu0 %3607
    %v3609 = vsel %vm85, %v2907, inf
    %3610 = vmin.xlane.f32.xlu0 %v3609
    %v3611 = vpop.xlane.xlu0 %3610
    %v3612 = vsel %vm85, %v2908, inf
    %3613 = vmin.xlane.f32.xlu0 %v3612
    %v3614 = vpop.xlane.xlu0 %3613
    %v3615 = vsel %vm85, %v2909, inf
    %3616 = vmin.xlane.f32.xlu0 %v3615
    %v3617 = vpop.xlane.xlu0 %3616
    %v3618 = vsel %vm85, %v2910, inf
    %3619 = vmin.xlane.f32.xlu0 %v3618
    %v3620 = vpop.xlane.xlu0 %3619
    %v3621 = vsel %vm85, %v2911, inf
    %3622 = vmin.xlane.f32.xlu0 %v3621
    %v3623 = vpop.xlane.xlu0 %3622
    %v3624 = vsel %vm85, %v2912, inf
    %3625 = vmin.xlane.f32.xlu0 %v3624
    %v3626 = vpop.xlane.xlu0 %3625
    %v3627 = vsel %vm85, %v2913, inf
    %3628 = vmin.xlane.f32.xlu0 %v3627
    %v3629 = vpop.xlane.xlu0 %3628
    %v3630 = vsel %vm85, %v2914, inf
    %3631 = vmin.xlane.f32.xlu0 %v3630
    %v3632 = vpop.xlane.xlu0 %3631
    %v3633 = vsel %vm85, %v2915, inf
    %3634 = vmin.xlane.f32.xlu0 %v3633
    %v3635 = vpop.xlane.xlu0 %3634
    %v3636 = vsel %vm85, %v2916, inf
    %3637 = vmin.xlane.f32.xlu0 %v3636
    %v3638 = vpop.xlane.xlu0 %3637
    %v3639 = vsel %vm85, %v2917, inf
    %3640 = vmin.xlane.f32.xlu0 %v3639
    %v3641 = vpop.xlane.xlu0 %3640
    %v3642 = vsel %vm85, %v2918, inf
    %3643 = vmin.xlane.f32.xlu0 %v3642
    %v3644 = vpop.xlane.xlu0 %3643
    %v3645 = vsel %vm85, %v2919, inf
    %3646 = vmin.xlane.f32.xlu0 %v3645
    %v3647 = vpop.xlane.xlu0 %3646
    %v3648 = vsel %vm85, %v2920, inf
    %3649 = vmin.xlane.f32.xlu0 %v3648
    %v3650 = vpop.xlane.xlu0 %3649
    %v3651 = vsel %vm85, %v2921, inf
    %3652 = vmin.xlane.f32.xlu0 %v3651
    %v3653 = vpop.xlane.xlu0 %3652
    %v3654 = vsel %vm85, %v2922, inf
    %3655 = vmin.xlane.f32.xlu0 %v3654
    %v3656 = vpop.xlane.xlu0 %3655
    %v3657 = vsel %vm85, %v2923, inf
    %3658 = vmin.xlane.f32.xlu0 %v3657
    %v3659 = vpop.xlane.xlu0 %3658
    %v3660 = vsel %vm85, %v2924, inf
    %3661 = vmin.xlane.f32.xlu0 %v3660
    %v3662 = vpop.xlane.xlu0 %3661
    %v3663 = vsel %vm85, %v2925, inf
    %3664 = vmin.xlane.f32.xlu0 %v3663
    %v3665 = vpop.xlane.xlu0 %3664
    %v3666 = vsel %vm85, %v2926, inf
    %3667 = vmin.xlane.f32.xlu0 %v3666
    %v3668 = vpop.xlane.xlu0 %3667
    %v3669 = vsel %vm85, %v2927, inf
    %3670 = vmin.xlane.f32.xlu0 %v3669
    %v3671 = vpop.xlane.xlu0 %3670
    %v3672 = vsel %vm85, %v2928, inf
    %3673 = vmin.xlane.f32.xlu0 %v3672
    %v3674 = vpop.xlane.xlu0 %3673
    %v3675 = vsel %vm85, %v2929, inf
    %3676 = vmin.xlane.f32.xlu0 %v3675
    %v3677 = vpop.xlane.xlu0 %3676
    %v3678 = vsel %vm85, %v2930, inf
    %3679 = vmin.xlane.f32.xlu0 %v3678
    %v3680 = vpop.xlane.xlu0 %3679
    %v3681 = vsel %vm85, %v2931, inf
    %3682 = vmin.xlane.f32.xlu0 %v3681
    %v3683 = vpop.xlane.xlu0 %3682
    %v3684 = vsel %vm85, %v2932, inf
    %3685 = vmin.xlane.f32.xlu0 %v3684
    %v3686 = vpop.xlane.xlu0 %3685
    %v3687 = vsel %vm85, %v2933, inf
    %3688 = vmin.xlane.f32.xlu0 %v3687
    %v3689 = vpop.xlane.xlu0 %3688
    %v3690 = vsel %vm85, %v2934, inf
    %3691 = vmin.xlane.f32.xlu0 %v3690
    %v3692 = vpop.xlane.xlu0 %3691
    %v3693 = vsel %vm85, %v2935, inf
    %3694 = vmin.xlane.f32.xlu0 %v3693
    %v3695 = vpop.xlane.xlu0 %3694
    %v3696 = vsel %vm85, %v2936, inf
    %3697 = vmin.xlane.f32.xlu0 %v3696
    %v3698 = vpop.xlane.xlu0 %3697
    %v3699 = vsel %vm85, %v2937, inf
    %3700 = vmin.xlane.f32.xlu0 %v3699
    %v3701 = vpop.xlane.xlu0 %3700
    %v3702 = vsel %vm85, %v2938, inf
    %3703 = vmin.xlane.f32.xlu0 %v3702
    %v3704 = vpop.xlane.xlu0 %3703
    %v3705 = vsel %vm85, %v2939, inf
    %3706 = vmin.xlane.f32.xlu0 %v3705
    %v3707 = vpop.xlane.xlu0 %3706
    %v3708 = vsel %vm215, 1, 0
    %v3709 = vsel %vm216, 1, 0
    %v3710 = vsel %vm217, 1, 0
    %v3711 = vsel %vm218, 1, 0
    %v3712 = vsel %vm219, 1, 0
    %v3713 = vsel %vm220, 1, 0
    %v3714 = vsel %vm221, 1, 0
    %v3715 = vsel %vm222, 1, 0
    %3716 = vset.pattern.permute.xlu0 0
    %3717 = vperm.xlu0 %3716, %v3708
    %v3718 = vpop.permute.xlu0 %3717
    %3719 = vset.pattern.permute.xlu0 0
    %3720 = vperm.xlu0 %3719, %v3709
    %v3721 = vpop.permute.xlu0 %3720
    %3722 = vset.pattern.permute.xlu0 0
    %3723 = vperm.xlu0 %3722, %v3710
    %v3724 = vpop.permute.xlu0 %3723
    %3725 = vset.pattern.permute.xlu0 0
    %3726 = vperm.xlu0 %3725, %v3711
    %v3727 = vpop.permute.xlu0 %3726
    %3728 = vset.pattern.permute.xlu0 0
    %3729 = vperm.xlu0 %3728, %v3712
    %v3730 = vpop.permute.xlu0 %3729
    %3731 = vset.pattern.permute.xlu0 0
    %3732 = vperm.xlu0 %3731, %v3713
    %v3733 = vpop.permute.xlu0 %3732
    %3734 = vset.pattern.permute.xlu0 0
    %3735 = vperm.xlu0 %3734, %v3714
    %v3736 = vpop.permute.xlu0 %3735
    %3737 = vset.pattern.permute.xlu0 0
    %3738 = vperm.xlu0 %3737, %v3715
    %v3739 = vpop.permute.xlu0 %3738
    %vm3740 = vcmp.eq.s32.totalorder %v3718, 1
    %vm3741 = vcmp.eq.s32.totalorder %v3721, 1
    %vm3742 = vcmp.eq.s32.totalorder %v3724, 1
    %vm3743 = vcmp.eq.s32.totalorder %v3727, 1
    %vm3744 = vcmp.eq.s32.totalorder %v3730, 1
    %vm3745 = vcmp.eq.s32.totalorder %v3733, 1
    %vm3746 = vcmp.eq.s32.totalorder %v3736, 1
    %vm3747 = vcmp.eq.s32.totalorder %v3739, 1
    %v4004 = vlaneseq
    %v4005 = vand.u32 %v4004, 127
    %v4006 = vlaneseq
    %v4007 = vshrl.u32 %v4006, 7
    %v4008 = vsub.s32 %v4005, %v4007
    %v4009 = vrot.slane %v1918, %v4008
    %v4010 = vadd.s32 %v4005, 4294967288
    %v4011 = vlaneseq
    %v4012 = vshrl.u32 %v4011, 7
    %v4013 = vsub.s32 %v4010, %v4012
    %v4014 = vrot.slane %v1921, %v4013
    %vm4015 = vcmask 130112
    %v4016 = vsel %vm4015, %v4014, %v4009
    %v4017 = vadd.s32 %v4005, 4294967280
    %v4018 = vlaneseq
    %v4019 = vshrl.u32 %v4018, 7
    %v4020 = vsub.s32 %v4017, %v4019
    %v4021 = vrot.slane %v1924, %v4020
    %vm4022 = vcmask 195712
    %v4023 = vsel %vm4022, %v4021, %v4016
    %v4024 = vadd.s32 %v4005, 4294967272
    %v4025 = vlaneseq
    %v4026 = vshrl.u32 %v4025, 7
    %v4027 = vsub.s32 %v4024, %v4026
    %v4028 = vrot.slane %v1927, %v4027
    %vm4029 = vcmask 261312
    %v4030 = vsel %vm4029, %v4028, %v4023
    %v4031 = vlaneseq
    %v4032 = vshrl.u32 %v4031, 7
    %v4033 = vsub.s32 %v4005, %v4032
    %v4034 = vrot.slane %v1930, %v4033
    %v4035 = vlaneseq
    %v4036 = vshrl.u32 %v4035, 7
    %v4037 = vsub.s32 %v4010, %v4036
    %v4038 = vrot.slane %v1933, %v4037
    %v4039 = vsel %vm4015, %v4038, %v4034
    %v4040 = vlaneseq
    %v4041 = vshrl.u32 %v4040, 7
    %v4042 = vsub.s32 %v4017, %v4041
    %v4043 = vrot.slane %v1936, %v4042
    %v4044 = vsel %vm4022, %v4043, %v4039
    %v4045 = vlaneseq
    %v4046 = vshrl.u32 %v4045, 7
    %v4047 = vsub.s32 %v4024, %v4046
    %v4048 = vrot.slane %v1939, %v4047
    %v4049 = vsel %vm4029, %v4048, %v4044
    %v4050 = vlaneseq
    %v4051 = vshrl.u32 %v4050, 7
    %v4052 = vsub.s32 %v4005, %v4051
    %v4053 = vrot.slane %v1942, %v4052
    %v4054 = vlaneseq
    %v4055 = vshrl.u32 %v4054, 7
    %v4056 = vsub.s32 %v4010, %v4055
    %v4057 = vrot.slane %v1945, %v4056
    %v4058 = vsel %vm4015, %v4057, %v4053
    %v4059 = vlaneseq
    %v4060 = vshrl.u32 %v4059, 7
    %v4061 = vsub.s32 %v4017, %v4060
    %v4062 = vrot.slane %v1948, %v4061
    %v4063 = vsel %vm4022, %v4062, %v4058
    %v4064 = vlaneseq
    %v4065 = vshrl.u32 %v4064, 7
    %v4066 = vsub.s32 %v4024, %v4065
    %v4067 = vrot.slane %v1951, %v4066
    %v4068 = vsel %vm4029, %v4067, %v4063
    %v4069 = vlaneseq
    %v4070 = vshrl.u32 %v4069, 7
    %v4071 = vsub.s32 %v4005, %v4070
    %v4072 = vrot.slane %v1954, %v4071
    %v4073 = vlaneseq
    %v4074 = vshrl.u32 %v4073, 7
    %v4075 = vsub.s32 %v4010, %v4074
    %v4076 = vrot.slane %v1957, %v4075
    %v4077 = vsel %vm4015, %v4076, %v4072
    %v4078 = vlaneseq
    %v4079 = vshrl.u32 %v4078, 7
    %v4080 = vsub.s32 %v4017, %v4079
    %v4081 = vrot.slane %v1960, %v4080
    %v4082 = vsel %vm4022, %v4081, %v4077
    %v4083 = vlaneseq
    %v4084 = vshrl.u32 %v4083, 7
    %v4085 = vsub.s32 %v4024, %v4084
    %v4086 = vrot.slane %v1963, %v4085
    %v4087 = vsel %vm4029, %v4086, %v4082
    %v4088 = vlaneseq
    %v4089 = vshrl.u32 %v4088, 7
    %v4090 = vsub.s32 %v4005, %v4089
    %v4091 = vrot.slane %v1966, %v4090
    %v4092 = vlaneseq
    %v4093 = vshrl.u32 %v4092, 7
    %v4094 = vsub.s32 %v4010, %v4093
    %v4095 = vrot.slane %v1969, %v4094
    %v4096 = vsel %vm4015, %v4095, %v4091
    %v4097 = vlaneseq
    %v4098 = vshrl.u32 %v4097, 7
    %v4099 = vsub.s32 %v4017, %v4098
    %v4100 = vrot.slane %v1972, %v4099
    %v4101 = vsel %vm4022, %v4100, %v4096
    %v4102 = vlaneseq
    %v4103 = vshrl.u32 %v4102, 7
    %v4104 = vsub.s32 %v4024, %v4103
    %v4105 = vrot.slane %v1975, %v4104
    %v4106 = vsel %vm4029, %v4105, %v4101
    %v4107 = vlaneseq
    %v4108 = vshrl.u32 %v4107, 7
    %v4109 = vsub.s32 %v4005, %v4108
    %v4110 = vrot.slane %v1978, %v4109
    %v4111 = vlaneseq
    %v4112 = vshrl.u32 %v4111, 7
    %v4113 = vsub.s32 %v4010, %v4112
    %v4114 = vrot.slane %v1981, %v4113
    %v4115 = vsel %vm4015, %v4114, %v4110
    %v4116 = vlaneseq
    %v4117 = vshrl.u32 %v4116, 7
    %v4118 = vsub.s32 %v4017, %v4117
    %v4119 = vrot.slane %v1984, %v4118
    %v4120 = vsel %vm4022, %v4119, %v4115
    %v4121 = vlaneseq
    %v4122 = vshrl.u32 %v4121, 7
    %v4123 = vsub.s32 %v4024, %v4122
    %v4124 = vrot.slane %v1987, %v4123
    %v4125 = vsel %vm4029, %v4124, %v4120
    %v4126 = vlaneseq
    %v4127 = vshrl.u32 %v4126, 7
    %v4128 = vsub.s32 %v4005, %v4127
    %v4129 = vrot.slane %v1990, %v4128
    %v4130 = vlaneseq
    %v4131 = vshrl.u32 %v4130, 7
    %v4132 = vsub.s32 %v4010, %v4131
    %v4133 = vrot.slane %v1993, %v4132
    %v4134 = vsel %vm4015, %v4133, %v4129
    %v4135 = vlaneseq
    %v4136 = vshrl.u32 %v4135, 7
    %v4137 = vsub.s32 %v4017, %v4136
    %v4138 = vrot.slane %v1996, %v4137
    %v4139 = vsel %vm4022, %v4138, %v4134
    %v4140 = vlaneseq
    %v4141 = vshrl.u32 %v4140, 7
    %v4142 = vsub.s32 %v4024, %v4141
    %v4143 = vrot.slane %v1999, %v4142
    %v4144 = vsel %vm4029, %v4143, %v4139
    %v4145 = vlaneseq
    %v4146 = vshrl.u32 %v4145, 7
    %v4147 = vsub.s32 %v4005, %v4146
    %v4148 = vrot.slane %v2002, %v4147
    %v4149 = vlaneseq
    %v4150 = vshrl.u32 %v4149, 7
    %v4151 = vsub.s32 %v4010, %v4150
    %v4152 = vrot.slane %v2005, %v4151
    %v4153 = vsel %vm4015, %v4152, %v4148
    %v4154 = vlaneseq
    %v4155 = vshrl.u32 %v4154, 7
    %v4156 = vsub.s32 %v4017, %v4155
    %v4157 = vrot.slane %v2008, %v4156
    %v4158 = vsel %vm4022, %v4157, %v4153
    %v4159 = vlaneseq
    %v4160 = vshrl.u32 %v4159, 7
    %v4161 = vsub.s32 %v4024, %v4160
    %v4162 = vrot.slane %v2011, %v4161
    %v4163 = vsel %vm4029, %v4162, %v4158
    %v4164 = vlaneseq
    %v4165 = vshrl.u32 %v4164, 7
    %v4166 = vsub.s32 %v4005, %v4165
    %v4167 = vrot.slane %v2014, %v4166
    %v4168 = vlaneseq
    %v4169 = vshrl.u32 %v4168, 7
    %v4170 = vsub.s32 %v4010, %v4169
    %v4171 = vrot.slane %v2017, %v4170
    %v4172 = vsel %vm4015, %v4171, %v4167
    %v4173 = vlaneseq
    %v4174 = vshrl.u32 %v4173, 7
    %v4175 = vsub.s32 %v4017, %v4174
    %v4176 = vrot.slane %v2020, %v4175
    %v4177 = vsel %vm4022, %v4176, %v4172
    %v4178 = vlaneseq
    %v4179 = vshrl.u32 %v4178, 7
    %v4180 = vsub.s32 %v4024, %v4179
    %v4181 = vrot.slane %v2023, %v4180
    %v4182 = vsel %vm4029, %v4181, %v4177
    %v4183 = vlaneseq
    %v4184 = vshrl.u32 %v4183, 7
    %v4185 = vsub.s32 %v4005, %v4184
    %v4186 = vrot.slane %v2026, %v4185
    %v4187 = vlaneseq
    %v4188 = vshrl.u32 %v4187, 7
    %v4189 = vsub.s32 %v4010, %v4188
    %v4190 = vrot.slane %v2029, %v4189
    %v4191 = vsel %vm4015, %v4190, %v4186
    %v4192 = vlaneseq
    %v4193 = vshrl.u32 %v4192, 7
    %v4194 = vsub.s32 %v4017, %v4193
    %v4195 = vrot.slane %v2032, %v4194
    %v4196 = vsel %vm4022, %v4195, %v4191
    %v4197 = vlaneseq
    %v4198 = vshrl.u32 %v4197, 7
    %v4199 = vsub.s32 %v4024, %v4198
    %v4200 = vrot.slane %v2035, %v4199
    %v4201 = vsel %vm4029, %v4200, %v4196
    %v4202 = vlaneseq
    %v4203 = vshrl.u32 %v4202, 7
    %v4204 = vsub.s32 %v4005, %v4203
    %v4205 = vrot.slane %v2038, %v4204
    %v4206 = vlaneseq
    %v4207 = vshrl.u32 %v4206, 7
    %v4208 = vsub.s32 %v4010, %v4207
    %v4209 = vrot.slane %v2041, %v4208
    %v4210 = vsel %vm4015, %v4209, %v4205
    %v4211 = vlaneseq
    %v4212 = vshrl.u32 %v4211, 7
    %v4213 = vsub.s32 %v4017, %v4212
    %v4214 = vrot.slane %v2044, %v4213
    %v4215 = vsel %vm4022, %v4214, %v4210
    %v4216 = vlaneseq
    %v4217 = vshrl.u32 %v4216, 7
    %v4218 = vsub.s32 %v4024, %v4217
    %v4219 = vrot.slane %v2047, %v4218
    %v4220 = vsel %vm4029, %v4219, %v4215
    %v4221 = vlaneseq
    %v4222 = vshrl.u32 %v4221, 7
    %v4223 = vsub.s32 %v4005, %v4222
    %v4224 = vrot.slane %v2050, %v4223
    %v4225 = vlaneseq
    %v4226 = vshrl.u32 %v4225, 7
    %v4227 = vsub.s32 %v4010, %v4226
    %v4228 = vrot.slane %v2053, %v4227
    %v4229 = vsel %vm4015, %v4228, %v4224
    %v4230 = vlaneseq
    %v4231 = vshrl.u32 %v4230, 7
    %v4232 = vsub.s32 %v4017, %v4231
    %v4233 = vrot.slane %v2056, %v4232
    %v4234 = vsel %vm4022, %v4233, %v4229
    %v4235 = vlaneseq
    %v4236 = vshrl.u32 %v4235, 7
    %v4237 = vsub.s32 %v4024, %v4236
    %v4238 = vrot.slane %v2059, %v4237
    %v4239 = vsel %vm4029, %v4238, %v4234
    %v4240 = vlaneseq
    %v4241 = vshrl.u32 %v4240, 7
    %v4242 = vsub.s32 %v4005, %v4241
    %v4243 = vrot.slane %v2062, %v4242
    %v4244 = vlaneseq
    %v4245 = vshrl.u32 %v4244, 7
    %v4246 = vsub.s32 %v4010, %v4245
    %v4247 = vrot.slane %v2065, %v4246
    %v4248 = vsel %vm4015, %v4247, %v4243
    %v4249 = vlaneseq
    %v4250 = vshrl.u32 %v4249, 7
    %v4251 = vsub.s32 %v4017, %v4250
    %v4252 = vrot.slane %v2068, %v4251
    %v4253 = vsel %vm4022, %v4252, %v4248
    %v4254 = vlaneseq
    %v4255 = vshrl.u32 %v4254, 7
    %v4256 = vsub.s32 %v4024, %v4255
    %v4257 = vrot.slane %v2071, %v4256
    %v4258 = vsel %vm4029, %v4257, %v4253
    %v4259 = vlaneseq
    %v4260 = vshrl.u32 %v4259, 7
    %v4261 = vsub.s32 %v4005, %v4260
    %v4262 = vrot.slane %v2074, %v4261
    %v4263 = vlaneseq
    %v4264 = vshrl.u32 %v4263, 7
    %v4265 = vsub.s32 %v4010, %v4264
    %v4266 = vrot.slane %v2077, %v4265
    %v4267 = vsel %vm4015, %v4266, %v4262
    %v4268 = vlaneseq
    %v4269 = vshrl.u32 %v4268, 7
    %v4270 = vsub.s32 %v4017, %v4269
    %v4271 = vrot.slane %v2080, %v4270
    %v4272 = vsel %vm4022, %v4271, %v4267
    %v4273 = vlaneseq
    %v4274 = vshrl.u32 %v4273, 7
    %v4275 = vsub.s32 %v4024, %v4274
    %v4276 = vrot.slane %v2083, %v4275
    %v4277 = vsel %vm4029, %v4276, %v4272
    %v4278 = vlaneseq
    %v4279 = vshrl.u32 %v4278, 7
    %v4280 = vsub.s32 %v4005, %v4279
    %v4281 = vrot.slane %v2086, %v4280
    %v4282 = vlaneseq
    %v4283 = vshrl.u32 %v4282, 7
    %v4284 = vsub.s32 %v4010, %v4283
    %v4285 = vrot.slane %v2089, %v4284
    %v4286 = vsel %vm4015, %v4285, %v4281
    %v4287 = vlaneseq
    %v4288 = vshrl.u32 %v4287, 7
    %v4289 = vsub.s32 %v4017, %v4288
    %v4290 = vrot.slane %v2092, %v4289
    %v4291 = vsel %vm4022, %v4290, %v4286
    %v4292 = vlaneseq
    %v4293 = vshrl.u32 %v4292, 7
    %v4294 = vsub.s32 %v4024, %v4293
    %v4295 = vrot.slane %v2095, %v4294
    %v4296 = vsel %vm4029, %v4295, %v4291
    %v4297 = vlaneseq
    %v4298 = vshrl.u32 %v4297, 7
    %v4299 = vsub.s32 %v4005, %v4298
    %v4300 = vrot.slane %v2098, %v4299
    %v4301 = vlaneseq
    %v4302 = vshrl.u32 %v4301, 7
    %v4303 = vsub.s32 %v4010, %v4302
    %v4304 = vrot.slane %v2101, %v4303
    %v4305 = vsel %vm4015, %v4304, %v4300
    %v4306 = vlaneseq
    %v4307 = vshrl.u32 %v4306, 7
    %v4308 = vsub.s32 %v4017, %v4307
    %v4309 = vrot.slane %v2104, %v4308
    %v4310 = vsel %vm4022, %v4309, %v4305
    %v4311 = vlaneseq
    %v4312 = vshrl.u32 %v4311, 7
    %v4313 = vsub.s32 %v4024, %v4312
    %v4314 = vrot.slane %v2107, %v4313
    %v4315 = vsel %vm4029, %v4314, %v4310
    %v4316 = vlaneseq
    %v4317 = vshrl.u32 %v4316, 7
    %v4318 = vsub.s32 %v4005, %v4317
    %v4319 = vrot.slane %v2110, %v4318
    %v4320 = vlaneseq
    %v4321 = vshrl.u32 %v4320, 7
    %v4322 = vsub.s32 %v4010, %v4321
    %v4323 = vrot.slane %v2113, %v4322
    %v4324 = vsel %vm4015, %v4323, %v4319
    %v4325 = vlaneseq
    %v4326 = vshrl.u32 %v4325, 7
    %v4327 = vsub.s32 %v4017, %v4326
    %v4328 = vrot.slane %v2116, %v4327
    %v4329 = vsel %vm4022, %v4328, %v4324
    %v4330 = vlaneseq
    %v4331 = vshrl.u32 %v4330, 7
    %v4332 = vsub.s32 %v4024, %v4331
    %v4333 = vrot.slane %v2119, %v4332
    %v4334 = vsel %vm4029, %v4333, %v4329
    %v4335 = vlaneseq
    %v4336 = vshrl.u32 %v4335, 7
    %v4337 = vsub.s32 %v4005, %v4336
    %v4338 = vrot.slane %v2122, %v4337
    %v4339 = vlaneseq
    %v4340 = vshrl.u32 %v4339, 7
    %v4341 = vsub.s32 %v4010, %v4340
    %v4342 = vrot.slane %v2125, %v4341
    %v4343 = vsel %vm4015, %v4342, %v4338
    %v4344 = vlaneseq
    %v4345 = vshrl.u32 %v4344, 7
    %v4346 = vsub.s32 %v4017, %v4345
    %v4347 = vrot.slane %v2128, %v4346
    %v4348 = vsel %vm4022, %v4347, %v4343
    %v4349 = vlaneseq
    %v4350 = vshrl.u32 %v4349, 7
    %v4351 = vsub.s32 %v4024, %v4350
    %v4352 = vrot.slane %v2131, %v4351
    %v4353 = vsel %vm4029, %v4352, %v4348
    %v4354 = vlaneseq
    %v4355 = vshrl.u32 %v4354, 7
    %v4356 = vsub.s32 %v4005, %v4355
    %v4357 = vrot.slane %v2134, %v4356
    %v4358 = vlaneseq
    %v4359 = vshrl.u32 %v4358, 7
    %v4360 = vsub.s32 %v4010, %v4359
    %v4361 = vrot.slane %v2137, %v4360
    %v4362 = vsel %vm4015, %v4361, %v4357
    %v4363 = vlaneseq
    %v4364 = vshrl.u32 %v4363, 7
    %v4365 = vsub.s32 %v4017, %v4364
    %v4366 = vrot.slane %v2140, %v4365
    %v4367 = vsel %vm4022, %v4366, %v4362
    %v4368 = vlaneseq
    %v4369 = vshrl.u32 %v4368, 7
    %v4370 = vsub.s32 %v4024, %v4369
    %v4371 = vrot.slane %v2143, %v4370
    %v4372 = vsel %vm4029, %v4371, %v4367
    %v4373 = vlaneseq
    %v4374 = vshrl.u32 %v4373, 7
    %v4375 = vsub.s32 %v4005, %v4374
    %v4376 = vrot.slane %v2146, %v4375
    %v4377 = vlaneseq
    %v4378 = vshrl.u32 %v4377, 7
    %v4379 = vsub.s32 %v4010, %v4378
    %v4380 = vrot.slane %v2149, %v4379
    %v4381 = vsel %vm4015, %v4380, %v4376
    %v4382 = vlaneseq
    %v4383 = vshrl.u32 %v4382, 7
    %v4384 = vsub.s32 %v4017, %v4383
    %v4385 = vrot.slane %v2152, %v4384
    %v4386 = vsel %vm4022, %v4385, %v4381
    %v4387 = vlaneseq
    %v4388 = vshrl.u32 %v4387, 7
    %v4389 = vsub.s32 %v4024, %v4388
    %v4390 = vrot.slane %v2155, %v4389
    %v4391 = vsel %vm4029, %v4390, %v4386
    %v4392 = vlaneseq
    %v4393 = vshrl.u32 %v4392, 7
    %v4394 = vsub.s32 %v4005, %v4393
    %v4395 = vrot.slane %v2158, %v4394
    %v4396 = vlaneseq
    %v4397 = vshrl.u32 %v4396, 7
    %v4398 = vsub.s32 %v4010, %v4397
    %v4399 = vrot.slane %v2161, %v4398
    %v4400 = vsel %vm4015, %v4399, %v4395
    %v4401 = vlaneseq
    %v4402 = vshrl.u32 %v4401, 7
    %v4403 = vsub.s32 %v4017, %v4402
    %v4404 = vrot.slane %v2164, %v4403
    %v4405 = vsel %vm4022, %v4404, %v4400
    %v4406 = vlaneseq
    %v4407 = vshrl.u32 %v4406, 7
    %v4408 = vsub.s32 %v4024, %v4407
    %v4409 = vrot.slane %v2167, %v4408
    %v4410 = vsel %vm4029, %v4409, %v4405
    %v4411 = vlaneseq
    %v4412 = vshrl.u32 %v4411, 7
    %v4413 = vsub.s32 %v4005, %v4412
    %v4414 = vrot.slane %v2170, %v4413
    %v4415 = vlaneseq
    %v4416 = vshrl.u32 %v4415, 7
    %v4417 = vsub.s32 %v4010, %v4416
    %v4418 = vrot.slane %v2173, %v4417
    %v4419 = vsel %vm4015, %v4418, %v4414
    %v4420 = vlaneseq
    %v4421 = vshrl.u32 %v4420, 7
    %v4422 = vsub.s32 %v4017, %v4421
    %v4423 = vrot.slane %v2176, %v4422
    %v4424 = vsel %vm4022, %v4423, %v4419
    %v4425 = vlaneseq
    %v4426 = vshrl.u32 %v4425, 7
    %v4427 = vsub.s32 %v4024, %v4426
    %v4428 = vrot.slane %v2179, %v4427
    %v4429 = vsel %vm4029, %v4428, %v4424
    %v4430 = vlaneseq
    %v4431 = vshrl.u32 %v4430, 7
    %v4432 = vsub.s32 %v4005, %v4431
    %v4433 = vrot.slane %v2182, %v4432
    %v4434 = vlaneseq
    %v4435 = vshrl.u32 %v4434, 7
    %v4436 = vsub.s32 %v4010, %v4435
    %v4437 = vrot.slane %v2185, %v4436
    %v4438 = vsel %vm4015, %v4437, %v4433
    %v4439 = vlaneseq
    %v4440 = vshrl.u32 %v4439, 7
    %v4441 = vsub.s32 %v4017, %v4440
    %v4442 = vrot.slane %v2188, %v4441
    %v4443 = vsel %vm4022, %v4442, %v4438
    %v4444 = vlaneseq
    %v4445 = vshrl.u32 %v4444, 7
    %v4446 = vsub.s32 %v4024, %v4445
    %v4447 = vrot.slane %v2191, %v4446
    %v4448 = vsel %vm4029, %v4447, %v4443
    %v4449 = vlaneseq
    %v4450 = vshrl.u32 %v4449, 7
    %v4451 = vsub.s32 %v4005, %v4450
    %v4452 = vrot.slane %v2194, %v4451
    %v4453 = vlaneseq
    %v4454 = vshrl.u32 %v4453, 7
    %v4455 = vsub.s32 %v4010, %v4454
    %v4456 = vrot.slane %v2197, %v4455
    %v4457 = vsel %vm4015, %v4456, %v4452
    %v4458 = vlaneseq
    %v4459 = vshrl.u32 %v4458, 7
    %v4460 = vsub.s32 %v4017, %v4459
    %v4461 = vrot.slane %v2200, %v4460
    %v4462 = vsel %vm4022, %v4461, %v4457
    %v4463 = vlaneseq
    %v4464 = vshrl.u32 %v4463, 7
    %v4465 = vsub.s32 %v4024, %v4464
    %v4466 = vrot.slane %v2203, %v4465
    %v4467 = vsel %vm4029, %v4466, %v4462
    %v4468 = vlaneseq
    %v4469 = vshrl.u32 %v4468, 7
    %v4470 = vsub.s32 %v4005, %v4469
    %v4471 = vrot.slane %v2206, %v4470
    %v4472 = vlaneseq
    %v4473 = vshrl.u32 %v4472, 7
    %v4474 = vsub.s32 %v4010, %v4473
    %v4475 = vrot.slane %v2209, %v4474
    %v4476 = vsel %vm4015, %v4475, %v4471
    %v4477 = vlaneseq
    %v4478 = vshrl.u32 %v4477, 7
    %v4479 = vsub.s32 %v4017, %v4478
    %v4480 = vrot.slane %v2212, %v4479
    %v4481 = vsel %vm4022, %v4480, %v4476
    %v4482 = vlaneseq
    %v4483 = vshrl.u32 %v4482, 7
    %v4484 = vsub.s32 %v4024, %v4483
    %v4485 = vrot.slane %v2215, %v4484
    %v4486 = vsel %vm4029, %v4485, %v4481
    %v4487 = vlaneseq
    %v4488 = vshrl.u32 %v4487, 7
    %v4489 = vsub.s32 %v4005, %v4488
    %v4490 = vrot.slane %v2218, %v4489
    %v4491 = vlaneseq
    %v4492 = vshrl.u32 %v4491, 7
    %v4493 = vsub.s32 %v4010, %v4492
    %v4494 = vrot.slane %v2221, %v4493
    %v4495 = vsel %vm4015, %v4494, %v4490
    %v4496 = vlaneseq
    %v4497 = vshrl.u32 %v4496, 7
    %v4498 = vsub.s32 %v4017, %v4497
    %v4499 = vrot.slane %v2224, %v4498
    %v4500 = vsel %vm4022, %v4499, %v4495
    %v4501 = vlaneseq
    %v4502 = vshrl.u32 %v4501, 7
    %v4503 = vsub.s32 %v4024, %v4502
    %v4504 = vrot.slane %v2227, %v4503
    %v4505 = vsel %vm4029, %v4504, %v4500
    %v4506 = vlaneseq
    %v4507 = vshrl.u32 %v4506, 7
    %v4508 = vsub.s32 %v4005, %v4507
    %v4509 = vrot.slane %v2230, %v4508
    %v4510 = vlaneseq
    %v4511 = vshrl.u32 %v4510, 7
    %v4512 = vsub.s32 %v4010, %v4511
    %v4513 = vrot.slane %v2233, %v4512
    %v4514 = vsel %vm4015, %v4513, %v4509
    %v4515 = vlaneseq
    %v4516 = vshrl.u32 %v4515, 7
    %v4517 = vsub.s32 %v4017, %v4516
    %v4518 = vrot.slane %v2236, %v4517
    %v4519 = vsel %vm4022, %v4518, %v4514
    %v4520 = vlaneseq
    %v4521 = vshrl.u32 %v4520, 7
    %v4522 = vsub.s32 %v4024, %v4521
    %v4523 = vrot.slane %v2239, %v4522
    %v4524 = vsel %vm4029, %v4523, %v4519
    %v4525 = vlaneseq
    %v4526 = vshrl.u32 %v4525, 7
    %v4527 = vsub.s32 %v4005, %v4526
    %v4528 = vrot.slane %v2242, %v4527
    %v4529 = vlaneseq
    %v4530 = vshrl.u32 %v4529, 7
    %v4531 = vsub.s32 %v4010, %v4530
    %v4532 = vrot.slane %v2245, %v4531
    %v4533 = vsel %vm4015, %v4532, %v4528
    %v4534 = vlaneseq
    %v4535 = vshrl.u32 %v4534, 7
    %v4536 = vsub.s32 %v4017, %v4535
    %v4537 = vrot.slane %v2248, %v4536
    %v4538 = vsel %vm4022, %v4537, %v4533
    %v4539 = vlaneseq
    %v4540 = vshrl.u32 %v4539, 7
    %v4541 = vsub.s32 %v4024, %v4540
    %v4542 = vrot.slane %v2251, %v4541
    %v4543 = vsel %vm4029, %v4542, %v4538
    %v4544 = vlaneseq
    %v4545 = vshrl.u32 %v4544, 7
    %v4546 = vsub.s32 %v4005, %v4545
    %v4547 = vrot.slane %v2254, %v4546
    %v4548 = vlaneseq
    %v4549 = vshrl.u32 %v4548, 7
    %v4550 = vsub.s32 %v4010, %v4549
    %v4551 = vrot.slane %v2257, %v4550
    %v4552 = vsel %vm4015, %v4551, %v4547
    %v4553 = vlaneseq
    %v4554 = vshrl.u32 %v4553, 7
    %v4555 = vsub.s32 %v4017, %v4554
    %v4556 = vrot.slane %v2260, %v4555
    %v4557 = vsel %vm4022, %v4556, %v4552
    %v4558 = vlaneseq
    %v4559 = vshrl.u32 %v4558, 7
    %v4560 = vsub.s32 %v4024, %v4559
    %v4561 = vrot.slane %v2263, %v4560
    %v4562 = vsel %vm4029, %v4561, %v4557
    %v4563 = vlaneseq
    %v4564 = vshrl.u32 %v4563, 7
    %v4565 = vsub.s32 %v4005, %v4564
    %v4566 = vrot.slane %v2266, %v4565
    %v4567 = vlaneseq
    %v4568 = vshrl.u32 %v4567, 7
    %v4569 = vsub.s32 %v4010, %v4568
    %v4570 = vrot.slane %v2269, %v4569
    %v4571 = vsel %vm4015, %v4570, %v4566
    %v4572 = vlaneseq
    %v4573 = vshrl.u32 %v4572, 7
    %v4574 = vsub.s32 %v4017, %v4573
    %v4575 = vrot.slane %v2272, %v4574
    %v4576 = vsel %vm4022, %v4575, %v4571
    %v4577 = vlaneseq
    %v4578 = vshrl.u32 %v4577, 7
    %v4579 = vsub.s32 %v4024, %v4578
    %v4580 = vrot.slane %v2275, %v4579
    %v4581 = vsel %vm4029, %v4580, %v4576
    %v4582 = vlaneseq
    %v4583 = vshrl.u32 %v4582, 7
    %v4584 = vsub.s32 %v4005, %v4583
    %v4585 = vrot.slane %v2278, %v4584
    %v4586 = vlaneseq
    %v4587 = vshrl.u32 %v4586, 7
    %v4588 = vsub.s32 %v4010, %v4587
    %v4589 = vrot.slane %v2281, %v4588
    %v4590 = vsel %vm4015, %v4589, %v4585
    %v4591 = vlaneseq
    %v4592 = vshrl.u32 %v4591, 7
    %v4593 = vsub.s32 %v4017, %v4592
    %v4594 = vrot.slane %v2284, %v4593
    %v4595 = vsel %vm4022, %v4594, %v4590
    %v4596 = vlaneseq
    %v4597 = vshrl.u32 %v4596, 7
    %v4598 = vsub.s32 %v4024, %v4597
    %v4599 = vrot.slane %v2287, %v4598
    %v4600 = vsel %vm4029, %v4599, %v4595
    %v4601 = vlaneseq
    %v4602 = vshrl.u32 %v4601, 7
    %v4603 = vsub.s32 %v4005, %v4602
    %v4604 = vrot.slane %v2290, %v4603
    %v4605 = vlaneseq
    %v4606 = vshrl.u32 %v4605, 7
    %v4607 = vsub.s32 %v4010, %v4606
    %v4608 = vrot.slane %v2293, %v4607
    %v4609 = vsel %vm4015, %v4608, %v4604
    %v4610 = vlaneseq
    %v4611 = vshrl.u32 %v4610, 7
    %v4612 = vsub.s32 %v4017, %v4611
    %v4613 = vrot.slane %v2296, %v4612
    %v4614 = vsel %vm4022, %v4613, %v4609
    %v4615 = vlaneseq
    %v4616 = vshrl.u32 %v4615, 7
    %v4617 = vsub.s32 %v4024, %v4616
    %v4618 = vrot.slane %v2299, %v4617
    %v4619 = vsel %vm4029, %v4618, %v4614
    %v4620 = vlaneseq
    %v4621 = vshrl.u32 %v4620, 7
    %v4622 = vsub.s32 %v4005, %v4621
    %v4623 = vrot.slane %v2302, %v4622
    %v4624 = vlaneseq
    %v4625 = vshrl.u32 %v4624, 7
    %v4626 = vsub.s32 %v4010, %v4625
    %v4627 = vrot.slane %v2305, %v4626
    %v4628 = vsel %vm4015, %v4627, %v4623
    %v4629 = vlaneseq
    %v4630 = vshrl.u32 %v4629, 7
    %v4631 = vsub.s32 %v4017, %v4630
    %v4632 = vrot.slane %v2308, %v4631
    %v4633 = vsel %vm4022, %v4632, %v4628
    %v4634 = vlaneseq
    %v4635 = vshrl.u32 %v4634, 7
    %v4636 = vsub.s32 %v4024, %v4635
    %v4637 = vrot.slane %v2311, %v4636
    %v4638 = vsel %vm4029, %v4637, %v4633
    %v4639 = vlaneseq
    %v4640 = vshrl.u32 %v4639, 7
    %v4641 = vsub.s32 %v4005, %v4640
    %v4642 = vrot.slane %v2314, %v4641
    %v4643 = vlaneseq
    %v4644 = vshrl.u32 %v4643, 7
    %v4645 = vsub.s32 %v4010, %v4644
    %v4646 = vrot.slane %v2317, %v4645
    %v4647 = vsel %vm4015, %v4646, %v4642
    %v4648 = vlaneseq
    %v4649 = vshrl.u32 %v4648, 7
    %v4650 = vsub.s32 %v4017, %v4649
    %v4651 = vrot.slane %v2320, %v4650
    %v4652 = vsel %vm4022, %v4651, %v4647
    %v4653 = vlaneseq
    %v4654 = vshrl.u32 %v4653, 7
    %v4655 = vsub.s32 %v4024, %v4654
    %v4656 = vrot.slane %v2323, %v4655
    %v4657 = vsel %vm4029, %v4656, %v4652
    %v4658 = vlaneseq
    %v4659 = vshrl.u32 %v4658, 7
    %v4660 = vsub.s32 %v4005, %v4659
    %v4661 = vrot.slane %v2326, %v4660
    %v4662 = vlaneseq
    %v4663 = vshrl.u32 %v4662, 7
    %v4664 = vsub.s32 %v4010, %v4663
    %v4665 = vrot.slane %v2329, %v4664
    %v4666 = vsel %vm4015, %v4665, %v4661
    %v4667 = vlaneseq
    %v4668 = vshrl.u32 %v4667, 7
    %v4669 = vsub.s32 %v4017, %v4668
    %v4670 = vrot.slane %v2332, %v4669
    %v4671 = vsel %vm4022, %v4670, %v4666
    %v4672 = vlaneseq
    %v4673 = vshrl.u32 %v4672, 7
    %v4674 = vsub.s32 %v4024, %v4673
    %v4675 = vrot.slane %v2335, %v4674
    %v4676 = vsel %vm4029, %v4675, %v4671
    %v4677 = vlaneseq
    %v4678 = vshrl.u32 %v4677, 7
    %v4679 = vsub.s32 %v4005, %v4678
    %v4680 = vrot.slane %v2338, %v4679
    %v4681 = vlaneseq
    %v4682 = vshrl.u32 %v4681, 7
    %v4683 = vsub.s32 %v4010, %v4682
    %v4684 = vrot.slane %v2341, %v4683
    %v4685 = vsel %vm4015, %v4684, %v4680
    %v4686 = vlaneseq
    %v4687 = vshrl.u32 %v4686, 7
    %v4688 = vsub.s32 %v4017, %v4687
    %v4689 = vrot.slane %v2344, %v4688
    %v4690 = vsel %vm4022, %v4689, %v4685
    %v4691 = vlaneseq
    %v4692 = vshrl.u32 %v4691, 7
    %v4693 = vsub.s32 %v4024, %v4692
    %v4694 = vrot.slane %v2347, %v4693
    %v4695 = vsel %vm4029, %v4694, %v4690
    %v4696 = vlaneseq
    %v4697 = vshrl.u32 %v4696, 7
    %v4698 = vsub.s32 %v4005, %v4697
    %v4699 = vrot.slane %v2350, %v4698
    %v4700 = vlaneseq
    %v4701 = vshrl.u32 %v4700, 7
    %v4702 = vsub.s32 %v4010, %v4701
    %v4703 = vrot.slane %v2353, %v4702
    %v4704 = vsel %vm4015, %v4703, %v4699
    %v4705 = vlaneseq
    %v4706 = vshrl.u32 %v4705, 7
    %v4707 = vsub.s32 %v4017, %v4706
    %v4708 = vrot.slane %v2356, %v4707
    %v4709 = vsel %vm4022, %v4708, %v4704
    %v4710 = vlaneseq
    %v4711 = vshrl.u32 %v4710, 7
    %v4712 = vsub.s32 %v4024, %v4711
    %v4713 = vrot.slane %v2359, %v4712
    %v4714 = vsel %vm4029, %v4713, %v4709
    %v4715 = vlaneseq
    %v4716 = vshrl.u32 %v4715, 7
    %v4717 = vsub.s32 %v4005, %v4716
    %v4718 = vrot.slane %v2362, %v4717
    %v4719 = vlaneseq
    %v4720 = vshrl.u32 %v4719, 7
    %v4721 = vsub.s32 %v4010, %v4720
    %v4722 = vrot.slane %v2365, %v4721
    %v4723 = vsel %vm4015, %v4722, %v4718
    %v4724 = vlaneseq
    %v4725 = vshrl.u32 %v4724, 7
    %v4726 = vsub.s32 %v4017, %v4725
    %v4727 = vrot.slane %v2368, %v4726
    %v4728 = vsel %vm4022, %v4727, %v4723
    %v4729 = vlaneseq
    %v4730 = vshrl.u32 %v4729, 7
    %v4731 = vsub.s32 %v4024, %v4730
    %v4732 = vrot.slane %v2371, %v4731
    %v4733 = vsel %vm4029, %v4732, %v4728
    %v4734 = vlaneseq
    %v4735 = vshrl.u32 %v4734, 7
    %v4736 = vsub.s32 %v4005, %v4735
    %v4737 = vrot.slane %v2374, %v4736
    %v4738 = vlaneseq
    %v4739 = vshrl.u32 %v4738, 7
    %v4740 = vsub.s32 %v4010, %v4739
    %v4741 = vrot.slane %v2377, %v4740
    %v4742 = vsel %vm4015, %v4741, %v4737
    %v4743 = vlaneseq
    %v4744 = vshrl.u32 %v4743, 7
    %v4745 = vsub.s32 %v4017, %v4744
    %v4746 = vrot.slane %v2380, %v4745
    %v4747 = vsel %vm4022, %v4746, %v4742
    %v4748 = vlaneseq
    %v4749 = vshrl.u32 %v4748, 7
    %v4750 = vsub.s32 %v4024, %v4749
    %v4751 = vrot.slane %v2383, %v4750
    %v4752 = vsel %vm4029, %v4751, %v4747
    %v4753 = vlaneseq
    %v4754 = vshrl.u32 %v4753, 7
    %v4755 = vsub.s32 %v4005, %v4754
    %v4756 = vrot.slane %v2386, %v4755
    %v4757 = vlaneseq
    %v4758 = vshrl.u32 %v4757, 7
    %v4759 = vsub.s32 %v4010, %v4758
    %v4760 = vrot.slane %v2389, %v4759
    %v4761 = vsel %vm4015, %v4760, %v4756
    %v4762 = vlaneseq
    %v4763 = vshrl.u32 %v4762, 7
    %v4764 = vsub.s32 %v4017, %v4763
    %v4765 = vrot.slane %v2392, %v4764
    %v4766 = vsel %vm4022, %v4765, %v4761
    %v4767 = vlaneseq
    %v4768 = vshrl.u32 %v4767, 7
    %v4769 = vsub.s32 %v4024, %v4768
    %v4770 = vrot.slane %v2395, %v4769
    %v4771 = vsel %vm4029, %v4770, %v4766
    %v4772 = vlaneseq
    %v4773 = vshrl.u32 %v4772, 7
    %v4774 = vsub.s32 %v4005, %v4773
    %v4775 = vrot.slane %v2398, %v4774
    %v4776 = vlaneseq
    %v4777 = vshrl.u32 %v4776, 7
    %v4778 = vsub.s32 %v4010, %v4777
    %v4779 = vrot.slane %v2401, %v4778
    %v4780 = vsel %vm4015, %v4779, %v4775
    %v4781 = vlaneseq
    %v4782 = vshrl.u32 %v4781, 7
    %v4783 = vsub.s32 %v4017, %v4782
    %v4784 = vrot.slane %v2404, %v4783
    %v4785 = vsel %vm4022, %v4784, %v4780
    %v4786 = vlaneseq
    %v4787 = vshrl.u32 %v4786, 7
    %v4788 = vsub.s32 %v4024, %v4787
    %v4789 = vrot.slane %v2407, %v4788
    %v4790 = vsel %vm4029, %v4789, %v4785
    %v4791 = vlaneseq
    %v4792 = vshrl.u32 %v4791, 7
    %v4793 = vsub.s32 %v4005, %v4792
    %v4794 = vrot.slane %v2410, %v4793
    %v4795 = vlaneseq
    %v4796 = vshrl.u32 %v4795, 7
    %v4797 = vsub.s32 %v4010, %v4796
    %v4798 = vrot.slane %v2413, %v4797
    %v4799 = vsel %vm4015, %v4798, %v4794
    %v4800 = vlaneseq
    %v4801 = vshrl.u32 %v4800, 7
    %v4802 = vsub.s32 %v4017, %v4801
    %v4803 = vrot.slane %v2416, %v4802
    %v4804 = vsel %vm4022, %v4803, %v4799
    %v4805 = vlaneseq
    %v4806 = vshrl.u32 %v4805, 7
    %v4807 = vsub.s32 %v4024, %v4806
    %v4808 = vrot.slane %v2419, %v4807
    %v4809 = vsel %vm4029, %v4808, %v4804
    %v4810 = vlaneseq
    %v4811 = vshrl.u32 %v4810, 7
    %v4812 = vsub.s32 %v4005, %v4811
    %v4813 = vrot.slane %v2422, %v4812
    %v4814 = vlaneseq
    %v4815 = vshrl.u32 %v4814, 7
    %v4816 = vsub.s32 %v4010, %v4815
    %v4817 = vrot.slane %v2425, %v4816
    %v4818 = vsel %vm4015, %v4817, %v4813
    %v4819 = vlaneseq
    %v4820 = vshrl.u32 %v4819, 7
    %v4821 = vsub.s32 %v4017, %v4820
    %v4822 = vrot.slane %v2428, %v4821
    %v4823 = vsel %vm4022, %v4822, %v4818
    %v4824 = vlaneseq
    %v4825 = vshrl.u32 %v4824, 7
    %v4826 = vsub.s32 %v4024, %v4825
    %v4827 = vrot.slane %v2431, %v4826
    %v4828 = vsel %vm4029, %v4827, %v4823
    %v4829 = vlaneseq
    %v4830 = vshrl.u32 %v4829, 7
    %v4831 = vsub.s32 %v4005, %v4830
    %v4832 = vrot.slane %v2434, %v4831
    %v4833 = vlaneseq
    %v4834 = vshrl.u32 %v4833, 7
    %v4835 = vsub.s32 %v4010, %v4834
    %v4836 = vrot.slane %v2437, %v4835
    %v4837 = vsel %vm4015, %v4836, %v4832
    %v4838 = vlaneseq
    %v4839 = vshrl.u32 %v4838, 7
    %v4840 = vsub.s32 %v4017, %v4839
    %v4841 = vrot.slane %v2440, %v4840
    %v4842 = vsel %vm4022, %v4841, %v4837
    %v4843 = vlaneseq
    %v4844 = vshrl.u32 %v4843, 7
    %v4845 = vsub.s32 %v4024, %v4844
    %v4846 = vrot.slane %v2443, %v4845
    %v4847 = vsel %vm4029, %v4846, %v4842
    %v4848 = vlaneseq
    %v4849 = vshrl.u32 %v4848, 7
    %v4850 = vsub.s32 %v4005, %v4849
    %v4851 = vrot.slane %v2446, %v4850
    %v4852 = vlaneseq
    %v4853 = vshrl.u32 %v4852, 7
    %v4854 = vsub.s32 %v4010, %v4853
    %v4855 = vrot.slane %v2449, %v4854
    %v4856 = vsel %vm4015, %v4855, %v4851
    %v4857 = vlaneseq
    %v4858 = vshrl.u32 %v4857, 7
    %v4859 = vsub.s32 %v4017, %v4858
    %v4860 = vrot.slane %v2452, %v4859
    %v4861 = vsel %vm4022, %v4860, %v4856
    %v4862 = vlaneseq
    %v4863 = vshrl.u32 %v4862, 7
    %v4864 = vsub.s32 %v4024, %v4863
    %v4865 = vrot.slane %v2455, %v4864
    %v4866 = vsel %vm4029, %v4865, %v4861
    %v4867 = vlaneseq
    %v4868 = vshrl.u32 %v4867, 7
    %v4869 = vsub.s32 %v4005, %v4868
    %v4870 = vrot.slane %v2458, %v4869
    %v4871 = vlaneseq
    %v4872 = vshrl.u32 %v4871, 7
    %v4873 = vsub.s32 %v4010, %v4872
    %v4874 = vrot.slane %v2461, %v4873
    %v4875 = vsel %vm4015, %v4874, %v4870
    %v4876 = vlaneseq
    %v4877 = vshrl.u32 %v4876, 7
    %v4878 = vsub.s32 %v4017, %v4877
    %v4879 = vrot.slane %v2464, %v4878
    %v4880 = vsel %vm4022, %v4879, %v4875
    %v4881 = vlaneseq
    %v4882 = vshrl.u32 %v4881, 7
    %v4883 = vsub.s32 %v4024, %v4882
    %v4884 = vrot.slane %v2467, %v4883
    %v4885 = vsel %vm4029, %v4884, %v4880
    %v4886 = vlaneseq
    %v4887 = vshrl.u32 %v4886, 7
    %v4888 = vsub.s32 %v4005, %v4887
    %v4889 = vrot.slane %v2470, %v4888
    %v4890 = vlaneseq
    %v4891 = vshrl.u32 %v4890, 7
    %v4892 = vsub.s32 %v4010, %v4891
    %v4893 = vrot.slane %v2473, %v4892
    %v4894 = vsel %vm4015, %v4893, %v4889
    %v4895 = vlaneseq
    %v4896 = vshrl.u32 %v4895, 7
    %v4897 = vsub.s32 %v4017, %v4896
    %v4898 = vrot.slane %v2476, %v4897
    %v4899 = vsel %vm4022, %v4898, %v4894
    %v4900 = vlaneseq
    %v4901 = vshrl.u32 %v4900, 7
    %v4902 = vsub.s32 %v4024, %v4901
    %v4903 = vrot.slane %v2479, %v4902
    %v4904 = vsel %vm4029, %v4903, %v4899
    %v4905 = vlaneseq
    %v4906 = vshrl.u32 %v4905, 7
    %v4907 = vsub.s32 %v4005, %v4906
    %v4908 = vrot.slane %v2482, %v4907
    %v4909 = vlaneseq
    %v4910 = vshrl.u32 %v4909, 7
    %v4911 = vsub.s32 %v4010, %v4910
    %v4912 = vrot.slane %v2485, %v4911
    %v4913 = vsel %vm4015, %v4912, %v4908
    %v4914 = vlaneseq
    %v4915 = vshrl.u32 %v4914, 7
    %v4916 = vsub.s32 %v4017, %v4915
    %v4917 = vrot.slane %v2488, %v4916
    %v4918 = vsel %vm4022, %v4917, %v4913
    %v4919 = vlaneseq
    %v4920 = vshrl.u32 %v4919, 7
    %v4921 = vsub.s32 %v4024, %v4920
    %v4922 = vrot.slane %v2491, %v4921
    %v4923 = vsel %vm4029, %v4922, %v4918
    %v4924 = vlaneseq
    %v4925 = vshrl.u32 %v4924, 7
    %v4926 = vsub.s32 %v4005, %v4925
    %v4927 = vrot.slane %v2494, %v4926
    %v4928 = vlaneseq
    %v4929 = vshrl.u32 %v4928, 7
    %v4930 = vsub.s32 %v4010, %v4929
    %v4931 = vrot.slane %v2497, %v4930
    %v4932 = vsel %vm4015, %v4931, %v4927
    %v4933 = vlaneseq
    %v4934 = vshrl.u32 %v4933, 7
    %v4935 = vsub.s32 %v4017, %v4934
    %v4936 = vrot.slane %v2500, %v4935
    %v4937 = vsel %vm4022, %v4936, %v4932
    %v4938 = vlaneseq
    %v4939 = vshrl.u32 %v4938, 7
    %v4940 = vsub.s32 %v4024, %v4939
    %v4941 = vrot.slane %v2503, %v4940
    %v4942 = vsel %vm4029, %v4941, %v4937
    %v4943 = vlaneseq
    %v4944 = vshrl.u32 %v4943, 7
    %v4945 = vsub.s32 %v4005, %v4944
    %v4946 = vrot.slane %v2506, %v4945
    %v4947 = vlaneseq
    %v4948 = vshrl.u32 %v4947, 7
    %v4949 = vsub.s32 %v4010, %v4948
    %v4950 = vrot.slane %v2509, %v4949
    %v4951 = vsel %vm4015, %v4950, %v4946
    %v4952 = vlaneseq
    %v4953 = vshrl.u32 %v4952, 7
    %v4954 = vsub.s32 %v4017, %v4953
    %v4955 = vrot.slane %v2512, %v4954
    %v4956 = vsel %vm4022, %v4955, %v4951
    %v4957 = vlaneseq
    %v4958 = vshrl.u32 %v4957, 7
    %v4959 = vsub.s32 %v4024, %v4958
    %v4960 = vrot.slane %v2515, %v4959
    %v4961 = vsel %vm4029, %v4960, %v4956
    %v4962 = vlaneseq
    %v4963 = vshrl.u32 %v4962, 7
    %v4964 = vsub.s32 %v4005, %v4963
    %v4965 = vrot.slane %v2518, %v4964
    %v4966 = vlaneseq
    %v4967 = vshrl.u32 %v4966, 7
    %v4968 = vsub.s32 %v4010, %v4967
    %v4969 = vrot.slane %v2521, %v4968
    %v4970 = vsel %vm4015, %v4969, %v4965
    %v4971 = vlaneseq
    %v4972 = vshrl.u32 %v4971, 7
    %v4973 = vsub.s32 %v4017, %v4972
    %v4974 = vrot.slane %v2524, %v4973
    %v4975 = vsel %vm4022, %v4974, %v4970
    %v4976 = vlaneseq
    %v4977 = vshrl.u32 %v4976, 7
    %v4978 = vsub.s32 %v4024, %v4977
    %v4979 = vrot.slane %v2527, %v4978
    %v4980 = vsel %vm4029, %v4979, %v4975
    %v4981 = vlaneseq
    %v4982 = vshrl.u32 %v4981, 7
    %v4983 = vsub.s32 %v4005, %v4982
    %v4984 = vrot.slane %v2530, %v4983
    %v4985 = vlaneseq
    %v4986 = vshrl.u32 %v4985, 7
    %v4987 = vsub.s32 %v4010, %v4986
    %v4988 = vrot.slane %v2533, %v4987
    %v4989 = vsel %vm4015, %v4988, %v4984
    %v4990 = vlaneseq
    %v4991 = vshrl.u32 %v4990, 7
    %v4992 = vsub.s32 %v4017, %v4991
    %v4993 = vrot.slane %v2536, %v4992
    %v4994 = vsel %vm4022, %v4993, %v4989
    %v4995 = vlaneseq
    %v4996 = vshrl.u32 %v4995, 7
    %v4997 = vsub.s32 %v4024, %v4996
    %v4998 = vrot.slane %v2539, %v4997
    %v4999 = vsel %vm4029, %v4998, %v4994
    %v5000 = vlaneseq
    %v5001 = vshrl.u32 %v5000, 7
    %v5002 = vsub.s32 %v4005, %v5001
    %v5003 = vrot.slane %v2542, %v5002
    %v5004 = vlaneseq
    %v5005 = vshrl.u32 %v5004, 7
    %v5006 = vsub.s32 %v4010, %v5005
    %v5007 = vrot.slane %v2545, %v5006
    %v5008 = vsel %vm4015, %v5007, %v5003
    %v5009 = vlaneseq
    %v5010 = vshrl.u32 %v5009, 7
    %v5011 = vsub.s32 %v4017, %v5010
    %v5012 = vrot.slane %v2548, %v5011
    %v5013 = vsel %vm4022, %v5012, %v5008
    %v5014 = vlaneseq
    %v5015 = vshrl.u32 %v5014, 7
    %v5016 = vsub.s32 %v4024, %v5015
    %v5017 = vrot.slane %v2551, %v5016
    %v5018 = vsel %vm4029, %v5017, %v5013
    %v5019 = vlaneseq
    %v5020 = vshrl.u32 %v5019, 7
    %v5021 = vsub.s32 %v4005, %v5020
    %v5022 = vrot.slane %v2554, %v5021
    %v5023 = vlaneseq
    %v5024 = vshrl.u32 %v5023, 7
    %v5025 = vsub.s32 %v4010, %v5024
    %v5026 = vrot.slane %v2557, %v5025
    %v5027 = vsel %vm4015, %v5026, %v5022
    %v5028 = vlaneseq
    %v5029 = vshrl.u32 %v5028, 7
    %v5030 = vsub.s32 %v4017, %v5029
    %v5031 = vrot.slane %v2560, %v5030
    %v5032 = vsel %vm4022, %v5031, %v5027
    %v5033 = vlaneseq
    %v5034 = vshrl.u32 %v5033, 7
    %v5035 = vsub.s32 %v4024, %v5034
    %v5036 = vrot.slane %v2563, %v5035
    %v5037 = vsel %vm4029, %v5036, %v5032
    %v5038 = vlaneseq
    %v5039 = vshrl.u32 %v5038, 7
    %v5040 = vsub.s32 %v4005, %v5039
    %v5041 = vrot.slane %v2566, %v5040
    %v5042 = vlaneseq
    %v5043 = vshrl.u32 %v5042, 7
    %v5044 = vsub.s32 %v4010, %v5043
    %v5045 = vrot.slane %v2569, %v5044
    %v5046 = vsel %vm4015, %v5045, %v5041
    %v5047 = vlaneseq
    %v5048 = vshrl.u32 %v5047, 7
    %v5049 = vsub.s32 %v4017, %v5048
    %v5050 = vrot.slane %v2572, %v5049
    %v5051 = vsel %vm4022, %v5050, %v5046
    %v5052 = vlaneseq
    %v5053 = vshrl.u32 %v5052, 7
    %v5054 = vsub.s32 %v4024, %v5053
    %v5055 = vrot.slane %v2575, %v5054
    %v5056 = vsel %vm4029, %v5055, %v5051
    %v5057 = vlaneseq
    %v5058 = vshrl.u32 %v5057, 7
    %v5059 = vsub.s32 %v4005, %v5058
    %v5060 = vrot.slane %v2578, %v5059
    %v5061 = vlaneseq
    %v5062 = vshrl.u32 %v5061, 7
    %v5063 = vsub.s32 %v4010, %v5062
    %v5064 = vrot.slane %v2581, %v5063
    %v5065 = vsel %vm4015, %v5064, %v5060
    %v5066 = vlaneseq
    %v5067 = vshrl.u32 %v5066, 7
    %v5068 = vsub.s32 %v4017, %v5067
    %v5069 = vrot.slane %v2584, %v5068
    %v5070 = vsel %vm4022, %v5069, %v5065
    %v5071 = vlaneseq
    %v5072 = vshrl.u32 %v5071, 7
    %v5073 = vsub.s32 %v4024, %v5072
    %v5074 = vrot.slane %v2587, %v5073
    %v5075 = vsel %vm4029, %v5074, %v5070
    %v5076 = vlaneseq
    %v5077 = vshrl.u32 %v5076, 7
    %v5078 = vsub.s32 %v4005, %v5077
    %v5079 = vrot.slane %v2590, %v5078
    %v5080 = vlaneseq
    %v5081 = vshrl.u32 %v5080, 7
    %v5082 = vsub.s32 %v4010, %v5081
    %v5083 = vrot.slane %v2593, %v5082
    %v5084 = vsel %vm4015, %v5083, %v5079
    %v5085 = vlaneseq
    %v5086 = vshrl.u32 %v5085, 7
    %v5087 = vsub.s32 %v4017, %v5086
    %v5088 = vrot.slane %v2596, %v5087
    %v5089 = vsel %vm4022, %v5088, %v5084
    %v5090 = vlaneseq
    %v5091 = vshrl.u32 %v5090, 7
    %v5092 = vsub.s32 %v4024, %v5091
    %v5093 = vrot.slane %v2599, %v5092
    %v5094 = vsel %vm4029, %v5093, %v5089
    %v5095 = vlaneseq
    %v5096 = vshrl.u32 %v5095, 7
    %v5097 = vsub.s32 %v4005, %v5096
    %v5098 = vrot.slane %v2602, %v5097
    %v5099 = vlaneseq
    %v5100 = vshrl.u32 %v5099, 7
    %v5101 = vsub.s32 %v4010, %v5100
    %v5102 = vrot.slane %v2605, %v5101
    %v5103 = vsel %vm4015, %v5102, %v5098
    %v5104 = vlaneseq
    %v5105 = vshrl.u32 %v5104, 7
    %v5106 = vsub.s32 %v4017, %v5105
    %v5107 = vrot.slane %v2608, %v5106
    %v5108 = vsel %vm4022, %v5107, %v5103
    %v5109 = vlaneseq
    %v5110 = vshrl.u32 %v5109, 7
    %v5111 = vsub.s32 %v4024, %v5110
    %v5112 = vrot.slane %v2611, %v5111
    %v5113 = vsel %vm4029, %v5112, %v5108
    %v5114 = vlaneseq
    %v5115 = vshrl.u32 %v5114, 7
    %v5116 = vsub.s32 %v4005, %v5115
    %v5117 = vrot.slane %v2614, %v5116
    %v5118 = vlaneseq
    %v5119 = vshrl.u32 %v5118, 7
    %v5120 = vsub.s32 %v4010, %v5119
    %v5121 = vrot.slane %v2617, %v5120
    %v5122 = vsel %vm4015, %v5121, %v5117
    %v5123 = vlaneseq
    %v5124 = vshrl.u32 %v5123, 7
    %v5125 = vsub.s32 %v4017, %v5124
    %v5126 = vrot.slane %v2620, %v5125
    %v5127 = vsel %vm4022, %v5126, %v5122
    %v5128 = vlaneseq
    %v5129 = vshrl.u32 %v5128, 7
    %v5130 = vsub.s32 %v4024, %v5129
    %v5131 = vrot.slane %v2623, %v5130
    %v5132 = vsel %vm4029, %v5131, %v5127
    %v5133 = vlaneseq
    %v5134 = vshrl.u32 %v5133, 7
    %v5135 = vsub.s32 %v4005, %v5134
    %v5136 = vrot.slane %v2626, %v5135
    %v5137 = vlaneseq
    %v5138 = vshrl.u32 %v5137, 7
    %v5139 = vsub.s32 %v4010, %v5138
    %v5140 = vrot.slane %v2629, %v5139
    %v5141 = vsel %vm4015, %v5140, %v5136
    %v5142 = vlaneseq
    %v5143 = vshrl.u32 %v5142, 7
    %v5144 = vsub.s32 %v4017, %v5143
    %v5145 = vrot.slane %v2632, %v5144
    %v5146 = vsel %vm4022, %v5145, %v5141
    %v5147 = vlaneseq
    %v5148 = vshrl.u32 %v5147, 7
    %v5149 = vsub.s32 %v4024, %v5148
    %v5150 = vrot.slane %v2635, %v5149
    %v5151 = vsel %vm4029, %v5150, %v5146
    %v5152 = vlaneseq
    %v5153 = vshrl.u32 %v5152, 7
    %v5154 = vsub.s32 %v4005, %v5153
    %v5155 = vrot.slane %v2638, %v5154
    %v5156 = vlaneseq
    %v5157 = vshrl.u32 %v5156, 7
    %v5158 = vsub.s32 %v4010, %v5157
    %v5159 = vrot.slane %v2641, %v5158
    %v5160 = vsel %vm4015, %v5159, %v5155
    %v5161 = vlaneseq
    %v5162 = vshrl.u32 %v5161, 7
    %v5163 = vsub.s32 %v4017, %v5162
    %v5164 = vrot.slane %v2644, %v5163
    %v5165 = vsel %vm4022, %v5164, %v5160
    %v5166 = vlaneseq
    %v5167 = vshrl.u32 %v5166, 7
    %v5168 = vsub.s32 %v4024, %v5167
    %v5169 = vrot.slane %v2647, %v5168
    %v5170 = vsel %vm4029, %v5169, %v5165
    %v5171 = vlaneseq
    %v5172 = vshrl.u32 %v5171, 7
    %v5173 = vsub.s32 %v4005, %v5172
    %v5174 = vrot.slane %v2650, %v5173
    %v5175 = vlaneseq
    %v5176 = vshrl.u32 %v5175, 7
    %v5177 = vsub.s32 %v4010, %v5176
    %v5178 = vrot.slane %v2653, %v5177
    %v5179 = vsel %vm4015, %v5178, %v5174
    %v5180 = vlaneseq
    %v5181 = vshrl.u32 %v5180, 7
    %v5182 = vsub.s32 %v4017, %v5181
    %v5183 = vrot.slane %v2656, %v5182
    %v5184 = vsel %vm4022, %v5183, %v5179
    %v5185 = vlaneseq
    %v5186 = vshrl.u32 %v5185, 7
    %v5187 = vsub.s32 %v4024, %v5186
    %v5188 = vrot.slane %v2659, %v5187
    %v5189 = vsel %vm4029, %v5188, %v5184
    %v5190 = vlaneseq
    %v5191 = vshrl.u32 %v5190, 7
    %v5192 = vsub.s32 %v4005, %v5191
    %v5193 = vrot.slane %v2662, %v5192
    %v5194 = vlaneseq
    %v5195 = vshrl.u32 %v5194, 7
    %v5196 = vsub.s32 %v4010, %v5195
    %v5197 = vrot.slane %v2665, %v5196
    %v5198 = vsel %vm4015, %v5197, %v5193
    %v5199 = vlaneseq
    %v5200 = vshrl.u32 %v5199, 7
    %v5201 = vsub.s32 %v4017, %v5200
    %v5202 = vrot.slane %v2668, %v5201
    %v5203 = vsel %vm4022, %v5202, %v5198
    %v5204 = vlaneseq
    %v5205 = vshrl.u32 %v5204, 7
    %v5206 = vsub.s32 %v4024, %v5205
    %v5207 = vrot.slane %v2671, %v5206
    %v5208 = vsel %vm4029, %v5207, %v5203
    %v5209 = vlaneseq
    %v5210 = vshrl.u32 %v5209, 7
    %v5211 = vsub.s32 %v4005, %v5210
    %v5212 = vrot.slane %v2674, %v5211
    %v5213 = vlaneseq
    %v5214 = vshrl.u32 %v5213, 7
    %v5215 = vsub.s32 %v4010, %v5214
    %v5216 = vrot.slane %v2677, %v5215
    %v5217 = vsel %vm4015, %v5216, %v5212
    %v5218 = vlaneseq
    %v5219 = vshrl.u32 %v5218, 7
    %v5220 = vsub.s32 %v4017, %v5219
    %v5221 = vrot.slane %v2680, %v5220
    %v5222 = vsel %vm4022, %v5221, %v5217
    %v5223 = vlaneseq
    %v5224 = vshrl.u32 %v5223, 7
    %v5225 = vsub.s32 %v4024, %v5224
    %v5226 = vrot.slane %v2683, %v5225
    %v5227 = vsel %vm4029, %v5226, %v5222
    %vm5228 = vcmask 1041409
    %v5229 = vsel %vm5228, %v4049, %v4030
    %vm5230 = vcmask 1042434
    %v5231 = vsel %vm5230, %v4068, %v5229
    %vm5232 = vcmask 1043459
    %v5233 = vsel %vm5232, %v4087, %v5231
    %vm5234 = vcmask 1044484
    %v5235 = vsel %vm5234, %v4106, %v5233
    %vm5236 = vcmask 1045509
    %v5237 = vsel %vm5236, %v4125, %v5235
    %vm5238 = vcmask 1046534
    %v5239 = vsel %vm5238, %v4144, %v5237
    %vm5240 = vcmask 1047559
    %v5241 = vsel %vm5240, %v4163, %v5239
    %v5242 = vsel %vm5228, %v4201, %v4182
    %v5243 = vsel %vm5230, %v4220, %v5242
    %v5244 = vsel %vm5232, %v4239, %v5243
    %v5245 = vsel %vm5234, %v4258, %v5244
    %v5246 = vsel %vm5236, %v4277, %v5245
    %v5247 = vsel %vm5238, %v4296, %v5246
    %v5248 = vsel %vm5240, %v4315, %v5247
    %v5249 = vsel %vm5228, %v4353, %v4334
    %v5250 = vsel %vm5230, %v4372, %v5249
    %v5251 = vsel %vm5232, %v4391, %v5250
    %v5252 = vsel %vm5234, %v4410, %v5251
    %v5253 = vsel %vm5236, %v4429, %v5252
    %v5254 = vsel %vm5238, %v4448, %v5253
    %v5255 = vsel %vm5240, %v4467, %v5254
    %v5256 = vsel %vm5228, %v4505, %v4486
    %v5257 = vsel %vm5230, %v4524, %v5256
    %v5258 = vsel %vm5232, %v4543, %v5257
    %v5259 = vsel %vm5234, %v4562, %v5258
    %v5260 = vsel %vm5236, %v4581, %v5259
    %v5261 = vsel %vm5238, %v4600, %v5260
    %v5262 = vsel %vm5240, %v4619, %v5261
    %v5263 = vsel %vm5228, %v4657, %v4638
    %v5264 = vsel %vm5230, %v4676, %v5263
    %v5265 = vsel %vm5232, %v4695, %v5264
    %v5266 = vsel %vm5234, %v4714, %v5265
    %v5267 = vsel %vm5236, %v4733, %v5266
    %v5268 = vsel %vm5238, %v4752, %v5267
    %v5269 = vsel %vm5240, %v4771, %v5268
    %v5270 = vsel %vm5228, %v4809, %v4790
    %v5271 = vsel %vm5230, %v4828, %v5270
    %v5272 = vsel %vm5232, %v4847, %v5271
    %v5273 = vsel %vm5234, %v4866, %v5272
    %v5274 = vsel %vm5236, %v4885, %v5273
    %v5275 = vsel %vm5238, %v4904, %v5274
    %v5276 = vsel %vm5240, %v4923, %v5275
    %v5277 = vsel %vm5228, %v4961, %v4942
    %v5278 = vsel %vm5230, %v4980, %v5277
    %v5279 = vsel %vm5232, %v4999, %v5278
    %v5280 = vsel %vm5234, %v5018, %v5279
    %v5281 = vsel %vm5236, %v5037, %v5280
    %v5282 = vsel %vm5238, %v5056, %v5281
    %v5283 = vsel %vm5240, %v5075, %v5282
    %v5284 = vsel %vm5228, %v5113, %v5094
    %v5285 = vsel %vm5230, %v5132, %v5284
    %v5286 = vsel %vm5232, %v5151, %v5285
    %v5287 = vsel %vm5234, %v5170, %v5286
    %v5288 = vsel %vm5236, %v5189, %v5287
    %v5289 = vsel %vm5238, %v5208, %v5288
    %v5290 = vsel %vm5240, %v5227, %v5289
    %v5299 = vsel %vm3740, %v5241, 0.0
    %v5300 = vsel %vm3741, %v5248, 0.0
    %v5301 = vsel %vm3742, %v5255, 0.0
    %v5302 = vsel %vm3743, %v5262, 0.0
    %v5303 = vsel %vm3744, %v5269, 0.0
    %v5304 = vsel %vm3745, %v5276, 0.0
    %v5305 = vsel %vm3746, %v5283, 0.0
    %v5306 = vsel %vm3747, %v5290, 0.0
    %v5563 = vlaneseq
    %v5564 = vshrl.u32 %v5563, 7
    %v5565 = vsub.s32 %v4005, %v5564
    %v5566 = vrot.slane %v2942, %v5565
    %v5567 = vlaneseq
    %v5568 = vshrl.u32 %v5567, 7
    %v5569 = vsub.s32 %v4010, %v5568
    %v5570 = vrot.slane %v2945, %v5569
    %v5571 = vsel %vm4015, %v5570, %v5566
    %v5572 = vlaneseq
    %v5573 = vshrl.u32 %v5572, 7
    %v5574 = vsub.s32 %v4017, %v5573
    %v5575 = vrot.slane %v2948, %v5574
    %v5576 = vsel %vm4022, %v5575, %v5571
    %v5577 = vlaneseq
    %v5578 = vshrl.u32 %v5577, 7
    %v5579 = vsub.s32 %v4024, %v5578
    %v5580 = vrot.slane %v2951, %v5579
    %v5581 = vsel %vm4029, %v5580, %v5576
    %v5582 = vlaneseq
    %v5583 = vshrl.u32 %v5582, 7
    %v5584 = vsub.s32 %v4005, %v5583
    %v5585 = vrot.slane %v2954, %v5584
    %v5586 = vlaneseq
    %v5587 = vshrl.u32 %v5586, 7
    %v5588 = vsub.s32 %v4010, %v5587
    %v5589 = vrot.slane %v2957, %v5588
    %v5590 = vsel %vm4015, %v5589, %v5585
    %v5591 = vlaneseq
    %v5592 = vshrl.u32 %v5591, 7
    %v5593 = vsub.s32 %v4017, %v5592
    %v5594 = vrot.slane %v2960, %v5593
    %v5595 = vsel %vm4022, %v5594, %v5590
    %v5596 = vlaneseq
    %v5597 = vshrl.u32 %v5596, 7
    %v5598 = vsub.s32 %v4024, %v5597
    %v5599 = vrot.slane %v2963, %v5598
    %v5600 = vsel %vm4029, %v5599, %v5595
    %v5601 = vlaneseq
    %v5602 = vshrl.u32 %v5601, 7
    %v5603 = vsub.s32 %v4005, %v5602
    %v5604 = vrot.slane %v2966, %v5603
    %v5605 = vlaneseq
    %v5606 = vshrl.u32 %v5605, 7
    %v5607 = vsub.s32 %v4010, %v5606
    %v5608 = vrot.slane %v2969, %v5607
    %v5609 = vsel %vm4015, %v5608, %v5604
    %v5610 = vlaneseq
    %v5611 = vshrl.u32 %v5610, 7
    %v5612 = vsub.s32 %v4017, %v5611
    %v5613 = vrot.slane %v2972, %v5612
    %v5614 = vsel %vm4022, %v5613, %v5609
    %v5615 = vlaneseq
    %v5616 = vshrl.u32 %v5615, 7
    %v5617 = vsub.s32 %v4024, %v5616
    %v5618 = vrot.slane %v2975, %v5617
    %v5619 = vsel %vm4029, %v5618, %v5614
    %v5620 = vlaneseq
    %v5621 = vshrl.u32 %v5620, 7
    %v5622 = vsub.s32 %v4005, %v5621
    %v5623 = vrot.slane %v2978, %v5622
    %v5624 = vlaneseq
    %v5625 = vshrl.u32 %v5624, 7
    %v5626 = vsub.s32 %v4010, %v5625
    %v5627 = vrot.slane %v2981, %v5626
    %v5628 = vsel %vm4015, %v5627, %v5623
    %v5629 = vlaneseq
    %v5630 = vshrl.u32 %v5629, 7
    %v5631 = vsub.s32 %v4017, %v5630
    %v5632 = vrot.slane %v2984, %v5631
    %v5633 = vsel %vm4022, %v5632, %v5628
    %v5634 = vlaneseq
    %v5635 = vshrl.u32 %v5634, 7
    %v5636 = vsub.s32 %v4024, %v5635
    %v5637 = vrot.slane %v2987, %v5636
    %v5638 = vsel %vm4029, %v5637, %v5633
    %v5639 = vlaneseq
    %v5640 = vshrl.u32 %v5639, 7
    %v5641 = vsub.s32 %v4005, %v5640
    %v5642 = vrot.slane %v2990, %v5641
    %v5643 = vlaneseq
    %v5644 = vshrl.u32 %v5643, 7
    %v5645 = vsub.s32 %v4010, %v5644
    %v5646 = vrot.slane %v2993, %v5645
    %v5647 = vsel %vm4015, %v5646, %v5642
    %v5648 = vlaneseq
    %v5649 = vshrl.u32 %v5648, 7
    %v5650 = vsub.s32 %v4017, %v5649
    %v5651 = vrot.slane %v2996, %v5650
    %v5652 = vsel %vm4022, %v5651, %v5647
    %v5653 = vlaneseq
    %v5654 = vshrl.u32 %v5653, 7
    %v5655 = vsub.s32 %v4024, %v5654
    %v5656 = vrot.slane %v2999, %v5655
    %v5657 = vsel %vm4029, %v5656, %v5652
    %v5658 = vlaneseq
    %v5659 = vshrl.u32 %v5658, 7
    %v5660 = vsub.s32 %v4005, %v5659
    %v5661 = vrot.slane %v3002, %v5660
    %v5662 = vlaneseq
    %v5663 = vshrl.u32 %v5662, 7
    %v5664 = vsub.s32 %v4010, %v5663
    %v5665 = vrot.slane %v3005, %v5664
    %v5666 = vsel %vm4015, %v5665, %v5661
    %v5667 = vlaneseq
    %v5668 = vshrl.u32 %v5667, 7
    %v5669 = vsub.s32 %v4017, %v5668
    %v5670 = vrot.slane %v3008, %v5669
    %v5671 = vsel %vm4022, %v5670, %v5666
    %v5672 = vlaneseq
    %v5673 = vshrl.u32 %v5672, 7
    %v5674 = vsub.s32 %v4024, %v5673
    %v5675 = vrot.slane %v3011, %v5674
    %v5676 = vsel %vm4029, %v5675, %v5671
    %v5677 = vlaneseq
    %v5678 = vshrl.u32 %v5677, 7
    %v5679 = vsub.s32 %v4005, %v5678
    %v5680 = vrot.slane %v3014, %v5679
    %v5681 = vlaneseq
    %v5682 = vshrl.u32 %v5681, 7
    %v5683 = vsub.s32 %v4010, %v5682
    %v5684 = vrot.slane %v3017, %v5683
    %v5685 = vsel %vm4015, %v5684, %v5680
    %v5686 = vlaneseq
    %v5687 = vshrl.u32 %v5686, 7
    %v5688 = vsub.s32 %v4017, %v5687
    %v5689 = vrot.slane %v3020, %v5688
    %v5690 = vsel %vm4022, %v5689, %v5685
    %v5691 = vlaneseq
    %v5692 = vshrl.u32 %v5691, 7
    %v5693 = vsub.s32 %v4024, %v5692
    %v5694 = vrot.slane %v3023, %v5693
    %v5695 = vsel %vm4029, %v5694, %v5690
    %v5696 = vlaneseq
    %v5697 = vshrl.u32 %v5696, 7
    %v5698 = vsub.s32 %v4005, %v5697
    %v5699 = vrot.slane %v3026, %v5698
    %v5700 = vlaneseq
    %v5701 = vshrl.u32 %v5700, 7
    %v5702 = vsub.s32 %v4010, %v5701
    %v5703 = vrot.slane %v3029, %v5702
    %v5704 = vsel %vm4015, %v5703, %v5699
    %v5705 = vlaneseq
    %v5706 = vshrl.u32 %v5705, 7
    %v5707 = vsub.s32 %v4017, %v5706
    %v5708 = vrot.slane %v3032, %v5707
    %v5709 = vsel %vm4022, %v5708, %v5704
    %v5710 = vlaneseq
    %v5711 = vshrl.u32 %v5710, 7
    %v5712 = vsub.s32 %v4024, %v5711
    %v5713 = vrot.slane %v3035, %v5712
    %v5714 = vsel %vm4029, %v5713, %v5709
    %v5715 = vlaneseq
    %v5716 = vshrl.u32 %v5715, 7
    %v5717 = vsub.s32 %v4005, %v5716
    %v5718 = vrot.slane %v3038, %v5717
    %v5719 = vlaneseq
    %v5720 = vshrl.u32 %v5719, 7
    %v5721 = vsub.s32 %v4010, %v5720
    %v5722 = vrot.slane %v3041, %v5721
    %v5723 = vsel %vm4015, %v5722, %v5718
    %v5724 = vlaneseq
    %v5725 = vshrl.u32 %v5724, 7
    %v5726 = vsub.s32 %v4017, %v5725
    %v5727 = vrot.slane %v3044, %v5726
    %v5728 = vsel %vm4022, %v5727, %v5723
    %v5729 = vlaneseq
    %v5730 = vshrl.u32 %v5729, 7
    %v5731 = vsub.s32 %v4024, %v5730
    %v5732 = vrot.slane %v3047, %v5731
    %v5733 = vsel %vm4029, %v5732, %v5728
    %v5734 = vlaneseq
    %v5735 = vshrl.u32 %v5734, 7
    %v5736 = vsub.s32 %v4005, %v5735
    %v5737 = vrot.slane %v3050, %v5736
    %v5738 = vlaneseq
    %v5739 = vshrl.u32 %v5738, 7
    %v5740 = vsub.s32 %v4010, %v5739
    %v5741 = vrot.slane %v3053, %v5740
    %v5742 = vsel %vm4015, %v5741, %v5737
    %v5743 = vlaneseq
    %v5744 = vshrl.u32 %v5743, 7
    %v5745 = vsub.s32 %v4017, %v5744
    %v5746 = vrot.slane %v3056, %v5745
    %v5747 = vsel %vm4022, %v5746, %v5742
    %v5748 = vlaneseq
    %v5749 = vshrl.u32 %v5748, 7
    %v5750 = vsub.s32 %v4024, %v5749
    %v5751 = vrot.slane %v3059, %v5750
    %v5752 = vsel %vm4029, %v5751, %v5747
    %v5753 = vlaneseq
    %v5754 = vshrl.u32 %v5753, 7
    %v5755 = vsub.s32 %v4005, %v5754
    %v5756 = vrot.slane %v3062, %v5755
    %v5757 = vlaneseq
    %v5758 = vshrl.u32 %v5757, 7
    %v5759 = vsub.s32 %v4010, %v5758
    %v5760 = vrot.slane %v3065, %v5759
    %v5761 = vsel %vm4015, %v5760, %v5756
    %v5762 = vlaneseq
    %v5763 = vshrl.u32 %v5762, 7
    %v5764 = vsub.s32 %v4017, %v5763
    %v5765 = vrot.slane %v3068, %v5764
    %v5766 = vsel %vm4022, %v5765, %v5761
    %v5767 = vlaneseq
    %v5768 = vshrl.u32 %v5767, 7
    %v5769 = vsub.s32 %v4024, %v5768
    %v5770 = vrot.slane %v3071, %v5769
    %v5771 = vsel %vm4029, %v5770, %v5766
    %v5772 = vlaneseq
    %v5773 = vshrl.u32 %v5772, 7
    %v5774 = vsub.s32 %v4005, %v5773
    %v5775 = vrot.slane %v3074, %v5774
    %v5776 = vlaneseq
    %v5777 = vshrl.u32 %v5776, 7
    %v5778 = vsub.s32 %v4010, %v5777
    %v5779 = vrot.slane %v3077, %v5778
    %v5780 = vsel %vm4015, %v5779, %v5775
    %v5781 = vlaneseq
    %v5782 = vshrl.u32 %v5781, 7
    %v5783 = vsub.s32 %v4017, %v5782
    %v5784 = vrot.slane %v3080, %v5783
    %v5785 = vsel %vm4022, %v5784, %v5780
    %v5786 = vlaneseq
    %v5787 = vshrl.u32 %v5786, 7
    %v5788 = vsub.s32 %v4024, %v5787
    %v5789 = vrot.slane %v3083, %v5788
    %v5790 = vsel %vm4029, %v5789, %v5785
    %v5791 = vlaneseq
    %v5792 = vshrl.u32 %v5791, 7
    %v5793 = vsub.s32 %v4005, %v5792
    %v5794 = vrot.slane %v3086, %v5793
    %v5795 = vlaneseq
    %v5796 = vshrl.u32 %v5795, 7
    %v5797 = vsub.s32 %v4010, %v5796
    %v5798 = vrot.slane %v3089, %v5797
    %v5799 = vsel %vm4015, %v5798, %v5794
    %v5800 = vlaneseq
    %v5801 = vshrl.u32 %v5800, 7
    %v5802 = vsub.s32 %v4017, %v5801
    %v5803 = vrot.slane %v3092, %v5802
    %v5804 = vsel %vm4022, %v5803, %v5799
    %v5805 = vlaneseq
    %v5806 = vshrl.u32 %v5805, 7
    %v5807 = vsub.s32 %v4024, %v5806
    %v5808 = vrot.slane %v3095, %v5807
    %v5809 = vsel %vm4029, %v5808, %v5804
    %v5810 = vlaneseq
    %v5811 = vshrl.u32 %v5810, 7
    %v5812 = vsub.s32 %v4005, %v5811
    %v5813 = vrot.slane %v3098, %v5812
    %v5814 = vlaneseq
    %v5815 = vshrl.u32 %v5814, 7
    %v5816 = vsub.s32 %v4010, %v5815
    %v5817 = vrot.slane %v3101, %v5816
    %v5818 = vsel %vm4015, %v5817, %v5813
    %v5819 = vlaneseq
    %v5820 = vshrl.u32 %v5819, 7
    %v5821 = vsub.s32 %v4017, %v5820
    %v5822 = vrot.slane %v3104, %v5821
    %v5823 = vsel %vm4022, %v5822, %v5818
    %v5824 = vlaneseq
    %v5825 = vshrl.u32 %v5824, 7
    %v5826 = vsub.s32 %v4024, %v5825
    %v5827 = vrot.slane %v3107, %v5826
    %v5828 = vsel %vm4029, %v5827, %v5823
    %v5829 = vlaneseq
    %v5830 = vshrl.u32 %v5829, 7
    %v5831 = vsub.s32 %v4005, %v5830
    %v5832 = vrot.slane %v3110, %v5831
    %v5833 = vlaneseq
    %v5834 = vshrl.u32 %v5833, 7
    %v5835 = vsub.s32 %v4010, %v5834
    %v5836 = vrot.slane %v3113, %v5835
    %v5837 = vsel %vm4015, %v5836, %v5832
    %v5838 = vlaneseq
    %v5839 = vshrl.u32 %v5838, 7
    %v5840 = vsub.s32 %v4017, %v5839
    %v5841 = vrot.slane %v3116, %v5840
    %v5842 = vsel %vm4022, %v5841, %v5837
    %v5843 = vlaneseq
    %v5844 = vshrl.u32 %v5843, 7
    %v5845 = vsub.s32 %v4024, %v5844
    %v5846 = vrot.slane %v3119, %v5845
    %v5847 = vsel %vm4029, %v5846, %v5842
    %v5848 = vlaneseq
    %v5849 = vshrl.u32 %v5848, 7
    %v5850 = vsub.s32 %v4005, %v5849
    %v5851 = vrot.slane %v3122, %v5850
    %v5852 = vlaneseq
    %v5853 = vshrl.u32 %v5852, 7
    %v5854 = vsub.s32 %v4010, %v5853
    %v5855 = vrot.slane %v3125, %v5854
    %v5856 = vsel %vm4015, %v5855, %v5851
    %v5857 = vlaneseq
    %v5858 = vshrl.u32 %v5857, 7
    %v5859 = vsub.s32 %v4017, %v5858
    %v5860 = vrot.slane %v3128, %v5859
    %v5861 = vsel %vm4022, %v5860, %v5856
    %v5862 = vlaneseq
    %v5863 = vshrl.u32 %v5862, 7
    %v5864 = vsub.s32 %v4024, %v5863
    %v5865 = vrot.slane %v3131, %v5864
    %v5866 = vsel %vm4029, %v5865, %v5861
    %v5867 = vlaneseq
    %v5868 = vshrl.u32 %v5867, 7
    %v5869 = vsub.s32 %v4005, %v5868
    %v5870 = vrot.slane %v3134, %v5869
    %v5871 = vlaneseq
    %v5872 = vshrl.u32 %v5871, 7
    %v5873 = vsub.s32 %v4010, %v5872
    %v5874 = vrot.slane %v3137, %v5873
    %v5875 = vsel %vm4015, %v5874, %v5870
    %v5876 = vlaneseq
    %v5877 = vshrl.u32 %v5876, 7
    %v5878 = vsub.s32 %v4017, %v5877
    %v5879 = vrot.slane %v3140, %v5878
    %v5880 = vsel %vm4022, %v5879, %v5875
    %v5881 = vlaneseq
    %v5882 = vshrl.u32 %v5881, 7
    %v5883 = vsub.s32 %v4024, %v5882
    %v5884 = vrot.slane %v3143, %v5883
    %v5885 = vsel %vm4029, %v5884, %v5880
    %v5886 = vlaneseq
    %v5887 = vshrl.u32 %v5886, 7
    %v5888 = vsub.s32 %v4005, %v5887
    %v5889 = vrot.slane %v3146, %v5888
    %v5890 = vlaneseq
    %v5891 = vshrl.u32 %v5890, 7
    %v5892 = vsub.s32 %v4010, %v5891
    %v5893 = vrot.slane %v3149, %v5892
    %v5894 = vsel %vm4015, %v5893, %v5889
    %v5895 = vlaneseq
    %v5896 = vshrl.u32 %v5895, 7
    %v5897 = vsub.s32 %v4017, %v5896
    %v5898 = vrot.slane %v3152, %v5897
    %v5899 = vsel %vm4022, %v5898, %v5894
    %v5900 = vlaneseq
    %v5901 = vshrl.u32 %v5900, 7
    %v5902 = vsub.s32 %v4024, %v5901
    %v5903 = vrot.slane %v3155, %v5902
    %v5904 = vsel %vm4029, %v5903, %v5899
    %v5905 = vlaneseq
    %v5906 = vshrl.u32 %v5905, 7
    %v5907 = vsub.s32 %v4005, %v5906
    %v5908 = vrot.slane %v3158, %v5907
    %v5909 = vlaneseq
    %v5910 = vshrl.u32 %v5909, 7
    %v5911 = vsub.s32 %v4010, %v5910
    %v5912 = vrot.slane %v3161, %v5911
    %v5913 = vsel %vm4015, %v5912, %v5908
    %v5914 = vlaneseq
    %v5915 = vshrl.u32 %v5914, 7
    %v5916 = vsub.s32 %v4017, %v5915
    %v5917 = vrot.slane %v3164, %v5916
    %v5918 = vsel %vm4022, %v5917, %v5913
    %v5919 = vlaneseq
    %v5920 = vshrl.u32 %v5919, 7
    %v5921 = vsub.s32 %v4024, %v5920
    %v5922 = vrot.slane %v3167, %v5921
    %v5923 = vsel %vm4029, %v5922, %v5918
    %v5924 = vlaneseq
    %v5925 = vshrl.u32 %v5924, 7
    %v5926 = vsub.s32 %v4005, %v5925
    %v5927 = vrot.slane %v3170, %v5926
    %v5928 = vlaneseq
    %v5929 = vshrl.u32 %v5928, 7
    %v5930 = vsub.s32 %v4010, %v5929
    %v5931 = vrot.slane %v3173, %v5930
    %v5932 = vsel %vm4015, %v5931, %v5927
    %v5933 = vlaneseq
    %v5934 = vshrl.u32 %v5933, 7
    %v5935 = vsub.s32 %v4017, %v5934
    %v5936 = vrot.slane %v3176, %v5935
    %v5937 = vsel %vm4022, %v5936, %v5932
    %v5938 = vlaneseq
    %v5939 = vshrl.u32 %v5938, 7
    %v5940 = vsub.s32 %v4024, %v5939
    %v5941 = vrot.slane %v3179, %v5940
    %v5942 = vsel %vm4029, %v5941, %v5937
    %v5943 = vlaneseq
    %v5944 = vshrl.u32 %v5943, 7
    %v5945 = vsub.s32 %v4005, %v5944
    %v5946 = vrot.slane %v3182, %v5945
    %v5947 = vlaneseq
    %v5948 = vshrl.u32 %v5947, 7
    %v5949 = vsub.s32 %v4010, %v5948
    %v5950 = vrot.slane %v3185, %v5949
    %v5951 = vsel %vm4015, %v5950, %v5946
    %v5952 = vlaneseq
    %v5953 = vshrl.u32 %v5952, 7
    %v5954 = vsub.s32 %v4017, %v5953
    %v5955 = vrot.slane %v3188, %v5954
    %v5956 = vsel %vm4022, %v5955, %v5951
    %v5957 = vlaneseq
    %v5958 = vshrl.u32 %v5957, 7
    %v5959 = vsub.s32 %v4024, %v5958
    %v5960 = vrot.slane %v3191, %v5959
    %v5961 = vsel %vm4029, %v5960, %v5956
    %v5962 = vlaneseq
    %v5963 = vshrl.u32 %v5962, 7
    %v5964 = vsub.s32 %v4005, %v5963
    %v5965 = vrot.slane %v3194, %v5964
    %v5966 = vlaneseq
    %v5967 = vshrl.u32 %v5966, 7
    %v5968 = vsub.s32 %v4010, %v5967
    %v5969 = vrot.slane %v3197, %v5968
    %v5970 = vsel %vm4015, %v5969, %v5965
    %v5971 = vlaneseq
    %v5972 = vshrl.u32 %v5971, 7
    %v5973 = vsub.s32 %v4017, %v5972
    %v5974 = vrot.slane %v3200, %v5973
    %v5975 = vsel %vm4022, %v5974, %v5970
    %v5976 = vlaneseq
    %v5977 = vshrl.u32 %v5976, 7
    %v5978 = vsub.s32 %v4024, %v5977
    %v5979 = vrot.slane %v3203, %v5978
    %v5980 = vsel %vm4029, %v5979, %v5975
    %v5981 = vlaneseq
    %v5982 = vshrl.u32 %v5981, 7
    %v5983 = vsub.s32 %v4005, %v5982
    %v5984 = vrot.slane %v3206, %v5983
    %v5985 = vlaneseq
    %v5986 = vshrl.u32 %v5985, 7
    %v5987 = vsub.s32 %v4010, %v5986
    %v5988 = vrot.slane %v3209, %v5987
    %v5989 = vsel %vm4015, %v5988, %v5984
    %v5990 = vlaneseq
    %v5991 = vshrl.u32 %v5990, 7
    %v5992 = vsub.s32 %v4017, %v5991
    %v5993 = vrot.slane %v3212, %v5992
    %v5994 = vsel %vm4022, %v5993, %v5989
    %v5995 = vlaneseq
    %v5996 = vshrl.u32 %v5995, 7
    %v5997 = vsub.s32 %v4024, %v5996
    %v5998 = vrot.slane %v3215, %v5997
    %v5999 = vsel %vm4029, %v5998, %v5994
    %v6000 = vlaneseq
    %v6001 = vshrl.u32 %v6000, 7
    %v6002 = vsub.s32 %v4005, %v6001
    %v6003 = vrot.slane %v3218, %v6002
    %v6004 = vlaneseq
    %v6005 = vshrl.u32 %v6004, 7
    %v6006 = vsub.s32 %v4010, %v6005
    %v6007 = vrot.slane %v3221, %v6006
    %v6008 = vsel %vm4015, %v6007, %v6003
    %v6009 = vlaneseq
    %v6010 = vshrl.u32 %v6009, 7
    %v6011 = vsub.s32 %v4017, %v6010
    %v6012 = vrot.slane %v3224, %v6011
    %v6013 = vsel %vm4022, %v6012, %v6008
    %v6014 = vlaneseq
    %v6015 = vshrl.u32 %v6014, 7
    %v6016 = vsub.s32 %v4024, %v6015
    %v6017 = vrot.slane %v3227, %v6016
    %v6018 = vsel %vm4029, %v6017, %v6013
    %v6019 = vlaneseq
    %v6020 = vshrl.u32 %v6019, 7
    %v6021 = vsub.s32 %v4005, %v6020
    %v6022 = vrot.slane %v3230, %v6021
    %v6023 = vlaneseq
    %v6024 = vshrl.u32 %v6023, 7
    %v6025 = vsub.s32 %v4010, %v6024
    %v6026 = vrot.slane %v3233, %v6025
    %v6027 = vsel %vm4015, %v6026, %v6022
    %v6028 = vlaneseq
    %v6029 = vshrl.u32 %v6028, 7
    %v6030 = vsub.s32 %v4017, %v6029
    %v6031 = vrot.slane %v3236, %v6030
    %v6032 = vsel %vm4022, %v6031, %v6027
    %v6033 = vlaneseq
    %v6034 = vshrl.u32 %v6033, 7
    %v6035 = vsub.s32 %v4024, %v6034
    %v6036 = vrot.slane %v3239, %v6035
    %v6037 = vsel %vm4029, %v6036, %v6032
    %v6038 = vlaneseq
    %v6039 = vshrl.u32 %v6038, 7
    %v6040 = vsub.s32 %v4005, %v6039
    %v6041 = vrot.slane %v3242, %v6040
    %v6042 = vlaneseq
    %v6043 = vshrl.u32 %v6042, 7
    %v6044 = vsub.s32 %v4010, %v6043
    %v6045 = vrot.slane %v3245, %v6044
    %v6046 = vsel %vm4015, %v6045, %v6041
    %v6047 = vlaneseq
    %v6048 = vshrl.u32 %v6047, 7
    %v6049 = vsub.s32 %v4017, %v6048
    %v6050 = vrot.slane %v3248, %v6049
    %v6051 = vsel %vm4022, %v6050, %v6046
    %v6052 = vlaneseq
    %v6053 = vshrl.u32 %v6052, 7
    %v6054 = vsub.s32 %v4024, %v6053
    %v6055 = vrot.slane %v3251, %v6054
    %v6056 = vsel %vm4029, %v6055, %v6051
    %v6057 = vlaneseq
    %v6058 = vshrl.u32 %v6057, 7
    %v6059 = vsub.s32 %v4005, %v6058
    %v6060 = vrot.slane %v3254, %v6059
    %v6061 = vlaneseq
    %v6062 = vshrl.u32 %v6061, 7
    %v6063 = vsub.s32 %v4010, %v6062
    %v6064 = vrot.slane %v3257, %v6063
    %v6065 = vsel %vm4015, %v6064, %v6060
    %v6066 = vlaneseq
    %v6067 = vshrl.u32 %v6066, 7
    %v6068 = vsub.s32 %v4017, %v6067
    %v6069 = vrot.slane %v3260, %v6068
    %v6070 = vsel %vm4022, %v6069, %v6065
    %v6071 = vlaneseq
    %v6072 = vshrl.u32 %v6071, 7
    %v6073 = vsub.s32 %v4024, %v6072
    %v6074 = vrot.slane %v3263, %v6073
    %v6075 = vsel %vm4029, %v6074, %v6070
    %v6076 = vlaneseq
    %v6077 = vshrl.u32 %v6076, 7
    %v6078 = vsub.s32 %v4005, %v6077
    %v6079 = vrot.slane %v3266, %v6078
    %v6080 = vlaneseq
    %v6081 = vshrl.u32 %v6080, 7
    %v6082 = vsub.s32 %v4010, %v6081
    %v6083 = vrot.slane %v3269, %v6082
    %v6084 = vsel %vm4015, %v6083, %v6079
    %v6085 = vlaneseq
    %v6086 = vshrl.u32 %v6085, 7
    %v6087 = vsub.s32 %v4017, %v6086
    %v6088 = vrot.slane %v3272, %v6087
    %v6089 = vsel %vm4022, %v6088, %v6084
    %v6090 = vlaneseq
    %v6091 = vshrl.u32 %v6090, 7
    %v6092 = vsub.s32 %v4024, %v6091
    %v6093 = vrot.slane %v3275, %v6092
    %v6094 = vsel %vm4029, %v6093, %v6089
    %v6095 = vlaneseq
    %v6096 = vshrl.u32 %v6095, 7
    %v6097 = vsub.s32 %v4005, %v6096
    %v6098 = vrot.slane %v3278, %v6097
    %v6099 = vlaneseq
    %v6100 = vshrl.u32 %v6099, 7
    %v6101 = vsub.s32 %v4010, %v6100
    %v6102 = vrot.slane %v3281, %v6101
    %v6103 = vsel %vm4015, %v6102, %v6098
    %v6104 = vlaneseq
    %v6105 = vshrl.u32 %v6104, 7
    %v6106 = vsub.s32 %v4017, %v6105
    %v6107 = vrot.slane %v3284, %v6106
    %v6108 = vsel %vm4022, %v6107, %v6103
    %v6109 = vlaneseq
    %v6110 = vshrl.u32 %v6109, 7
    %v6111 = vsub.s32 %v4024, %v6110
    %v6112 = vrot.slane %v3287, %v6111
    %v6113 = vsel %vm4029, %v6112, %v6108
    %v6114 = vlaneseq
    %v6115 = vshrl.u32 %v6114, 7
    %v6116 = vsub.s32 %v4005, %v6115
    %v6117 = vrot.slane %v3290, %v6116
    %v6118 = vlaneseq
    %v6119 = vshrl.u32 %v6118, 7
    %v6120 = vsub.s32 %v4010, %v6119
    %v6121 = vrot.slane %v3293, %v6120
    %v6122 = vsel %vm4015, %v6121, %v6117
    %v6123 = vlaneseq
    %v6124 = vshrl.u32 %v6123, 7
    %v6125 = vsub.s32 %v4017, %v6124
    %v6126 = vrot.slane %v3296, %v6125
    %v6127 = vsel %vm4022, %v6126, %v6122
    %v6128 = vlaneseq
    %v6129 = vshrl.u32 %v6128, 7
    %v6130 = vsub.s32 %v4024, %v6129
    %v6131 = vrot.slane %v3299, %v6130
    %v6132 = vsel %vm4029, %v6131, %v6127
    %v6133 = vlaneseq
    %v6134 = vshrl.u32 %v6133, 7
    %v6135 = vsub.s32 %v4005, %v6134
    %v6136 = vrot.slane %v3302, %v6135
    %v6137 = vlaneseq
    %v6138 = vshrl.u32 %v6137, 7
    %v6139 = vsub.s32 %v4010, %v6138
    %v6140 = vrot.slane %v3305, %v6139
    %v6141 = vsel %vm4015, %v6140, %v6136
    %v6142 = vlaneseq
    %v6143 = vshrl.u32 %v6142, 7
    %v6144 = vsub.s32 %v4017, %v6143
    %v6145 = vrot.slane %v3308, %v6144
    %v6146 = vsel %vm4022, %v6145, %v6141
    %v6147 = vlaneseq
    %v6148 = vshrl.u32 %v6147, 7
    %v6149 = vsub.s32 %v4024, %v6148
    %v6150 = vrot.slane %v3311, %v6149
    %v6151 = vsel %vm4029, %v6150, %v6146
    %v6152 = vlaneseq
    %v6153 = vshrl.u32 %v6152, 7
    %v6154 = vsub.s32 %v4005, %v6153
    %v6155 = vrot.slane %v3314, %v6154
    %v6156 = vlaneseq
    %v6157 = vshrl.u32 %v6156, 7
    %v6158 = vsub.s32 %v4010, %v6157
    %v6159 = vrot.slane %v3317, %v6158
    %v6160 = vsel %vm4015, %v6159, %v6155
    %v6161 = vlaneseq
    %v6162 = vshrl.u32 %v6161, 7
    %v6163 = vsub.s32 %v4017, %v6162
    %v6164 = vrot.slane %v3320, %v6163
    %v6165 = vsel %vm4022, %v6164, %v6160
    %v6166 = vlaneseq
    %v6167 = vshrl.u32 %v6166, 7
    %v6168 = vsub.s32 %v4024, %v6167
    %v6169 = vrot.slane %v3323, %v6168
    %v6170 = vsel %vm4029, %v6169, %v6165
    %v6171 = vlaneseq
    %v6172 = vshrl.u32 %v6171, 7
    %v6173 = vsub.s32 %v4005, %v6172
    %v6174 = vrot.slane %v3326, %v6173
    %v6175 = vlaneseq
    %v6176 = vshrl.u32 %v6175, 7
    %v6177 = vsub.s32 %v4010, %v6176
    %v6178 = vrot.slane %v3329, %v6177
    %v6179 = vsel %vm4015, %v6178, %v6174
    %v6180 = vlaneseq
    %v6181 = vshrl.u32 %v6180, 7
    %v6182 = vsub.s32 %v4017, %v6181
    %v6183 = vrot.slane %v3332, %v6182
    %v6184 = vsel %vm4022, %v6183, %v6179
    %v6185 = vlaneseq
    %v6186 = vshrl.u32 %v6185, 7
    %v6187 = vsub.s32 %v4024, %v6186
    %v6188 = vrot.slane %v3335, %v6187
    %v6189 = vsel %vm4029, %v6188, %v6184
    %v6190 = vlaneseq
    %v6191 = vshrl.u32 %v6190, 7
    %v6192 = vsub.s32 %v4005, %v6191
    %v6193 = vrot.slane %v3338, %v6192
    %v6194 = vlaneseq
    %v6195 = vshrl.u32 %v6194, 7
    %v6196 = vsub.s32 %v4010, %v6195
    %v6197 = vrot.slane %v3341, %v6196
    %v6198 = vsel %vm4015, %v6197, %v6193
    %v6199 = vlaneseq
    %v6200 = vshrl.u32 %v6199, 7
    %v6201 = vsub.s32 %v4017, %v6200
    %v6202 = vrot.slane %v3344, %v6201
    %v6203 = vsel %vm4022, %v6202, %v6198
    %v6204 = vlaneseq
    %v6205 = vshrl.u32 %v6204, 7
    %v6206 = vsub.s32 %v4024, %v6205
    %v6207 = vrot.slane %v3347, %v6206
    %v6208 = vsel %vm4029, %v6207, %v6203
    %v6209 = vlaneseq
    %v6210 = vshrl.u32 %v6209, 7
    %v6211 = vsub.s32 %v4005, %v6210
    %v6212 = vrot.slane %v3350, %v6211
    %v6213 = vlaneseq
    %v6214 = vshrl.u32 %v6213, 7
    %v6215 = vsub.s32 %v4010, %v6214
    %v6216 = vrot.slane %v3353, %v6215
    %v6217 = vsel %vm4015, %v6216, %v6212
    %v6218 = vlaneseq
    %v6219 = vshrl.u32 %v6218, 7
    %v6220 = vsub.s32 %v4017, %v6219
    %v6221 = vrot.slane %v3356, %v6220
    %v6222 = vsel %vm4022, %v6221, %v6217
    %v6223 = vlaneseq
    %v6224 = vshrl.u32 %v6223, 7
    %v6225 = vsub.s32 %v4024, %v6224
    %v6226 = vrot.slane %v3359, %v6225
    %v6227 = vsel %vm4029, %v6226, %v6222
    %v6228 = vlaneseq
    %v6229 = vshrl.u32 %v6228, 7
    %v6230 = vsub.s32 %v4005, %v6229
    %v6231 = vrot.slane %v3362, %v6230
    %v6232 = vlaneseq
    %v6233 = vshrl.u32 %v6232, 7
    %v6234 = vsub.s32 %v4010, %v6233
    %v6235 = vrot.slane %v3365, %v6234
    %v6236 = vsel %vm4015, %v6235, %v6231
    %v6237 = vlaneseq
    %v6238 = vshrl.u32 %v6237, 7
    %v6239 = vsub.s32 %v4017, %v6238
    %v6240 = vrot.slane %v3368, %v6239
    %v6241 = vsel %vm4022, %v6240, %v6236
    %v6242 = vlaneseq
    %v6243 = vshrl.u32 %v6242, 7
    %v6244 = vsub.s32 %v4024, %v6243
    %v6245 = vrot.slane %v3371, %v6244
    %v6246 = vsel %vm4029, %v6245, %v6241
    %v6247 = vlaneseq
    %v6248 = vshrl.u32 %v6247, 7
    %v6249 = vsub.s32 %v4005, %v6248
    %v6250 = vrot.slane %v3374, %v6249
    %v6251 = vlaneseq
    %v6252 = vshrl.u32 %v6251, 7
    %v6253 = vsub.s32 %v4010, %v6252
    %v6254 = vrot.slane %v3377, %v6253
    %v6255 = vsel %vm4015, %v6254, %v6250
    %v6256 = vlaneseq
    %v6257 = vshrl.u32 %v6256, 7
    %v6258 = vsub.s32 %v4017, %v6257
    %v6259 = vrot.slane %v3380, %v6258
    %v6260 = vsel %vm4022, %v6259, %v6255
    %v6261 = vlaneseq
    %v6262 = vshrl.u32 %v6261, 7
    %v6263 = vsub.s32 %v4024, %v6262
    %v6264 = vrot.slane %v3383, %v6263
    %v6265 = vsel %vm4029, %v6264, %v6260
    %v6266 = vlaneseq
    %v6267 = vshrl.u32 %v6266, 7
    %v6268 = vsub.s32 %v4005, %v6267
    %v6269 = vrot.slane %v3386, %v6268
    %v6270 = vlaneseq
    %v6271 = vshrl.u32 %v6270, 7
    %v6272 = vsub.s32 %v4010, %v6271
    %v6273 = vrot.slane %v3389, %v6272
    %v6274 = vsel %vm4015, %v6273, %v6269
    %v6275 = vlaneseq
    %v6276 = vshrl.u32 %v6275, 7
    %v6277 = vsub.s32 %v4017, %v6276
    %v6278 = vrot.slane %v3392, %v6277
    %v6279 = vsel %vm4022, %v6278, %v6274
    %v6280 = vlaneseq
    %v6281 = vshrl.u32 %v6280, 7
    %v6282 = vsub.s32 %v4024, %v6281
    %v6283 = vrot.slane %v3395, %v6282
    %v6284 = vsel %vm4029, %v6283, %v6279
    %v6285 = vlaneseq
    %v6286 = vshrl.u32 %v6285, 7
    %v6287 = vsub.s32 %v4005, %v6286
    %v6288 = vrot.slane %v3398, %v6287
    %v6289 = vlaneseq
    %v6290 = vshrl.u32 %v6289, 7
    %v6291 = vsub.s32 %v4010, %v6290
    %v6292 = vrot.slane %v3401, %v6291
    %v6293 = vsel %vm4015, %v6292, %v6288
    %v6294 = vlaneseq
    %v6295 = vshrl.u32 %v6294, 7
    %v6296 = vsub.s32 %v4017, %v6295
    %v6297 = vrot.slane %v3404, %v6296
    %v6298 = vsel %vm4022, %v6297, %v6293
    %v6299 = vlaneseq
    %v6300 = vshrl.u32 %v6299, 7
    %v6301 = vsub.s32 %v4024, %v6300
    %v6302 = vrot.slane %v3407, %v6301
    %v6303 = vsel %vm4029, %v6302, %v6298
    %v6304 = vlaneseq
    %v6305 = vshrl.u32 %v6304, 7
    %v6306 = vsub.s32 %v4005, %v6305
    %v6307 = vrot.slane %v3410, %v6306
    %v6308 = vlaneseq
    %v6309 = vshrl.u32 %v6308, 7
    %v6310 = vsub.s32 %v4010, %v6309
    %v6311 = vrot.slane %v3413, %v6310
    %v6312 = vsel %vm4015, %v6311, %v6307
    %v6313 = vlaneseq
    %v6314 = vshrl.u32 %v6313, 7
    %v6315 = vsub.s32 %v4017, %v6314
    %v6316 = vrot.slane %v3416, %v6315
    %v6317 = vsel %vm4022, %v6316, %v6312
    %v6318 = vlaneseq
    %v6319 = vshrl.u32 %v6318, 7
    %v6320 = vsub.s32 %v4024, %v6319
    %v6321 = vrot.slane %v3419, %v6320
    %v6322 = vsel %vm4029, %v6321, %v6317
    %v6323 = vlaneseq
    %v6324 = vshrl.u32 %v6323, 7
    %v6325 = vsub.s32 %v4005, %v6324
    %v6326 = vrot.slane %v3422, %v6325
    %v6327 = vlaneseq
    %v6328 = vshrl.u32 %v6327, 7
    %v6329 = vsub.s32 %v4010, %v6328
    %v6330 = vrot.slane %v3425, %v6329
    %v6331 = vsel %vm4015, %v6330, %v6326
    %v6332 = vlaneseq
    %v6333 = vshrl.u32 %v6332, 7
    %v6334 = vsub.s32 %v4017, %v6333
    %v6335 = vrot.slane %v3428, %v6334
    %v6336 = vsel %vm4022, %v6335, %v6331
    %v6337 = vlaneseq
    %v6338 = vshrl.u32 %v6337, 7
    %v6339 = vsub.s32 %v4024, %v6338
    %v6340 = vrot.slane %v3431, %v6339
    %v6341 = vsel %vm4029, %v6340, %v6336
    %v6342 = vlaneseq
    %v6343 = vshrl.u32 %v6342, 7
    %v6344 = vsub.s32 %v4005, %v6343
    %v6345 = vrot.slane %v3434, %v6344
    %v6346 = vlaneseq
    %v6347 = vshrl.u32 %v6346, 7
    %v6348 = vsub.s32 %v4010, %v6347
    %v6349 = vrot.slane %v3437, %v6348
    %v6350 = vsel %vm4015, %v6349, %v6345
    %v6351 = vlaneseq
    %v6352 = vshrl.u32 %v6351, 7
    %v6353 = vsub.s32 %v4017, %v6352
    %v6354 = vrot.slane %v3440, %v6353
    %v6355 = vsel %vm4022, %v6354, %v6350
    %v6356 = vlaneseq
    %v6357 = vshrl.u32 %v6356, 7
    %v6358 = vsub.s32 %v4024, %v6357
    %v6359 = vrot.slane %v3443, %v6358
    %v6360 = vsel %vm4029, %v6359, %v6355
    %v6361 = vlaneseq
    %v6362 = vshrl.u32 %v6361, 7
    %v6363 = vsub.s32 %v4005, %v6362
    %v6364 = vrot.slane %v3446, %v6363
    %v6365 = vlaneseq
    %v6366 = vshrl.u32 %v6365, 7
    %v6367 = vsub.s32 %v4010, %v6366
    %v6368 = vrot.slane %v3449, %v6367
    %v6369 = vsel %vm4015, %v6368, %v6364
    %v6370 = vlaneseq
    %v6371 = vshrl.u32 %v6370, 7
    %v6372 = vsub.s32 %v4017, %v6371
    %v6373 = vrot.slane %v3452, %v6372
    %v6374 = vsel %vm4022, %v6373, %v6369
    %v6375 = vlaneseq
    %v6376 = vshrl.u32 %v6375, 7
    %v6377 = vsub.s32 %v4024, %v6376
    %v6378 = vrot.slane %v3455, %v6377
    %v6379 = vsel %vm4029, %v6378, %v6374
    %v6380 = vlaneseq
    %v6381 = vshrl.u32 %v6380, 7
    %v6382 = vsub.s32 %v4005, %v6381
    %v6383 = vrot.slane %v3458, %v6382
    %v6384 = vlaneseq
    %v6385 = vshrl.u32 %v6384, 7
    %v6386 = vsub.s32 %v4010, %v6385
    %v6387 = vrot.slane %v3461, %v6386
    %v6388 = vsel %vm4015, %v6387, %v6383
    %v6389 = vlaneseq
    %v6390 = vshrl.u32 %v6389, 7
    %v6391 = vsub.s32 %v4017, %v6390
    %v6392 = vrot.slane %v3464, %v6391
    %v6393 = vsel %vm4022, %v6392, %v6388
    %v6394 = vlaneseq
    %v6395 = vshrl.u32 %v6394, 7
    %v6396 = vsub.s32 %v4024, %v6395
    %v6397 = vrot.slane %v3467, %v6396
    %v6398 = vsel %vm4029, %v6397, %v6393
    %v6399 = vlaneseq
    %v6400 = vshrl.u32 %v6399, 7
    %v6401 = vsub.s32 %v4005, %v6400
    %v6402 = vrot.slane %v3470, %v6401
    %v6403 = vlaneseq
    %v6404 = vshrl.u32 %v6403, 7
    %v6405 = vsub.s32 %v4010, %v6404
    %v6406 = vrot.slane %v3473, %v6405
    %v6407 = vsel %vm4015, %v6406, %v6402
    %v6408 = vlaneseq
    %v6409 = vshrl.u32 %v6408, 7
    %v6410 = vsub.s32 %v4017, %v6409
    %v6411 = vrot.slane %v3476, %v6410
    %v6412 = vsel %vm4022, %v6411, %v6407
    %v6413 = vlaneseq
    %v6414 = vshrl.u32 %v6413, 7
    %v6415 = vsub.s32 %v4024, %v6414
    %v6416 = vrot.slane %v3479, %v6415
    %v6417 = vsel %vm4029, %v6416, %v6412
    %v6418 = vlaneseq
    %v6419 = vshrl.u32 %v6418, 7
    %v6420 = vsub.s32 %v4005, %v6419
    %v6421 = vrot.slane %v3482, %v6420
    %v6422 = vlaneseq
    %v6423 = vshrl.u32 %v6422, 7
    %v6424 = vsub.s32 %v4010, %v6423
    %v6425 = vrot.slane %v3485, %v6424
    %v6426 = vsel %vm4015, %v6425, %v6421
    %v6427 = vlaneseq
    %v6428 = vshrl.u32 %v6427, 7
    %v6429 = vsub.s32 %v4017, %v6428
    %v6430 = vrot.slane %v3488, %v6429
    %v6431 = vsel %vm4022, %v6430, %v6426
    %v6432 = vlaneseq
    %v6433 = vshrl.u32 %v6432, 7
    %v6434 = vsub.s32 %v4024, %v6433
    %v6435 = vrot.slane %v3491, %v6434
    %v6436 = vsel %vm4029, %v6435, %v6431
    %v6437 = vlaneseq
    %v6438 = vshrl.u32 %v6437, 7
    %v6439 = vsub.s32 %v4005, %v6438
    %v6440 = vrot.slane %v3494, %v6439
    %v6441 = vlaneseq
    %v6442 = vshrl.u32 %v6441, 7
    %v6443 = vsub.s32 %v4010, %v6442
    %v6444 = vrot.slane %v3497, %v6443
    %v6445 = vsel %vm4015, %v6444, %v6440
    %v6446 = vlaneseq
    %v6447 = vshrl.u32 %v6446, 7
    %v6448 = vsub.s32 %v4017, %v6447
    %v6449 = vrot.slane %v3500, %v6448
    %v6450 = vsel %vm4022, %v6449, %v6445
    %v6451 = vlaneseq
    %v6452 = vshrl.u32 %v6451, 7
    %v6453 = vsub.s32 %v4024, %v6452
    %v6454 = vrot.slane %v3503, %v6453
    %v6455 = vsel %vm4029, %v6454, %v6450
    %v6456 = vlaneseq
    %v6457 = vshrl.u32 %v6456, 7
    %v6458 = vsub.s32 %v4005, %v6457
    %v6459 = vrot.slane %v3506, %v6458
    %v6460 = vlaneseq
    %v6461 = vshrl.u32 %v6460, 7
    %v6462 = vsub.s32 %v4010, %v6461
    %v6463 = vrot.slane %v3509, %v6462
    %v6464 = vsel %vm4015, %v6463, %v6459
    %v6465 = vlaneseq
    %v6466 = vshrl.u32 %v6465, 7
    %v6467 = vsub.s32 %v4017, %v6466
    %v6468 = vrot.slane %v3512, %v6467
    %v6469 = vsel %vm4022, %v6468, %v6464
    %v6470 = vlaneseq
    %v6471 = vshrl.u32 %v6470, 7
    %v6472 = vsub.s32 %v4024, %v6471
    %v6473 = vrot.slane %v3515, %v6472
    %v6474 = vsel %vm4029, %v6473, %v6469
    %v6475 = vlaneseq
    %v6476 = vshrl.u32 %v6475, 7
    %v6477 = vsub.s32 %v4005, %v6476
    %v6478 = vrot.slane %v3518, %v6477
    %v6479 = vlaneseq
    %v6480 = vshrl.u32 %v6479, 7
    %v6481 = vsub.s32 %v4010, %v6480
    %v6482 = vrot.slane %v3521, %v6481
    %v6483 = vsel %vm4015, %v6482, %v6478
    %v6484 = vlaneseq
    %v6485 = vshrl.u32 %v6484, 7
    %v6486 = vsub.s32 %v4017, %v6485
    %v6487 = vrot.slane %v3524, %v6486
    %v6488 = vsel %vm4022, %v6487, %v6483
    %v6489 = vlaneseq
    %v6490 = vshrl.u32 %v6489, 7
    %v6491 = vsub.s32 %v4024, %v6490
    %v6492 = vrot.slane %v3527, %v6491
    %v6493 = vsel %vm4029, %v6492, %v6488
    %v6494 = vlaneseq
    %v6495 = vshrl.u32 %v6494, 7
    %v6496 = vsub.s32 %v4005, %v6495
    %v6497 = vrot.slane %v3530, %v6496
    %v6498 = vlaneseq
    %v6499 = vshrl.u32 %v6498, 7
    %v6500 = vsub.s32 %v4010, %v6499
    %v6501 = vrot.slane %v3533, %v6500
    %v6502 = vsel %vm4015, %v6501, %v6497
    %v6503 = vlaneseq
    %v6504 = vshrl.u32 %v6503, 7
    %v6505 = vsub.s32 %v4017, %v6504
    %v6506 = vrot.slane %v3536, %v6505
    %v6507 = vsel %vm4022, %v6506, %v6502
    %v6508 = vlaneseq
    %v6509 = vshrl.u32 %v6508, 7
    %v6510 = vsub.s32 %v4024, %v6509
    %v6511 = vrot.slane %v3539, %v6510
    %v6512 = vsel %vm4029, %v6511, %v6507
    %v6513 = vlaneseq
    %v6514 = vshrl.u32 %v6513, 7
    %v6515 = vsub.s32 %v4005, %v6514
    %v6516 = vrot.slane %v3542, %v6515
    %v6517 = vlaneseq
    %v6518 = vshrl.u32 %v6517, 7
    %v6519 = vsub.s32 %v4010, %v6518
    %v6520 = vrot.slane %v3545, %v6519
    %v6521 = vsel %vm4015, %v6520, %v6516
    %v6522 = vlaneseq
    %v6523 = vshrl.u32 %v6522, 7
    %v6524 = vsub.s32 %v4017, %v6523
    %v6525 = vrot.slane %v3548, %v6524
    %v6526 = vsel %vm4022, %v6525, %v6521
    %v6527 = vlaneseq
    %v6528 = vshrl.u32 %v6527, 7
    %v6529 = vsub.s32 %v4024, %v6528
    %v6530 = vrot.slane %v3551, %v6529
    %v6531 = vsel %vm4029, %v6530, %v6526
    %v6532 = vlaneseq
    %v6533 = vshrl.u32 %v6532, 7
    %v6534 = vsub.s32 %v4005, %v6533
    %v6535 = vrot.slane %v3554, %v6534
    %v6536 = vlaneseq
    %v6537 = vshrl.u32 %v6536, 7
    %v6538 = vsub.s32 %v4010, %v6537
    %v6539 = vrot.slane %v3557, %v6538
    %v6540 = vsel %vm4015, %v6539, %v6535
    %v6541 = vlaneseq
    %v6542 = vshrl.u32 %v6541, 7
    %v6543 = vsub.s32 %v4017, %v6542
    %v6544 = vrot.slane %v3560, %v6543
    %v6545 = vsel %vm4022, %v6544, %v6540
    %v6546 = vlaneseq
    %v6547 = vshrl.u32 %v6546, 7
    %v6548 = vsub.s32 %v4024, %v6547
    %v6549 = vrot.slane %v3563, %v6548
    %v6550 = vsel %vm4029, %v6549, %v6545
    %v6551 = vlaneseq
    %v6552 = vshrl.u32 %v6551, 7
    %v6553 = vsub.s32 %v4005, %v6552
    %v6554 = vrot.slane %v3566, %v6553
    %v6555 = vlaneseq
    %v6556 = vshrl.u32 %v6555, 7
    %v6557 = vsub.s32 %v4010, %v6556
    %v6558 = vrot.slane %v3569, %v6557
    %v6559 = vsel %vm4015, %v6558, %v6554
    %v6560 = vlaneseq
    %v6561 = vshrl.u32 %v6560, 7
    %v6562 = vsub.s32 %v4017, %v6561
    %v6563 = vrot.slane %v3572, %v6562
    %v6564 = vsel %vm4022, %v6563, %v6559
    %v6565 = vlaneseq
    %v6566 = vshrl.u32 %v6565, 7
    %v6567 = vsub.s32 %v4024, %v6566
    %v6568 = vrot.slane %v3575, %v6567
    %v6569 = vsel %vm4029, %v6568, %v6564
    %v6570 = vlaneseq
    %v6571 = vshrl.u32 %v6570, 7
    %v6572 = vsub.s32 %v4005, %v6571
    %v6573 = vrot.slane %v3578, %v6572
    %v6574 = vlaneseq
    %v6575 = vshrl.u32 %v6574, 7
    %v6576 = vsub.s32 %v4010, %v6575
    %v6577 = vrot.slane %v3581, %v6576
    %v6578 = vsel %vm4015, %v6577, %v6573
    %v6579 = vlaneseq
    %v6580 = vshrl.u32 %v6579, 7
    %v6581 = vsub.s32 %v4017, %v6580
    %v6582 = vrot.slane %v3584, %v6581
    %v6583 = vsel %vm4022, %v6582, %v6578
    %v6584 = vlaneseq
    %v6585 = vshrl.u32 %v6584, 7
    %v6586 = vsub.s32 %v4024, %v6585
    %v6587 = vrot.slane %v3587, %v6586
    %v6588 = vsel %vm4029, %v6587, %v6583
    %v6589 = vlaneseq
    %v6590 = vshrl.u32 %v6589, 7
    %v6591 = vsub.s32 %v4005, %v6590
    %v6592 = vrot.slane %v3590, %v6591
    %v6593 = vlaneseq
    %v6594 = vshrl.u32 %v6593, 7
    %v6595 = vsub.s32 %v4010, %v6594
    %v6596 = vrot.slane %v3593, %v6595
    %v6597 = vsel %vm4015, %v6596, %v6592
    %v6598 = vlaneseq
    %v6599 = vshrl.u32 %v6598, 7
    %v6600 = vsub.s32 %v4017, %v6599
    %v6601 = vrot.slane %v3596, %v6600
    %v6602 = vsel %vm4022, %v6601, %v6597
    %v6603 = vlaneseq
    %v6604 = vshrl.u32 %v6603, 7
    %v6605 = vsub.s32 %v4024, %v6604
    %v6606 = vrot.slane %v3599, %v6605
    %v6607 = vsel %vm4029, %v6606, %v6602
    %v6608 = vlaneseq
    %v6609 = vshrl.u32 %v6608, 7
    %v6610 = vsub.s32 %v4005, %v6609
    %v6611 = vrot.slane %v3602, %v6610
    %v6612 = vlaneseq
    %v6613 = vshrl.u32 %v6612, 7
    %v6614 = vsub.s32 %v4010, %v6613
    %v6615 = vrot.slane %v3605, %v6614
    %v6616 = vsel %vm4015, %v6615, %v6611
    %v6617 = vlaneseq
    %v6618 = vshrl.u32 %v6617, 7
    %v6619 = vsub.s32 %v4017, %v6618
    %v6620 = vrot.slane %v3608, %v6619
    %v6621 = vsel %vm4022, %v6620, %v6616
    %v6622 = vlaneseq
    %v6623 = vshrl.u32 %v6622, 7
    %v6624 = vsub.s32 %v4024, %v6623
    %v6625 = vrot.slane %v3611, %v6624
    %v6626 = vsel %vm4029, %v6625, %v6621
    %v6627 = vlaneseq
    %v6628 = vshrl.u32 %v6627, 7
    %v6629 = vsub.s32 %v4005, %v6628
    %v6630 = vrot.slane %v3614, %v6629
    %v6631 = vlaneseq
    %v6632 = vshrl.u32 %v6631, 7
    %v6633 = vsub.s32 %v4010, %v6632
    %v6634 = vrot.slane %v3617, %v6633
    %v6635 = vsel %vm4015, %v6634, %v6630
    %v6636 = vlaneseq
    %v6637 = vshrl.u32 %v6636, 7
    %v6638 = vsub.s32 %v4017, %v6637
    %v6639 = vrot.slane %v3620, %v6638
    %v6640 = vsel %vm4022, %v6639, %v6635
    %v6641 = vlaneseq
    %v6642 = vshrl.u32 %v6641, 7
    %v6643 = vsub.s32 %v4024, %v6642
    %v6644 = vrot.slane %v3623, %v6643
    %v6645 = vsel %vm4029, %v6644, %v6640
    %v6646 = vlaneseq
    %v6647 = vshrl.u32 %v6646, 7
    %v6648 = vsub.s32 %v4005, %v6647
    %v6649 = vrot.slane %v3626, %v6648
    %v6650 = vlaneseq
    %v6651 = vshrl.u32 %v6650, 7
    %v6652 = vsub.s32 %v4010, %v6651
    %v6653 = vrot.slane %v3629, %v6652
    %v6654 = vsel %vm4015, %v6653, %v6649
    %v6655 = vlaneseq
    %v6656 = vshrl.u32 %v6655, 7
    %v6657 = vsub.s32 %v4017, %v6656
    %v6658 = vrot.slane %v3632, %v6657
    %v6659 = vsel %vm4022, %v6658, %v6654
    %v6660 = vlaneseq
    %v6661 = vshrl.u32 %v6660, 7
    %v6662 = vsub.s32 %v4024, %v6661
    %v6663 = vrot.slane %v3635, %v6662
    %v6664 = vsel %vm4029, %v6663, %v6659
    %v6665 = vlaneseq
    %v6666 = vshrl.u32 %v6665, 7
    %v6667 = vsub.s32 %v4005, %v6666
    %v6668 = vrot.slane %v3638, %v6667
    %v6669 = vlaneseq
    %v6670 = vshrl.u32 %v6669, 7
    %v6671 = vsub.s32 %v4010, %v6670
    %v6672 = vrot.slane %v3641, %v6671
    %v6673 = vsel %vm4015, %v6672, %v6668
    %v6674 = vlaneseq
    %v6675 = vshrl.u32 %v6674, 7
    %v6676 = vsub.s32 %v4017, %v6675
    %v6677 = vrot.slane %v3644, %v6676
    %v6678 = vsel %vm4022, %v6677, %v6673
    %v6679 = vlaneseq
    %v6680 = vshrl.u32 %v6679, 7
    %v6681 = vsub.s32 %v4024, %v6680
    %v6682 = vrot.slane %v3647, %v6681
    %v6683 = vsel %vm4029, %v6682, %v6678
    %v6684 = vlaneseq
    %v6685 = vshrl.u32 %v6684, 7
    %v6686 = vsub.s32 %v4005, %v6685
    %v6687 = vrot.slane %v3650, %v6686
    %v6688 = vlaneseq
    %v6689 = vshrl.u32 %v6688, 7
    %v6690 = vsub.s32 %v4010, %v6689
    %v6691 = vrot.slane %v3653, %v6690
    %v6692 = vsel %vm4015, %v6691, %v6687
    %v6693 = vlaneseq
    %v6694 = vshrl.u32 %v6693, 7
    %v6695 = vsub.s32 %v4017, %v6694
    %v6696 = vrot.slane %v3656, %v6695
    %v6697 = vsel %vm4022, %v6696, %v6692
    %v6698 = vlaneseq
    %v6699 = vshrl.u32 %v6698, 7
    %v6700 = vsub.s32 %v4024, %v6699
    %v6701 = vrot.slane %v3659, %v6700
    %v6702 = vsel %vm4029, %v6701, %v6697
    %v6703 = vlaneseq
    %v6704 = vshrl.u32 %v6703, 7
    %v6705 = vsub.s32 %v4005, %v6704
    %v6706 = vrot.slane %v3662, %v6705
    %v6707 = vlaneseq
    %v6708 = vshrl.u32 %v6707, 7
    %v6709 = vsub.s32 %v4010, %v6708
    %v6710 = vrot.slane %v3665, %v6709
    %v6711 = vsel %vm4015, %v6710, %v6706
    %v6712 = vlaneseq
    %v6713 = vshrl.u32 %v6712, 7
    %v6714 = vsub.s32 %v4017, %v6713
    %v6715 = vrot.slane %v3668, %v6714
    %v6716 = vsel %vm4022, %v6715, %v6711
    %v6717 = vlaneseq
    %v6718 = vshrl.u32 %v6717, 7
    %v6719 = vsub.s32 %v4024, %v6718
    %v6720 = vrot.slane %v3671, %v6719
    %v6721 = vsel %vm4029, %v6720, %v6716
    %v6722 = vlaneseq
    %v6723 = vshrl.u32 %v6722, 7
    %v6724 = vsub.s32 %v4005, %v6723
    %v6725 = vrot.slane %v3674, %v6724
    %v6726 = vlaneseq
    %v6727 = vshrl.u32 %v6726, 7
    %v6728 = vsub.s32 %v4010, %v6727
    %v6729 = vrot.slane %v3677, %v6728
    %v6730 = vsel %vm4015, %v6729, %v6725
    %v6731 = vlaneseq
    %v6732 = vshrl.u32 %v6731, 7
    %v6733 = vsub.s32 %v4017, %v6732
    %v6734 = vrot.slane %v3680, %v6733
    %v6735 = vsel %vm4022, %v6734, %v6730
    %v6736 = vlaneseq
    %v6737 = vshrl.u32 %v6736, 7
    %v6738 = vsub.s32 %v4024, %v6737
    %v6739 = vrot.slane %v3683, %v6738
    %v6740 = vsel %vm4029, %v6739, %v6735
    %v6741 = vlaneseq
    %v6742 = vshrl.u32 %v6741, 7
    %v6743 = vsub.s32 %v4005, %v6742
    %v6744 = vrot.slane %v3686, %v6743
    %v6745 = vlaneseq
    %v6746 = vshrl.u32 %v6745, 7
    %v6747 = vsub.s32 %v4010, %v6746
    %v6748 = vrot.slane %v3689, %v6747
    %v6749 = vsel %vm4015, %v6748, %v6744
    %v6750 = vlaneseq
    %v6751 = vshrl.u32 %v6750, 7
    %v6752 = vsub.s32 %v4017, %v6751
    %v6753 = vrot.slane %v3692, %v6752
    %v6754 = vsel %vm4022, %v6753, %v6749
    %v6755 = vlaneseq
    %v6756 = vshrl.u32 %v6755, 7
    %v6757 = vsub.s32 %v4024, %v6756
    %v6758 = vrot.slane %v3695, %v6757
    %v6759 = vsel %vm4029, %v6758, %v6754
    %v6760 = vlaneseq
    %v6761 = vshrl.u32 %v6760, 7
    %v6762 = vsub.s32 %v4005, %v6761
    %v6763 = vrot.slane %v3698, %v6762
    %v6764 = vlaneseq
    %v6765 = vshrl.u32 %v6764, 7
    %v6766 = vsub.s32 %v4010, %v6765
    %v6767 = vrot.slane %v3701, %v6766
    %v6768 = vsel %vm4015, %v6767, %v6763
    %v6769 = vlaneseq
    %v6770 = vshrl.u32 %v6769, 7
    %v6771 = vsub.s32 %v4017, %v6770
    %v6772 = vrot.slane %v3704, %v6771
    %v6773 = vsel %vm4022, %v6772, %v6768
    %v6774 = vlaneseq
    %v6775 = vshrl.u32 %v6774, 7
    %v6776 = vsub.s32 %v4024, %v6775
    %v6777 = vrot.slane %v3707, %v6776
    %v6778 = vsel %vm4029, %v6777, %v6773
    %v6779 = vsel %vm5228, %v5600, %v5581
    %v6780 = vsel %vm5230, %v5619, %v6779
    %v6781 = vsel %vm5232, %v5638, %v6780
    %v6782 = vsel %vm5234, %v5657, %v6781
    %v6783 = vsel %vm5236, %v5676, %v6782
    %v6784 = vsel %vm5238, %v5695, %v6783
    %v6785 = vsel %vm5240, %v5714, %v6784
    %v6786 = vsel %vm5228, %v5752, %v5733
    %v6787 = vsel %vm5230, %v5771, %v6786
    %v6788 = vsel %vm5232, %v5790, %v6787
    %v6789 = vsel %vm5234, %v5809, %v6788
    %v6790 = vsel %vm5236, %v5828, %v6789
    %v6791 = vsel %vm5238, %v5847, %v6790
    %v6792 = vsel %vm5240, %v5866, %v6791
    %v6793 = vsel %vm5228, %v5904, %v5885
    %v6794 = vsel %vm5230, %v5923, %v6793
    %v6795 = vsel %vm5232, %v5942, %v6794
    %v6796 = vsel %vm5234, %v5961, %v6795
    %v6797 = vsel %vm5236, %v5980, %v6796
    %v6798 = vsel %vm5238, %v5999, %v6797
    %v6799 = vsel %vm5240, %v6018, %v6798
    %v6800 = vsel %vm5228, %v6056, %v6037
    %v6801 = vsel %vm5230, %v6075, %v6800
    %v6802 = vsel %vm5232, %v6094, %v6801
    %v6803 = vsel %vm5234, %v6113, %v6802
    %v6804 = vsel %vm5236, %v6132, %v6803
    %v6805 = vsel %vm5238, %v6151, %v6804
    %v6806 = vsel %vm5240, %v6170, %v6805
    %v6807 = vsel %vm5228, %v6208, %v6189
    %v6808 = vsel %vm5230, %v6227, %v6807
    %v6809 = vsel %vm5232, %v6246, %v6808
    %v6810 = vsel %vm5234, %v6265, %v6809
    %v6811 = vsel %vm5236, %v6284, %v6810
    %v6812 = vsel %vm5238, %v6303, %v6811
    %v6813 = vsel %vm5240, %v6322, %v6812
    %v6814 = vsel %vm5228, %v6360, %v6341
    %v6815 = vsel %vm5230, %v6379, %v6814
    %v6816 = vsel %vm5232, %v6398, %v6815
    %v6817 = vsel %vm5234, %v6417, %v6816
    %v6818 = vsel %vm5236, %v6436, %v6817
    %v6819 = vsel %vm5238, %v6455, %v6818
    %v6820 = vsel %vm5240, %v6474, %v6819
    %v6821 = vsel %vm5228, %v6512, %v6493
    %v6822 = vsel %vm5230, %v6531, %v6821
    %v6823 = vsel %vm5232, %v6550, %v6822
    %v6824 = vsel %vm5234, %v6569, %v6823
    %v6825 = vsel %vm5236, %v6588, %v6824
    %v6826 = vsel %vm5238, %v6607, %v6825
    %v6827 = vsel %vm5240, %v6626, %v6826
    %v6828 = vsel %vm5228, %v6664, %v6645
    %v6829 = vsel %vm5230, %v6683, %v6828
    %v6830 = vsel %vm5232, %v6702, %v6829
    %v6831 = vsel %vm5234, %v6721, %v6830
    %v6832 = vsel %vm5236, %v6740, %v6831
    %v6833 = vsel %vm5238, %v6759, %v6832
    %v6834 = vsel %vm5240, %v6778, %v6833
    %v6843 = vsel %vm3740, %v6785, 0.0
    %v6844 = vsel %vm3741, %v6792, 0.0
    %v6845 = vsel %vm3742, %v6799, 0.0
    %v6846 = vsel %vm3743, %v6806, 0.0
    %v6847 = vsel %vm3744, %v6813, 0.0
    %v6848 = vsel %vm3745, %v6820, 0.0
    %v6849 = vsel %vm3746, %v6827, 0.0
    %v6850 = vsel %vm3747, %v6834, 0.0
    %v6851 = vld [vmem:[#allocation5] sm:$0xff]
    %v6852 = vld [vmem:[#allocation5 + $0x8] sm:$0xff]
    %v6853 = vld [vmem:[#allocation5 + $0x10] sm:$0xff]
    %v6854 = vld [vmem:[#allocation5 + $0x18] sm:$0xff]
    %s6855 = scalar_lea.vmem [#allocation5], 32
    %v6856 = vld [vmem:[%s6855] sm:$0xff]
    %v6857 = vld [vmem:[%s6855 + $0x8] sm:$0xff]
    %v6858 = vld [vmem:[%s6855 + $0x10] sm:$0xff]
    %v6859 = vld [vmem:[%s6855 + $0x18] sm:$0xff]
    %v6861 = vsel %vm962, %v5299, 0
    %v6864 = vsel %vm962, %v5300, 0
    %v6867 = vsel %vm962, %v5301, 0
    %v6870 = vsel %vm962, %v5302, 0
    %v6873 = vsel %vm962, %v5303, 0
    %v6876 = vsel %vm962, %v5304, 0
    %v6879 = vsel %vm962, %v5305, 0
    %v6882 = vsel %vm962, %v5306, 0
    %6884 = vmatprep.subr.mxu0 0.0
    %6885 = vmatpush1.msra.mxu0 %v6856
    %6886 = vmatprep.subr.mxu0 0.0
    %6887 = vmatpush1.msra.mxu0 %v6857
    %6888 = vmatprep.subr.mxu0 0.0
    %6889 = vmatpush1.msra.mxu0 %v6858
    %6890 = vmatprep.subr.mxu0 0.0
    %6891 = vmatpush1.msra.mxu0 %v6859
    %6892 = vmatprep.subr.mxu0 0.0
    %6893 = vmatpush1.msra.mxu0 0.0
    %6894 = vmatprep.subr.mxu0 0.0
    %6895 = vmatpush1.msra.mxu0 0.0
    %6896 = vmatprep.subr.mxu0 0.0
    %6897 = vmatpush1.msra.mxu0 0.0
    %6898 = vmatprep.subr.mxu0 0.0
    %6899 = vmatpush1.msra.mxu0 0.0
    %6900 = vmatprep.subr.mxu0 0.0
    %6901 = vmatpush1.msra.mxu0 0.0
    %6902 = vmatprep.subr.mxu0 0.0
    %6903 = vmatpush1.msra.mxu0 0.0
    %6904 = vmatprep.subr.mxu0 0.0
    %6905 = vmatpush1.msra.mxu0 0.0
    %6906 = vmatprep.subr.mxu0 0.0
    %6907 = vmatpush1.msra.mxu0 0.0
    %6908 = vmatprep.subr.mxu0 0.0
    %6909 = vmatpush1.msra.mxu0 0.0
    %6910 = vmatprep.subr.mxu0 0.0
    %6911 = vmatpush1.msra.mxu0 0.0
    %6912 = vmatprep.subr.mxu0 0.0
    %6913 = vmatpush1.msra.mxu0 0.0
    %6914 = vmatprep.subr.mxu0 0.0
    %6915 = vmatpush1.msra.mxu0 0.0
    %6916 = vmatprep.subr.mxu0 0.0
    %6917 = vmatpush1.msra.mxu0 0.0
    %6918 = vmatprep.subr.mxu0 0.0
    %6919 = vmatpush1.msra.mxu0 0.0
    %6920 = vmatprep.subr.mxu0 0.0
    %6921 = vmatpush1.msra.mxu0 0.0
    %6922 = vmatprep.subr.mxu0 0.0
    %6923 = vmatpush1.msra.mxu0 0.0
    %6924 = vmatprep.subr.mxu0 0.0
    %6925 = vmatpush1.msra.mxu0 0.0
    %6926 = vmatprep.subr.mxu0 0.0
    %6927 = vmatpush1.msra.mxu0 0.0
    %6928 = vmatprep.subr.mxu0 0.0
    %6929 = vmatpush1.msra.mxu0 0.0
    %6930 = vmatprep.subr.mxu0 0.0
    %6931 = vmatpush1.msra.mxu0 0.0
    %6932 = vmatprep.subr.mxu0 0.0
    %6933 = vmatpush1.msra.mxu0 0.0
    %6934 = vmatprep.subr.mxu0 0.0
    %6935 = vmatpush1.msra.mxu0 0.0
    %6936 = vmatprep.subr.mxu0 0.0
    %6937 = vmatpush1.msra.mxu0 0.0
    %6938 = vmatprep.subr.mxu0 0.0
    %6939 = vmatpush1.msra.mxu0 0.0
    %6940 = vmatprep.subr.mxu0 0.0
    %6941 = vmatpush1.msra.mxu0 0.0
    %6942 = vmatprep.subr.mxu0 0.0
    %6943 = vmatpush1.msra.mxu0 0.0
    %6944 = vmatprep.subr.mxu0 0.0
    %6945 = vmatpush1.msra.mxu0 0.0
    %6946 = vmatprep.subr.mxu0 0.0
    %6947 = vmatpush1.msra.mxu0 0.0
    %6948 = vmatprep.mubr.f32.mxu0 0.0
    %6949 = vmatmul.mubr.f32.gmra.mrb[0].mxu0 %v6861
    %v6950 = vpop.f32.mrb[0].mxu0
    %v6951 = vadd.f32 0.0, %v6950
    %v6952 = vpop.f32.mrb[0].mxu0
    %6953 = vmatprep.mubr.f32.mxu0 0.0
    %6954 = vmatmul.mubr.f32.gmra.mrb[0].mxu0 %v6864
    %v6955 = vpop.f32.mrb[0].mxu0
    %v6956 = vadd.f32 0.0, %v6955
    %v6957 = vpop.f32.mrb[0].mxu0
    %6958 = vmatprep.mubr.f32.mxu0 0.0
    %6959 = vmatmul.mubr.f32.gmra.mrb[0].mxu0 %v6867
    %v6960 = vpop.f32.mrb[0].mxu0
    %v6961 = vadd.f32 0.0, %v6960
    %v6962 = vpop.f32.mrb[0].mxu0
    %6963 = vmatprep.mubr.f32.mxu0 0.0
    %6964 = vmatmul.mubr.f32.gmra.mrb[0].mxu0 %v6870
    %v6965 = vpop.f32.mrb[0].mxu0
    %v6966 = vadd.f32 0.0, %v6965
    %v6967 = vpop.f32.mrb[0].mxu0
    %6968 = vmatprep.mubr.f32.mxu0 0.0
    %6969 = vmatmul.mubr.f32.gmra.mrb[0].mxu0 %v6873
    %v6970 = vpop.f32.mrb[0].mxu0
    %v6971 = vadd.f32 0.0, %v6970
    %v6972 = vpop.f32.mrb[0].mxu0
    %6973 = vmatprep.mubr.f32.mxu0 0.0
    %6974 = vmatmul.mubr.f32.gmra.mrb[0].mxu0 %v6876
    %v6975 = vpop.f32.mrb[0].mxu0
    %v6976 = vadd.f32 0.0, %v6975
    %v6977 = vpop.f32.mrb[0].mxu0
    %6978 = vmatprep.mubr.f32.mxu0 0.0
    %6979 = vmatmul.mubr.f32.gmra.mrb[0].mxu0 %v6879
    %v6980 = vpop.f32.mrb[0].mxu0
    %v6981 = vadd.f32 0.0, %v6980
    %v6982 = vpop.f32.mrb[0].mxu0
    %6983 = vmatprep.mubr.f32.mxu0 0.0
    %6984 = vmatmul.mubr.f32.gmra.mrb[0].mxu0 %v6882
    %v6985 = vpop.f32.mrb[0].mxu0
    %v6986 = vadd.f32 0.0, %v6985
    %v6987 = vpop.f32.mrb[0].mxu0
    %6988 = vdwg.mxu0
    %v6990 = vsel %vm962, %v1116, 0
    %v6993 = vsel %vm962, %v1117, 0
    %v6996 = vsel %vm962, %v1118, 0
    %v6999 = vsel %vm962, %v1119, 0
    %v7002 = vsel %vm962, %v1120, 0
    %v7005 = vsel %vm962, %v1121, 0
    %v7008 = vsel %vm962, %v1122, 0
    %v7011 = vsel %vm962, %v1123, 0
    %7013 = vmatprep.subr.mxu0 0.0
    %7014 = vmatpush1.msra.mxu0 %v6851
    %7015 = vmatprep.subr.mxu0 0.0
    %7016 = vmatpush1.msra.mxu0 %v6852
    %7017 = vmatprep.subr.mxu0 0.0
    %7018 = vmatpush1.msra.mxu0 %v6853
    %7019 = vmatprep.subr.mxu0 0.0
    %7020 = vmatpush1.msra.mxu0 %v6854
    %7021 = vmatprep.subr.mxu0 0.0
    %7022 = vmatpush1.msra.mxu0 0.0
    %7023 = vmatprep.subr.mxu0 0.0
    %7024 = vmatpush1.msra.mxu0 0.0
    %7025 = vmatprep.subr.mxu0 0.0
    %7026 = vmatpush1.msra.mxu0 0.0
    %7027 = vmatprep.subr.mxu0 0.0
    %7028 = vmatpush1.msra.mxu0 0.0
    %7029 = vmatprep.subr.mxu0 0.0
    %7030 = vmatpush1.msra.mxu0 0.0
    %7031 = vmatprep.subr.mxu0 0.0
    %7032 = vmatpush1.msra.mxu0 0.0
    %7033 = vmatprep.subr.mxu0 0.0
    %7034 = vmatpush1.msra.mxu0 0.0
    %7035 = vmatprep.subr.mxu0 0.0
    %7036 = vmatpush1.msra.mxu0 0.0
    %7037 = vmatprep.subr.mxu0 0.0
    %7038 = vmatpush1.msra.mxu0 0.0
    %7039 = vmatprep.subr.mxu0 0.0
    %7040 = vmatpush1.msra.mxu0 0.0
    %7041 = vmatprep.subr.mxu0 0.0
    %7042 = vmatpush1.msra.mxu0 0.0
    %7043 = vmatprep.subr.mxu0 0.0
    %7044 = vmatpush1.msra.mxu0 0.0
    %7045 = vmatprep.subr.mxu0 0.0
    %7046 = vmatpush1.msra.mxu0 0.0
    %7047 = vmatprep.subr.mxu0 0.0
    %7048 = vmatpush1.msra.mxu0 0.0
    %7049 = vmatprep.subr.mxu0 0.0
    %7050 = vmatpush1.msra.mxu0 0.0
    %7051 = vmatprep.subr.mxu0 0.0
    %7052 = vmatpush1.msra.mxu0 0.0
    %7053 = vmatprep.subr.mxu0 0.0
    %7054 = vmatpush1.msra.mxu0 0.0
    %7055 = vmatprep.subr.mxu0 0.0
    %7056 = vmatpush1.msra.mxu0 0.0
    %7057 = vmatprep.subr.mxu0 0.0
    %7058 = vmatpush1.msra.mxu0 0.0
    %7059 = vmatprep.subr.mxu0 0.0
    %7060 = vmatpush1.msra.mxu0 0.0
    %7061 = vmatprep.subr.mxu0 0.0
    %7062 = vmatpush1.msra.mxu0 0.0
    %7063 = vmatprep.subr.mxu0 0.0
    %7064 = vmatpush1.msra.mxu0 0.0
    %7065 = vmatprep.subr.mxu0 0.0
    %7066 = vmatpush1.msra.mxu0 0.0
    %7067 = vmatprep.subr.mxu0 0.0
    %7068 = vmatpush1.msra.mxu0 0.0
    %7069 = vmatprep.subr.mxu0 0.0
    %7070 = vmatpush1.msra.mxu0 0.0
    %7071 = vmatprep.subr.mxu0 0.0
    %7072 = vmatpush1.msra.mxu0 0.0
    %7073 = vmatprep.subr.mxu0 0.0
    %7074 = vmatpush1.msra.mxu0 0.0
    %7075 = vmatprep.subr.mxu0 0.0
    %7076 = vmatpush1.msra.mxu0 0.0
    %7077 = vmatprep.mubr.f32.mxu0 0.0
    %7078 = vmatmul.mubr.f32.gmra.mrb[0].mxu0 %v6990
    %v7079 = vpop.f32.mrb[0].mxu0
    %v7080 = vadd.f32 %v6951, %v7079
    %v7081 = vpop.f32.mrb[0].mxu0
    %7082 = vmatprep.mubr.f32.mxu0 0.0
    %7083 = vmatmul.mubr.f32.gmra.mrb[0].mxu0 %v6993
    %v7084 = vpop.f32.mrb[0].mxu0
    %v7085 = vadd.f32 %v6956, %v7084
    %v7086 = vpop.f32.mrb[0].mxu0
    %7087 = vmatprep.mubr.f32.mxu0 0.0
    %7088 = vmatmul.mubr.f32.gmra.mrb[0].mxu0 %v6996
    %v7089 = vpop.f32.mrb[0].mxu0
    %v7090 = vadd.f32 %v6961, %v7089
    %v7091 = vpop.f32.mrb[0].mxu0
    %7092 = vmatprep.mubr.f32.mxu0 0.0
    %7093 = vmatmul.mubr.f32.gmra.mrb[0].mxu0 %v6999
    %v7094 = vpop.f32.mrb[0].mxu0
    %v7095 = vadd.f32 %v6966, %v7094
    %v7096 = vpop.f32.mrb[0].mxu0
    %7097 = vmatprep.mubr.f32.mxu0 0.0
    %7098 = vmatmul.mubr.f32.gmra.mrb[0].mxu0 %v7002
    %v7099 = vpop.f32.mrb[0].mxu0
    %v7100 = vadd.f32 %v6971, %v7099
    %v7101 = vpop.f32.mrb[0].mxu0
    %7102 = vmatprep.mubr.f32.mxu0 0.0
    %7103 = vmatmul.mubr.f32.gmra.mrb[0].mxu0 %v7005
    %v7104 = vpop.f32.mrb[0].mxu0
    %v7105 = vadd.f32 %v6976, %v7104
    %v7106 = vpop.f32.mrb[0].mxu0
    %7107 = vmatprep.mubr.f32.mxu0 0.0
    %7108 = vmatmul.mubr.f32.gmra.mrb[0].mxu0 %v7008
    %v7109 = vpop.f32.mrb[0].mxu0
    %v7110 = vadd.f32 %v6981, %v7109
    %v7111 = vpop.f32.mrb[0].mxu0
    %7112 = vmatprep.mubr.f32.mxu0 0.0
    %7113 = vmatmul.mubr.f32.gmra.mrb[0].mxu0 %v7011
    %v7114 = vpop.f32.mrb[0].mxu0
    %v7115 = vadd.f32 %v6986, %v7114
    %v7116 = vpop.f32.mrb[0].mxu0
    %7117 = vdwg.mxu0
    %s7118 = scalar_lea.vmem [#allocation5], 64
    %v7119 = vld [vmem:[%s7118] sm:$0xff]
    %v7120 = vld [vmem:[%s7118 + $0x8] sm:$0xff]
    %v7121 = vld [vmem:[%s7118 + $0x10] sm:$0xff]
    %v7122 = vld [vmem:[%s7118 + $0x18] sm:$0xff]
    %v7124 = vsel %vm962, %v6843, 0
    %v7127 = vsel %vm962, %v6844, 0
    %v7130 = vsel %vm962, %v6845, 0
    %v7133 = vsel %vm962, %v6846, 0
    %v7136 = vsel %vm962, %v6847, 0
    %v7139 = vsel %vm962, %v6848, 0
    %v7142 = vsel %vm962, %v6849, 0
    %v7145 = vsel %vm962, %v6850, 0
    %7147 = vmatprep.subr.mxu0 0.0
    %7148 = vmatpush1.msra.mxu0 %v7119
    %7149 = vmatprep.subr.mxu0 0.0
    %7150 = vmatpush1.msra.mxu0 %v7120
    %7151 = vmatprep.subr.mxu0 0.0
    %7152 = vmatpush1.msra.mxu0 %v7121
    %7153 = vmatprep.subr.mxu0 0.0
    %7154 = vmatpush1.msra.mxu0 %v7122
    %7155 = vmatprep.subr.mxu0 0.0
    %7156 = vmatpush1.msra.mxu0 0.0
    %7157 = vmatprep.subr.mxu0 0.0
    %7158 = vmatpush1.msra.mxu0 0.0
    %7159 = vmatprep.subr.mxu0 0.0
    %7160 = vmatpush1.msra.mxu0 0.0
    %7161 = vmatprep.subr.mxu0 0.0
    %7162 = vmatpush1.msra.mxu0 0.0
    %7163 = vmatprep.subr.mxu0 0.0
    %7164 = vmatpush1.msra.mxu0 0.0
    %7165 = vmatprep.subr.mxu0 0.0
    %7166 = vmatpush1.msra.mxu0 0.0
    %7167 = vmatprep.subr.mxu0 0.0
    %7168 = vmatpush1.msra.mxu0 0.0
    %7169 = vmatprep.subr.mxu0 0.0
    %7170 = vmatpush1.msra.mxu0 0.0
    %7171 = vmatprep.subr.mxu0 0.0
    %7172 = vmatpush1.msra.mxu0 0.0
    %7173 = vmatprep.subr.mxu0 0.0
    %7174 = vmatpush1.msra.mxu0 0.0
    %7175 = vmatprep.subr.mxu0 0.0
    %7176 = vmatpush1.msra.mxu0 0.0
    %7177 = vmatprep.subr.mxu0 0.0
    %7178 = vmatpush1.msra.mxu0 0.0
    %7179 = vmatprep.subr.mxu0 0.0
    %7180 = vmatpush1.msra.mxu0 0.0
    %7181 = vmatprep.subr.mxu0 0.0
    %7182 = vmatpush1.msra.mxu0 0.0
    %7183 = vmatprep.subr.mxu0 0.0
    %7184 = vmatpush1.msra.mxu0 0.0
    %7185 = vmatprep.subr.mxu0 0.0
    %7186 = vmatpush1.msra.mxu0 0.0
    %7187 = vmatprep.subr.mxu0 0.0
    %7188 = vmatpush1.msra.mxu0 0.0
    %7189 = vmatprep.subr.mxu0 0.0
    %7190 = vmatpush1.msra.mxu0 0.0
    %7191 = vmatprep.subr.mxu0 0.0
    %7192 = vmatpush1.msra.mxu0 0.0
    %7193 = vmatprep.subr.mxu0 0.0
    %7194 = vmatpush1.msra.mxu0 0.0
    %7195 = vmatprep.subr.mxu0 0.0
    %7196 = vmatpush1.msra.mxu0 0.0
    %7197 = vmatprep.subr.mxu0 0.0
    %7198 = vmatpush1.msra.mxu0 0.0
    %7199 = vmatprep.subr.mxu0 0.0
    %7200 = vmatpush1.msra.mxu0 0.0
    %7201 = vmatprep.subr.mxu0 0.0
    %7202 = vmatpush1.msra.mxu0 0.0
    %7203 = vmatprep.subr.mxu0 0.0
    %7204 = vmatpush1.msra.mxu0 0.0
    %7205 = vmatprep.subr.mxu0 0.0
    %7206 = vmatpush1.msra.mxu0 0.0
    %7207 = vmatprep.subr.mxu0 0.0
    %7208 = vmatpush1.msra.mxu0 0.0
    %7209 = vmatprep.subr.mxu0 0.0
    %7210 = vmatpush1.msra.mxu0 0.0
    %7211 = vmatprep.mubr.f32.mxu0 0.0
    %7212 = vmatmul.mubr.f32.gmra.mrb[0].mxu0 %v7124
    %v7213 = vpop.f32.mrb[0].mxu0
    %v7214 = vadd.f32 0.0, %v7213
    %v7215 = vpop.f32.mrb[0].mxu0
    %7216 = vmatprep.mubr.f32.mxu0 0.0
    %7217 = vmatmul.mubr.f32.gmra.mrb[0].mxu0 %v7127
    %v7218 = vpop.f32.mrb[0].mxu0
    %v7219 = vadd.f32 0.0, %v7218
    %v7220 = vpop.f32.mrb[0].mxu0
    %7221 = vmatprep.mubr.f32.mxu0 0.0
    %7222 = vmatmul.mubr.f32.gmra.mrb[0].mxu0 %v7130
    %v7223 = vpop.f32.mrb[0].mxu0
    %v7224 = vadd.f32 0.0, %v7223
    %v7225 = vpop.f32.mrb[0].mxu0
    %7226 = vmatprep.mubr.f32.mxu0 0.0
    %7227 = vmatmul.mubr.f32.gmra.mrb[0].mxu0 %v7133
    %v7228 = vpop.f32.mrb[0].mxu0
    %v7229 = vadd.f32 0.0, %v7228
    %v7230 = vpop.f32.mrb[0].mxu0
    %7231 = vmatprep.mubr.f32.mxu0 0.0
    %7232 = vmatmul.mubr.f32.gmra.mrb[0].mxu0 %v7136
    %v7233 = vpop.f32.mrb[0].mxu0
    %v7234 = vadd.f32 0.0, %v7233
    %v7235 = vpop.f32.mrb[0].mxu0
    %7236 = vmatprep.mubr.f32.mxu0 0.0
    %7237 = vmatmul.mubr.f32.gmra.mrb[0].mxu0 %v7139
    %v7238 = vpop.f32.mrb[0].mxu0
    %v7239 = vadd.f32 0.0, %v7238
    %v7240 = vpop.f32.mrb[0].mxu0
    %7241 = vmatprep.mubr.f32.mxu0 0.0
    %7242 = vmatmul.mubr.f32.gmra.mrb[0].mxu0 %v7142
    %v7243 = vpop.f32.mrb[0].mxu0
    %v7244 = vadd.f32 0.0, %v7243
    %v7245 = vpop.f32.mrb[0].mxu0
    %7246 = vmatprep.mubr.f32.mxu0 0.0
    %7247 = vmatmul.mubr.f32.gmra.mrb[0].mxu0 %v7145
    %v7248 = vpop.f32.mrb[0].mxu0
    %v7249 = vadd.f32 0.0, %v7248
    %v7250 = vpop.f32.mrb[0].mxu0
    %7251 = vdwg.mxu0
    %v7252 = vadd.f32 %v7080, %v7214
    %v7253 = vadd.f32 %v7085, %v7219
    %v7254 = vadd.f32 %v7090, %v7224
    %v7255 = vadd.f32 %v7095, %v7229
    %v7256 = vadd.f32 %v7100, %v7234
    %v7257 = vadd.f32 %v7105, %v7239
    %v7258 = vadd.f32 %v7110, %v7244
    %v7259 = vadd.f32 %v7115, %v7249
    %s7260 = scalar_lea.vmem [#allocation5], 96
    %v7261 = vld [vmem:[%s7260] sm:$0xff]
    %v7262 = vld [vmem:[%s7260 + $0x8] sm:$0xff]
    %v7263 = vld [vmem:[%s7260 + $0x10] sm:$0xff]
    %v7264 = vld [vmem:[%s7260 + $0x18] sm:$0xff]
    %7273 = vrot.lane.b32.xlu0 %v1194, 96
    %v7274 = vpop.permute.xlu0 %7273
    %7275 = vrot.lane.b32.xlu0 %v1201, 96
    %v7276 = vpop.permute.xlu0 %7275
    %7277 = vrot.lane.b32.xlu0 %v1208, 96
    %v7278 = vpop.permute.xlu0 %7277
    %7279 = vrot.lane.b32.xlu0 %v1215, 96
    %v7280 = vpop.permute.xlu0 %7279
    %7281 = vrot.lane.b32.xlu0 %v1222, 96
    %v7282 = vpop.permute.xlu0 %7281
    %7283 = vrot.lane.b32.xlu0 %v1229, 96
    %v7284 = vpop.permute.xlu0 %7283
    %7285 = vrot.lane.b32.xlu0 %v1236, 96
    %v7286 = vpop.permute.xlu0 %7285
    %7287 = vrot.lane.b32.xlu0 %v1243, 96
    %v7288 = vpop.permute.xlu0 %7287
    %v7289 = vsel %vm962, %v7274, 0
    %v7291 = vsel %vm962, %v7276, 0
    %v7293 = vsel %vm962, %v7278, 0
    %v7295 = vsel %vm962, %v7280, 0
    %v7297 = vsel %vm962, %v7282, 0
    %v7299 = vsel %vm962, %v7284, 0
    %v7301 = vsel %vm962, %v7286, 0
    %v7303 = vsel %vm962, %v7288, 0
    %7305 = vmatprep.subr.mxu0 0.0
    %7306 = vmatpush1.msra.mxu0 %v7261
    %7307 = vmatprep.subr.mxu0 0.0
    %7308 = vmatpush1.msra.mxu0 %v7262
    %7309 = vmatprep.subr.mxu0 0.0
    %7310 = vmatpush1.msra.mxu0 %v7263
    %7311 = vmatprep.subr.mxu0 0.0
    %7312 = vmatpush1.msra.mxu0 %v7264
    %7313 = vmatprep.subr.mxu0 0.0
    %7314 = vmatpush1.msra.mxu0 0.0
    %7315 = vmatprep.subr.mxu0 0.0
    %7316 = vmatpush1.msra.mxu0 0.0
    %7317 = vmatprep.subr.mxu0 0.0
    %7318 = vmatpush1.msra.mxu0 0.0
    %7319 = vmatprep.subr.mxu0 0.0
    %7320 = vmatpush1.msra.mxu0 0.0
    %7321 = vmatprep.subr.mxu0 0.0
    %7322 = vmatpush1.msra.mxu0 0.0
    %7323 = vmatprep.subr.mxu0 0.0
    %7324 = vmatpush1.msra.mxu0 0.0
    %7325 = vmatprep.subr.mxu0 0.0
    %7326 = vmatpush1.msra.mxu0 0.0
    %7327 = vmatprep.subr.mxu0 0.0
    %7328 = vmatpush1.msra.mxu0 0.0
    %7329 = vmatprep.subr.mxu0 0.0
    %7330 = vmatpush1.msra.mxu0 0.0
    %7331 = vmatprep.subr.mxu0 0.0
    %7332 = vmatpush1.msra.mxu0 0.0
    %7333 = vmatprep.subr.mxu0 0.0
    %7334 = vmatpush1.msra.mxu0 0.0
    %7335 = vmatprep.subr.mxu0 0.0
    %7336 = vmatpush1.msra.mxu0 0.0
    %7337 = vmatprep.subr.mxu0 0.0
    %7338 = vmatpush1.msra.mxu0 0.0
    %7339 = vmatprep.subr.mxu0 0.0
    %7340 = vmatpush1.msra.mxu0 0.0
    %7341 = vmatprep.subr.mxu0 0.0
    %7342 = vmatpush1.msra.mxu0 0.0
    %7343 = vmatprep.subr.mxu0 0.0
    %7344 = vmatpush1.msra.mxu0 0.0
    %7345 = vmatprep.subr.mxu0 0.0
    %7346 = vmatpush1.msra.mxu0 0.0
    %7347 = vmatprep.subr.mxu0 0.0
    %7348 = vmatpush1.msra.mxu0 0.0
    %7349 = vmatprep.subr.mxu0 0.0
    %7350 = vmatpush1.msra.mxu0 0.0
    %7351 = vmatprep.subr.mxu0 0.0
    %7352 = vmatpush1.msra.mxu0 0.0
    %7353 = vmatprep.subr.mxu0 0.0
    %7354 = vmatpush1.msra.mxu0 0.0
    %7355 = vmatprep.subr.mxu0 0.0
    %7356 = vmatpush1.msra.mxu0 0.0
    %7357 = vmatprep.subr.mxu0 0.0
    %7358 = vmatpush1.msra.mxu0 0.0
    %7359 = vmatprep.subr.mxu0 0.0
    %7360 = vmatpush1.msra.mxu0 0.0
    %7361 = vmatprep.subr.mxu0 0.0
    %7362 = vmatpush1.msra.mxu0 0.0
    %7363 = vmatprep.subr.mxu0 0.0
    %7364 = vmatpush1.msra.mxu0 0.0
    %7365 = vmatprep.subr.mxu0 0.0
    %7366 = vmatpush1.msra.mxu0 0.0
    %7367 = vmatprep.subr.mxu0 0.0
    %7368 = vmatpush1.msra.mxu0 0.0
    %7369 = vmatprep.mubr.f32.mxu0 0.0
    %7370 = vmatmul.mubr.f32.gmra.mrb[0].mxu0 %v7289
    %v7371 = vpop.f32.mrb[0].mxu0
    %v7372 = vadd.f32 0.0, %v7371
    %v7373 = vpop.f32.mrb[0].mxu0
    %7374 = vmatprep.mubr.f32.mxu0 0.0
    %7375 = vmatmul.mubr.f32.gmra.mrb[0].mxu0 %v7291
    %v7376 = vpop.f32.mrb[0].mxu0
    %v7377 = vadd.f32 0.0, %v7376
    %v7378 = vpop.f32.mrb[0].mxu0
    %7379 = vmatprep.mubr.f32.mxu0 0.0
    %7380 = vmatmul.mubr.f32.gmra.mrb[0].mxu0 %v7293
    %v7381 = vpop.f32.mrb[0].mxu0
    %v7382 = vadd.f32 0.0, %v7381
    %v7383 = vpop.f32.mrb[0].mxu0
    %7384 = vmatprep.mubr.f32.mxu0 0.0
    %7385 = vmatmul.mubr.f32.gmra.mrb[0].mxu0 %v7295
    %v7386 = vpop.f32.mrb[0].mxu0
    %v7387 = vadd.f32 0.0, %v7386
    %v7388 = vpop.f32.mrb[0].mxu0
    %7389 = vmatprep.mubr.f32.mxu0 0.0
    %7390 = vmatmul.mubr.f32.gmra.mrb[0].mxu0 %v7297
    %v7391 = vpop.f32.mrb[0].mxu0
    %v7392 = vadd.f32 0.0, %v7391
    %v7393 = vpop.f32.mrb[0].mxu0
    %7394 = vmatprep.mubr.f32.mxu0 0.0
    %7395 = vmatmul.mubr.f32.gmra.mrb[0].mxu0 %v7299
    %v7396 = vpop.f32.mrb[0].mxu0
    %v7397 = vadd.f32 0.0, %v7396
    %v7398 = vpop.f32.mrb[0].mxu0
    %7399 = vmatprep.mubr.f32.mxu0 0.0
    %7400 = vmatmul.mubr.f32.gmra.mrb[0].mxu0 %v7301
    %v7401 = vpop.f32.mrb[0].mxu0
    %v7402 = vadd.f32 0.0, %v7401
    %v7403 = vpop.f32.mrb[0].mxu0
    %7404 = vmatprep.mubr.f32.mxu0 0.0
    %7405 = vmatmul.mubr.f32.gmra.mrb[0].mxu0 %v7303
    %v7406 = vpop.f32.mrb[0].mxu0
    %v7407 = vadd.f32 0.0, %v7406
    %v7408 = vpop.f32.mrb[0].mxu0
    %7409 = vdwg.mxu0
    %v7410 = vadd.f32 %v7252, %v7372
    %v7411 = vadd.f32 %v7253, %v7377
    %v7412 = vadd.f32 %v7254, %v7382
    %v7413 = vadd.f32 %v7255, %v7387
    %v7414 = vadd.f32 %v7256, %v7392
    %v7415 = vadd.f32 %v7257, %v7397
    %v7416 = vadd.f32 %v7258, %v7402
    %v7417 = vadd.f32 %v7259, %v7407
    %v7418 = vld [vmem:[%s5] sm:$0x1]
    %v7420 = vlaneseq
    %v7421 = vshrl.u32 %v7420, 7
    %v7422 = vsub.s32 0, %v7421
    %v7423 = vrot.slane %v7418, %v7422
    %v7425 = vadd.f32 %v7410, %v7423
    %v7426 = vadd.f32 %v7411, %v7423
    %v7427 = vadd.f32 %v7412, %v7423
    %v7428 = vadd.f32 %v7413, %v7423
    %v7429 = vadd.f32 %v7414, %v7423
    %v7430 = vadd.f32 %v7415, %v7423
    %v7431 = vadd.f32 %v7416, %v7423
    %v7432 = vadd.f32 %v7417, %v7423
    %v7433 = vmax.f32 %v7425, 0.0
    %v7434 = vmax.f32 %v7426, 0.0
    %v7435 = vmax.f32 %v7427, 0.0
    %v7436 = vmax.f32 %v7428, 0.0
    %v7437 = vmax.f32 %v7429, 0.0
    %v7438 = vmax.f32 %v7430, 0.0
    %v7439 = vmax.f32 %v7431, 0.0
    %v7440 = vmax.f32 %v7432, 0.0
    %v7441 = vmul.f32 %v7433, %v7433
    %v7442 = vmul.f32 %v7434, %v7434
    %v7443 = vmul.f32 %v7435, %v7435
    %v7444 = vmul.f32 %v7436, %v7436
    %v7445 = vmul.f32 %v7437, %v7437
    %v7446 = vmul.f32 %v7438, %v7438
    %v7447 = vmul.f32 %v7439, %v7439
    %v7448 = vmul.f32 %v7440, %v7440
    %7457 = vrot.lane.b32.xlu0 %v7441, 32
    %v7458 = vpop.permute.xlu0 %7457
    %7459 = vrot.lane.b32.xlu0 %v7442, 32
    %v7460 = vpop.permute.xlu0 %7459
    %7461 = vrot.lane.b32.xlu0 %v7443, 32
    %v7462 = vpop.permute.xlu0 %7461
    %7463 = vrot.lane.b32.xlu0 %v7444, 32
    %v7464 = vpop.permute.xlu0 %7463
    %7465 = vrot.lane.b32.xlu0 %v7445, 32
    %v7466 = vpop.permute.xlu0 %7465
    %7467 = vrot.lane.b32.xlu0 %v7446, 32
    %v7468 = vpop.permute.xlu0 %7467
    %7469 = vrot.lane.b32.xlu0 %v7447, 32
    %v7470 = vpop.permute.xlu0 %7469
    %7471 = vrot.lane.b32.xlu0 %v7448, 32
    %v7472 = vpop.permute.xlu0 %7471
    %v7481 = vsel %vm962, %v7433, %v7458
    %v7482 = vsel %vm962, %v7434, %v7460
    %v7483 = vsel %vm962, %v7435, %v7462
    %v7484 = vsel %vm962, %v7436, %v7464
    %v7485 = vsel %vm962, %v7437, %v7466
    %v7486 = vsel %vm962, %v7438, %v7468
    %v7487 = vsel %vm962, %v7439, %v7470
    %v7488 = vsel %vm962, %v7440, %v7472
    %7489 = vmatprep.subr.mxu0 0.0
    %7490 = vmatpush1.msra.mxu0 %v7481
    %7491 = vmatprep.subr.mxu0 0.0
    %7492 = vmatpush1.msra.mxu0 %v7482
    %7493 = vmatprep.subr.mxu0 0.0
    %7494 = vmatpush1.msra.mxu0 %v7483
    %7495 = vmatprep.subr.mxu0 0.0
    %7496 = vmatpush1.msra.mxu0 %v7484
    %7497 = vmatprep.subr.mxu0 0.0
    %7498 = vmatpush1.msra.mxu0 %v7485
    %7499 = vmatprep.subr.mxu0 0.0
    %7500 = vmatpush1.msra.mxu0 %v7486
    %7501 = vmatprep.subr.mxu0 0.0
    %7502 = vmatpush1.msra.mxu0 %v7487
    %7503 = vmatprep.subr.mxu0 0.0
    %7504 = vmatpush1.msra.mxu0 %v7488
    %7505 = vmatprep.subr.mxu0 0.0
    %7506 = vmatpush1.msra.mxu0 0.0
    %7507 = vmatprep.subr.mxu0 0.0
    %7508 = vmatpush1.msra.mxu0 0.0
    %7509 = vmatprep.subr.mxu0 0.0
    %7510 = vmatpush1.msra.mxu0 0.0
    %7511 = vmatprep.subr.mxu0 0.0
    %7512 = vmatpush1.msra.mxu0 0.0
    %7513 = vmatprep.subr.mxu0 0.0
    %7514 = vmatpush1.msra.mxu0 0.0
    %7515 = vmatprep.subr.mxu0 0.0
    %7516 = vmatpush1.msra.mxu0 0.0
    %7517 = vmatprep.subr.mxu0 0.0
    %7518 = vmatpush1.msra.mxu0 0.0
    %7519 = vmatprep.subr.mxu0 0.0
    %7520 = vmatpush1.msra.mxu0 0.0
    %7521 = vmatprep.subr.mxu0 0.0
    %7522 = vmatpush1.msra.mxu0 0.0
    %7523 = vmatprep.subr.mxu0 0.0
    %7524 = vmatpush1.msra.mxu0 0.0
    %7525 = vmatprep.subr.mxu0 0.0
    %7526 = vmatpush1.msra.mxu0 0.0
    %7527 = vmatprep.subr.mxu0 0.0
    %7528 = vmatpush1.msra.mxu0 0.0
    %7529 = vmatprep.subr.mxu0 0.0
    %7530 = vmatpush1.msra.mxu0 0.0
    %7531 = vmatprep.subr.mxu0 0.0
    %7532 = vmatpush1.msra.mxu0 0.0
    %7533 = vmatprep.subr.mxu0 0.0
    %7534 = vmatpush1.msra.mxu0 0.0
    %7535 = vmatprep.subr.mxu0 0.0
    %7536 = vmatpush1.msra.mxu0 0.0
    %7537 = vmatprep.subr.mxu0 0.0
    %7538 = vmatpush1.msra.mxu0 0.0
    %7539 = vmatprep.subr.mxu0 0.0
    %7540 = vmatpush1.msra.mxu0 0.0
    %7541 = vmatprep.subr.mxu0 0.0
    %7542 = vmatpush1.msra.mxu0 0.0
    %7543 = vmatprep.subr.mxu0 0.0
    %7544 = vmatpush1.msra.mxu0 0.0
    %7545 = vmatprep.subr.mxu0 0.0
    %7546 = vmatpush1.msra.mxu0 0.0
    %7547 = vmatprep.subr.mxu0 0.0
    %7548 = vmatpush1.msra.mxu0 0.0
    %7549 = vmatprep.subr.mxu0 0.0
    %7550 = vmatpush1.msra.mxu0 0.0
    %7551 = vmatprep.subr.mxu0 0.0
    %7552 = vmatpush1.msra.mxu0 0.0
    %7553 = vmatprep.mubr.f32.mxu0 0.0
    %7554 = vmatmul.mubr.f32.gmra.mrb[0].mxu0 %v87
    %v7555 = vpop.f32.mrb[0].mxu0
    %v7556 = vadd.f32 0.0, %v7555
    %v7557 = vpop.f32.mrb[0].mxu0
    %7558 = vmatprep.mubr.f32.mxu0 0.0
    %7559 = vmatmul.mubr.f32.gmra.mrb[0].mxu0 %v90
    %v7560 = vpop.f32.mrb[0].mxu0
    %v7561 = vadd.f32 0.0, %v7560
    %v7562 = vpop.f32.mrb[0].mxu0
    %7563 = vmatprep.mubr.f32.mxu0 0.0
    %7564 = vmatmul.mubr.f32.gmra.mrb[0].mxu0 %v93
    %v7565 = vpop.f32.mrb[0].mxu0
    %v7566 = vadd.f32 0.0, %v7565
    %v7567 = vpop.f32.mrb[0].mxu0
    %7568 = vmatprep.mubr.f32.mxu0 0.0
    %7569 = vmatmul.mubr.f32.gmra.mrb[0].mxu0 %v96
    %v7570 = vpop.f32.mrb[0].mxu0
    %v7571 = vadd.f32 0.0, %v7570
    %v7572 = vpop.f32.mrb[0].mxu0
    %7573 = vmatprep.mubr.f32.mxu0 0.0
    %7574 = vmatmul.mubr.f32.gmra.mrb[0].mxu0 %v99
    %v7575 = vpop.f32.mrb[0].mxu0
    %v7576 = vadd.f32 0.0, %v7575
    %v7577 = vpop.f32.mrb[0].mxu0
    %7578 = vmatprep.mubr.f32.mxu0 0.0
    %7579 = vmatmul.mubr.f32.gmra.mrb[0].mxu0 %v102
    %v7580 = vpop.f32.mrb[0].mxu0
    %v7581 = vadd.f32 0.0, %v7580
    %v7582 = vpop.f32.mrb[0].mxu0
    %7583 = vmatprep.mubr.f32.mxu0 0.0
    %7584 = vmatmul.mubr.f32.gmra.mrb[0].mxu0 %v105
    %v7585 = vpop.f32.mrb[0].mxu0
    %v7586 = vadd.f32 0.0, %v7585
    %v7587 = vpop.f32.mrb[0].mxu0
    %7588 = vmatprep.mubr.f32.mxu0 0.0
    %7589 = vmatmul.mubr.f32.gmra.mrb[0].mxu0 %v108
    %v7590 = vpop.f32.mrb[0].mxu0
    %v7591 = vadd.f32 0.0, %v7590
    %v7592 = vpop.f32.mrb[0].mxu0
    %7593 = vdwg.mxu0
    %v7594 = vmul.f32 %v7556, %v1079
    %v7595 = vmul.f32 %v7561, %v1084
    %v7596 = vmul.f32 %v7566, %v1089
    %v7597 = vmul.f32 %v7571, %v1094
    %v7598 = vmul.f32 %v7576, %v1099
    %v7599 = vmul.f32 %v7581, %v1104
    %v7600 = vmul.f32 %v7586, %v1109
    %v7601 = vmul.f32 %v7591, %v1114
    %v7602 = vmul.f32 %v7594, %v7594
    %v7603 = vmul.f32 %v7595, %v7595
    %v7604 = vmul.f32 %v7596, %v7596
    %v7605 = vmul.f32 %v7597, %v7597
    %v7606 = vmul.f32 %v7598, %v7598
    %v7607 = vmul.f32 %v7599, %v7599
    %v7608 = vmul.f32 %v7600, %v7600
    %v7609 = vmul.f32 %v7601, %v7601
    %7618 = vrot.lane.b32.xlu0 %v7602, 32
    %v7619 = vpop.permute.xlu0 %7618
    %7620 = vrot.lane.b32.xlu0 %v7603, 32
    %v7621 = vpop.permute.xlu0 %7620
    %7622 = vrot.lane.b32.xlu0 %v7604, 32
    %v7623 = vpop.permute.xlu0 %7622
    %7624 = vrot.lane.b32.xlu0 %v7605, 32
    %v7625 = vpop.permute.xlu0 %7624
    %7626 = vrot.lane.b32.xlu0 %v7606, 32
    %v7627 = vpop.permute.xlu0 %7626
    %7628 = vrot.lane.b32.xlu0 %v7607, 32
    %v7629 = vpop.permute.xlu0 %7628
    %7630 = vrot.lane.b32.xlu0 %v7608, 32
    %v7631 = vpop.permute.xlu0 %7630
    %7632 = vrot.lane.b32.xlu0 %v7609, 32
    %v7633 = vpop.permute.xlu0 %7632
    %v7642 = vsub.f32 %v7594, %v7619
    %v7643 = vsub.f32 %v7595, %v7621
    %v7644 = vsub.f32 %v7596, %v7623
    %v7645 = vsub.f32 %v7597, %v7625
    %v7646 = vsub.f32 %v7598, %v7627
    %v7647 = vsub.f32 %v7599, %v7629
    %v7648 = vsub.f32 %v7600, %v7631
    %v7649 = vsub.f32 %v7601, %v7633
    %v7650 = vmax.f32 %v7642, 0.0
    %v7651 = vmax.f32 %v7643, 0.0
    %v7652 = vmax.f32 %v7644, 0.0
    %v7653 = vmax.f32 %v7645, 0.0
    %v7654 = vmax.f32 %v7646, 0.0
    %v7655 = vmax.f32 %v7647, 0.0
    %v7656 = vmax.f32 %v7648, 0.0
    %v7657 = vmax.f32 %v7649, 0.0
    %v7658 = vadd.f32 %v7650, 1e-05
    %v7659 = vadd.f32 %v7651, 1e-05
    %v7660 = vadd.f32 %v7652, 1e-05
    %v7661 = vadd.f32 %v7653, 1e-05
    %v7662 = vadd.f32 %v7654, 1e-05
    %v7663 = vadd.f32 %v7655, 1e-05
    %v7664 = vadd.f32 %v7656, 1e-05
    %v7665 = vadd.f32 %v7657, 1e-05
    %v7666 = vrsqrt.pop %v7658
    %v7667 = vmul.f32 %v7658, %v7666
    %vm7668 = vcmp.eq.f32.partialorder %v7658, inf
    %v7669 = vsel %vm7668, %v7658, %v7667
    %vm7670 = vcmp.eq.f32.partialorder %v7658, 0.0
    %v7671 = vand.u32 %v7658, 2147483648
    %v7672 = vsel %vm7670, %v7671, %v7669
    %v7673 = vrsqrt.pop %v7659
    %v7674 = vmul.f32 %v7659, %v7673
    %vm7675 = vcmp.eq.f32.partialorder %v7659, inf
    %v7676 = vsel %vm7675, %v7659, %v7674
    %vm7677 = vcmp.eq.f32.partialorder %v7659, 0.0
    %v7678 = vand.u32 %v7659, 2147483648
    %v7679 = vsel %vm7677, %v7678, %v7676
    %v7680 = vrsqrt.pop %v7660
    %v7681 = vmul.f32 %v7660, %v7680
    %vm7682 = vcmp.eq.f32.partialorder %v7660, inf
    %v7683 = vsel %vm7682, %v7660, %v7681
    %vm7684 = vcmp.eq.f32.partialorder %v7660, 0.0
    %v7685 = vand.u32 %v7660, 2147483648
    %v7686 = vsel %vm7684, %v7685, %v7683
    %v7687 = vrsqrt.pop %v7661
    %v7688 = vmul.f32 %v7661, %v7687
    %vm7689 = vcmp.eq.f32.partialorder %v7661, inf
    %v7690 = vsel %vm7689, %v7661, %v7688
    %vm7691 = vcmp.eq.f32.partialorder %v7661, 0.0
    %v7692 = vand.u32 %v7661, 2147483648
    %v7693 = vsel %vm7691, %v7692, %v7690
    %v7694 = vrsqrt.pop %v7662
    %v7695 = vmul.f32 %v7662, %v7694
    %vm7696 = vcmp.eq.f32.partialorder %v7662, inf
    %v7697 = vsel %vm7696, %v7662, %v7695
    %vm7698 = vcmp.eq.f32.partialorder %v7662, 0.0
    %v7699 = vand.u32 %v7662, 2147483648
    %v7700 = vsel %vm7698, %v7699, %v7697
    %v7701 = vrsqrt.pop %v7663
    %v7702 = vmul.f32 %v7663, %v7701
    %vm7703 = vcmp.eq.f32.partialorder %v7663, inf
    %v7704 = vsel %vm7703, %v7663, %v7702
    %vm7705 = vcmp.eq.f32.partialorder %v7663, 0.0
    %v7706 = vand.u32 %v7663, 2147483648
    %v7707 = vsel %vm7705, %v7706, %v7704
    %v7708 = vrsqrt.pop %v7664
    %v7709 = vmul.f32 %v7664, %v7708
    %vm7710 = vcmp.eq.f32.partialorder %v7664, inf
    %v7711 = vsel %vm7710, %v7664, %v7709
    %vm7712 = vcmp.eq.f32.partialorder %v7664, 0.0
    %v7713 = vand.u32 %v7664, 2147483648
    %v7714 = vsel %vm7712, %v7713, %v7711
    %v7715 = vrsqrt.pop %v7665
    %v7716 = vmul.f32 %v7665, %v7715
    %vm7717 = vcmp.eq.f32.partialorder %v7665, inf
    %v7718 = vsel %vm7717, %v7665, %v7716
    %vm7719 = vcmp.eq.f32.partialorder %v7665, 0.0
    %v7720 = vand.u32 %v7665, 2147483648
    %v7721 = vsel %vm7719, %v7720, %v7718
    %7722 = vxpose.xlu0.b32.start [1/16] %v7433, 128
    %7723 = vxpose.xlu0.b32.cont [2/16] %v7434, 128
    %7724 = vxpose.xlu0.b32.cont [3/16] %v7435, 128
    %7725 = vxpose.xlu0.b32.cont [4/16] %v7436, 128
    %7726 = vxpose.xlu0.b32.cont [5/16] %v7437, 128
    %7727 = vxpose.xlu0.b32.cont [6/16] %v7438, 128
    %7728 = vxpose.xlu0.b32.cont [7/16] %v7439, 128
    %7729 = vxpose.xlu0.b32.cont [8/16] %v7440, 128
    %7730 = vxpose.xlu0.b32.cont [9/16] 0.0, 128
    %7731 = vxpose.xlu0.b32.cont [10/16] 0.0, 128
    %7732 = vxpose.xlu0.b32.cont [11/16] 0.0, 128
    %7733 = vxpose.xlu0.b32.cont [12/16] 0.0, 128
    %7734 = vxpose.xlu0.b32.cont [13/16] 0.0, 128
    %7735 = vxpose.xlu0.b32.cont [14/16] 0.0, 128
    %7736 = vxpose.xlu0.b32.cont [15/16] 0.0, 128
    %7737 = vxpose.xlu0.b32.end [16/16] 0.0, 128
    %v7738 = vpop.trf.xlu0
    %v7739 = vpop.trf.xlu0
    %v7740 = vpop.trf.xlu0
    %v7741 = vpop.trf.xlu0
    %v7742 = vpop.trf.xlu0
    %v7743 = vpop.trf.xlu0
    %v7744 = vpop.trf.xlu0
    %v7745 = vpop.trf.xlu0
    %v7746 = vpop.trf.xlu0
    %v7747 = vpop.trf.xlu0
    %v7748 = vpop.trf.xlu0
    %v7749 = vpop.trf.xlu0
    %v7750 = vpop.trf.xlu0
    %v7751 = vpop.trf.xlu0
    %v7752 = vpop.trf.xlu0
    %v7753 = vpop.trf.xlu0
    %v7754 = vsel %vm1596, %v7738, -inf
    %v7755 = vsel %vm1596, %v7739, -inf
    %v7756 = vsel %vm1596, %v7740, -inf
    %v7757 = vsel %vm1596, %v7741, -inf
    %v7758 = vsel %vm1597, %v7738, -inf
    %v7759 = vsel %vm1597, %v7739, -inf
    %v7760 = vsel %vm1597, %v7740, -inf
    %v7761 = vsel %vm1597, %v7741, -inf
    %v7762 = vsel %vm1598, %v7738, -inf
    %v7763 = vsel %vm1598, %v7739, -inf
    %v7764 = vsel %vm1598, %v7740, -inf
    %v7765 = vsel %vm1598, %v7741, -inf
    %v7766 = vsel %vm1599, %v7738, -inf
    %v7767 = vsel %vm1599, %v7739, -inf
    %v7768 = vsel %vm1599, %v7740, -inf
    %v7769 = vsel %vm1599, %v7741, -inf
    %v7770 = vsel %vm1600, %v7738, -inf
    %v7771 = vsel %vm1600, %v7739, -inf
    %v7772 = vsel %vm1600, %v7740, -inf
    %v7773 = vsel %vm1600, %v7741, -inf
    %v7774 = vsel %vm1601, %v7738, -inf
    %v7775 = vsel %vm1601, %v7739, -inf
    %v7776 = vsel %vm1601, %v7740, -inf
    %v7777 = vsel %vm1601, %v7741, -inf
    %v7778 = vsel %vm1602, %v7738, -inf
    %v7779 = vsel %vm1602, %v7739, -inf
    %v7780 = vsel %vm1602, %v7740, -inf
    %v7781 = vsel %vm1602, %v7741, -inf
    %v7782 = vsel %vm1603, %v7738, -inf
    %v7783 = vsel %vm1603, %v7739, -inf
    %v7784 = vsel %vm1603, %v7740, -inf
    %v7785 = vsel %vm1603, %v7741, -inf
    %v7786 = vsel %vm1604, %v7738, -inf
    %v7787 = vsel %vm1604, %v7739, -inf
    %v7788 = vsel %vm1604, %v7740, -inf
    %v7789 = vsel %vm1604, %v7741, -inf
    %v7790 = vsel %vm1605, %v7738, -inf
    %v7791 = vsel %vm1605, %v7739, -inf
    %v7792 = vsel %vm1605, %v7740, -inf
    %v7793 = vsel %vm1605, %v7741, -inf
    %v7794 = vsel %vm1606, %v7738, -inf
    %v7795 = vsel %vm1606, %v7739, -inf
    %v7796 = vsel %vm1606, %v7740, -inf
    %v7797 = vsel %vm1606, %v7741, -inf
    %v7798 = vsel %vm1607, %v7738, -inf
    %v7799 = vsel %vm1607, %v7739, -inf
    %v7800 = vsel %vm1607, %v7740, -inf
    %v7801 = vsel %vm1607, %v7741, -inf
    %v7802 = vsel %vm1608, %v7738, -inf
    %v7803 = vsel %vm1608, %v7739, -inf
    %v7804 = vsel %vm1608, %v7740, -inf
    %v7805 = vsel %vm1608, %v7741, -inf
    %v7806 = vsel %vm1609, %v7738, -inf
    %v7807 = vsel %vm1609, %v7739, -inf
    %v7808 = vsel %vm1609, %v7740, -inf
    %v7809 = vsel %vm1609, %v7741, -inf
    %v7810 = vsel %vm1610, %v7738, -inf
    %v7811 = vsel %vm1610, %v7739, -inf
    %v7812 = vsel %vm1610, %v7740, -inf
    %v7813 = vsel %vm1610, %v7741, -inf
    %v7814 = vsel %vm1611, %v7738, -inf
    %v7815 = vsel %vm1611, %v7739, -inf
    %v7816 = vsel %vm1611, %v7740, -inf
    %v7817 = vsel %vm1611, %v7741, -inf
    %v7818 = vsel %vm1612, %v7738, -inf
    %v7819 = vsel %vm1612, %v7739, -inf
    %v7820 = vsel %vm1612, %v7740, -inf
    %v7821 = vsel %vm1612, %v7741, -inf
    %v7822 = vsel %vm1613, %v7738, -inf
    %v7823 = vsel %vm1613, %v7739, -inf
    %v7824 = vsel %vm1613, %v7740, -inf
    %v7825 = vsel %vm1613, %v7741, -inf
    %v7826 = vsel %vm1614, %v7738, -inf
    %v7827 = vsel %vm1614, %v7739, -inf
    %v7828 = vsel %vm1614, %v7740, -inf
    %v7829 = vsel %vm1614, %v7741, -inf
    %v7830 = vsel %vm1615, %v7738, -inf
    %v7831 = vsel %vm1615, %v7739, -inf
    %v7832 = vsel %vm1615, %v7740, -inf
    %v7833 = vsel %vm1615, %v7741, -inf
    %v7834 = vsel %vm1616, %v7738, -inf
    %v7835 = vsel %vm1616, %v7739, -inf
    %v7836 = vsel %vm1616, %v7740, -inf
    %v7837 = vsel %vm1616, %v7741, -inf
    %v7838 = vsel %vm1617, %v7738, -inf
    %v7839 = vsel %vm1617, %v7739, -inf
    %v7840 = vsel %vm1617, %v7740, -inf
    %v7841 = vsel %vm1617, %v7741, -inf
    %v7842 = vsel %vm1618, %v7738, -inf
    %v7843 = vsel %vm1618, %v7739, -inf
    %v7844 = vsel %vm1618, %v7740, -inf
    %v7845 = vsel %vm1618, %v7741, -inf
    %v7846 = vsel %vm1619, %v7738, -inf
    %v7847 = vsel %vm1619, %v7739, -inf
    %v7848 = vsel %vm1619, %v7740, -inf
    %v7849 = vsel %vm1619, %v7741, -inf
    %v7850 = vsel %vm1620, %v7738, -inf
    %v7851 = vsel %vm1620, %v7739, -inf
    %v7852 = vsel %vm1620, %v7740, -inf
    %v7853 = vsel %vm1620, %v7741, -inf
    %v7854 = vsel %vm1621, %v7738, -inf
    %v7855 = vsel %vm1621, %v7739, -inf
    %v7856 = vsel %vm1621, %v7740, -inf
    %v7857 = vsel %vm1621, %v7741, -inf
    %v7858 = vsel %vm1622, %v7738, -inf
    %v7859 = vsel %vm1622, %v7739, -inf
    %v7860 = vsel %vm1622, %v7740, -inf
    %v7861 = vsel %vm1622, %v7741, -inf
    %v7862 = vsel %vm1623, %v7738, -inf
    %v7863 = vsel %vm1623, %v7739, -inf
    %v7864 = vsel %vm1623, %v7740, -inf
    %v7865 = vsel %vm1623, %v7741, -inf
    %v7866 = vsel %vm1624, %v7738, -inf
    %v7867 = vsel %vm1624, %v7739, -inf
    %v7868 = vsel %vm1624, %v7740, -inf
    %v7869 = vsel %vm1624, %v7741, -inf
    %v7870 = vsel %vm1625, %v7738, -inf
    %v7871 = vsel %vm1625, %v7739, -inf
    %v7872 = vsel %vm1625, %v7740, -inf
    %v7873 = vsel %vm1625, %v7741, -inf
    %v7874 = vsel %vm1626, %v7738, -inf
    %v7875 = vsel %vm1626, %v7739, -inf
    %v7876 = vsel %vm1626, %v7740, -inf
    %v7877 = vsel %vm1626, %v7741, -inf
    %v7878 = vsel %vm1627, %v7738, -inf
    %v7879 = vsel %vm1627, %v7739, -inf
    %v7880 = vsel %vm1627, %v7740, -inf
    %v7881 = vsel %vm1627, %v7741, -inf
    %v7882 = vsel %vm1628, %v7738, -inf
    %v7883 = vsel %vm1628, %v7739, -inf
    %v7884 = vsel %vm1628, %v7740, -inf
    %v7885 = vsel %vm1628, %v7741, -inf
    %v7886 = vsel %vm1629, %v7738, -inf
    %v7887 = vsel %vm1629, %v7739, -inf
    %v7888 = vsel %vm1629, %v7740, -inf
    %v7889 = vsel %vm1629, %v7741, -inf
    %v7890 = vsel %vm1630, %v7738, -inf
    %v7891 = vsel %vm1630, %v7739, -inf
    %v7892 = vsel %vm1630, %v7740, -inf
    %v7893 = vsel %vm1630, %v7741, -inf
    %v7894 = vsel %vm1631, %v7738, -inf
    %v7895 = vsel %vm1631, %v7739, -inf
    %v7896 = vsel %vm1631, %v7740, -inf
    %v7897 = vsel %vm1631, %v7741, -inf
    %v7898 = vsel %vm1632, %v7738, -inf
    %v7899 = vsel %vm1632, %v7739, -inf
    %v7900 = vsel %vm1632, %v7740, -inf
    %v7901 = vsel %vm1632, %v7741, -inf
    %v7902 = vsel %vm1633, %v7738, -inf
    %v7903 = vsel %vm1633, %v7739, -inf
    %v7904 = vsel %vm1633, %v7740, -inf
    %v7905 = vsel %vm1633, %v7741, -inf
    %v7906 = vsel %vm1634, %v7738, -inf
    %v7907 = vsel %vm1634, %v7739, -inf
    %v7908 = vsel %vm1634, %v7740, -inf
    %v7909 = vsel %vm1634, %v7741, -inf
    %v7910 = vsel %vm1635, %v7738, -inf
    %v7911 = vsel %vm1635, %v7739, -inf
    %v7912 = vsel %vm1635, %v7740, -inf
    %v7913 = vsel %vm1635, %v7741, -inf
    %v7914 = vsel %vm1636, %v7738, -inf
    %v7915 = vsel %vm1636, %v7739, -inf
    %v7916 = vsel %vm1636, %v7740, -inf
    %v7917 = vsel %vm1636, %v7741, -inf
    %v7918 = vsel %vm1637, %v7738, -inf
    %v7919 = vsel %vm1637, %v7739, -inf
    %v7920 = vsel %vm1637, %v7740, -inf
    %v7921 = vsel %vm1637, %v7741, -inf
    %v7922 = vsel %vm1638, %v7738, -inf
    %v7923 = vsel %vm1638, %v7739, -inf
    %v7924 = vsel %vm1638, %v7740, -inf
    %v7925 = vsel %vm1638, %v7741, -inf
    %v7926 = vsel %vm1639, %v7738, -inf
    %v7927 = vsel %vm1639, %v7739, -inf
    %v7928 = vsel %vm1639, %v7740, -inf
    %v7929 = vsel %vm1639, %v7741, -inf
    %v7930 = vsel %vm1640, %v7738, -inf
    %v7931 = vsel %vm1640, %v7739, -inf
    %v7932 = vsel %vm1640, %v7740, -inf
    %v7933 = vsel %vm1640, %v7741, -inf
    %v7934 = vsel %vm1641, %v7738, -inf
    %v7935 = vsel %vm1641, %v7739, -inf
    %v7936 = vsel %vm1641, %v7740, -inf
    %v7937 = vsel %vm1641, %v7741, -inf
    %v7938 = vsel %vm1642, %v7738, -inf
    %v7939 = vsel %vm1642, %v7739, -inf
    %v7940 = vsel %vm1642, %v7740, -inf
    %v7941 = vsel %vm1642, %v7741, -inf
    %v7942 = vsel %vm1643, %v7738, -inf
    %v7943 = vsel %vm1643, %v7739, -inf
    %v7944 = vsel %vm1643, %v7740, -inf
    %v7945 = vsel %vm1643, %v7741, -inf
    %v7946 = vsel %vm1644, %v7738, -inf
    %v7947 = vsel %vm1644, %v7739, -inf
    %v7948 = vsel %vm1644, %v7740, -inf
    %v7949 = vsel %vm1644, %v7741, -inf
    %v7950 = vsel %vm1645, %v7738, -inf
    %v7951 = vsel %vm1645, %v7739, -inf
    %v7952 = vsel %vm1645, %v7740, -inf
    %v7953 = vsel %vm1645, %v7741, -inf
    %v7954 = vsel %vm1646, %v7738, -inf
    %v7955 = vsel %vm1646, %v7739, -inf
    %v7956 = vsel %vm1646, %v7740, -inf
    %v7957 = vsel %vm1646, %v7741, -inf
    %v7958 = vsel %vm1647, %v7738, -inf
    %v7959 = vsel %vm1647, %v7739, -inf
    %v7960 = vsel %vm1647, %v7740, -inf
    %v7961 = vsel %vm1647, %v7741, -inf
    %v7962 = vsel %vm1648, %v7738, -inf
    %v7963 = vsel %vm1648, %v7739, -inf
    %v7964 = vsel %vm1648, %v7740, -inf
    %v7965 = vsel %vm1648, %v7741, -inf
    %v7966 = vsel %vm1649, %v7738, -inf
    %v7967 = vsel %vm1649, %v7739, -inf
    %v7968 = vsel %vm1649, %v7740, -inf
    %v7969 = vsel %vm1649, %v7741, -inf
    %v7970 = vsel %vm1650, %v7738, -inf
    %v7971 = vsel %vm1650, %v7739, -inf
    %v7972 = vsel %vm1650, %v7740, -inf
    %v7973 = vsel %vm1650, %v7741, -inf
    %v7974 = vsel %vm1651, %v7738, -inf
    %v7975 = vsel %vm1651, %v7739, -inf
    %v7976 = vsel %vm1651, %v7740, -inf
    %v7977 = vsel %vm1651, %v7741, -inf
    %v7978 = vsel %vm1652, %v7738, -inf
    %v7979 = vsel %vm1652, %v7739, -inf
    %v7980 = vsel %vm1652, %v7740, -inf
    %v7981 = vsel %vm1652, %v7741, -inf
    %v7982 = vsel %vm1653, %v7738, -inf
    %v7983 = vsel %vm1653, %v7739, -inf
    %v7984 = vsel %vm1653, %v7740, -inf
    %v7985 = vsel %vm1653, %v7741, -inf
    %v7986 = vsel %vm1654, %v7738, -inf
    %v7987 = vsel %vm1654, %v7739, -inf
    %v7988 = vsel %vm1654, %v7740, -inf
    %v7989 = vsel %vm1654, %v7741, -inf
    %v7990 = vsel %vm1655, %v7738, -inf
    %v7991 = vsel %vm1655, %v7739, -inf
    %v7992 = vsel %vm1655, %v7740, -inf
    %v7993 = vsel %vm1655, %v7741, -inf
    %v7994 = vsel %vm1656, %v7738, -inf
    %v7995 = vsel %vm1656, %v7739, -inf
    %v7996 = vsel %vm1656, %v7740, -inf
    %v7997 = vsel %vm1656, %v7741, -inf
    %v7998 = vsel %vm1657, %v7738, -inf
    %v7999 = vsel %vm1657, %v7739, -inf
    %v8000 = vsel %vm1657, %v7740, -inf
    %v8001 = vsel %vm1657, %v7741, -inf
    %v8002 = vsel %vm1658, %v7738, -inf
    %v8003 = vsel %vm1658, %v7739, -inf
    %v8004 = vsel %vm1658, %v7740, -inf
    %v8005 = vsel %vm1658, %v7741, -inf
    %v8006 = vsel %vm1659, %v7738, -inf
    %v8007 = vsel %vm1659, %v7739, -inf
    %v8008 = vsel %vm1659, %v7740, -inf
    %v8009 = vsel %vm1659, %v7741, -inf
    %v8010 = vsel %vm85, %v7754, -inf
    %8011 = vmax.xlane.f32.xlu0 %v8010
    %v8012 = vpop.xlane.xlu0 %8011
    %v8013 = vsel %vm85, %v7755, -inf
    %8014 = vmax.xlane.f32.xlu0 %v8013
    %v8015 = vpop.xlane.xlu0 %8014
    %v8016 = vsel %vm85, %v7756, -inf
    %8017 = vmax.xlane.f32.xlu0 %v8016
    %v8018 = vpop.xlane.xlu0 %8017
    %v8019 = vsel %vm85, %v7757, -inf
    %8020 = vmax.xlane.f32.xlu0 %v8019
    %v8021 = vpop.xlane.xlu0 %8020
    %v8022 = vsel %vm85, %v7758, -inf
    %8023 = vmax.xlane.f32.xlu0 %v8022
    %v8024 = vpop.xlane.xlu0 %8023
    %v8025 = vsel %vm85, %v7759, -inf
    %8026 = vmax.xlane.f32.xlu0 %v8025
    %v8027 = vpop.xlane.xlu0 %8026
    %v8028 = vsel %vm85, %v7760, -inf
    %8029 = vmax.xlane.f32.xlu0 %v8028
    %v8030 = vpop.xlane.xlu0 %8029
    %v8031 = vsel %vm85, %v7761, -inf
    %8032 = vmax.xlane.f32.xlu0 %v8031
    %v8033 = vpop.xlane.xlu0 %8032
    %v8034 = vsel %vm85, %v7762, -inf
    %8035 = vmax.xlane.f32.xlu0 %v8034
    %v8036 = vpop.xlane.xlu0 %8035
    %v8037 = vsel %vm85, %v7763, -inf
    %8038 = vmax.xlane.f32.xlu0 %v8037
    %v8039 = vpop.xlane.xlu0 %8038
    %v8040 = vsel %vm85, %v7764, -inf
    %8041 = vmax.xlane.f32.xlu0 %v8040
    %v8042 = vpop.xlane.xlu0 %8041
    %v8043 = vsel %vm85, %v7765, -inf
    %8044 = vmax.xlane.f32.xlu0 %v8043
    %v8045 = vpop.xlane.xlu0 %8044
    %v8046 = vsel %vm85, %v7766, -inf
    %8047 = vmax.xlane.f32.xlu0 %v8046
    %v8048 = vpop.xlane.xlu0 %8047
    %v8049 = vsel %vm85, %v7767, -inf
    %8050 = vmax.xlane.f32.xlu0 %v8049
    %v8051 = vpop.xlane.xlu0 %8050
    %v8052 = vsel %vm85, %v7768, -inf
    %8053 = vmax.xlane.f32.xlu0 %v8052
    %v8054 = vpop.xlane.xlu0 %8053
    %v8055 = vsel %vm85, %v7769, -inf
    %8056 = vmax.xlane.f32.xlu0 %v8055
    %v8057 = vpop.xlane.xlu0 %8056
    %v8058 = vsel %vm85, %v7770, -inf
    %8059 = vmax.xlane.f32.xlu0 %v8058
    %v8060 = vpop.xlane.xlu0 %8059
    %v8061 = vsel %vm85, %v7771, -inf
    %8062 = vmax.xlane.f32.xlu0 %v8061
    %v8063 = vpop.xlane.xlu0 %8062
    %v8064 = vsel %vm85, %v7772, -inf
    %8065 = vmax.xlane.f32.xlu0 %v8064
    %v8066 = vpop.xlane.xlu0 %8065
    %v8067 = vsel %vm85, %v7773, -inf
    %8068 = vmax.xlane.f32.xlu0 %v8067
    %v8069 = vpop.xlane.xlu0 %8068
    %v8070 = vsel %vm85, %v7774, -inf
    %8071 = vmax.xlane.f32.xlu0 %v8070
    %v8072 = vpop.xlane.xlu0 %8071
    %v8073 = vsel %vm85, %v7775, -inf
    %8074 = vmax.xlane.f32.xlu0 %v8073
    %v8075 = vpop.xlane.xlu0 %8074
    %v8076 = vsel %vm85, %v7776, -inf
    %8077 = vmax.xlane.f32.xlu0 %v8076
    %v8078 = vpop.xlane.xlu0 %8077
    %v8079 = vsel %vm85, %v7777, -inf
    %8080 = vmax.xlane.f32.xlu0 %v8079
    %v8081 = vpop.xlane.xlu0 %8080
    %v8082 = vsel %vm85, %v7778, -inf
    %8083 = vmax.xlane.f32.xlu0 %v8082
    %v8084 = vpop.xlane.xlu0 %8083
    %v8085 = vsel %vm85, %v7779, -inf
    %8086 = vmax.xlane.f32.xlu0 %v8085
    %v8087 = vpop.xlane.xlu0 %8086
    %v8088 = vsel %vm85, %v7780, -inf
    %8089 = vmax.xlane.f32.xlu0 %v8088
    %v8090 = vpop.xlane.xlu0 %8089
    %v8091 = vsel %vm85, %v7781, -inf
    %8092 = vmax.xlane.f32.xlu0 %v8091
    %v8093 = vpop.xlane.xlu0 %8092
    %v8094 = vsel %vm85, %v7782, -inf
    %8095 = vmax.xlane.f32.xlu0 %v8094
    %v8096 = vpop.xlane.xlu0 %8095
    %v8097 = vsel %vm85, %v7783, -inf
    %8098 = vmax.xlane.f32.xlu0 %v8097
    %v8099 = vpop.xlane.xlu0 %8098
    %v8100 = vsel %vm85, %v7784, -inf
    %8101 = vmax.xlane.f32.xlu0 %v8100
    %v8102 = vpop.xlane.xlu0 %8101
    %v8103 = vsel %vm85, %v7785, -inf
    %8104 = vmax.xlane.f32.xlu0 %v8103
    %v8105 = vpop.xlane.xlu0 %8104
    %v8106 = vsel %vm85, %v7786, -inf
    %8107 = vmax.xlane.f32.xlu0 %v8106
    %v8108 = vpop.xlane.xlu0 %8107
    %v8109 = vsel %vm85, %v7787, -inf
    %8110 = vmax.xlane.f32.xlu0 %v8109
    %v8111 = vpop.xlane.xlu0 %8110
    %v8112 = vsel %vm85, %v7788, -inf
    %8113 = vmax.xlane.f32.xlu0 %v8112
    %v8114 = vpop.xlane.xlu0 %8113
    %v8115 = vsel %vm85, %v7789, -inf
    %8116 = vmax.xlane.f32.xlu0 %v8115
    %v8117 = vpop.xlane.xlu0 %8116
    %v8118 = vsel %vm85, %v7790, -inf
    %8119 = vmax.xlane.f32.xlu0 %v8118
    %v8120 = vpop.xlane.xlu0 %8119
    %v8121 = vsel %vm85, %v7791, -inf
    %8122 = vmax.xlane.f32.xlu0 %v8121
    %v8123 = vpop.xlane.xlu0 %8122
    %v8124 = vsel %vm85, %v7792, -inf
    %8125 = vmax.xlane.f32.xlu0 %v8124
    %v8126 = vpop.xlane.xlu0 %8125
    %v8127 = vsel %vm85, %v7793, -inf
    %8128 = vmax.xlane.f32.xlu0 %v8127
    %v8129 = vpop.xlane.xlu0 %8128
    %v8130 = vsel %vm85, %v7794, -inf
    %8131 = vmax.xlane.f32.xlu0 %v8130
    %v8132 = vpop.xlane.xlu0 %8131
    %v8133 = vsel %vm85, %v7795, -inf
    %8134 = vmax.xlane.f32.xlu0 %v8133
    %v8135 = vpop.xlane.xlu0 %8134
    %v8136 = vsel %vm85, %v7796, -inf
    %8137 = vmax.xlane.f32.xlu0 %v8136
    %v8138 = vpop.xlane.xlu0 %8137
    %v8139 = vsel %vm85, %v7797, -inf
    %8140 = vmax.xlane.f32.xlu0 %v8139
    %v8141 = vpop.xlane.xlu0 %8140
    %v8142 = vsel %vm85, %v7798, -inf
    %8143 = vmax.xlane.f32.xlu0 %v8142
    %v8144 = vpop.xlane.xlu0 %8143
    %v8145 = vsel %vm85, %v7799, -inf
    %8146 = vmax.xlane.f32.xlu0 %v8145
    %v8147 = vpop.xlane.xlu0 %8146
    %v8148 = vsel %vm85, %v7800, -inf
    %8149 = vmax.xlane.f32.xlu0 %v8148
    %v8150 = vpop.xlane.xlu0 %8149
    %v8151 = vsel %vm85, %v7801, -inf
    %8152 = vmax.xlane.f32.xlu0 %v8151
    %v8153 = vpop.xlane.xlu0 %8152
    %v8154 = vsel %vm85, %v7802, -inf
    %8155 = vmax.xlane.f32.xlu0 %v8154
    %v8156 = vpop.xlane.xlu0 %8155
    %v8157 = vsel %vm85, %v7803, -inf
    %8158 = vmax.xlane.f32.xlu0 %v8157
    %v8159 = vpop.xlane.xlu0 %8158
    %v8160 = vsel %vm85, %v7804, -inf
    %8161 = vmax.xlane.f32.xlu0 %v8160
    %v8162 = vpop.xlane.xlu0 %8161
    %v8163 = vsel %vm85, %v7805, -inf
    %8164 = vmax.xlane.f32.xlu0 %v8163
    %v8165 = vpop.xlane.xlu0 %8164
    %v8166 = vsel %vm85, %v7806, -inf
    %8167 = vmax.xlane.f32.xlu0 %v8166
    %v8168 = vpop.xlane.xlu0 %8167
    %v8169 = vsel %vm85, %v7807, -inf
    %8170 = vmax.xlane.f32.xlu0 %v8169
    %v8171 = vpop.xlane.xlu0 %8170
    %v8172 = vsel %vm85, %v7808, -inf
    %8173 = vmax.xlane.f32.xlu0 %v8172
    %v8174 = vpop.xlane.xlu0 %8173
    %v8175 = vsel %vm85, %v7809, -inf
    %8176 = vmax.xlane.f32.xlu0 %v8175
    %v8177 = vpop.xlane.xlu0 %8176
    %v8178 = vsel %vm85, %v7810, -inf
    %8179 = vmax.xlane.f32.xlu0 %v8178
    %v8180 = vpop.xlane.xlu0 %8179
    %v8181 = vsel %vm85, %v7811, -inf
    %8182 = vmax.xlane.f32.xlu0 %v8181
    %v8183 = vpop.xlane.xlu0 %8182
    %v8184 = vsel %vm85, %v7812, -inf
    %8185 = vmax.xlane.f32.xlu0 %v8184
    %v8186 = vpop.xlane.xlu0 %8185
    %v8187 = vsel %vm85, %v7813, -inf
    %8188 = vmax.xlane.f32.xlu0 %v8187
    %v8189 = vpop.xlane.xlu0 %8188
    %v8190 = vsel %vm85, %v7814, -inf
    %8191 = vmax.xlane.f32.xlu0 %v8190
    %v8192 = vpop.xlane.xlu0 %8191
    %v8193 = vsel %vm85, %v7815, -inf
    %8194 = vmax.xlane.f32.xlu0 %v8193
    %v8195 = vpop.xlane.xlu0 %8194
    %v8196 = vsel %vm85, %v7816, -inf
    %8197 = vmax.xlane.f32.xlu0 %v8196
    %v8198 = vpop.xlane.xlu0 %8197
    %v8199 = vsel %vm85, %v7817, -inf
    %8200 = vmax.xlane.f32.xlu0 %v8199
    %v8201 = vpop.xlane.xlu0 %8200
    %v8202 = vsel %vm85, %v7818, -inf
    %8203 = vmax.xlane.f32.xlu0 %v8202
    %v8204 = vpop.xlane.xlu0 %8203
    %v8205 = vsel %vm85, %v7819, -inf
    %8206 = vmax.xlane.f32.xlu0 %v8205
    %v8207 = vpop.xlane.xlu0 %8206
    %v8208 = vsel %vm85, %v7820, -inf
    %8209 = vmax.xlane.f32.xlu0 %v8208
    %v8210 = vpop.xlane.xlu0 %8209
    %v8211 = vsel %vm85, %v7821, -inf
    %8212 = vmax.xlane.f32.xlu0 %v8211
    %v8213 = vpop.xlane.xlu0 %8212
    %v8214 = vsel %vm85, %v7822, -inf
    %8215 = vmax.xlane.f32.xlu0 %v8214
    %v8216 = vpop.xlane.xlu0 %8215
    %v8217 = vsel %vm85, %v7823, -inf
    %8218 = vmax.xlane.f32.xlu0 %v8217
    %v8219 = vpop.xlane.xlu0 %8218
    %v8220 = vsel %vm85, %v7824, -inf
    %8221 = vmax.xlane.f32.xlu0 %v8220
    %v8222 = vpop.xlane.xlu0 %8221
    %v8223 = vsel %vm85, %v7825, -inf
    %8224 = vmax.xlane.f32.xlu0 %v8223
    %v8225 = vpop.xlane.xlu0 %8224
    %v8226 = vsel %vm85, %v7826, -inf
    %8227 = vmax.xlane.f32.xlu0 %v8226
    %v8228 = vpop.xlane.xlu0 %8227
    %v8229 = vsel %vm85, %v7827, -inf
    %8230 = vmax.xlane.f32.xlu0 %v8229
    %v8231 = vpop.xlane.xlu0 %8230
    %v8232 = vsel %vm85, %v7828, -inf
    %8233 = vmax.xlane.f32.xlu0 %v8232
    %v8234 = vpop.xlane.xlu0 %8233
    %v8235 = vsel %vm85, %v7829, -inf
    %8236 = vmax.xlane.f32.xlu0 %v8235
    %v8237 = vpop.xlane.xlu0 %8236
    %v8238 = vsel %vm85, %v7830, -inf
    %8239 = vmax.xlane.f32.xlu0 %v8238
    %v8240 = vpop.xlane.xlu0 %8239
    %v8241 = vsel %vm85, %v7831, -inf
    %8242 = vmax.xlane.f32.xlu0 %v8241
    %v8243 = vpop.xlane.xlu0 %8242
    %v8244 = vsel %vm85, %v7832, -inf
    %8245 = vmax.xlane.f32.xlu0 %v8244
    %v8246 = vpop.xlane.xlu0 %8245
    %v8247 = vsel %vm85, %v7833, -inf
    %8248 = vmax.xlane.f32.xlu0 %v8247
    %v8249 = vpop.xlane.xlu0 %8248
    %v8250 = vsel %vm85, %v7834, -inf
    %8251 = vmax.xlane.f32.xlu0 %v8250
    %v8252 = vpop.xlane.xlu0 %8251
    %v8253 = vsel %vm85, %v7835, -inf
    %8254 = vmax.xlane.f32.xlu0 %v8253
    %v8255 = vpop.xlane.xlu0 %8254
    %v8256 = vsel %vm85, %v7836, -inf
    %8257 = vmax.xlane.f32.xlu0 %v8256
    %v8258 = vpop.xlane.xlu0 %8257
    %v8259 = vsel %vm85, %v7837, -inf
    %8260 = vmax.xlane.f32.xlu0 %v8259
    %v8261 = vpop.xlane.xlu0 %8260
    %v8262 = vsel %vm85, %v7838, -inf
    %8263 = vmax.xlane.f32.xlu0 %v8262
    %v8264 = vpop.xlane.xlu0 %8263
    %v8265 = vsel %vm85, %v7839, -inf
    %8266 = vmax.xlane.f32.xlu0 %v8265
    %v8267 = vpop.xlane.xlu0 %8266
    %v8268 = vsel %vm85, %v7840, -inf
    %8269 = vmax.xlane.f32.xlu0 %v8268
    %v8270 = vpop.xlane.xlu0 %8269
    %v8271 = vsel %vm85, %v7841, -inf
    %8272 = vmax.xlane.f32.xlu0 %v8271
    %v8273 = vpop.xlane.xlu0 %8272
    %v8274 = vsel %vm85, %v7842, -inf
    %8275 = vmax.xlane.f32.xlu0 %v8274
    %v8276 = vpop.xlane.xlu0 %8275
    %v8277 = vsel %vm85, %v7843, -inf
    %8278 = vmax.xlane.f32.xlu0 %v8277
    %v8279 = vpop.xlane.xlu0 %8278
    %v8280 = vsel %vm85, %v7844, -inf
    %8281 = vmax.xlane.f32.xlu0 %v8280
    %v8282 = vpop.xlane.xlu0 %8281
    %v8283 = vsel %vm85, %v7845, -inf
    %8284 = vmax.xlane.f32.xlu0 %v8283
    %v8285 = vpop.xlane.xlu0 %8284
    %v8286 = vsel %vm85, %v7846, -inf
    %8287 = vmax.xlane.f32.xlu0 %v8286
    %v8288 = vpop.xlane.xlu0 %8287
    %v8289 = vsel %vm85, %v7847, -inf
    %8290 = vmax.xlane.f32.xlu0 %v8289
    %v8291 = vpop.xlane.xlu0 %8290
    %v8292 = vsel %vm85, %v7848, -inf
    %8293 = vmax.xlane.f32.xlu0 %v8292
    %v8294 = vpop.xlane.xlu0 %8293
    %v8295 = vsel %vm85, %v7849, -inf
    %8296 = vmax.xlane.f32.xlu0 %v8295
    %v8297 = vpop.xlane.xlu0 %8296
    %v8298 = vsel %vm85, %v7850, -inf
    %8299 = vmax.xlane.f32.xlu0 %v8298
    %v8300 = vpop.xlane.xlu0 %8299
    %v8301 = vsel %vm85, %v7851, -inf
    %8302 = vmax.xlane.f32.xlu0 %v8301
    %v8303 = vpop.xlane.xlu0 %8302
    %v8304 = vsel %vm85, %v7852, -inf
    %8305 = vmax.xlane.f32.xlu0 %v8304
    %v8306 = vpop.xlane.xlu0 %8305
    %v8307 = vsel %vm85, %v7853, -inf
    %8308 = vmax.xlane.f32.xlu0 %v8307
    %v8309 = vpop.xlane.xlu0 %8308
    %v8310 = vsel %vm85, %v7854, -inf
    %8311 = vmax.xlane.f32.xlu0 %v8310
    %v8312 = vpop.xlane.xlu0 %8311
    %v8313 = vsel %vm85, %v7855, -inf
    %8314 = vmax.xlane.f32.xlu0 %v8313
    %v8315 = vpop.xlane.xlu0 %8314
    %v8316 = vsel %vm85, %v7856, -inf
    %8317 = vmax.xlane.f32.xlu0 %v8316
    %v8318 = vpop.xlane.xlu0 %8317
    %v8319 = vsel %vm85, %v7857, -inf
    %8320 = vmax.xlane.f32.xlu0 %v8319
    %v8321 = vpop.xlane.xlu0 %8320
    %v8322 = vsel %vm85, %v7858, -inf
    %8323 = vmax.xlane.f32.xlu0 %v8322
    %v8324 = vpop.xlane.xlu0 %8323
    %v8325 = vsel %vm85, %v7859, -inf
    %8326 = vmax.xlane.f32.xlu0 %v8325
    %v8327 = vpop.xlane.xlu0 %8326
    %v8328 = vsel %vm85, %v7860, -inf
    %8329 = vmax.xlane.f32.xlu0 %v8328
    %v8330 = vpop.xlane.xlu0 %8329
    %v8331 = vsel %vm85, %v7861, -inf
    %8332 = vmax.xlane.f32.xlu0 %v8331
    %v8333 = vpop.xlane.xlu0 %8332
    %v8334 = vsel %vm85, %v7862, -inf
    %8335 = vmax.xlane.f32.xlu0 %v8334
    %v8336 = vpop.xlane.xlu0 %8335
    %v8337 = vsel %vm85, %v7863, -inf
    %8338 = vmax.xlane.f32.xlu0 %v8337
    %v8339 = vpop.xlane.xlu0 %8338
    %v8340 = vsel %vm85, %v7864, -inf
    %8341 = vmax.xlane.f32.xlu0 %v8340
    %v8342 = vpop.xlane.xlu0 %8341
    %v8343 = vsel %vm85, %v7865, -inf
    %8344 = vmax.xlane.f32.xlu0 %v8343
    %v8345 = vpop.xlane.xlu0 %8344
    %v8346 = vsel %vm85, %v7866, -inf
    %8347 = vmax.xlane.f32.xlu0 %v8346
    %v8348 = vpop.xlane.xlu0 %8347
    %v8349 = vsel %vm85, %v7867, -inf
    %8350 = vmax.xlane.f32.xlu0 %v8349
    %v8351 = vpop.xlane.xlu0 %8350
    %v8352 = vsel %vm85, %v7868, -inf
    %8353 = vmax.xlane.f32.xlu0 %v8352
    %v8354 = vpop.xlane.xlu0 %8353
    %v8355 = vsel %vm85, %v7869, -inf
    %8356 = vmax.xlane.f32.xlu0 %v8355
    %v8357 = vpop.xlane.xlu0 %8356
    %v8358 = vsel %vm85, %v7870, -inf
    %8359 = vmax.xlane.f32.xlu0 %v8358
    %v8360 = vpop.xlane.xlu0 %8359
    %v8361 = vsel %vm85, %v7871, -inf
    %8362 = vmax.xlane.f32.xlu0 %v8361
    %v8363 = vpop.xlane.xlu0 %8362
    %v8364 = vsel %vm85, %v7872, -inf
    %8365 = vmax.xlane.f32.xlu0 %v8364
    %v8366 = vpop.xlane.xlu0 %8365
    %v8367 = vsel %vm85, %v7873, -inf
    %8368 = vmax.xlane.f32.xlu0 %v8367
    %v8369 = vpop.xlane.xlu0 %8368
    %v8370 = vsel %vm85, %v7874, -inf
    %8371 = vmax.xlane.f32.xlu0 %v8370
    %v8372 = vpop.xlane.xlu0 %8371
    %v8373 = vsel %vm85, %v7875, -inf
    %8374 = vmax.xlane.f32.xlu0 %v8373
    %v8375 = vpop.xlane.xlu0 %8374
    %v8376 = vsel %vm85, %v7876, -inf
    %8377 = vmax.xlane.f32.xlu0 %v8376
    %v8378 = vpop.xlane.xlu0 %8377
    %v8379 = vsel %vm85, %v7877, -inf
    %8380 = vmax.xlane.f32.xlu0 %v8379
    %v8381 = vpop.xlane.xlu0 %8380
    %v8382 = vsel %vm85, %v7878, -inf
    %8383 = vmax.xlane.f32.xlu0 %v8382
    %v8384 = vpop.xlane.xlu0 %8383
    %v8385 = vsel %vm85, %v7879, -inf
    %8386 = vmax.xlane.f32.xlu0 %v8385
    %v8387 = vpop.xlane.xlu0 %8386
    %v8388 = vsel %vm85, %v7880, -inf
    %8389 = vmax.xlane.f32.xlu0 %v8388
    %v8390 = vpop.xlane.xlu0 %8389
    %v8391 = vsel %vm85, %v7881, -inf
    %8392 = vmax.xlane.f32.xlu0 %v8391
    %v8393 = vpop.xlane.xlu0 %8392
    %v8394 = vsel %vm85, %v7882, -inf
    %8395 = vmax.xlane.f32.xlu0 %v8394
    %v8396 = vpop.xlane.xlu0 %8395
    %v8397 = vsel %vm85, %v7883, -inf
    %8398 = vmax.xlane.f32.xlu0 %v8397
    %v8399 = vpop.xlane.xlu0 %8398
    %v8400 = vsel %vm85, %v7884, -inf
    %8401 = vmax.xlane.f32.xlu0 %v8400
    %v8402 = vpop.xlane.xlu0 %8401
    %v8403 = vsel %vm85, %v7885, -inf
    %8404 = vmax.xlane.f32.xlu0 %v8403
    %v8405 = vpop.xlane.xlu0 %8404
    %v8406 = vsel %vm85, %v7886, -inf
    %8407 = vmax.xlane.f32.xlu0 %v8406
    %v8408 = vpop.xlane.xlu0 %8407
    %v8409 = vsel %vm85, %v7887, -inf
    %8410 = vmax.xlane.f32.xlu0 %v8409
    %v8411 = vpop.xlane.xlu0 %8410
    %v8412 = vsel %vm85, %v7888, -inf
    %8413 = vmax.xlane.f32.xlu0 %v8412
    %v8414 = vpop.xlane.xlu0 %8413
    %v8415 = vsel %vm85, %v7889, -inf
    %8416 = vmax.xlane.f32.xlu0 %v8415
    %v8417 = vpop.xlane.xlu0 %8416
    %v8418 = vsel %vm85, %v7890, -inf
    %8419 = vmax.xlane.f32.xlu0 %v8418
    %v8420 = vpop.xlane.xlu0 %8419
    %v8421 = vsel %vm85, %v7891, -inf
    %8422 = vmax.xlane.f32.xlu0 %v8421
    %v8423 = vpop.xlane.xlu0 %8422
    %v8424 = vsel %vm85, %v7892, -inf
    %8425 = vmax.xlane.f32.xlu0 %v8424
    %v8426 = vpop.xlane.xlu0 %8425
    %v8427 = vsel %vm85, %v7893, -inf
    %8428 = vmax.xlane.f32.xlu0 %v8427
    %v8429 = vpop.xlane.xlu0 %8428
    %v8430 = vsel %vm85, %v7894, -inf
    %8431 = vmax.xlane.f32.xlu0 %v8430
    %v8432 = vpop.xlane.xlu0 %8431
    %v8433 = vsel %vm85, %v7895, -inf
    %8434 = vmax.xlane.f32.xlu0 %v8433
    %v8435 = vpop.xlane.xlu0 %8434
    %v8436 = vsel %vm85, %v7896, -inf
    %8437 = vmax.xlane.f32.xlu0 %v8436
    %v8438 = vpop.xlane.xlu0 %8437
    %v8439 = vsel %vm85, %v7897, -inf
    %8440 = vmax.xlane.f32.xlu0 %v8439
    %v8441 = vpop.xlane.xlu0 %8440
    %v8442 = vsel %vm85, %v7898, -inf
    %8443 = vmax.xlane.f32.xlu0 %v8442
    %v8444 = vpop.xlane.xlu0 %8443
    %v8445 = vsel %vm85, %v7899, -inf
    %8446 = vmax.xlane.f32.xlu0 %v8445
    %v8447 = vpop.xlane.xlu0 %8446
    %v8448 = vsel %vm85, %v7900, -inf
    %8449 = vmax.xlane.f32.xlu0 %v8448
    %v8450 = vpop.xlane.xlu0 %8449
    %v8451 = vsel %vm85, %v7901, -inf
    %8452 = vmax.xlane.f32.xlu0 %v8451
    %v8453 = vpop.xlane.xlu0 %8452
    %v8454 = vsel %vm85, %v7902, -inf
    %8455 = vmax.xlane.f32.xlu0 %v8454
    %v8456 = vpop.xlane.xlu0 %8455
    %v8457 = vsel %vm85, %v7903, -inf
    %8458 = vmax.xlane.f32.xlu0 %v8457
    %v8459 = vpop.xlane.xlu0 %8458
    %v8460 = vsel %vm85, %v7904, -inf
    %8461 = vmax.xlane.f32.xlu0 %v8460
    %v8462 = vpop.xlane.xlu0 %8461
    %v8463 = vsel %vm85, %v7905, -inf
    %8464 = vmax.xlane.f32.xlu0 %v8463
    %v8465 = vpop.xlane.xlu0 %8464
    %v8466 = vsel %vm85, %v7906, -inf
    %8467 = vmax.xlane.f32.xlu0 %v8466
    %v8468 = vpop.xlane.xlu0 %8467
    %v8469 = vsel %vm85, %v7907, -inf
    %8470 = vmax.xlane.f32.xlu0 %v8469
    %v8471 = vpop.xlane.xlu0 %8470
    %v8472 = vsel %vm85, %v7908, -inf
    %8473 = vmax.xlane.f32.xlu0 %v8472
    %v8474 = vpop.xlane.xlu0 %8473
    %v8475 = vsel %vm85, %v7909, -inf
    %8476 = vmax.xlane.f32.xlu0 %v8475
    %v8477 = vpop.xlane.xlu0 %8476
    %v8478 = vsel %vm85, %v7910, -inf
    %8479 = vmax.xlane.f32.xlu0 %v8478
    %v8480 = vpop.xlane.xlu0 %8479
    %v8481 = vsel %vm85, %v7911, -inf
    %8482 = vmax.xlane.f32.xlu0 %v8481
    %v8483 = vpop.xlane.xlu0 %8482
    %v8484 = vsel %vm85, %v7912, -inf
    %8485 = vmax.xlane.f32.xlu0 %v8484
    %v8486 = vpop.xlane.xlu0 %8485
    %v8487 = vsel %vm85, %v7913, -inf
    %8488 = vmax.xlane.f32.xlu0 %v8487
    %v8489 = vpop.xlane.xlu0 %8488
    %v8490 = vsel %vm85, %v7914, -inf
    %8491 = vmax.xlane.f32.xlu0 %v8490
    %v8492 = vpop.xlane.xlu0 %8491
    %v8493 = vsel %vm85, %v7915, -inf
    %8494 = vmax.xlane.f32.xlu0 %v8493
    %v8495 = vpop.xlane.xlu0 %8494
    %v8496 = vsel %vm85, %v7916, -inf
    %8497 = vmax.xlane.f32.xlu0 %v8496
    %v8498 = vpop.xlane.xlu0 %8497
    %v8499 = vsel %vm85, %v7917, -inf
    %8500 = vmax.xlane.f32.xlu0 %v8499
    %v8501 = vpop.xlane.xlu0 %8500
    %v8502 = vsel %vm85, %v7918, -inf
    %8503 = vmax.xlane.f32.xlu0 %v8502
    %v8504 = vpop.xlane.xlu0 %8503
    %v8505 = vsel %vm85, %v7919, -inf
    %8506 = vmax.xlane.f32.xlu0 %v8505
    %v8507 = vpop.xlane.xlu0 %8506
    %v8508 = vsel %vm85, %v7920, -inf
    %8509 = vmax.xlane.f32.xlu0 %v8508
    %v8510 = vpop.xlane.xlu0 %8509
    %v8511 = vsel %vm85, %v7921, -inf
    %8512 = vmax.xlane.f32.xlu0 %v8511
    %v8513 = vpop.xlane.xlu0 %8512
    %v8514 = vsel %vm85, %v7922, -inf
    %8515 = vmax.xlane.f32.xlu0 %v8514
    %v8516 = vpop.xlane.xlu0 %8515
    %v8517 = vsel %vm85, %v7923, -inf
    %8518 = vmax.xlane.f32.xlu0 %v8517
    %v8519 = vpop.xlane.xlu0 %8518
    %v8520 = vsel %vm85, %v7924, -inf
    %8521 = vmax.xlane.f32.xlu0 %v8520
    %v8522 = vpop.xlane.xlu0 %8521
    %v8523 = vsel %vm85, %v7925, -inf
    %8524 = vmax.xlane.f32.xlu0 %v8523
    %v8525 = vpop.xlane.xlu0 %8524
    %v8526 = vsel %vm85, %v7926, -inf
    %8527 = vmax.xlane.f32.xlu0 %v8526
    %v8528 = vpop.xlane.xlu0 %8527
    %v8529 = vsel %vm85, %v7927, -inf
    %8530 = vmax.xlane.f32.xlu0 %v8529
    %v8531 = vpop.xlane.xlu0 %8530
    %v8532 = vsel %vm85, %v7928, -inf
    %8533 = vmax.xlane.f32.xlu0 %v8532
    %v8534 = vpop.xlane.xlu0 %8533
    %v8535 = vsel %vm85, %v7929, -inf
    %8536 = vmax.xlane.f32.xlu0 %v8535
    %v8537 = vpop.xlane.xlu0 %8536
    %v8538 = vsel %vm85, %v7930, -inf
    %8539 = vmax.xlane.f32.xlu0 %v8538
    %v8540 = vpop.xlane.xlu0 %8539
    %v8541 = vsel %vm85, %v7931, -inf
    %8542 = vmax.xlane.f32.xlu0 %v8541
    %v8543 = vpop.xlane.xlu0 %8542
    %v8544 = vsel %vm85, %v7932, -inf
    %8545 = vmax.xlane.f32.xlu0 %v8544
    %v8546 = vpop.xlane.xlu0 %8545
    %v8547 = vsel %vm85, %v7933, -inf
    %8548 = vmax.xlane.f32.xlu0 %v8547
    %v8549 = vpop.xlane.xlu0 %8548
    %v8550 = vsel %vm85, %v7934, -inf
    %8551 = vmax.xlane.f32.xlu0 %v8550
    %v8552 = vpop.xlane.xlu0 %8551
    %v8553 = vsel %vm85, %v7935, -inf
    %8554 = vmax.xlane.f32.xlu0 %v8553
    %v8555 = vpop.xlane.xlu0 %8554
    %v8556 = vsel %vm85, %v7936, -inf
    %8557 = vmax.xlane.f32.xlu0 %v8556
    %v8558 = vpop.xlane.xlu0 %8557
    %v8559 = vsel %vm85, %v7937, -inf
    %8560 = vmax.xlane.f32.xlu0 %v8559
    %v8561 = vpop.xlane.xlu0 %8560
    %v8562 = vsel %vm85, %v7938, -inf
    %8563 = vmax.xlane.f32.xlu0 %v8562
    %v8564 = vpop.xlane.xlu0 %8563
    %v8565 = vsel %vm85, %v7939, -inf
    %8566 = vmax.xlane.f32.xlu0 %v8565
    %v8567 = vpop.xlane.xlu0 %8566
    %v8568 = vsel %vm85, %v7940, -inf
    %8569 = vmax.xlane.f32.xlu0 %v8568
    %v8570 = vpop.xlane.xlu0 %8569
    %v8571 = vsel %vm85, %v7941, -inf
    %8572 = vmax.xlane.f32.xlu0 %v8571
    %v8573 = vpop.xlane.xlu0 %8572
    %v8574 = vsel %vm85, %v7942, -inf
    %8575 = vmax.xlane.f32.xlu0 %v8574
    %v8576 = vpop.xlane.xlu0 %8575
    %v8577 = vsel %vm85, %v7943, -inf
    %8578 = vmax.xlane.f32.xlu0 %v8577
    %v8579 = vpop.xlane.xlu0 %8578
    %v8580 = vsel %vm85, %v7944, -inf
    %8581 = vmax.xlane.f32.xlu0 %v8580
    %v8582 = vpop.xlane.xlu0 %8581
    %v8583 = vsel %vm85, %v7945, -inf
    %8584 = vmax.xlane.f32.xlu0 %v8583
    %v8585 = vpop.xlane.xlu0 %8584
    %v8586 = vsel %vm85, %v7946, -inf
    %8587 = vmax.xlane.f32.xlu0 %v8586
    %v8588 = vpop.xlane.xlu0 %8587
    %v8589 = vsel %vm85, %v7947, -inf
    %8590 = vmax.xlane.f32.xlu0 %v8589
    %v8591 = vpop.xlane.xlu0 %8590
    %v8592 = vsel %vm85, %v7948, -inf
    %8593 = vmax.xlane.f32.xlu0 %v8592
    %v8594 = vpop.xlane.xlu0 %8593
    %v8595 = vsel %vm85, %v7949, -inf
    %8596 = vmax.xlane.f32.xlu0 %v8595
    %v8597 = vpop.xlane.xlu0 %8596
    %v8598 = vsel %vm85, %v7950, -inf
    %8599 = vmax.xlane.f32.xlu0 %v8598
    %v8600 = vpop.xlane.xlu0 %8599
    %v8601 = vsel %vm85, %v7951, -inf
    %8602 = vmax.xlane.f32.xlu0 %v8601
    %v8603 = vpop.xlane.xlu0 %8602
    %v8604 = vsel %vm85, %v7952, -inf
    %8605 = vmax.xlane.f32.xlu0 %v8604
    %v8606 = vpop.xlane.xlu0 %8605
    %v8607 = vsel %vm85, %v7953, -inf
    %8608 = vmax.xlane.f32.xlu0 %v8607
    %v8609 = vpop.xlane.xlu0 %8608
    %v8610 = vsel %vm85, %v7954, -inf
    %8611 = vmax.xlane.f32.xlu0 %v8610
    %v8612 = vpop.xlane.xlu0 %8611
    %v8613 = vsel %vm85, %v7955, -inf
    %8614 = vmax.xlane.f32.xlu0 %v8613
    %v8615 = vpop.xlane.xlu0 %8614
    %v8616 = vsel %vm85, %v7956, -inf
    %8617 = vmax.xlane.f32.xlu0 %v8616
    %v8618 = vpop.xlane.xlu0 %8617
    %v8619 = vsel %vm85, %v7957, -inf
    %8620 = vmax.xlane.f32.xlu0 %v8619
    %v8621 = vpop.xlane.xlu0 %8620
    %v8622 = vsel %vm85, %v7958, -inf
    %8623 = vmax.xlane.f32.xlu0 %v8622
    %v8624 = vpop.xlane.xlu0 %8623
    %v8625 = vsel %vm85, %v7959, -inf
    %8626 = vmax.xlane.f32.xlu0 %v8625
    %v8627 = vpop.xlane.xlu0 %8626
    %v8628 = vsel %vm85, %v7960, -inf
    %8629 = vmax.xlane.f32.xlu0 %v8628
    %v8630 = vpop.xlane.xlu0 %8629
    %v8631 = vsel %vm85, %v7961, -inf
    %8632 = vmax.xlane.f32.xlu0 %v8631
    %v8633 = vpop.xlane.xlu0 %8632
    %v8634 = vsel %vm85, %v7962, -inf
    %8635 = vmax.xlane.f32.xlu0 %v8634
    %v8636 = vpop.xlane.xlu0 %8635
    %v8637 = vsel %vm85, %v7963, -inf
    %8638 = vmax.xlane.f32.xlu0 %v8637
    %v8639 = vpop.xlane.xlu0 %8638
    %v8640 = vsel %vm85, %v7964, -inf
    %8641 = vmax.xlane.f32.xlu0 %v8640
    %v8642 = vpop.xlane.xlu0 %8641
    %v8643 = vsel %vm85, %v7965, -inf
    %8644 = vmax.xlane.f32.xlu0 %v8643
    %v8645 = vpop.xlane.xlu0 %8644
    %v8646 = vsel %vm85, %v7966, -inf
    %8647 = vmax.xlane.f32.xlu0 %v8646
    %v8648 = vpop.xlane.xlu0 %8647
    %v8649 = vsel %vm85, %v7967, -inf
    %8650 = vmax.xlane.f32.xlu0 %v8649
    %v8651 = vpop.xlane.xlu0 %8650
    %v8652 = vsel %vm85, %v7968, -inf
    %8653 = vmax.xlane.f32.xlu0 %v8652
    %v8654 = vpop.xlane.xlu0 %8653
    %v8655 = vsel %vm85, %v7969, -inf
    %8656 = vmax.xlane.f32.xlu0 %v8655
    %v8657 = vpop.xlane.xlu0 %8656
    %v8658 = vsel %vm85, %v7970, -inf
    %8659 = vmax.xlane.f32.xlu0 %v8658
    %v8660 = vpop.xlane.xlu0 %8659
    %v8661 = vsel %vm85, %v7971, -inf
    %8662 = vmax.xlane.f32.xlu0 %v8661
    %v8663 = vpop.xlane.xlu0 %8662
    %v8664 = vsel %vm85, %v7972, -inf
    %8665 = vmax.xlane.f32.xlu0 %v8664
    %v8666 = vpop.xlane.xlu0 %8665
    %v8667 = vsel %vm85, %v7973, -inf
    %8668 = vmax.xlane.f32.xlu0 %v8667
    %v8669 = vpop.xlane.xlu0 %8668
    %v8670 = vsel %vm85, %v7974, -inf
    %8671 = vmax.xlane.f32.xlu0 %v8670
    %v8672 = vpop.xlane.xlu0 %8671
    %v8673 = vsel %vm85, %v7975, -inf
    %8674 = vmax.xlane.f32.xlu0 %v8673
    %v8675 = vpop.xlane.xlu0 %8674
    %v8676 = vsel %vm85, %v7976, -inf
    %8677 = vmax.xlane.f32.xlu0 %v8676
    %v8678 = vpop.xlane.xlu0 %8677
    %v8679 = vsel %vm85, %v7977, -inf
    %8680 = vmax.xlane.f32.xlu0 %v8679
    %v8681 = vpop.xlane.xlu0 %8680
    %v8682 = vsel %vm85, %v7978, -inf
    %8683 = vmax.xlane.f32.xlu0 %v8682
    %v8684 = vpop.xlane.xlu0 %8683
    %v8685 = vsel %vm85, %v7979, -inf
    %8686 = vmax.xlane.f32.xlu0 %v8685
    %v8687 = vpop.xlane.xlu0 %8686
    %v8688 = vsel %vm85, %v7980, -inf
    %8689 = vmax.xlane.f32.xlu0 %v8688
    %v8690 = vpop.xlane.xlu0 %8689
    %v8691 = vsel %vm85, %v7981, -inf
    %8692 = vmax.xlane.f32.xlu0 %v8691
    %v8693 = vpop.xlane.xlu0 %8692
    %v8694 = vsel %vm85, %v7982, -inf
    %8695 = vmax.xlane.f32.xlu0 %v8694
    %v8696 = vpop.xlane.xlu0 %8695
    %v8697 = vsel %vm85, %v7983, -inf
    %8698 = vmax.xlane.f32.xlu0 %v8697
    %v8699 = vpop.xlane.xlu0 %8698
    %v8700 = vsel %vm85, %v7984, -inf
    %8701 = vmax.xlane.f32.xlu0 %v8700
    %v8702 = vpop.xlane.xlu0 %8701
    %v8703 = vsel %vm85, %v7985, -inf
    %8704 = vmax.xlane.f32.xlu0 %v8703
    %v8705 = vpop.xlane.xlu0 %8704
    %v8706 = vsel %vm85, %v7986, -inf
    %8707 = vmax.xlane.f32.xlu0 %v8706
    %v8708 = vpop.xlane.xlu0 %8707
    %v8709 = vsel %vm85, %v7987, -inf
    %8710 = vmax.xlane.f32.xlu0 %v8709
    %v8711 = vpop.xlane.xlu0 %8710
    %v8712 = vsel %vm85, %v7988, -inf
    %8713 = vmax.xlane.f32.xlu0 %v8712
    %v8714 = vpop.xlane.xlu0 %8713
    %v8715 = vsel %vm85, %v7989, -inf
    %8716 = vmax.xlane.f32.xlu0 %v8715
    %v8717 = vpop.xlane.xlu0 %8716
    %v8718 = vsel %vm85, %v7990, -inf
    %8719 = vmax.xlane.f32.xlu0 %v8718
    %v8720 = vpop.xlane.xlu0 %8719
    %v8721 = vsel %vm85, %v7991, -inf
    %8722 = vmax.xlane.f32.xlu0 %v8721
    %v8723 = vpop.xlane.xlu0 %8722
    %v8724 = vsel %vm85, %v7992, -inf
    %8725 = vmax.xlane.f32.xlu0 %v8724
    %v8726 = vpop.xlane.xlu0 %8725
    %v8727 = vsel %vm85, %v7993, -inf
    %8728 = vmax.xlane.f32.xlu0 %v8727
    %v8729 = vpop.xlane.xlu0 %8728
    %v8730 = vsel %vm85, %v7994, -inf
    %8731 = vmax.xlane.f32.xlu0 %v8730
    %v8732 = vpop.xlane.xlu0 %8731
    %v8733 = vsel %vm85, %v7995, -inf
    %8734 = vmax.xlane.f32.xlu0 %v8733
    %v8735 = vpop.xlane.xlu0 %8734
    %v8736 = vsel %vm85, %v7996, -inf
    %8737 = vmax.xlane.f32.xlu0 %v8736
    %v8738 = vpop.xlane.xlu0 %8737
    %v8739 = vsel %vm85, %v7997, -inf
    %8740 = vmax.xlane.f32.xlu0 %v8739
    %v8741 = vpop.xlane.xlu0 %8740
    %v8742 = vsel %vm85, %v7998, -inf
    %8743 = vmax.xlane.f32.xlu0 %v8742
    %v8744 = vpop.xlane.xlu0 %8743
    %v8745 = vsel %vm85, %v7999, -inf
    %8746 = vmax.xlane.f32.xlu0 %v8745
    %v8747 = vpop.xlane.xlu0 %8746
    %v8748 = vsel %vm85, %v8000, -inf
    %8749 = vmax.xlane.f32.xlu0 %v8748
    %v8750 = vpop.xlane.xlu0 %8749
    %v8751 = vsel %vm85, %v8001, -inf
    %8752 = vmax.xlane.f32.xlu0 %v8751
    %v8753 = vpop.xlane.xlu0 %8752
    %v8754 = vsel %vm85, %v8002, -inf
    %8755 = vmax.xlane.f32.xlu0 %v8754
    %v8756 = vpop.xlane.xlu0 %8755
    %v8757 = vsel %vm85, %v8003, -inf
    %8758 = vmax.xlane.f32.xlu0 %v8757
    %v8759 = vpop.xlane.xlu0 %8758
    %v8760 = vsel %vm85, %v8004, -inf
    %8761 = vmax.xlane.f32.xlu0 %v8760
    %v8762 = vpop.xlane.xlu0 %8761
    %v8763 = vsel %vm85, %v8005, -inf
    %8764 = vmax.xlane.f32.xlu0 %v8763
    %v8765 = vpop.xlane.xlu0 %8764
    %v8766 = vsel %vm85, %v8006, -inf
    %8767 = vmax.xlane.f32.xlu0 %v8766
    %v8768 = vpop.xlane.xlu0 %8767
    %v8769 = vsel %vm85, %v8007, -inf
    %8770 = vmax.xlane.f32.xlu0 %v8769
    %v8771 = vpop.xlane.xlu0 %8770
    %v8772 = vsel %vm85, %v8008, -inf
    %8773 = vmax.xlane.f32.xlu0 %v8772
    %v8774 = vpop.xlane.xlu0 %8773
    %v8775 = vsel %vm85, %v8009, -inf
    %8776 = vmax.xlane.f32.xlu0 %v8775
    %v8777 = vpop.xlane.xlu0 %8776
    %v8778 = vsel %vm1596, %v7738, inf
    %v8779 = vsel %vm1596, %v7739, inf
    %v8780 = vsel %vm1596, %v7740, inf
    %v8781 = vsel %vm1596, %v7741, inf
    %v8782 = vsel %vm1597, %v7738, inf
    %v8783 = vsel %vm1597, %v7739, inf
    %v8784 = vsel %vm1597, %v7740, inf
    %v8785 = vsel %vm1597, %v7741, inf
    %v8786 = vsel %vm1598, %v7738, inf
    %v8787 = vsel %vm1598, %v7739, inf
    %v8788 = vsel %vm1598, %v7740, inf
    %v8789 = vsel %vm1598, %v7741, inf
    %v8790 = vsel %vm1599, %v7738, inf
    %v8791 = vsel %vm1599, %v7739, inf
    %v8792 = vsel %vm1599, %v7740, inf
    %v8793 = vsel %vm1599, %v7741, inf
    %v8794 = vsel %vm1600, %v7738, inf
    %v8795 = vsel %vm1600, %v7739, inf
    %v8796 = vsel %vm1600, %v7740, inf
    %v8797 = vsel %vm1600, %v7741, inf
    %v8798 = vsel %vm1601, %v7738, inf
    %v8799 = vsel %vm1601, %v7739, inf
    %v8800 = vsel %vm1601, %v7740, inf
    %v8801 = vsel %vm1601, %v7741, inf
    %v8802 = vsel %vm1602, %v7738, inf
    %v8803 = vsel %vm1602, %v7739, inf
    %v8804 = vsel %vm1602, %v7740, inf
    %v8805 = vsel %vm1602, %v7741, inf
    %v8806 = vsel %vm1603, %v7738, inf
    %v8807 = vsel %vm1603, %v7739, inf
    %v8808 = vsel %vm1603, %v7740, inf
    %v8809 = vsel %vm1603, %v7741, inf
    %v8810 = vsel %vm1604, %v7738, inf
    %v8811 = vsel %vm1604, %v7739, inf
    %v8812 = vsel %vm1604, %v7740, inf
    %v8813 = vsel %vm1604, %v7741, inf
    %v8814 = vsel %vm1605, %v7738, inf
    %v8815 = vsel %vm1605, %v7739, inf
    %v8816 = vsel %vm1605, %v7740, inf
    %v8817 = vsel %vm1605, %v7741, inf
    %v8818 = vsel %vm1606, %v7738, inf
    %v8819 = vsel %vm1606, %v7739, inf
    %v8820 = vsel %vm1606, %v7740, inf
    %v8821 = vsel %vm1606, %v7741, inf
    %v8822 = vsel %vm1607, %v7738, inf
    %v8823 = vsel %vm1607, %v7739, inf
    %v8824 = vsel %vm1607, %v7740, inf
    %v8825 = vsel %vm1607, %v7741, inf
    %v8826 = vsel %vm1608, %v7738, inf
    %v8827 = vsel %vm1608, %v7739, inf
    %v8828 = vsel %vm1608, %v7740, inf
    %v8829 = vsel %vm1608, %v7741, inf
    %v8830 = vsel %vm1609, %v7738, inf
    %v8831 = vsel %vm1609, %v7739, inf
    %v8832 = vsel %vm1609, %v7740, inf
    %v8833 = vsel %vm1609, %v7741, inf
    %v8834 = vsel %vm1610, %v7738, inf
    %v8835 = vsel %vm1610, %v7739, inf
    %v8836 = vsel %vm1610, %v7740, inf
    %v8837 = vsel %vm1610, %v7741, inf
    %v8838 = vsel %vm1611, %v7738, inf
    %v8839 = vsel %vm1611, %v7739, inf
    %v8840 = vsel %vm1611, %v7740, inf
    %v8841 = vsel %vm1611, %v7741, inf
    %v8842 = vsel %vm1612, %v7738, inf
    %v8843 = vsel %vm1612, %v7739, inf
    %v8844 = vsel %vm1612, %v7740, inf
    %v8845 = vsel %vm1612, %v7741, inf
    %v8846 = vsel %vm1613, %v7738, inf
    %v8847 = vsel %vm1613, %v7739, inf
    %v8848 = vsel %vm1613, %v7740, inf
    %v8849 = vsel %vm1613, %v7741, inf
    %v8850 = vsel %vm1614, %v7738, inf
    %v8851 = vsel %vm1614, %v7739, inf
    %v8852 = vsel %vm1614, %v7740, inf
    %v8853 = vsel %vm1614, %v7741, inf
    %v8854 = vsel %vm1615, %v7738, inf
    %v8855 = vsel %vm1615, %v7739, inf
    %v8856 = vsel %vm1615, %v7740, inf
    %v8857 = vsel %vm1615, %v7741, inf
    %v8858 = vsel %vm1616, %v7738, inf
    %v8859 = vsel %vm1616, %v7739, inf
    %v8860 = vsel %vm1616, %v7740, inf
    %v8861 = vsel %vm1616, %v7741, inf
    %v8862 = vsel %vm1617, %v7738, inf
    %v8863 = vsel %vm1617, %v7739, inf
    %v8864 = vsel %vm1617, %v7740, inf
    %v8865 = vsel %vm1617, %v7741, inf
    %v8866 = vsel %vm1618, %v7738, inf
    %v8867 = vsel %vm1618, %v7739, inf
    %v8868 = vsel %vm1618, %v7740, inf
    %v8869 = vsel %vm1618, %v7741, inf
    %v8870 = vsel %vm1619, %v7738, inf
    %v8871 = vsel %vm1619, %v7739, inf
    %v8872 = vsel %vm1619, %v7740, inf
    %v8873 = vsel %vm1619, %v7741, inf
    %v8874 = vsel %vm1620, %v7738, inf
    %v8875 = vsel %vm1620, %v7739, inf
    %v8876 = vsel %vm1620, %v7740, inf
    %v8877 = vsel %vm1620, %v7741, inf
    %v8878 = vsel %vm1621, %v7738, inf
    %v8879 = vsel %vm1621, %v7739, inf
    %v8880 = vsel %vm1621, %v7740, inf
    %v8881 = vsel %vm1621, %v7741, inf
    %v8882 = vsel %vm1622, %v7738, inf
    %v8883 = vsel %vm1622, %v7739, inf
    %v8884 = vsel %vm1622, %v7740, inf
    %v8885 = vsel %vm1622, %v7741, inf
    %v8886 = vsel %vm1623, %v7738, inf
    %v8887 = vsel %vm1623, %v7739, inf
    %v8888 = vsel %vm1623, %v7740, inf
    %v8889 = vsel %vm1623, %v7741, inf
    %v8890 = vsel %vm1624, %v7738, inf
    %v8891 = vsel %vm1624, %v7739, inf
    %v8892 = vsel %vm1624, %v7740, inf
    %v8893 = vsel %vm1624, %v7741, inf
    %v8894 = vsel %vm1625, %v7738, inf
    %v8895 = vsel %vm1625, %v7739, inf
    %v8896 = vsel %vm1625, %v7740, inf
    %v8897 = vsel %vm1625, %v7741, inf
    %v8898 = vsel %vm1626, %v7738, inf
    %v8899 = vsel %vm1626, %v7739, inf
    %v8900 = vsel %vm1626, %v7740, inf
    %v8901 = vsel %vm1626, %v7741, inf
    %v8902 = vsel %vm1627, %v7738, inf
    %v8903 = vsel %vm1627, %v7739, inf
    %v8904 = vsel %vm1627, %v7740, inf
    %v8905 = vsel %vm1627, %v7741, inf
    %v8906 = vsel %vm1628, %v7738, inf
    %v8907 = vsel %vm1628, %v7739, inf
    %v8908 = vsel %vm1628, %v7740, inf
    %v8909 = vsel %vm1628, %v7741, inf
    %v8910 = vsel %vm1629, %v7738, inf
    %v8911 = vsel %vm1629, %v7739, inf
    %v8912 = vsel %vm1629, %v7740, inf
    %v8913 = vsel %vm1629, %v7741, inf
    %v8914 = vsel %vm1630, %v7738, inf
    %v8915 = vsel %vm1630, %v7739, inf
    %v8916 = vsel %vm1630, %v7740, inf
    %v8917 = vsel %vm1630, %v7741, inf
    %v8918 = vsel %vm1631, %v7738, inf
    %v8919 = vsel %vm1631, %v7739, inf
    %v8920 = vsel %vm1631, %v7740, inf
    %v8921 = vsel %vm1631, %v7741, inf
    %v8922 = vsel %vm1632, %v7738, inf
    %v8923 = vsel %vm1632, %v7739, inf
    %v8924 = vsel %vm1632, %v7740, inf
    %v8925 = vsel %vm1632, %v7741, inf
    %v8926 = vsel %vm1633, %v7738, inf
    %v8927 = vsel %vm1633, %v7739, inf
    %v8928 = vsel %vm1633, %v7740, inf
    %v8929 = vsel %vm1633, %v7741, inf
    %v8930 = vsel %vm1634, %v7738, inf
    %v8931 = vsel %vm1634, %v7739, inf
    %v8932 = vsel %vm1634, %v7740, inf
    %v8933 = vsel %vm1634, %v7741, inf
    %v8934 = vsel %vm1635, %v7738, inf
    %v8935 = vsel %vm1635, %v7739, inf
    %v8936 = vsel %vm1635, %v7740, inf
    %v8937 = vsel %vm1635, %v7741, inf
    %v8938 = vsel %vm1636, %v7738, inf
    %v8939 = vsel %vm1636, %v7739, inf
    %v8940 = vsel %vm1636, %v7740, inf
    %v8941 = vsel %vm1636, %v7741, inf
    %v8942 = vsel %vm1637, %v7738, inf
    %v8943 = vsel %vm1637, %v7739, inf
    %v8944 = vsel %vm1637, %v7740, inf
    %v8945 = vsel %vm1637, %v7741, inf
    %v8946 = vsel %vm1638, %v7738, inf
    %v8947 = vsel %vm1638, %v7739, inf
    %v8948 = vsel %vm1638, %v7740, inf
    %v8949 = vsel %vm1638, %v7741, inf
    %v8950 = vsel %vm1639, %v7738, inf
    %v8951 = vsel %vm1639, %v7739, inf
    %v8952 = vsel %vm1639, %v7740, inf
    %v8953 = vsel %vm1639, %v7741, inf
    %v8954 = vsel %vm1640, %v7738, inf
    %v8955 = vsel %vm1640, %v7739, inf
    %v8956 = vsel %vm1640, %v7740, inf
    %v8957 = vsel %vm1640, %v7741, inf
    %v8958 = vsel %vm1641, %v7738, inf
    %v8959 = vsel %vm1641, %v7739, inf
    %v8960 = vsel %vm1641, %v7740, inf
    %v8961 = vsel %vm1641, %v7741, inf
    %v8962 = vsel %vm1642, %v7738, inf
    %v8963 = vsel %vm1642, %v7739, inf
    %v8964 = vsel %vm1642, %v7740, inf
    %v8965 = vsel %vm1642, %v7741, inf
    %v8966 = vsel %vm1643, %v7738, inf
    %v8967 = vsel %vm1643, %v7739, inf
    %v8968 = vsel %vm1643, %v7740, inf
    %v8969 = vsel %vm1643, %v7741, inf
    %v8970 = vsel %vm1644, %v7738, inf
    %v8971 = vsel %vm1644, %v7739, inf
    %v8972 = vsel %vm1644, %v7740, inf
    %v8973 = vsel %vm1644, %v7741, inf
    %v8974 = vsel %vm1645, %v7738, inf
    %v8975 = vsel %vm1645, %v7739, inf
    %v8976 = vsel %vm1645, %v7740, inf
    %v8977 = vsel %vm1645, %v7741, inf
    %v8978 = vsel %vm1646, %v7738, inf
    %v8979 = vsel %vm1646, %v7739, inf
    %v8980 = vsel %vm1646, %v7740, inf
    %v8981 = vsel %vm1646, %v7741, inf
    %v8982 = vsel %vm1647, %v7738, inf
    %v8983 = vsel %vm1647, %v7739, inf
    %v8984 = vsel %vm1647, %v7740, inf
    %v8985 = vsel %vm1647, %v7741, inf
    %v8986 = vsel %vm1648, %v7738, inf
    %v8987 = vsel %vm1648, %v7739, inf
    %v8988 = vsel %vm1648, %v7740, inf
    %v8989 = vsel %vm1648, %v7741, inf
    %v8990 = vsel %vm1649, %v7738, inf
    %v8991 = vsel %vm1649, %v7739, inf
    %v8992 = vsel %vm1649, %v7740, inf
    %v8993 = vsel %vm1649, %v7741, inf
    %v8994 = vsel %vm1650, %v7738, inf
    %v8995 = vsel %vm1650, %v7739, inf
    %v8996 = vsel %vm1650, %v7740, inf
    %v8997 = vsel %vm1650, %v7741, inf
    %v8998 = vsel %vm1651, %v7738, inf
    %v8999 = vsel %vm1651, %v7739, inf
    %v9000 = vsel %vm1651, %v7740, inf
    %v9001 = vsel %vm1651, %v7741, inf
    %v9002 = vsel %vm1652, %v7738, inf
    %v9003 = vsel %vm1652, %v7739, inf
    %v9004 = vsel %vm1652, %v7740, inf
    %v9005 = vsel %vm1652, %v7741, inf
    %v9006 = vsel %vm1653, %v7738, inf
    %v9007 = vsel %vm1653, %v7739, inf
    %v9008 = vsel %vm1653, %v7740, inf
    %v9009 = vsel %vm1653, %v7741, inf
    %v9010 = vsel %vm1654, %v7738, inf
    %v9011 = vsel %vm1654, %v7739, inf
    %v9012 = vsel %vm1654, %v7740, inf
    %v9013 = vsel %vm1654, %v7741, inf
    %v9014 = vsel %vm1655, %v7738, inf
    %v9015 = vsel %vm1655, %v7739, inf
    %v9016 = vsel %vm1655, %v7740, inf
    %v9017 = vsel %vm1655, %v7741, inf
    %v9018 = vsel %vm1656, %v7738, inf
    %v9019 = vsel %vm1656, %v7739, inf
    %v9020 = vsel %vm1656, %v7740, inf
    %v9021 = vsel %vm1656, %v7741, inf
    %v9022 = vsel %vm1657, %v7738, inf
    %v9023 = vsel %vm1657, %v7739, inf
    %v9024 = vsel %vm1657, %v7740, inf
    %v9025 = vsel %vm1657, %v7741, inf
    %v9026 = vsel %vm1658, %v7738, inf
    %v9027 = vsel %vm1658, %v7739, inf
    %v9028 = vsel %vm1658, %v7740, inf
    %v9029 = vsel %vm1658, %v7741, inf
    %v9030 = vsel %vm1659, %v7738, inf
    %v9031 = vsel %vm1659, %v7739, inf
    %v9032 = vsel %vm1659, %v7740, inf
    %v9033 = vsel %vm1659, %v7741, inf
    %v9034 = vsel %vm85, %v8778, inf
    %9035 = vmin.xlane.f32.xlu0 %v9034
    %v9036 = vpop.xlane.xlu0 %9035
    %v9037 = vsel %vm85, %v8779, inf
    %9038 = vmin.xlane.f32.xlu0 %v9037
    %v9039 = vpop.xlane.xlu0 %9038
    %v9040 = vsel %vm85, %v8780, inf
    %9041 = vmin.xlane.f32.xlu0 %v9040
    %v9042 = vpop.xlane.xlu0 %9041
    %v9043 = vsel %vm85, %v8781, inf
    %9044 = vmin.xlane.f32.xlu0 %v9043
    %v9045 = vpop.xlane.xlu0 %9044
    %v9046 = vsel %vm85, %v8782, inf
    %9047 = vmin.xlane.f32.xlu0 %v9046
    %v9048 = vpop.xlane.xlu0 %9047
    %v9049 = vsel %vm85, %v8783, inf
    %9050 = vmin.xlane.f32.xlu0 %v9049
    %v9051 = vpop.xlane.xlu0 %9050
    %v9052 = vsel %vm85, %v8784, inf
    %9053 = vmin.xlane.f32.xlu0 %v9052
    %v9054 = vpop.xlane.xlu0 %9053
    %v9055 = vsel %vm85, %v8785, inf
    %9056 = vmin.xlane.f32.xlu0 %v9055
    %v9057 = vpop.xlane.xlu0 %9056
    %v9058 = vsel %vm85, %v8786, inf
    %9059 = vmin.xlane.f32.xlu0 %v9058
    %v9060 = vpop.xlane.xlu0 %9059
    %v9061 = vsel %vm85, %v8787, inf
    %9062 = vmin.xlane.f32.xlu0 %v9061
    %v9063 = vpop.xlane.xlu0 %9062
    %v9064 = vsel %vm85, %v8788, inf
    %9065 = vmin.xlane.f32.xlu0 %v9064
    %v9066 = vpop.xlane.xlu0 %9065
    %v9067 = vsel %vm85, %v8789, inf
    %9068 = vmin.xlane.f32.xlu0 %v9067
    %v9069 = vpop.xlane.xlu0 %9068
    %v9070 = vsel %vm85, %v8790, inf
    %9071 = vmin.xlane.f32.xlu0 %v9070
    %v9072 = vpop.xlane.xlu0 %9071
    %v9073 = vsel %vm85, %v8791, inf
    %9074 = vmin.xlane.f32.xlu0 %v9073
    %v9075 = vpop.xlane.xlu0 %9074
    %v9076 = vsel %vm85, %v8792, inf
    %9077 = vmin.xlane.f32.xlu0 %v9076
    %v9078 = vpop.xlane.xlu0 %9077
    %v9079 = vsel %vm85, %v8793, inf
    %9080 = vmin.xlane.f32.xlu0 %v9079
    %v9081 = vpop.xlane.xlu0 %9080
    %v9082 = vsel %vm85, %v8794, inf
    %9083 = vmin.xlane.f32.xlu0 %v9082
    %v9084 = vpop.xlane.xlu0 %9083
    %v9085 = vsel %vm85, %v8795, inf
    %9086 = vmin.xlane.f32.xlu0 %v9085
    %v9087 = vpop.xlane.xlu0 %9086
    %v9088 = vsel %vm85, %v8796, inf
    %9089 = vmin.xlane.f32.xlu0 %v9088
    %v9090 = vpop.xlane.xlu0 %9089
    %v9091 = vsel %vm85, %v8797, inf
    %9092 = vmin.xlane.f32.xlu0 %v9091
    %v9093 = vpop.xlane.xlu0 %9092
    %v9094 = vsel %vm85, %v8798, inf
    %9095 = vmin.xlane.f32.xlu0 %v9094
    %v9096 = vpop.xlane.xlu0 %9095
    %v9097 = vsel %vm85, %v8799, inf
    %9098 = vmin.xlane.f32.xlu0 %v9097
    %v9099 = vpop.xlane.xlu0 %9098
    %v9100 = vsel %vm85, %v8800, inf
    %9101 = vmin.xlane.f32.xlu0 %v9100
    %v9102 = vpop.xlane.xlu0 %9101
    %v9103 = vsel %vm85, %v8801, inf
    %9104 = vmin.xlane.f32.xlu0 %v9103
    %v9105 = vpop.xlane.xlu0 %9104
    %v9106 = vsel %vm85, %v8802, inf
    %9107 = vmin.xlane.f32.xlu0 %v9106
    %v9108 = vpop.xlane.xlu0 %9107
    %v9109 = vsel %vm85, %v8803, inf
    %9110 = vmin.xlane.f32.xlu0 %v9109
    %v9111 = vpop.xlane.xlu0 %9110
    %v9112 = vsel %vm85, %v8804, inf
    %9113 = vmin.xlane.f32.xlu0 %v9112
    %v9114 = vpop.xlane.xlu0 %9113
    %v9115 = vsel %vm85, %v8805, inf
    %9116 = vmin.xlane.f32.xlu0 %v9115
    %v9117 = vpop.xlane.xlu0 %9116
    %v9118 = vsel %vm85, %v8806, inf
    %9119 = vmin.xlane.f32.xlu0 %v9118
    %v9120 = vpop.xlane.xlu0 %9119
    %v9121 = vsel %vm85, %v8807, inf
    %9122 = vmin.xlane.f32.xlu0 %v9121
    %v9123 = vpop.xlane.xlu0 %9122
    %v9124 = vsel %vm85, %v8808, inf
    %9125 = vmin.xlane.f32.xlu0 %v9124
    %v9126 = vpop.xlane.xlu0 %9125
    %v9127 = vsel %vm85, %v8809, inf
    %9128 = vmin.xlane.f32.xlu0 %v9127
    %v9129 = vpop.xlane.xlu0 %9128
    %v9130 = vsel %vm85, %v8810, inf
    %9131 = vmin.xlane.f32.xlu0 %v9130
    %v9132 = vpop.xlane.xlu0 %9131
    %v9133 = vsel %vm85, %v8811, inf
    %9134 = vmin.xlane.f32.xlu0 %v9133
    %v9135 = vpop.xlane.xlu0 %9134
    %v9136 = vsel %vm85, %v8812, inf
    %9137 = vmin.xlane.f32.xlu0 %v9136
    %v9138 = vpop.xlane.xlu0 %9137
    %v9139 = vsel %vm85, %v8813, inf
    %9140 = vmin.xlane.f32.xlu0 %v9139
    %v9141 = vpop.xlane.xlu0 %9140
    %v9142 = vsel %vm85, %v8814, inf
    %9143 = vmin.xlane.f32.xlu0 %v9142
    %v9144 = vpop.xlane.xlu0 %9143
    %v9145 = vsel %vm85, %v8815, inf
    %9146 = vmin.xlane.f32.xlu0 %v9145
    %v9147 = vpop.xlane.xlu0 %9146
    %v9148 = vsel %vm85, %v8816, inf
    %9149 = vmin.xlane.f32.xlu0 %v9148
    %v9150 = vpop.xlane.xlu0 %9149
    %v9151 = vsel %vm85, %v8817, inf
    %9152 = vmin.xlane.f32.xlu0 %v9151
    %v9153 = vpop.xlane.xlu0 %9152
    %v9154 = vsel %vm85, %v8818, inf
    %9155 = vmin.xlane.f32.xlu0 %v9154
    %v9156 = vpop.xlane.xlu0 %9155
    %v9157 = vsel %vm85, %v8819, inf
    %9158 = vmin.xlane.f32.xlu0 %v9157
    %v9159 = vpop.xlane.xlu0 %9158
    %v9160 = vsel %vm85, %v8820, inf
    %9161 = vmin.xlane.f32.xlu0 %v9160
    %v9162 = vpop.xlane.xlu0 %9161
    %v9163 = vsel %vm85, %v8821, inf
    %9164 = vmin.xlane.f32.xlu0 %v9163
    %v9165 = vpop.xlane.xlu0 %9164
    %v9166 = vsel %vm85, %v8822, inf
    %9167 = vmin.xlane.f32.xlu0 %v9166
    %v9168 = vpop.xlane.xlu0 %9167
    %v9169 = vsel %vm85, %v8823, inf
    %9170 = vmin.xlane.f32.xlu0 %v9169
    %v9171 = vpop.xlane.xlu0 %9170
    %v9172 = vsel %vm85, %v8824, inf
    %9173 = vmin.xlane.f32.xlu0 %v9172
    %v9174 = vpop.xlane.xlu0 %9173
    %v9175 = vsel %vm85, %v8825, inf
    %9176 = vmin.xlane.f32.xlu0 %v9175
    %v9177 = vpop.xlane.xlu0 %9176
    %v9178 = vsel %vm85, %v8826, inf
    %9179 = vmin.xlane.f32.xlu0 %v9178
    %v9180 = vpop.xlane.xlu0 %9179
    %v9181 = vsel %vm85, %v8827, inf
    %9182 = vmin.xlane.f32.xlu0 %v9181
    %v9183 = vpop.xlane.xlu0 %9182
    %v9184 = vsel %vm85, %v8828, inf
    %9185 = vmin.xlane.f32.xlu0 %v9184
    %v9186 = vpop.xlane.xlu0 %9185
    %v9187 = vsel %vm85, %v8829, inf
    %9188 = vmin.xlane.f32.xlu0 %v9187
    %v9189 = vpop.xlane.xlu0 %9188
    %v9190 = vsel %vm85, %v8830, inf
    %9191 = vmin.xlane.f32.xlu0 %v9190
    %v9192 = vpop.xlane.xlu0 %9191
    %v9193 = vsel %vm85, %v8831, inf
    %9194 = vmin.xlane.f32.xlu0 %v9193
    %v9195 = vpop.xlane.xlu0 %9194
    %v9196 = vsel %vm85, %v8832, inf
    %9197 = vmin.xlane.f32.xlu0 %v9196
    %v9198 = vpop.xlane.xlu0 %9197
    %v9199 = vsel %vm85, %v8833, inf
    %9200 = vmin.xlane.f32.xlu0 %v9199
    %v9201 = vpop.xlane.xlu0 %9200
    %v9202 = vsel %vm85, %v8834, inf
    %9203 = vmin.xlane.f32.xlu0 %v9202
    %v9204 = vpop.xlane.xlu0 %9203
    %v9205 = vsel %vm85, %v8835, inf
    %9206 = vmin.xlane.f32.xlu0 %v9205
    %v9207 = vpop.xlane.xlu0 %9206
    %v9208 = vsel %vm85, %v8836, inf
    %9209 = vmin.xlane.f32.xlu0 %v9208
    %v9210 = vpop.xlane.xlu0 %9209
    %v9211 = vsel %vm85, %v8837, inf
    %9212 = vmin.xlane.f32.xlu0 %v9211
    %v9213 = vpop.xlane.xlu0 %9212
    %v9214 = vsel %vm85, %v8838, inf
    %9215 = vmin.xlane.f32.xlu0 %v9214
    %v9216 = vpop.xlane.xlu0 %9215
    %v9217 = vsel %vm85, %v8839, inf
    %9218 = vmin.xlane.f32.xlu0 %v9217
    %v9219 = vpop.xlane.xlu0 %9218
    %v9220 = vsel %vm85, %v8840, inf
    %9221 = vmin.xlane.f32.xlu0 %v9220
    %v9222 = vpop.xlane.xlu0 %9221
    %v9223 = vsel %vm85, %v8841, inf
    %9224 = vmin.xlane.f32.xlu0 %v9223
    %v9225 = vpop.xlane.xlu0 %9224
    %v9226 = vsel %vm85, %v8842, inf
    %9227 = vmin.xlane.f32.xlu0 %v9226
    %v9228 = vpop.xlane.xlu0 %9227
    %v9229 = vsel %vm85, %v8843, inf
    %9230 = vmin.xlane.f32.xlu0 %v9229
    %v9231 = vpop.xlane.xlu0 %9230
    %v9232 = vsel %vm85, %v8844, inf
    %9233 = vmin.xlane.f32.xlu0 %v9232
    %v9234 = vpop.xlane.xlu0 %9233
    %v9235 = vsel %vm85, %v8845, inf
    %9236 = vmin.xlane.f32.xlu0 %v9235
    %v9237 = vpop.xlane.xlu0 %9236
    %v9238 = vsel %vm85, %v8846, inf
    %9239 = vmin.xlane.f32.xlu0 %v9238
    %v9240 = vpop.xlane.xlu0 %9239
    %v9241 = vsel %vm85, %v8847, inf
    %9242 = vmin.xlane.f32.xlu0 %v9241
    %v9243 = vpop.xlane.xlu0 %9242
    %v9244 = vsel %vm85, %v8848, inf
    %9245 = vmin.xlane.f32.xlu0 %v9244
    %v9246 = vpop.xlane.xlu0 %9245
    %v9247 = vsel %vm85, %v8849, inf
    %9248 = vmin.xlane.f32.xlu0 %v9247
    %v9249 = vpop.xlane.xlu0 %9248
    %v9250 = vsel %vm85, %v8850, inf
    %9251 = vmin.xlane.f32.xlu0 %v9250
    %v9252 = vpop.xlane.xlu0 %9251
    %v9253 = vsel %vm85, %v8851, inf
    %9254 = vmin.xlane.f32.xlu0 %v9253
    %v9255 = vpop.xlane.xlu0 %9254
    %v9256 = vsel %vm85, %v8852, inf
    %9257 = vmin.xlane.f32.xlu0 %v9256
    %v9258 = vpop.xlane.xlu0 %9257
    %v9259 = vsel %vm85, %v8853, inf
    %9260 = vmin.xlane.f32.xlu0 %v9259
    %v9261 = vpop.xlane.xlu0 %9260
    %v9262 = vsel %vm85, %v8854, inf
    %9263 = vmin.xlane.f32.xlu0 %v9262
    %v9264 = vpop.xlane.xlu0 %9263
    %v9265 = vsel %vm85, %v8855, inf
    %9266 = vmin.xlane.f32.xlu0 %v9265
    %v9267 = vpop.xlane.xlu0 %9266
    %v9268 = vsel %vm85, %v8856, inf
    %9269 = vmin.xlane.f32.xlu0 %v9268
    %v9270 = vpop.xlane.xlu0 %9269
    %v9271 = vsel %vm85, %v8857, inf
    %9272 = vmin.xlane.f32.xlu0 %v9271
    %v9273 = vpop.xlane.xlu0 %9272
    %v9274 = vsel %vm85, %v8858, inf
    %9275 = vmin.xlane.f32.xlu0 %v9274
    %v9276 = vpop.xlane.xlu0 %9275
    %v9277 = vsel %vm85, %v8859, inf
    %9278 = vmin.xlane.f32.xlu0 %v9277
    %v9279 = vpop.xlane.xlu0 %9278
    %v9280 = vsel %vm85, %v8860, inf
    %9281 = vmin.xlane.f32.xlu0 %v9280
    %v9282 = vpop.xlane.xlu0 %9281
    %v9283 = vsel %vm85, %v8861, inf
    %9284 = vmin.xlane.f32.xlu0 %v9283
    %v9285 = vpop.xlane.xlu0 %9284
    %v9286 = vsel %vm85, %v8862, inf
    %9287 = vmin.xlane.f32.xlu0 %v9286
    %v9288 = vpop.xlane.xlu0 %9287
    %v9289 = vsel %vm85, %v8863, inf
    %9290 = vmin.xlane.f32.xlu0 %v9289
    %v9291 = vpop.xlane.xlu0 %9290
    %v9292 = vsel %vm85, %v8864, inf
    %9293 = vmin.xlane.f32.xlu0 %v9292
    %v9294 = vpop.xlane.xlu0 %9293
    %v9295 = vsel %vm85, %v8865, inf
    %9296 = vmin.xlane.f32.xlu0 %v9295
    %v9297 = vpop.xlane.xlu0 %9296
    %v9298 = vsel %vm85, %v8866, inf
    %9299 = vmin.xlane.f32.xlu0 %v9298
    %v9300 = vpop.xlane.xlu0 %9299
    %v9301 = vsel %vm85, %v8867, inf
    %9302 = vmin.xlane.f32.xlu0 %v9301
    %v9303 = vpop.xlane.xlu0 %9302
    %v9304 = vsel %vm85, %v8868, inf
    %9305 = vmin.xlane.f32.xlu0 %v9304
    %v9306 = vpop.xlane.xlu0 %9305
    %v9307 = vsel %vm85, %v8869, inf
    %9308 = vmin.xlane.f32.xlu0 %v9307
    %v9309 = vpop.xlane.xlu0 %9308
    %v9310 = vsel %vm85, %v8870, inf
    %9311 = vmin.xlane.f32.xlu0 %v9310
    %v9312 = vpop.xlane.xlu0 %9311
    %v9313 = vsel %vm85, %v8871, inf
    %9314 = vmin.xlane.f32.xlu0 %v9313
    %v9315 = vpop.xlane.xlu0 %9314
    %v9316 = vsel %vm85, %v8872, inf
    %9317 = vmin.xlane.f32.xlu0 %v9316
    %v9318 = vpop.xlane.xlu0 %9317
    %v9319 = vsel %vm85, %v8873, inf
    %9320 = vmin.xlane.f32.xlu0 %v9319
    %v9321 = vpop.xlane.xlu0 %9320
    %v9322 = vsel %vm85, %v8874, inf
    %9323 = vmin.xlane.f32.xlu0 %v9322
    %v9324 = vpop.xlane.xlu0 %9323
    %v9325 = vsel %vm85, %v8875, inf
    %9326 = vmin.xlane.f32.xlu0 %v9325
    %v9327 = vpop.xlane.xlu0 %9326
    %v9328 = vsel %vm85, %v8876, inf
    %9329 = vmin.xlane.f32.xlu0 %v9328
    %v9330 = vpop.xlane.xlu0 %9329
    %v9331 = vsel %vm85, %v8877, inf
    %9332 = vmin.xlane.f32.xlu0 %v9331
    %v9333 = vpop.xlane.xlu0 %9332
    %v9334 = vsel %vm85, %v8878, inf
    %9335 = vmin.xlane.f32.xlu0 %v9334
    %v9336 = vpop.xlane.xlu0 %9335
    %v9337 = vsel %vm85, %v8879, inf
    %9338 = vmin.xlane.f32.xlu0 %v9337
    %v9339 = vpop.xlane.xlu0 %9338
    %v9340 = vsel %vm85, %v8880, inf
    %9341 = vmin.xlane.f32.xlu0 %v9340
    %v9342 = vpop.xlane.xlu0 %9341
    %v9343 = vsel %vm85, %v8881, inf
    %9344 = vmin.xlane.f32.xlu0 %v9343
    %v9345 = vpop.xlane.xlu0 %9344
    %v9346 = vsel %vm85, %v8882, inf
    %9347 = vmin.xlane.f32.xlu0 %v9346
    %v9348 = vpop.xlane.xlu0 %9347
    %v9349 = vsel %vm85, %v8883, inf
    %9350 = vmin.xlane.f32.xlu0 %v9349
    %v9351 = vpop.xlane.xlu0 %9350
    %v9352 = vsel %vm85, %v8884, inf
    %9353 = vmin.xlane.f32.xlu0 %v9352
    %v9354 = vpop.xlane.xlu0 %9353
    %v9355 = vsel %vm85, %v8885, inf
    %9356 = vmin.xlane.f32.xlu0 %v9355
    %v9357 = vpop.xlane.xlu0 %9356
    %v9358 = vsel %vm85, %v8886, inf
    %9359 = vmin.xlane.f32.xlu0 %v9358
    %v9360 = vpop.xlane.xlu0 %9359
    %v9361 = vsel %vm85, %v8887, inf
    %9362 = vmin.xlane.f32.xlu0 %v9361
    %v9363 = vpop.xlane.xlu0 %9362
    %v9364 = vsel %vm85, %v8888, inf
    %9365 = vmin.xlane.f32.xlu0 %v9364
    %v9366 = vpop.xlane.xlu0 %9365
    %v9367 = vsel %vm85, %v8889, inf
    %9368 = vmin.xlane.f32.xlu0 %v9367
    %v9369 = vpop.xlane.xlu0 %9368
    %v9370 = vsel %vm85, %v8890, inf
    %9371 = vmin.xlane.f32.xlu0 %v9370
    %v9372 = vpop.xlane.xlu0 %9371
    %v9373 = vsel %vm85, %v8891, inf
    %9374 = vmin.xlane.f32.xlu0 %v9373
    %v9375 = vpop.xlane.xlu0 %9374
    %v9376 = vsel %vm85, %v8892, inf
    %9377 = vmin.xlane.f32.xlu0 %v9376
    %v9378 = vpop.xlane.xlu0 %9377
    %v9379 = vsel %vm85, %v8893, inf
    %9380 = vmin.xlane.f32.xlu0 %v9379
    %v9381 = vpop.xlane.xlu0 %9380
    %v9382 = vsel %vm85, %v8894, inf
    %9383 = vmin.xlane.f32.xlu0 %v9382
    %v9384 = vpop.xlane.xlu0 %9383
    %v9385 = vsel %vm85, %v8895, inf
    %9386 = vmin.xlane.f32.xlu0 %v9385
    %v9387 = vpop.xlane.xlu0 %9386
    %v9388 = vsel %vm85, %v8896, inf
    %9389 = vmin.xlane.f32.xlu0 %v9388
    %v9390 = vpop.xlane.xlu0 %9389
    %v9391 = vsel %vm85, %v8897, inf
    %9392 = vmin.xlane.f32.xlu0 %v9391
    %v9393 = vpop.xlane.xlu0 %9392
    %v9394 = vsel %vm85, %v8898, inf
    %9395 = vmin.xlane.f32.xlu0 %v9394
    %v9396 = vpop.xlane.xlu0 %9395
    %v9397 = vsel %vm85, %v8899, inf
    %9398 = vmin.xlane.f32.xlu0 %v9397
    %v9399 = vpop.xlane.xlu0 %9398
    %v9400 = vsel %vm85, %v8900, inf
    %9401 = vmin.xlane.f32.xlu0 %v9400
    %v9402 = vpop.xlane.xlu0 %9401
    %v9403 = vsel %vm85, %v8901, inf
    %9404 = vmin.xlane.f32.xlu0 %v9403
    %v9405 = vpop.xlane.xlu0 %9404
    %v9406 = vsel %vm85, %v8902, inf
    %9407 = vmin.xlane.f32.xlu0 %v9406
    %v9408 = vpop.xlane.xlu0 %9407
    %v9409 = vsel %vm85, %v8903, inf
    %9410 = vmin.xlane.f32.xlu0 %v9409
    %v9411 = vpop.xlane.xlu0 %9410
    %v9412 = vsel %vm85, %v8904, inf
    %9413 = vmin.xlane.f32.xlu0 %v9412
    %v9414 = vpop.xlane.xlu0 %9413
    %v9415 = vsel %vm85, %v8905, inf
    %9416 = vmin.xlane.f32.xlu0 %v9415
    %v9417 = vpop.xlane.xlu0 %9416
    %v9418 = vsel %vm85, %v8906, inf
    %9419 = vmin.xlane.f32.xlu0 %v9418
    %v9420 = vpop.xlane.xlu0 %9419
    %v9421 = vsel %vm85, %v8907, inf
    %9422 = vmin.xlane.f32.xlu0 %v9421
    %v9423 = vpop.xlane.xlu0 %9422
    %v9424 = vsel %vm85, %v8908, inf
    %9425 = vmin.xlane.f32.xlu0 %v9424
    %v9426 = vpop.xlane.xlu0 %9425
    %v9427 = vsel %vm85, %v8909, inf
    %9428 = vmin.xlane.f32.xlu0 %v9427
    %v9429 = vpop.xlane.xlu0 %9428
    %v9430 = vsel %vm85, %v8910, inf
    %9431 = vmin.xlane.f32.xlu0 %v9430
    %v9432 = vpop.xlane.xlu0 %9431
    %v9433 = vsel %vm85, %v8911, inf
    %9434 = vmin.xlane.f32.xlu0 %v9433
    %v9435 = vpop.xlane.xlu0 %9434
    %v9436 = vsel %vm85, %v8912, inf
    %9437 = vmin.xlane.f32.xlu0 %v9436
    %v9438 = vpop.xlane.xlu0 %9437
    %v9439 = vsel %vm85, %v8913, inf
    %9440 = vmin.xlane.f32.xlu0 %v9439
    %v9441 = vpop.xlane.xlu0 %9440
    %v9442 = vsel %vm85, %v8914, inf
    %9443 = vmin.xlane.f32.xlu0 %v9442
    %v9444 = vpop.xlane.xlu0 %9443
    %v9445 = vsel %vm85, %v8915, inf
    %9446 = vmin.xlane.f32.xlu0 %v9445
    %v9447 = vpop.xlane.xlu0 %9446
    %v9448 = vsel %vm85, %v8916, inf
    %9449 = vmin.xlane.f32.xlu0 %v9448
    %v9450 = vpop.xlane.xlu0 %9449
    %v9451 = vsel %vm85, %v8917, inf
    %9452 = vmin.xlane.f32.xlu0 %v9451
    %v9453 = vpop.xlane.xlu0 %9452
    %v9454 = vsel %vm85, %v8918, inf
    %9455 = vmin.xlane.f32.xlu0 %v9454
    %v9456 = vpop.xlane.xlu0 %9455
    %v9457 = vsel %vm85, %v8919, inf
    %9458 = vmin.xlane.f32.xlu0 %v9457
    %v9459 = vpop.xlane.xlu0 %9458
    %v9460 = vsel %vm85, %v8920, inf
    %9461 = vmin.xlane.f32.xlu0 %v9460
    %v9462 = vpop.xlane.xlu0 %9461
    %v9463 = vsel %vm85, %v8921, inf
    %9464 = vmin.xlane.f32.xlu0 %v9463
    %v9465 = vpop.xlane.xlu0 %9464
    %v9466 = vsel %vm85, %v8922, inf
    %9467 = vmin.xlane.f32.xlu0 %v9466
    %v9468 = vpop.xlane.xlu0 %9467
    %v9469 = vsel %vm85, %v8923, inf
    %9470 = vmin.xlane.f32.xlu0 %v9469
    %v9471 = vpop.xlane.xlu0 %9470
    %v9472 = vsel %vm85, %v8924, inf
    %9473 = vmin.xlane.f32.xlu0 %v9472
    %v9474 = vpop.xlane.xlu0 %9473
    %v9475 = vsel %vm85, %v8925, inf
    %9476 = vmin.xlane.f32.xlu0 %v9475
    %v9477 = vpop.xlane.xlu0 %9476
    %v9478 = vsel %vm85, %v8926, inf
    %9479 = vmin.xlane.f32.xlu0 %v9478
    %v9480 = vpop.xlane.xlu0 %9479
    %v9481 = vsel %vm85, %v8927, inf
    %9482 = vmin.xlane.f32.xlu0 %v9481
    %v9483 = vpop.xlane.xlu0 %9482
    %v9484 = vsel %vm85, %v8928, inf
    %9485 = vmin.xlane.f32.xlu0 %v9484
    %v9486 = vpop.xlane.xlu0 %9485
    %v9487 = vsel %vm85, %v8929, inf
    %9488 = vmin.xlane.f32.xlu0 %v9487
    %v9489 = vpop.xlane.xlu0 %9488
    %v9490 = vsel %vm85, %v8930, inf
    %9491 = vmin.xlane.f32.xlu0 %v9490
    %v9492 = vpop.xlane.xlu0 %9491
    %v9493 = vsel %vm85, %v8931, inf
    %9494 = vmin.xlane.f32.xlu0 %v9493
    %v9495 = vpop.xlane.xlu0 %9494
    %v9496 = vsel %vm85, %v8932, inf
    %9497 = vmin.xlane.f32.xlu0 %v9496
    %v9498 = vpop.xlane.xlu0 %9497
    %v9499 = vsel %vm85, %v8933, inf
    %9500 = vmin.xlane.f32.xlu0 %v9499
    %v9501 = vpop.xlane.xlu0 %9500
    %v9502 = vsel %vm85, %v8934, inf
    %9503 = vmin.xlane.f32.xlu0 %v9502
    %v9504 = vpop.xlane.xlu0 %9503
    %v9505 = vsel %vm85, %v8935, inf
    %9506 = vmin.xlane.f32.xlu0 %v9505
    %v9507 = vpop.xlane.xlu0 %9506
    %v9508 = vsel %vm85, %v8936, inf
    %9509 = vmin.xlane.f32.xlu0 %v9508
    %v9510 = vpop.xlane.xlu0 %9509
    %v9511 = vsel %vm85, %v8937, inf
    %9512 = vmin.xlane.f32.xlu0 %v9511
    %v9513 = vpop.xlane.xlu0 %9512
    %v9514 = vsel %vm85, %v8938, inf
    %9515 = vmin.xlane.f32.xlu0 %v9514
    %v9516 = vpop.xlane.xlu0 %9515
    %v9517 = vsel %vm85, %v8939, inf
    %9518 = vmin.xlane.f32.xlu0 %v9517
    %v9519 = vpop.xlane.xlu0 %9518
    %v9520 = vsel %vm85, %v8940, inf
    %9521 = vmin.xlane.f32.xlu0 %v9520
    %v9522 = vpop.xlane.xlu0 %9521
    %v9523 = vsel %vm85, %v8941, inf
    %9524 = vmin.xlane.f32.xlu0 %v9523
    %v9525 = vpop.xlane.xlu0 %9524
    %v9526 = vsel %vm85, %v8942, inf
    %9527 = vmin.xlane.f32.xlu0 %v9526
    %v9528 = vpop.xlane.xlu0 %9527
    %v9529 = vsel %vm85, %v8943, inf
    %9530 = vmin.xlane.f32.xlu0 %v9529
    %v9531 = vpop.xlane.xlu0 %9530
    %v9532 = vsel %vm85, %v8944, inf
    %9533 = vmin.xlane.f32.xlu0 %v9532
    %v9534 = vpop.xlane.xlu0 %9533
    %v9535 = vsel %vm85, %v8945, inf
    %9536 = vmin.xlane.f32.xlu0 %v9535
    %v9537 = vpop.xlane.xlu0 %9536
    %v9538 = vsel %vm85, %v8946, inf
    %9539 = vmin.xlane.f32.xlu0 %v9538
    %v9540 = vpop.xlane.xlu0 %9539
    %v9541 = vsel %vm85, %v8947, inf
    %9542 = vmin.xlane.f32.xlu0 %v9541
    %v9543 = vpop.xlane.xlu0 %9542
    %v9544 = vsel %vm85, %v8948, inf
    %9545 = vmin.xlane.f32.xlu0 %v9544
    %v9546 = vpop.xlane.xlu0 %9545
    %v9547 = vsel %vm85, %v8949, inf
    %9548 = vmin.xlane.f32.xlu0 %v9547
    %v9549 = vpop.xlane.xlu0 %9548
    %v9550 = vsel %vm85, %v8950, inf
    %9551 = vmin.xlane.f32.xlu0 %v9550
    %v9552 = vpop.xlane.xlu0 %9551
    %v9553 = vsel %vm85, %v8951, inf
    %9554 = vmin.xlane.f32.xlu0 %v9553
    %v9555 = vpop.xlane.xlu0 %9554
    %v9556 = vsel %vm85, %v8952, inf
    %9557 = vmin.xlane.f32.xlu0 %v9556
    %v9558 = vpop.xlane.xlu0 %9557
    %v9559 = vsel %vm85, %v8953, inf
    %9560 = vmin.xlane.f32.xlu0 %v9559
    %v9561 = vpop.xlane.xlu0 %9560
    %v9562 = vsel %vm85, %v8954, inf
    %9563 = vmin.xlane.f32.xlu0 %v9562
    %v9564 = vpop.xlane.xlu0 %9563
    %v9565 = vsel %vm85, %v8955, inf
    %9566 = vmin.xlane.f32.xlu0 %v9565
    %v9567 = vpop.xlane.xlu0 %9566
    %v9568 = vsel %vm85, %v8956, inf
    %9569 = vmin.xlane.f32.xlu0 %v9568
    %v9570 = vpop.xlane.xlu0 %9569
    %v9571 = vsel %vm85, %v8957, inf
    %9572 = vmin.xlane.f32.xlu0 %v9571
    %v9573 = vpop.xlane.xlu0 %9572
    %v9574 = vsel %vm85, %v8958, inf
    %9575 = vmin.xlane.f32.xlu0 %v9574
    %v9576 = vpop.xlane.xlu0 %9575
    %v9577 = vsel %vm85, %v8959, inf
    %9578 = vmin.xlane.f32.xlu0 %v9577
    %v9579 = vpop.xlane.xlu0 %9578
    %v9580 = vsel %vm85, %v8960, inf
    %9581 = vmin.xlane.f32.xlu0 %v9580
    %v9582 = vpop.xlane.xlu0 %9581
    %v9583 = vsel %vm85, %v8961, inf
    %9584 = vmin.xlane.f32.xlu0 %v9583
    %v9585 = vpop.xlane.xlu0 %9584
    %v9586 = vsel %vm85, %v8962, inf
    %9587 = vmin.xlane.f32.xlu0 %v9586
    %v9588 = vpop.xlane.xlu0 %9587
    %v9589 = vsel %vm85, %v8963, inf
    %9590 = vmin.xlane.f32.xlu0 %v9589
    %v9591 = vpop.xlane.xlu0 %9590
    %v9592 = vsel %vm85, %v8964, inf
    %9593 = vmin.xlane.f32.xlu0 %v9592
    %v9594 = vpop.xlane.xlu0 %9593
    %v9595 = vsel %vm85, %v8965, inf
    %9596 = vmin.xlane.f32.xlu0 %v9595
    %v9597 = vpop.xlane.xlu0 %9596
    %v9598 = vsel %vm85, %v8966, inf
    %9599 = vmin.xlane.f32.xlu0 %v9598
    %v9600 = vpop.xlane.xlu0 %9599
    %v9601 = vsel %vm85, %v8967, inf
    %9602 = vmin.xlane.f32.xlu0 %v9601
    %v9603 = vpop.xlane.xlu0 %9602
    %v9604 = vsel %vm85, %v8968, inf
    %9605 = vmin.xlane.f32.xlu0 %v9604
    %v9606 = vpop.xlane.xlu0 %9605
    %v9607 = vsel %vm85, %v8969, inf
    %9608 = vmin.xlane.f32.xlu0 %v9607
    %v9609 = vpop.xlane.xlu0 %9608
    %v9610 = vsel %vm85, %v8970, inf
    %9611 = vmin.xlane.f32.xlu0 %v9610
    %v9612 = vpop.xlane.xlu0 %9611
    %v9613 = vsel %vm85, %v8971, inf
    %9614 = vmin.xlane.f32.xlu0 %v9613
    %v9615 = vpop.xlane.xlu0 %9614
    %v9616 = vsel %vm85, %v8972, inf
    %9617 = vmin.xlane.f32.xlu0 %v9616
    %v9618 = vpop.xlane.xlu0 %9617
    %v9619 = vsel %vm85, %v8973, inf
    %9620 = vmin.xlane.f32.xlu0 %v9619
    %v9621 = vpop.xlane.xlu0 %9620
    %v9622 = vsel %vm85, %v8974, inf
    %9623 = vmin.xlane.f32.xlu0 %v9622
    %v9624 = vpop.xlane.xlu0 %9623
    %v9625 = vsel %vm85, %v8975, inf
    %9626 = vmin.xlane.f32.xlu0 %v9625
    %v9627 = vpop.xlane.xlu0 %9626
    %v9628 = vsel %vm85, %v8976, inf
    %9629 = vmin.xlane.f32.xlu0 %v9628
    %v9630 = vpop.xlane.xlu0 %9629
    %v9631 = vsel %vm85, %v8977, inf
    %9632 = vmin.xlane.f32.xlu0 %v9631
    %v9633 = vpop.xlane.xlu0 %9632
    %v9634 = vsel %vm85, %v8978, inf
    %9635 = vmin.xlane.f32.xlu0 %v9634
    %v9636 = vpop.xlane.xlu0 %9635
    %v9637 = vsel %vm85, %v8979, inf
    %9638 = vmin.xlane.f32.xlu0 %v9637
    %v9639 = vpop.xlane.xlu0 %9638
    %v9640 = vsel %vm85, %v8980, inf
    %9641 = vmin.xlane.f32.xlu0 %v9640
    %v9642 = vpop.xlane.xlu0 %9641
    %v9643 = vsel %vm85, %v8981, inf
    %9644 = vmin.xlane.f32.xlu0 %v9643
    %v9645 = vpop.xlane.xlu0 %9644
    %v9646 = vsel %vm85, %v8982, inf
    %9647 = vmin.xlane.f32.xlu0 %v9646
    %v9648 = vpop.xlane.xlu0 %9647
    %v9649 = vsel %vm85, %v8983, inf
    %9650 = vmin.xlane.f32.xlu0 %v9649
    %v9651 = vpop.xlane.xlu0 %9650
    %v9652 = vsel %vm85, %v8984, inf
    %9653 = vmin.xlane.f32.xlu0 %v9652
    %v9654 = vpop.xlane.xlu0 %9653
    %v9655 = vsel %vm85, %v8985, inf
    %9656 = vmin.xlane.f32.xlu0 %v9655
    %v9657 = vpop.xlane.xlu0 %9656
    %v9658 = vsel %vm85, %v8986, inf
    %9659 = vmin.xlane.f32.xlu0 %v9658
    %v9660 = vpop.xlane.xlu0 %9659
    %v9661 = vsel %vm85, %v8987, inf
    %9662 = vmin.xlane.f32.xlu0 %v9661
    %v9663 = vpop.xlane.xlu0 %9662
    %v9664 = vsel %vm85, %v8988, inf
    %9665 = vmin.xlane.f32.xlu0 %v9664
    %v9666 = vpop.xlane.xlu0 %9665
    %v9667 = vsel %vm85, %v8989, inf
    %9668 = vmin.xlane.f32.xlu0 %v9667
    %v9669 = vpop.xlane.xlu0 %9668
    %v9670 = vsel %vm85, %v8990, inf
    %9671 = vmin.xlane.f32.xlu0 %v9670
    %v9672 = vpop.xlane.xlu0 %9671
    %v9673 = vsel %vm85, %v8991, inf
    %9674 = vmin.xlane.f32.xlu0 %v9673
    %v9675 = vpop.xlane.xlu0 %9674
    %v9676 = vsel %vm85, %v8992, inf
    %9677 = vmin.xlane.f32.xlu0 %v9676
    %v9678 = vpop.xlane.xlu0 %9677
    %v9679 = vsel %vm85, %v8993, inf
    %9680 = vmin.xlane.f32.xlu0 %v9679
    %v9681 = vpop.xlane.xlu0 %9680
    %v9682 = vsel %vm85, %v8994, inf
    %9683 = vmin.xlane.f32.xlu0 %v9682
    %v9684 = vpop.xlane.xlu0 %9683
    %v9685 = vsel %vm85, %v8995, inf
    %9686 = vmin.xlane.f32.xlu0 %v9685
    %v9687 = vpop.xlane.xlu0 %9686
    %v9688 = vsel %vm85, %v8996, inf
    %9689 = vmin.xlane.f32.xlu0 %v9688
    %v9690 = vpop.xlane.xlu0 %9689
    %v9691 = vsel %vm85, %v8997, inf
    %9692 = vmin.xlane.f32.xlu0 %v9691
    %v9693 = vpop.xlane.xlu0 %9692
    %v9694 = vsel %vm85, %v8998, inf
    %9695 = vmin.xlane.f32.xlu0 %v9694
    %v9696 = vpop.xlane.xlu0 %9695
    %v9697 = vsel %vm85, %v8999, inf
    %9698 = vmin.xlane.f32.xlu0 %v9697
    %v9699 = vpop.xlane.xlu0 %9698
    %v9700 = vsel %vm85, %v9000, inf
    %9701 = vmin.xlane.f32.xlu0 %v9700
    %v9702 = vpop.xlane.xlu0 %9701
    %v9703 = vsel %vm85, %v9001, inf
    %9704 = vmin.xlane.f32.xlu0 %v9703
    %v9705 = vpop.xlane.xlu0 %9704
    %v9706 = vsel %vm85, %v9002, inf
    %9707 = vmin.xlane.f32.xlu0 %v9706
    %v9708 = vpop.xlane.xlu0 %9707
    %v9709 = vsel %vm85, %v9003, inf
    %9710 = vmin.xlane.f32.xlu0 %v9709
    %v9711 = vpop.xlane.xlu0 %9710
    %v9712 = vsel %vm85, %v9004, inf
    %9713 = vmin.xlane.f32.xlu0 %v9712
    %v9714 = vpop.xlane.xlu0 %9713
    %v9715 = vsel %vm85, %v9005, inf
    %9716 = vmin.xlane.f32.xlu0 %v9715
    %v9717 = vpop.xlane.xlu0 %9716
    %v9718 = vsel %vm85, %v9006, inf
    %9719 = vmin.xlane.f32.xlu0 %v9718
    %v9720 = vpop.xlane.xlu0 %9719
    %v9721 = vsel %vm85, %v9007, inf
    %9722 = vmin.xlane.f32.xlu0 %v9721
    %v9723 = vpop.xlane.xlu0 %9722
    %v9724 = vsel %vm85, %v9008, inf
    %9725 = vmin.xlane.f32.xlu0 %v9724
    %v9726 = vpop.xlane.xlu0 %9725
    %v9727 = vsel %vm85, %v9009, inf
    %9728 = vmin.xlane.f32.xlu0 %v9727
    %v9729 = vpop.xlane.xlu0 %9728
    %v9730 = vsel %vm85, %v9010, inf
    %9731 = vmin.xlane.f32.xlu0 %v9730
    %v9732 = vpop.xlane.xlu0 %9731
    %v9733 = vsel %vm85, %v9011, inf
    %9734 = vmin.xlane.f32.xlu0 %v9733
    %v9735 = vpop.xlane.xlu0 %9734
    %v9736 = vsel %vm85, %v9012, inf
    %9737 = vmin.xlane.f32.xlu0 %v9736
    %v9738 = vpop.xlane.xlu0 %9737
    %v9739 = vsel %vm85, %v9013, inf
    %9740 = vmin.xlane.f32.xlu0 %v9739
    %v9741 = vpop.xlane.xlu0 %9740
    %v9742 = vsel %vm85, %v9014, inf
    %9743 = vmin.xlane.f32.xlu0 %v9742
    %v9744 = vpop.xlane.xlu0 %9743
    %v9745 = vsel %vm85, %v9015, inf
    %9746 = vmin.xlane.f32.xlu0 %v9745
    %v9747 = vpop.xlane.xlu0 %9746
    %v9748 = vsel %vm85, %v9016, inf
    %9749 = vmin.xlane.f32.xlu0 %v9748
    %v9750 = vpop.xlane.xlu0 %9749
    %v9751 = vsel %vm85, %v9017, inf
    %9752 = vmin.xlane.f32.xlu0 %v9751
    %v9753 = vpop.xlane.xlu0 %9752
    %v9754 = vsel %vm85, %v9018, inf
    %9755 = vmin.xlane.f32.xlu0 %v9754
    %v9756 = vpop.xlane.xlu0 %9755
    %v9757 = vsel %vm85, %v9019, inf
    %9758 = vmin.xlane.f32.xlu0 %v9757
    %v9759 = vpop.xlane.xlu0 %9758
    %v9760 = vsel %vm85, %v9020, inf
    %9761 = vmin.xlane.f32.xlu0 %v9760
    %v9762 = vpop.xlane.xlu0 %9761
    %v9763 = vsel %vm85, %v9021, inf
    %9764 = vmin.xlane.f32.xlu0 %v9763
    %v9765 = vpop.xlane.xlu0 %9764
    %v9766 = vsel %vm85, %v9022, inf
    %9767 = vmin.xlane.f32.xlu0 %v9766
    %v9768 = vpop.xlane.xlu0 %9767
    %v9769 = vsel %vm85, %v9023, inf
    %9770 = vmin.xlane.f32.xlu0 %v9769
    %v9771 = vpop.xlane.xlu0 %9770
    %v9772 = vsel %vm85, %v9024, inf
    %9773 = vmin.xlane.f32.xlu0 %v9772
    %v9774 = vpop.xlane.xlu0 %9773
    %v9775 = vsel %vm85, %v9025, inf
    %9776 = vmin.xlane.f32.xlu0 %v9775
    %v9777 = vpop.xlane.xlu0 %9776
    %v9778 = vsel %vm85, %v9026, inf
    %9779 = vmin.xlane.f32.xlu0 %v9778
    %v9780 = vpop.xlane.xlu0 %9779
    %v9781 = vsel %vm85, %v9027, inf
    %9782 = vmin.xlane.f32.xlu0 %v9781
    %v9783 = vpop.xlane.xlu0 %9782
    %v9784 = vsel %vm85, %v9028, inf
    %9785 = vmin.xlane.f32.xlu0 %v9784
    %v9786 = vpop.xlane.xlu0 %9785
    %v9787 = vsel %vm85, %v9029, inf
    %9788 = vmin.xlane.f32.xlu0 %v9787
    %v9789 = vpop.xlane.xlu0 %9788
    %v9790 = vsel %vm85, %v9030, inf
    %9791 = vmin.xlane.f32.xlu0 %v9790
    %v9792 = vpop.xlane.xlu0 %9791
    %v9793 = vsel %vm85, %v9031, inf
    %9794 = vmin.xlane.f32.xlu0 %v9793
    %v9795 = vpop.xlane.xlu0 %9794
    %v9796 = vsel %vm85, %v9032, inf
    %9797 = vmin.xlane.f32.xlu0 %v9796
    %v9798 = vpop.xlane.xlu0 %9797
    %v9799 = vsel %vm85, %v9033, inf
    %9800 = vmin.xlane.f32.xlu0 %v9799
    %v9801 = vpop.xlane.xlu0 %9800
    %v10058 = vlaneseq
    %v10059 = vshrl.u32 %v10058, 7
    %v10060 = vsub.s32 %v4005, %v10059
    %v10061 = vrot.slane %v8012, %v10060
    %v10062 = vlaneseq
    %v10063 = vshrl.u32 %v10062, 7
    %v10064 = vsub.s32 %v4010, %v10063
    %v10065 = vrot.slane %v8015, %v10064
    %v10066 = vsel %vm4015, %v10065, %v10061
    %v10067 = vlaneseq
    %v10068 = vshrl.u32 %v10067, 7
    %v10069 = vsub.s32 %v4017, %v10068
    %v10070 = vrot.slane %v8018, %v10069
    %v10071 = vsel %vm4022, %v10070, %v10066
    %v10072 = vlaneseq
    %v10073 = vshrl.u32 %v10072, 7
    %v10074 = vsub.s32 %v4024, %v10073
    %v10075 = vrot.slane %v8021, %v10074
    %v10076 = vsel %vm4029, %v10075, %v10071
    %v10077 = vlaneseq
    %v10078 = vshrl.u32 %v10077, 7
    %v10079 = vsub.s32 %v4005, %v10078
    %v10080 = vrot.slane %v8024, %v10079
    %v10081 = vlaneseq
    %v10082 = vshrl.u32 %v10081, 7
    %v10083 = vsub.s32 %v4010, %v10082
    %v10084 = vrot.slane %v8027, %v10083
    %v10085 = vsel %vm4015, %v10084, %v10080
    %v10086 = vlaneseq
    %v10087 = vshrl.u32 %v10086, 7
    %v10088 = vsub.s32 %v4017, %v10087
    %v10089 = vrot.slane %v8030, %v10088
    %v10090 = vsel %vm4022, %v10089, %v10085
    %v10091 = vlaneseq
    %v10092 = vshrl.u32 %v10091, 7
    %v10093 = vsub.s32 %v4024, %v10092
    %v10094 = vrot.slane %v8033, %v10093
    %v10095 = vsel %vm4029, %v10094, %v10090
    %v10096 = vlaneseq
    %v10097 = vshrl.u32 %v10096, 7
    %v10098 = vsub.s32 %v4005, %v10097
    %v10099 = vrot.slane %v8036, %v10098
    %v10100 = vlaneseq
    %v10101 = vshrl.u32 %v10100, 7
    %v10102 = vsub.s32 %v4010, %v10101
    %v10103 = vrot.slane %v8039, %v10102
    %v10104 = vsel %vm4015, %v10103, %v10099
    %v10105 = vlaneseq
    %v10106 = vshrl.u32 %v10105, 7
    %v10107 = vsub.s32 %v4017, %v10106
    %v10108 = vrot.slane %v8042, %v10107
    %v10109 = vsel %vm4022, %v10108, %v10104
    %v10110 = vlaneseq
    %v10111 = vshrl.u32 %v10110, 7
    %v10112 = vsub.s32 %v4024, %v10111
    %v10113 = vrot.slane %v8045, %v10112
    %v10114 = vsel %vm4029, %v10113, %v10109
    %v10115 = vlaneseq
    %v10116 = vshrl.u32 %v10115, 7
    %v10117 = vsub.s32 %v4005, %v10116
    %v10118 = vrot.slane %v8048, %v10117
    %v10119 = vlaneseq
    %v10120 = vshrl.u32 %v10119, 7
    %v10121 = vsub.s32 %v4010, %v10120
    %v10122 = vrot.slane %v8051, %v10121
    %v10123 = vsel %vm4015, %v10122, %v10118
    %v10124 = vlaneseq
    %v10125 = vshrl.u32 %v10124, 7
    %v10126 = vsub.s32 %v4017, %v10125
    %v10127 = vrot.slane %v8054, %v10126
    %v10128 = vsel %vm4022, %v10127, %v10123
    %v10129 = vlaneseq
    %v10130 = vshrl.u32 %v10129, 7
    %v10131 = vsub.s32 %v4024, %v10130
    %v10132 = vrot.slane %v8057, %v10131
    %v10133 = vsel %vm4029, %v10132, %v10128
    %v10134 = vlaneseq
    %v10135 = vshrl.u32 %v10134, 7
    %v10136 = vsub.s32 %v4005, %v10135
    %v10137 = vrot.slane %v8060, %v10136
    %v10138 = vlaneseq
    %v10139 = vshrl.u32 %v10138, 7
    %v10140 = vsub.s32 %v4010, %v10139
    %v10141 = vrot.slane %v8063, %v10140
    %v10142 = vsel %vm4015, %v10141, %v10137
    %v10143 = vlaneseq
    %v10144 = vshrl.u32 %v10143, 7
    %v10145 = vsub.s32 %v4017, %v10144
    %v10146 = vrot.slane %v8066, %v10145
    %v10147 = vsel %vm4022, %v10146, %v10142
    %v10148 = vlaneseq
    %v10149 = vshrl.u32 %v10148, 7
    %v10150 = vsub.s32 %v4024, %v10149
    %v10151 = vrot.slane %v8069, %v10150
    %v10152 = vsel %vm4029, %v10151, %v10147
    %v10153 = vlaneseq
    %v10154 = vshrl.u32 %v10153, 7
    %v10155 = vsub.s32 %v4005, %v10154
    %v10156 = vrot.slane %v8072, %v10155
    %v10157 = vlaneseq
    %v10158 = vshrl.u32 %v10157, 7
    %v10159 = vsub.s32 %v4010, %v10158
    %v10160 = vrot.slane %v8075, %v10159
    %v10161 = vsel %vm4015, %v10160, %v10156
    %v10162 = vlaneseq
    %v10163 = vshrl.u32 %v10162, 7
    %v10164 = vsub.s32 %v4017, %v10163
    %v10165 = vrot.slane %v8078, %v10164
    %v10166 = vsel %vm4022, %v10165, %v10161
    %v10167 = vlaneseq
    %v10168 = vshrl.u32 %v10167, 7
    %v10169 = vsub.s32 %v4024, %v10168
    %v10170 = vrot.slane %v8081, %v10169
    %v10171 = vsel %vm4029, %v10170, %v10166
    %v10172 = vlaneseq
    %v10173 = vshrl.u32 %v10172, 7
    %v10174 = vsub.s32 %v4005, %v10173
    %v10175 = vrot.slane %v8084, %v10174
    %v10176 = vlaneseq
    %v10177 = vshrl.u32 %v10176, 7
    %v10178 = vsub.s32 %v4010, %v10177
    %v10179 = vrot.slane %v8087, %v10178
    %v10180 = vsel %vm4015, %v10179, %v10175
    %v10181 = vlaneseq
    %v10182 = vshrl.u32 %v10181, 7
    %v10183 = vsub.s32 %v4017, %v10182
    %v10184 = vrot.slane %v8090, %v10183
    %v10185 = vsel %vm4022, %v10184, %v10180
    %v10186 = vlaneseq
    %v10187 = vshrl.u32 %v10186, 7
    %v10188 = vsub.s32 %v4024, %v10187
    %v10189 = vrot.slane %v8093, %v10188
    %v10190 = vsel %vm4029, %v10189, %v10185
    %v10191 = vlaneseq
    %v10192 = vshrl.u32 %v10191, 7
    %v10193 = vsub.s32 %v4005, %v10192
    %v10194 = vrot.slane %v8096, %v10193
    %v10195 = vlaneseq
    %v10196 = vshrl.u32 %v10195, 7
    %v10197 = vsub.s32 %v4010, %v10196
    %v10198 = vrot.slane %v8099, %v10197
    %v10199 = vsel %vm4015, %v10198, %v10194
    %v10200 = vlaneseq
    %v10201 = vshrl.u32 %v10200, 7
    %v10202 = vsub.s32 %v4017, %v10201
    %v10203 = vrot.slane %v8102, %v10202
    %v10204 = vsel %vm4022, %v10203, %v10199
    %v10205 = vlaneseq
    %v10206 = vshrl.u32 %v10205, 7
    %v10207 = vsub.s32 %v4024, %v10206
    %v10208 = vrot.slane %v8105, %v10207
    %v10209 = vsel %vm4029, %v10208, %v10204
    %v10210 = vlaneseq
    %v10211 = vshrl.u32 %v10210, 7
    %v10212 = vsub.s32 %v4005, %v10211
    %v10213 = vrot.slane %v8108, %v10212
    %v10214 = vlaneseq
    %v10215 = vshrl.u32 %v10214, 7
    %v10216 = vsub.s32 %v4010, %v10215
    %v10217 = vrot.slane %v8111, %v10216
    %v10218 = vsel %vm4015, %v10217, %v10213
    %v10219 = vlaneseq
    %v10220 = vshrl.u32 %v10219, 7
    %v10221 = vsub.s32 %v4017, %v10220
    %v10222 = vrot.slane %v8114, %v10221
    %v10223 = vsel %vm4022, %v10222, %v10218
    %v10224 = vlaneseq
    %v10225 = vshrl.u32 %v10224, 7
    %v10226 = vsub.s32 %v4024, %v10225
    %v10227 = vrot.slane %v8117, %v10226
    %v10228 = vsel %vm4029, %v10227, %v10223
    %v10229 = vlaneseq
    %v10230 = vshrl.u32 %v10229, 7
    %v10231 = vsub.s32 %v4005, %v10230
    %v10232 = vrot.slane %v8120, %v10231
    %v10233 = vlaneseq
    %v10234 = vshrl.u32 %v10233, 7
    %v10235 = vsub.s32 %v4010, %v10234
    %v10236 = vrot.slane %v8123, %v10235
    %v10237 = vsel %vm4015, %v10236, %v10232
    %v10238 = vlaneseq
    %v10239 = vshrl.u32 %v10238, 7
    %v10240 = vsub.s32 %v4017, %v10239
    %v10241 = vrot.slane %v8126, %v10240
    %v10242 = vsel %vm4022, %v10241, %v10237
    %v10243 = vlaneseq
    %v10244 = vshrl.u32 %v10243, 7
    %v10245 = vsub.s32 %v4024, %v10244
    %v10246 = vrot.slane %v8129, %v10245
    %v10247 = vsel %vm4029, %v10246, %v10242
    %v10248 = vlaneseq
    %v10249 = vshrl.u32 %v10248, 7
    %v10250 = vsub.s32 %v4005, %v10249
    %v10251 = vrot.slane %v8132, %v10250
    %v10252 = vlaneseq
    %v10253 = vshrl.u32 %v10252, 7
    %v10254 = vsub.s32 %v4010, %v10253
    %v10255 = vrot.slane %v8135, %v10254
    %v10256 = vsel %vm4015, %v10255, %v10251
    %v10257 = vlaneseq
    %v10258 = vshrl.u32 %v10257, 7
    %v10259 = vsub.s32 %v4017, %v10258
    %v10260 = vrot.slane %v8138, %v10259
    %v10261 = vsel %vm4022, %v10260, %v10256
    %v10262 = vlaneseq
    %v10263 = vshrl.u32 %v10262, 7
    %v10264 = vsub.s32 %v4024, %v10263
    %v10265 = vrot.slane %v8141, %v10264
    %v10266 = vsel %vm4029, %v10265, %v10261
    %v10267 = vlaneseq
    %v10268 = vshrl.u32 %v10267, 7
    %v10269 = vsub.s32 %v4005, %v10268
    %v10270 = vrot.slane %v8144, %v10269
    %v10271 = vlaneseq
    %v10272 = vshrl.u32 %v10271, 7
    %v10273 = vsub.s32 %v4010, %v10272
    %v10274 = vrot.slane %v8147, %v10273
    %v10275 = vsel %vm4015, %v10274, %v10270
    %v10276 = vlaneseq
    %v10277 = vshrl.u32 %v10276, 7
    %v10278 = vsub.s32 %v4017, %v10277
    %v10279 = vrot.slane %v8150, %v10278
    %v10280 = vsel %vm4022, %v10279, %v10275
    %v10281 = vlaneseq
    %v10282 = vshrl.u32 %v10281, 7
    %v10283 = vsub.s32 %v4024, %v10282
    %v10284 = vrot.slane %v8153, %v10283
    %v10285 = vsel %vm4029, %v10284, %v10280
    %v10286 = vlaneseq
    %v10287 = vshrl.u32 %v10286, 7
    %v10288 = vsub.s32 %v4005, %v10287
    %v10289 = vrot.slane %v8156, %v10288
    %v10290 = vlaneseq
    %v10291 = vshrl.u32 %v10290, 7
    %v10292 = vsub.s32 %v4010, %v10291
    %v10293 = vrot.slane %v8159, %v10292
    %v10294 = vsel %vm4015, %v10293, %v10289
    %v10295 = vlaneseq
    %v10296 = vshrl.u32 %v10295, 7
    %v10297 = vsub.s32 %v4017, %v10296
    %v10298 = vrot.slane %v8162, %v10297
    %v10299 = vsel %vm4022, %v10298, %v10294
    %v10300 = vlaneseq
    %v10301 = vshrl.u32 %v10300, 7
    %v10302 = vsub.s32 %v4024, %v10301
    %v10303 = vrot.slane %v8165, %v10302
    %v10304 = vsel %vm4029, %v10303, %v10299
    %v10305 = vlaneseq
    %v10306 = vshrl.u32 %v10305, 7
    %v10307 = vsub.s32 %v4005, %v10306
    %v10308 = vrot.slane %v8168, %v10307
    %v10309 = vlaneseq
    %v10310 = vshrl.u32 %v10309, 7
    %v10311 = vsub.s32 %v4010, %v10310
    %v10312 = vrot.slane %v8171, %v10311
    %v10313 = vsel %vm4015, %v10312, %v10308
    %v10314 = vlaneseq
    %v10315 = vshrl.u32 %v10314, 7
    %v10316 = vsub.s32 %v4017, %v10315
    %v10317 = vrot.slane %v8174, %v10316
    %v10318 = vsel %vm4022, %v10317, %v10313
    %v10319 = vlaneseq
    %v10320 = vshrl.u32 %v10319, 7
    %v10321 = vsub.s32 %v4024, %v10320
    %v10322 = vrot.slane %v8177, %v10321
    %v10323 = vsel %vm4029, %v10322, %v10318
    %v10324 = vlaneseq
    %v10325 = vshrl.u32 %v10324, 7
    %v10326 = vsub.s32 %v4005, %v10325
    %v10327 = vrot.slane %v8180, %v10326
    %v10328 = vlaneseq
    %v10329 = vshrl.u32 %v10328, 7
    %v10330 = vsub.s32 %v4010, %v10329
    %v10331 = vrot.slane %v8183, %v10330
    %v10332 = vsel %vm4015, %v10331, %v10327
    %v10333 = vlaneseq
    %v10334 = vshrl.u32 %v10333, 7
    %v10335 = vsub.s32 %v4017, %v10334
    %v10336 = vrot.slane %v8186, %v10335
    %v10337 = vsel %vm4022, %v10336, %v10332
    %v10338 = vlaneseq
    %v10339 = vshrl.u32 %v10338, 7
    %v10340 = vsub.s32 %v4024, %v10339
    %v10341 = vrot.slane %v8189, %v10340
    %v10342 = vsel %vm4029, %v10341, %v10337
    %v10343 = vlaneseq
    %v10344 = vshrl.u32 %v10343, 7
    %v10345 = vsub.s32 %v4005, %v10344
    %v10346 = vrot.slane %v8192, %v10345
    %v10347 = vlaneseq
    %v10348 = vshrl.u32 %v10347, 7
    %v10349 = vsub.s32 %v4010, %v10348
    %v10350 = vrot.slane %v8195, %v10349
    %v10351 = vsel %vm4015, %v10350, %v10346
    %v10352 = vlaneseq
    %v10353 = vshrl.u32 %v10352, 7
    %v10354 = vsub.s32 %v4017, %v10353
    %v10355 = vrot.slane %v8198, %v10354
    %v10356 = vsel %vm4022, %v10355, %v10351
    %v10357 = vlaneseq
    %v10358 = vshrl.u32 %v10357, 7
    %v10359 = vsub.s32 %v4024, %v10358
    %v10360 = vrot.slane %v8201, %v10359
    %v10361 = vsel %vm4029, %v10360, %v10356
    %v10362 = vlaneseq
    %v10363 = vshrl.u32 %v10362, 7
    %v10364 = vsub.s32 %v4005, %v10363
    %v10365 = vrot.slane %v8204, %v10364
    %v10366 = vlaneseq
    %v10367 = vshrl.u32 %v10366, 7
    %v10368 = vsub.s32 %v4010, %v10367
    %v10369 = vrot.slane %v8207, %v10368
    %v10370 = vsel %vm4015, %v10369, %v10365
    %v10371 = vlaneseq
    %v10372 = vshrl.u32 %v10371, 7
    %v10373 = vsub.s32 %v4017, %v10372
    %v10374 = vrot.slane %v8210, %v10373
    %v10375 = vsel %vm4022, %v10374, %v10370
    %v10376 = vlaneseq
    %v10377 = vshrl.u32 %v10376, 7
    %v10378 = vsub.s32 %v4024, %v10377
    %v10379 = vrot.slane %v8213, %v10378
    %v10380 = vsel %vm4029, %v10379, %v10375
    %v10381 = vlaneseq
    %v10382 = vshrl.u32 %v10381, 7
    %v10383 = vsub.s32 %v4005, %v10382
    %v10384 = vrot.slane %v8216, %v10383
    %v10385 = vlaneseq
    %v10386 = vshrl.u32 %v10385, 7
    %v10387 = vsub.s32 %v4010, %v10386
    %v10388 = vrot.slane %v8219, %v10387
    %v10389 = vsel %vm4015, %v10388, %v10384
    %v10390 = vlaneseq
    %v10391 = vshrl.u32 %v10390, 7
    %v10392 = vsub.s32 %v4017, %v10391
    %v10393 = vrot.slane %v8222, %v10392
    %v10394 = vsel %vm4022, %v10393, %v10389
    %v10395 = vlaneseq
    %v10396 = vshrl.u32 %v10395, 7
    %v10397 = vsub.s32 %v4024, %v10396
    %v10398 = vrot.slane %v8225, %v10397
    %v10399 = vsel %vm4029, %v10398, %v10394
    %v10400 = vlaneseq
    %v10401 = vshrl.u32 %v10400, 7
    %v10402 = vsub.s32 %v4005, %v10401
    %v10403 = vrot.slane %v8228, %v10402
    %v10404 = vlaneseq
    %v10405 = vshrl.u32 %v10404, 7
    %v10406 = vsub.s32 %v4010, %v10405
    %v10407 = vrot.slane %v8231, %v10406
    %v10408 = vsel %vm4015, %v10407, %v10403
    %v10409 = vlaneseq
    %v10410 = vshrl.u32 %v10409, 7
    %v10411 = vsub.s32 %v4017, %v10410
    %v10412 = vrot.slane %v8234, %v10411
    %v10413 = vsel %vm4022, %v10412, %v10408
    %v10414 = vlaneseq
    %v10415 = vshrl.u32 %v10414, 7
    %v10416 = vsub.s32 %v4024, %v10415
    %v10417 = vrot.slane %v8237, %v10416
    %v10418 = vsel %vm4029, %v10417, %v10413
    %v10419 = vlaneseq
    %v10420 = vshrl.u32 %v10419, 7
    %v10421 = vsub.s32 %v4005, %v10420
    %v10422 = vrot.slane %v8240, %v10421
    %v10423 = vlaneseq
    %v10424 = vshrl.u32 %v10423, 7
    %v10425 = vsub.s32 %v4010, %v10424
    %v10426 = vrot.slane %v8243, %v10425
    %v10427 = vsel %vm4015, %v10426, %v10422
    %v10428 = vlaneseq
    %v10429 = vshrl.u32 %v10428, 7
    %v10430 = vsub.s32 %v4017, %v10429
    %v10431 = vrot.slane %v8246, %v10430
    %v10432 = vsel %vm4022, %v10431, %v10427
    %v10433 = vlaneseq
    %v10434 = vshrl.u32 %v10433, 7
    %v10435 = vsub.s32 %v4024, %v10434
    %v10436 = vrot.slane %v8249, %v10435
    %v10437 = vsel %vm4029, %v10436, %v10432
    %v10438 = vlaneseq
    %v10439 = vshrl.u32 %v10438, 7
    %v10440 = vsub.s32 %v4005, %v10439
    %v10441 = vrot.slane %v8252, %v10440
    %v10442 = vlaneseq
    %v10443 = vshrl.u32 %v10442, 7
    %v10444 = vsub.s32 %v4010, %v10443
    %v10445 = vrot.slane %v8255, %v10444
    %v10446 = vsel %vm4015, %v10445, %v10441
    %v10447 = vlaneseq
    %v10448 = vshrl.u32 %v10447, 7
    %v10449 = vsub.s32 %v4017, %v10448
    %v10450 = vrot.slane %v8258, %v10449
    %v10451 = vsel %vm4022, %v10450, %v10446
    %v10452 = vlaneseq
    %v10453 = vshrl.u32 %v10452, 7
    %v10454 = vsub.s32 %v4024, %v10453
    %v10455 = vrot.slane %v8261, %v10454
    %v10456 = vsel %vm4029, %v10455, %v10451
    %v10457 = vlaneseq
    %v10458 = vshrl.u32 %v10457, 7
    %v10459 = vsub.s32 %v4005, %v10458
    %v10460 = vrot.slane %v8264, %v10459
    %v10461 = vlaneseq
    %v10462 = vshrl.u32 %v10461, 7
    %v10463 = vsub.s32 %v4010, %v10462
    %v10464 = vrot.slane %v8267, %v10463
    %v10465 = vsel %vm4015, %v10464, %v10460
    %v10466 = vlaneseq
    %v10467 = vshrl.u32 %v10466, 7
    %v10468 = vsub.s32 %v4017, %v10467
    %v10469 = vrot.slane %v8270, %v10468
    %v10470 = vsel %vm4022, %v10469, %v10465
    %v10471 = vlaneseq
    %v10472 = vshrl.u32 %v10471, 7
    %v10473 = vsub.s32 %v4024, %v10472
    %v10474 = vrot.slane %v8273, %v10473
    %v10475 = vsel %vm4029, %v10474, %v10470
    %v10476 = vlaneseq
    %v10477 = vshrl.u32 %v10476, 7
    %v10478 = vsub.s32 %v4005, %v10477
    %v10479 = vrot.slane %v8276, %v10478
    %v10480 = vlaneseq
    %v10481 = vshrl.u32 %v10480, 7
    %v10482 = vsub.s32 %v4010, %v10481
    %v10483 = vrot.slane %v8279, %v10482
    %v10484 = vsel %vm4015, %v10483, %v10479
    %v10485 = vlaneseq
    %v10486 = vshrl.u32 %v10485, 7
    %v10487 = vsub.s32 %v4017, %v10486
    %v10488 = vrot.slane %v8282, %v10487
    %v10489 = vsel %vm4022, %v10488, %v10484
    %v10490 = vlaneseq
    %v10491 = vshrl.u32 %v10490, 7
    %v10492 = vsub.s32 %v4024, %v10491
    %v10493 = vrot.slane %v8285, %v10492
    %v10494 = vsel %vm4029, %v10493, %v10489
    %v10495 = vlaneseq
    %v10496 = vshrl.u32 %v10495, 7
    %v10497 = vsub.s32 %v4005, %v10496
    %v10498 = vrot.slane %v8288, %v10497
    %v10499 = vlaneseq
    %v10500 = vshrl.u32 %v10499, 7
    %v10501 = vsub.s32 %v4010, %v10500
    %v10502 = vrot.slane %v8291, %v10501
    %v10503 = vsel %vm4015, %v10502, %v10498
    %v10504 = vlaneseq
    %v10505 = vshrl.u32 %v10504, 7
    %v10506 = vsub.s32 %v4017, %v10505
    %v10507 = vrot.slane %v8294, %v10506
    %v10508 = vsel %vm4022, %v10507, %v10503
    %v10509 = vlaneseq
    %v10510 = vshrl.u32 %v10509, 7
    %v10511 = vsub.s32 %v4024, %v10510
    %v10512 = vrot.slane %v8297, %v10511
    %v10513 = vsel %vm4029, %v10512, %v10508
    %v10514 = vlaneseq
    %v10515 = vshrl.u32 %v10514, 7
    %v10516 = vsub.s32 %v4005, %v10515
    %v10517 = vrot.slane %v8300, %v10516
    %v10518 = vlaneseq
    %v10519 = vshrl.u32 %v10518, 7
    %v10520 = vsub.s32 %v4010, %v10519
    %v10521 = vrot.slane %v8303, %v10520
    %v10522 = vsel %vm4015, %v10521, %v10517
    %v10523 = vlaneseq
    %v10524 = vshrl.u32 %v10523, 7
    %v10525 = vsub.s32 %v4017, %v10524
    %v10526 = vrot.slane %v8306, %v10525
    %v10527 = vsel %vm4022, %v10526, %v10522
    %v10528 = vlaneseq
    %v10529 = vshrl.u32 %v10528, 7
    %v10530 = vsub.s32 %v4024, %v10529
    %v10531 = vrot.slane %v8309, %v10530
    %v10532 = vsel %vm4029, %v10531, %v10527
    %v10533 = vlaneseq
    %v10534 = vshrl.u32 %v10533, 7
    %v10535 = vsub.s32 %v4005, %v10534
    %v10536 = vrot.slane %v8312, %v10535
    %v10537 = vlaneseq
    %v10538 = vshrl.u32 %v10537, 7
    %v10539 = vsub.s32 %v4010, %v10538
    %v10540 = vrot.slane %v8315, %v10539
    %v10541 = vsel %vm4015, %v10540, %v10536
    %v10542 = vlaneseq
    %v10543 = vshrl.u32 %v10542, 7
    %v10544 = vsub.s32 %v4017, %v10543
    %v10545 = vrot.slane %v8318, %v10544
    %v10546 = vsel %vm4022, %v10545, %v10541
    %v10547 = vlaneseq
    %v10548 = vshrl.u32 %v10547, 7
    %v10549 = vsub.s32 %v4024, %v10548
    %v10550 = vrot.slane %v8321, %v10549
    %v10551 = vsel %vm4029, %v10550, %v10546
    %v10552 = vlaneseq
    %v10553 = vshrl.u32 %v10552, 7
    %v10554 = vsub.s32 %v4005, %v10553
    %v10555 = vrot.slane %v8324, %v10554
    %v10556 = vlaneseq
    %v10557 = vshrl.u32 %v10556, 7
    %v10558 = vsub.s32 %v4010, %v10557
    %v10559 = vrot.slane %v8327, %v10558
    %v10560 = vsel %vm4015, %v10559, %v10555
    %v10561 = vlaneseq
    %v10562 = vshrl.u32 %v10561, 7
    %v10563 = vsub.s32 %v4017, %v10562
    %v10564 = vrot.slane %v8330, %v10563
    %v10565 = vsel %vm4022, %v10564, %v10560
    %v10566 = vlaneseq
    %v10567 = vshrl.u32 %v10566, 7
    %v10568 = vsub.s32 %v4024, %v10567
    %v10569 = vrot.slane %v8333, %v10568
    %v10570 = vsel %vm4029, %v10569, %v10565
    %v10571 = vlaneseq
    %v10572 = vshrl.u32 %v10571, 7
    %v10573 = vsub.s32 %v4005, %v10572
    %v10574 = vrot.slane %v8336, %v10573
    %v10575 = vlaneseq
    %v10576 = vshrl.u32 %v10575, 7
    %v10577 = vsub.s32 %v4010, %v10576
    %v10578 = vrot.slane %v8339, %v10577
    %v10579 = vsel %vm4015, %v10578, %v10574
    %v10580 = vlaneseq
    %v10581 = vshrl.u32 %v10580, 7
    %v10582 = vsub.s32 %v4017, %v10581
    %v10583 = vrot.slane %v8342, %v10582
    %v10584 = vsel %vm4022, %v10583, %v10579
    %v10585 = vlaneseq
    %v10586 = vshrl.u32 %v10585, 7
    %v10587 = vsub.s32 %v4024, %v10586
    %v10588 = vrot.slane %v8345, %v10587
    %v10589 = vsel %vm4029, %v10588, %v10584
    %v10590 = vlaneseq
    %v10591 = vshrl.u32 %v10590, 7
    %v10592 = vsub.s32 %v4005, %v10591
    %v10593 = vrot.slane %v8348, %v10592
    %v10594 = vlaneseq
    %v10595 = vshrl.u32 %v10594, 7
    %v10596 = vsub.s32 %v4010, %v10595
    %v10597 = vrot.slane %v8351, %v10596
    %v10598 = vsel %vm4015, %v10597, %v10593
    %v10599 = vlaneseq
    %v10600 = vshrl.u32 %v10599, 7
    %v10601 = vsub.s32 %v4017, %v10600
    %v10602 = vrot.slane %v8354, %v10601
    %v10603 = vsel %vm4022, %v10602, %v10598
    %v10604 = vlaneseq
    %v10605 = vshrl.u32 %v10604, 7
    %v10606 = vsub.s32 %v4024, %v10605
    %v10607 = vrot.slane %v8357, %v10606
    %v10608 = vsel %vm4029, %v10607, %v10603
    %v10609 = vlaneseq
    %v10610 = vshrl.u32 %v10609, 7
    %v10611 = vsub.s32 %v4005, %v10610
    %v10612 = vrot.slane %v8360, %v10611
    %v10613 = vlaneseq
    %v10614 = vshrl.u32 %v10613, 7
    %v10615 = vsub.s32 %v4010, %v10614
    %v10616 = vrot.slane %v8363, %v10615
    %v10617 = vsel %vm4015, %v10616, %v10612
    %v10618 = vlaneseq
    %v10619 = vshrl.u32 %v10618, 7
    %v10620 = vsub.s32 %v4017, %v10619
    %v10621 = vrot.slane %v8366, %v10620
    %v10622 = vsel %vm4022, %v10621, %v10617
    %v10623 = vlaneseq
    %v10624 = vshrl.u32 %v10623, 7
    %v10625 = vsub.s32 %v4024, %v10624
    %v10626 = vrot.slane %v8369, %v10625
    %v10627 = vsel %vm4029, %v10626, %v10622
    %v10628 = vlaneseq
    %v10629 = vshrl.u32 %v10628, 7
    %v10630 = vsub.s32 %v4005, %v10629
    %v10631 = vrot.slane %v8372, %v10630
    %v10632 = vlaneseq
    %v10633 = vshrl.u32 %v10632, 7
    %v10634 = vsub.s32 %v4010, %v10633
    %v10635 = vrot.slane %v8375, %v10634
    %v10636 = vsel %vm4015, %v10635, %v10631
    %v10637 = vlaneseq
    %v10638 = vshrl.u32 %v10637, 7
    %v10639 = vsub.s32 %v4017, %v10638
    %v10640 = vrot.slane %v8378, %v10639
    %v10641 = vsel %vm4022, %v10640, %v10636
    %v10642 = vlaneseq
    %v10643 = vshrl.u32 %v10642, 7
    %v10644 = vsub.s32 %v4024, %v10643
    %v10645 = vrot.slane %v8381, %v10644
    %v10646 = vsel %vm4029, %v10645, %v10641
    %v10647 = vlaneseq
    %v10648 = vshrl.u32 %v10647, 7
    %v10649 = vsub.s32 %v4005, %v10648
    %v10650 = vrot.slane %v8384, %v10649
    %v10651 = vlaneseq
    %v10652 = vshrl.u32 %v10651, 7
    %v10653 = vsub.s32 %v4010, %v10652
    %v10654 = vrot.slane %v8387, %v10653
    %v10655 = vsel %vm4015, %v10654, %v10650
    %v10656 = vlaneseq
    %v10657 = vshrl.u32 %v10656, 7
    %v10658 = vsub.s32 %v4017, %v10657
    %v10659 = vrot.slane %v8390, %v10658
    %v10660 = vsel %vm4022, %v10659, %v10655
    %v10661 = vlaneseq
    %v10662 = vshrl.u32 %v10661, 7
    %v10663 = vsub.s32 %v4024, %v10662
    %v10664 = vrot.slane %v8393, %v10663
    %v10665 = vsel %vm4029, %v10664, %v10660
    %v10666 = vlaneseq
    %v10667 = vshrl.u32 %v10666, 7
    %v10668 = vsub.s32 %v4005, %v10667
    %v10669 = vrot.slane %v8396, %v10668
    %v10670 = vlaneseq
    %v10671 = vshrl.u32 %v10670, 7
    %v10672 = vsub.s32 %v4010, %v10671
    %v10673 = vrot.slane %v8399, %v10672
    %v10674 = vsel %vm4015, %v10673, %v10669
    %v10675 = vlaneseq
    %v10676 = vshrl.u32 %v10675, 7
    %v10677 = vsub.s32 %v4017, %v10676
    %v10678 = vrot.slane %v8402, %v10677
    %v10679 = vsel %vm4022, %v10678, %v10674
    %v10680 = vlaneseq
    %v10681 = vshrl.u32 %v10680, 7
    %v10682 = vsub.s32 %v4024, %v10681
    %v10683 = vrot.slane %v8405, %v10682
    %v10684 = vsel %vm4029, %v10683, %v10679
    %v10685 = vlaneseq
    %v10686 = vshrl.u32 %v10685, 7
    %v10687 = vsub.s32 %v4005, %v10686
    %v10688 = vrot.slane %v8408, %v10687
    %v10689 = vlaneseq
    %v10690 = vshrl.u32 %v10689, 7
    %v10691 = vsub.s32 %v4010, %v10690
    %v10692 = vrot.slane %v8411, %v10691
    %v10693 = vsel %vm4015, %v10692, %v10688
    %v10694 = vlaneseq
    %v10695 = vshrl.u32 %v10694, 7
    %v10696 = vsub.s32 %v4017, %v10695
    %v10697 = vrot.slane %v8414, %v10696
    %v10698 = vsel %vm4022, %v10697, %v10693
    %v10699 = vlaneseq
    %v10700 = vshrl.u32 %v10699, 7
    %v10701 = vsub.s32 %v4024, %v10700
    %v10702 = vrot.slane %v8417, %v10701
    %v10703 = vsel %vm4029, %v10702, %v10698
    %v10704 = vlaneseq
    %v10705 = vshrl.u32 %v10704, 7
    %v10706 = vsub.s32 %v4005, %v10705
    %v10707 = vrot.slane %v8420, %v10706
    %v10708 = vlaneseq
    %v10709 = vshrl.u32 %v10708, 7
    %v10710 = vsub.s32 %v4010, %v10709
    %v10711 = vrot.slane %v8423, %v10710
    %v10712 = vsel %vm4015, %v10711, %v10707
    %v10713 = vlaneseq
    %v10714 = vshrl.u32 %v10713, 7
    %v10715 = vsub.s32 %v4017, %v10714
    %v10716 = vrot.slane %v8426, %v10715
    %v10717 = vsel %vm4022, %v10716, %v10712
    %v10718 = vlaneseq
    %v10719 = vshrl.u32 %v10718, 7
    %v10720 = vsub.s32 %v4024, %v10719
    %v10721 = vrot.slane %v8429, %v10720
    %v10722 = vsel %vm4029, %v10721, %v10717
    %v10723 = vlaneseq
    %v10724 = vshrl.u32 %v10723, 7
    %v10725 = vsub.s32 %v4005, %v10724
    %v10726 = vrot.slane %v8432, %v10725
    %v10727 = vlaneseq
    %v10728 = vshrl.u32 %v10727, 7
    %v10729 = vsub.s32 %v4010, %v10728
    %v10730 = vrot.slane %v8435, %v10729
    %v10731 = vsel %vm4015, %v10730, %v10726
    %v10732 = vlaneseq
    %v10733 = vshrl.u32 %v10732, 7
    %v10734 = vsub.s32 %v4017, %v10733
    %v10735 = vrot.slane %v8438, %v10734
    %v10736 = vsel %vm4022, %v10735, %v10731
    %v10737 = vlaneseq
    %v10738 = vshrl.u32 %v10737, 7
    %v10739 = vsub.s32 %v4024, %v10738
    %v10740 = vrot.slane %v8441, %v10739
    %v10741 = vsel %vm4029, %v10740, %v10736
    %v10742 = vlaneseq
    %v10743 = vshrl.u32 %v10742, 7
    %v10744 = vsub.s32 %v4005, %v10743
    %v10745 = vrot.slane %v8444, %v10744
    %v10746 = vlaneseq
    %v10747 = vshrl.u32 %v10746, 7
    %v10748 = vsub.s32 %v4010, %v10747
    %v10749 = vrot.slane %v8447, %v10748
    %v10750 = vsel %vm4015, %v10749, %v10745
    %v10751 = vlaneseq
    %v10752 = vshrl.u32 %v10751, 7
    %v10753 = vsub.s32 %v4017, %v10752
    %v10754 = vrot.slane %v8450, %v10753
    %v10755 = vsel %vm4022, %v10754, %v10750
    %v10756 = vlaneseq
    %v10757 = vshrl.u32 %v10756, 7
    %v10758 = vsub.s32 %v4024, %v10757
    %v10759 = vrot.slane %v8453, %v10758
    %v10760 = vsel %vm4029, %v10759, %v10755
    %v10761 = vlaneseq
    %v10762 = vshrl.u32 %v10761, 7
    %v10763 = vsub.s32 %v4005, %v10762
    %v10764 = vrot.slane %v8456, %v10763
    %v10765 = vlaneseq
    %v10766 = vshrl.u32 %v10765, 7
    %v10767 = vsub.s32 %v4010, %v10766
    %v10768 = vrot.slane %v8459, %v10767
    %v10769 = vsel %vm4015, %v10768, %v10764
    %v10770 = vlaneseq
    %v10771 = vshrl.u32 %v10770, 7
    %v10772 = vsub.s32 %v4017, %v10771
    %v10773 = vrot.slane %v8462, %v10772
    %v10774 = vsel %vm4022, %v10773, %v10769
    %v10775 = vlaneseq
    %v10776 = vshrl.u32 %v10775, 7
    %v10777 = vsub.s32 %v4024, %v10776
    %v10778 = vrot.slane %v8465, %v10777
    %v10779 = vsel %vm4029, %v10778, %v10774
    %v10780 = vlaneseq
    %v10781 = vshrl.u32 %v10780, 7
    %v10782 = vsub.s32 %v4005, %v10781
    %v10783 = vrot.slane %v8468, %v10782
    %v10784 = vlaneseq
    %v10785 = vshrl.u32 %v10784, 7
    %v10786 = vsub.s32 %v4010, %v10785
    %v10787 = vrot.slane %v8471, %v10786
    %v10788 = vsel %vm4015, %v10787, %v10783
    %v10789 = vlaneseq
    %v10790 = vshrl.u32 %v10789, 7
    %v10791 = vsub.s32 %v4017, %v10790
    %v10792 = vrot.slane %v8474, %v10791
    %v10793 = vsel %vm4022, %v10792, %v10788
    %v10794 = vlaneseq
    %v10795 = vshrl.u32 %v10794, 7
    %v10796 = vsub.s32 %v4024, %v10795
    %v10797 = vrot.slane %v8477, %v10796
    %v10798 = vsel %vm4029, %v10797, %v10793
    %v10799 = vlaneseq
    %v10800 = vshrl.u32 %v10799, 7
    %v10801 = vsub.s32 %v4005, %v10800
    %v10802 = vrot.slane %v8480, %v10801
    %v10803 = vlaneseq
    %v10804 = vshrl.u32 %v10803, 7
    %v10805 = vsub.s32 %v4010, %v10804
    %v10806 = vrot.slane %v8483, %v10805
    %v10807 = vsel %vm4015, %v10806, %v10802
    %v10808 = vlaneseq
    %v10809 = vshrl.u32 %v10808, 7
    %v10810 = vsub.s32 %v4017, %v10809
    %v10811 = vrot.slane %v8486, %v10810
    %v10812 = vsel %vm4022, %v10811, %v10807
    %v10813 = vlaneseq
    %v10814 = vshrl.u32 %v10813, 7
    %v10815 = vsub.s32 %v4024, %v10814
    %v10816 = vrot.slane %v8489, %v10815
    %v10817 = vsel %vm4029, %v10816, %v10812
    %v10818 = vlaneseq
    %v10819 = vshrl.u32 %v10818, 7
    %v10820 = vsub.s32 %v4005, %v10819
    %v10821 = vrot.slane %v8492, %v10820
    %v10822 = vlaneseq
    %v10823 = vshrl.u32 %v10822, 7
    %v10824 = vsub.s32 %v4010, %v10823
    %v10825 = vrot.slane %v8495, %v10824
    %v10826 = vsel %vm4015, %v10825, %v10821
    %v10827 = vlaneseq
    %v10828 = vshrl.u32 %v10827, 7
    %v10829 = vsub.s32 %v4017, %v10828
    %v10830 = vrot.slane %v8498, %v10829
    %v10831 = vsel %vm4022, %v10830, %v10826
    %v10832 = vlaneseq
    %v10833 = vshrl.u32 %v10832, 7
    %v10834 = vsub.s32 %v4024, %v10833
    %v10835 = vrot.slane %v8501, %v10834
    %v10836 = vsel %vm4029, %v10835, %v10831
    %v10837 = vlaneseq
    %v10838 = vshrl.u32 %v10837, 7
    %v10839 = vsub.s32 %v4005, %v10838
    %v10840 = vrot.slane %v8504, %v10839
    %v10841 = vlaneseq
    %v10842 = vshrl.u32 %v10841, 7
    %v10843 = vsub.s32 %v4010, %v10842
    %v10844 = vrot.slane %v8507, %v10843
    %v10845 = vsel %vm4015, %v10844, %v10840
    %v10846 = vlaneseq
    %v10847 = vshrl.u32 %v10846, 7
    %v10848 = vsub.s32 %v4017, %v10847
    %v10849 = vrot.slane %v8510, %v10848
    %v10850 = vsel %vm4022, %v10849, %v10845
    %v10851 = vlaneseq
    %v10852 = vshrl.u32 %v10851, 7
    %v10853 = vsub.s32 %v4024, %v10852
    %v10854 = vrot.slane %v8513, %v10853
    %v10855 = vsel %vm4029, %v10854, %v10850
    %v10856 = vlaneseq
    %v10857 = vshrl.u32 %v10856, 7
    %v10858 = vsub.s32 %v4005, %v10857
    %v10859 = vrot.slane %v8516, %v10858
    %v10860 = vlaneseq
    %v10861 = vshrl.u32 %v10860, 7
    %v10862 = vsub.s32 %v4010, %v10861
    %v10863 = vrot.slane %v8519, %v10862
    %v10864 = vsel %vm4015, %v10863, %v10859
    %v10865 = vlaneseq
    %v10866 = vshrl.u32 %v10865, 7
    %v10867 = vsub.s32 %v4017, %v10866
    %v10868 = vrot.slane %v8522, %v10867
    %v10869 = vsel %vm4022, %v10868, %v10864
    %v10870 = vlaneseq
    %v10871 = vshrl.u32 %v10870, 7
    %v10872 = vsub.s32 %v4024, %v10871
    %v10873 = vrot.slane %v8525, %v10872
    %v10874 = vsel %vm4029, %v10873, %v10869
    %v10875 = vlaneseq
    %v10876 = vshrl.u32 %v10875, 7
    %v10877 = vsub.s32 %v4005, %v10876
    %v10878 = vrot.slane %v8528, %v10877
    %v10879 = vlaneseq
    %v10880 = vshrl.u32 %v10879, 7
    %v10881 = vsub.s32 %v4010, %v10880
    %v10882 = vrot.slane %v8531, %v10881
    %v10883 = vsel %vm4015, %v10882, %v10878
    %v10884 = vlaneseq
    %v10885 = vshrl.u32 %v10884, 7
    %v10886 = vsub.s32 %v4017, %v10885
    %v10887 = vrot.slane %v8534, %v10886
    %v10888 = vsel %vm4022, %v10887, %v10883
    %v10889 = vlaneseq
    %v10890 = vshrl.u32 %v10889, 7
    %v10891 = vsub.s32 %v4024, %v10890
    %v10892 = vrot.slane %v8537, %v10891
    %v10893 = vsel %vm4029, %v10892, %v10888
    %v10894 = vlaneseq
    %v10895 = vshrl.u32 %v10894, 7
    %v10896 = vsub.s32 %v4005, %v10895
    %v10897 = vrot.slane %v8540, %v10896
    %v10898 = vlaneseq
    %v10899 = vshrl.u32 %v10898, 7
    %v10900 = vsub.s32 %v4010, %v10899
    %v10901 = vrot.slane %v8543, %v10900
    %v10902 = vsel %vm4015, %v10901, %v10897
    %v10903 = vlaneseq
    %v10904 = vshrl.u32 %v10903, 7
    %v10905 = vsub.s32 %v4017, %v10904
    %v10906 = vrot.slane %v8546, %v10905
    %v10907 = vsel %vm4022, %v10906, %v10902
    %v10908 = vlaneseq
    %v10909 = vshrl.u32 %v10908, 7
    %v10910 = vsub.s32 %v4024, %v10909
    %v10911 = vrot.slane %v8549, %v10910
    %v10912 = vsel %vm4029, %v10911, %v10907
    %v10913 = vlaneseq
    %v10914 = vshrl.u32 %v10913, 7
    %v10915 = vsub.s32 %v4005, %v10914
    %v10916 = vrot.slane %v8552, %v10915
    %v10917 = vlaneseq
    %v10918 = vshrl.u32 %v10917, 7
    %v10919 = vsub.s32 %v4010, %v10918
    %v10920 = vrot.slane %v8555, %v10919
    %v10921 = vsel %vm4015, %v10920, %v10916
    %v10922 = vlaneseq
    %v10923 = vshrl.u32 %v10922, 7
    %v10924 = vsub.s32 %v4017, %v10923
    %v10925 = vrot.slane %v8558, %v10924
    %v10926 = vsel %vm4022, %v10925, %v10921
    %v10927 = vlaneseq
    %v10928 = vshrl.u32 %v10927, 7
    %v10929 = vsub.s32 %v4024, %v10928
    %v10930 = vrot.slane %v8561, %v10929
    %v10931 = vsel %vm4029, %v10930, %v10926
    %v10932 = vlaneseq
    %v10933 = vshrl.u32 %v10932, 7
    %v10934 = vsub.s32 %v4005, %v10933
    %v10935 = vrot.slane %v8564, %v10934
    %v10936 = vlaneseq
    %v10937 = vshrl.u32 %v10936, 7
    %v10938 = vsub.s32 %v4010, %v10937
    %v10939 = vrot.slane %v8567, %v10938
    %v10940 = vsel %vm4015, %v10939, %v10935
    %v10941 = vlaneseq
    %v10942 = vshrl.u32 %v10941, 7
    %v10943 = vsub.s32 %v4017, %v10942
    %v10944 = vrot.slane %v8570, %v10943
    %v10945 = vsel %vm4022, %v10944, %v10940
    %v10946 = vlaneseq
    %v10947 = vshrl.u32 %v10946, 7
    %v10948 = vsub.s32 %v4024, %v10947
    %v10949 = vrot.slane %v8573, %v10948
    %v10950 = vsel %vm4029, %v10949, %v10945
    %v10951 = vlaneseq
    %v10952 = vshrl.u32 %v10951, 7
    %v10953 = vsub.s32 %v4005, %v10952
    %v10954 = vrot.slane %v8576, %v10953
    %v10955 = vlaneseq
    %v10956 = vshrl.u32 %v10955, 7
    %v10957 = vsub.s32 %v4010, %v10956
    %v10958 = vrot.slane %v8579, %v10957
    %v10959 = vsel %vm4015, %v10958, %v10954
    %v10960 = vlaneseq
    %v10961 = vshrl.u32 %v10960, 7
    %v10962 = vsub.s32 %v4017, %v10961
    %v10963 = vrot.slane %v8582, %v10962
    %v10964 = vsel %vm4022, %v10963, %v10959
    %v10965 = vlaneseq
    %v10966 = vshrl.u32 %v10965, 7
    %v10967 = vsub.s32 %v4024, %v10966
    %v10968 = vrot.slane %v8585, %v10967
    %v10969 = vsel %vm4029, %v10968, %v10964
    %v10970 = vlaneseq
    %v10971 = vshrl.u32 %v10970, 7
    %v10972 = vsub.s32 %v4005, %v10971
    %v10973 = vrot.slane %v8588, %v10972
    %v10974 = vlaneseq
    %v10975 = vshrl.u32 %v10974, 7
    %v10976 = vsub.s32 %v4010, %v10975
    %v10977 = vrot.slane %v8591, %v10976
    %v10978 = vsel %vm4015, %v10977, %v10973
    %v10979 = vlaneseq
    %v10980 = vshrl.u32 %v10979, 7
    %v10981 = vsub.s32 %v4017, %v10980
    %v10982 = vrot.slane %v8594, %v10981
    %v10983 = vsel %vm4022, %v10982, %v10978
    %v10984 = vlaneseq
    %v10985 = vshrl.u32 %v10984, 7
    %v10986 = vsub.s32 %v4024, %v10985
    %v10987 = vrot.slane %v8597, %v10986
    %v10988 = vsel %vm4029, %v10987, %v10983
    %v10989 = vlaneseq
    %v10990 = vshrl.u32 %v10989, 7
    %v10991 = vsub.s32 %v4005, %v10990
    %v10992 = vrot.slane %v8600, %v10991
    %v10993 = vlaneseq
    %v10994 = vshrl.u32 %v10993, 7
    %v10995 = vsub.s32 %v4010, %v10994
    %v10996 = vrot.slane %v8603, %v10995
    %v10997 = vsel %vm4015, %v10996, %v10992
    %v10998 = vlaneseq
    %v10999 = vshrl.u32 %v10998, 7
    %v11000 = vsub.s32 %v4017, %v10999
    %v11001 = vrot.slane %v8606, %v11000
    %v11002 = vsel %vm4022, %v11001, %v10997
    %v11003 = vlaneseq
    %v11004 = vshrl.u32 %v11003, 7
    %v11005 = vsub.s32 %v4024, %v11004
    %v11006 = vrot.slane %v8609, %v11005
    %v11007 = vsel %vm4029, %v11006, %v11002
    %v11008 = vlaneseq
    %v11009 = vshrl.u32 %v11008, 7
    %v11010 = vsub.s32 %v4005, %v11009
    %v11011 = vrot.slane %v8612, %v11010
    %v11012 = vlaneseq
    %v11013 = vshrl.u32 %v11012, 7
    %v11014 = vsub.s32 %v4010, %v11013
    %v11015 = vrot.slane %v8615, %v11014
    %v11016 = vsel %vm4015, %v11015, %v11011
    %v11017 = vlaneseq
    %v11018 = vshrl.u32 %v11017, 7
    %v11019 = vsub.s32 %v4017, %v11018
    %v11020 = vrot.slane %v8618, %v11019
    %v11021 = vsel %vm4022, %v11020, %v11016
    %v11022 = vlaneseq
    %v11023 = vshrl.u32 %v11022, 7
    %v11024 = vsub.s32 %v4024, %v11023
    %v11025 = vrot.slane %v8621, %v11024
    %v11026 = vsel %vm4029, %v11025, %v11021
    %v11027 = vlaneseq
    %v11028 = vshrl.u32 %v11027, 7
    %v11029 = vsub.s32 %v4005, %v11028
    %v11030 = vrot.slane %v8624, %v11029
    %v11031 = vlaneseq
    %v11032 = vshrl.u32 %v11031, 7
    %v11033 = vsub.s32 %v4010, %v11032
    %v11034 = vrot.slane %v8627, %v11033
    %v11035 = vsel %vm4015, %v11034, %v11030
    %v11036 = vlaneseq
    %v11037 = vshrl.u32 %v11036, 7
    %v11038 = vsub.s32 %v4017, %v11037
    %v11039 = vrot.slane %v8630, %v11038
    %v11040 = vsel %vm4022, %v11039, %v11035
    %v11041 = vlaneseq
    %v11042 = vshrl.u32 %v11041, 7
    %v11043 = vsub.s32 %v4024, %v11042
    %v11044 = vrot.slane %v8633, %v11043
    %v11045 = vsel %vm4029, %v11044, %v11040
    %v11046 = vlaneseq
    %v11047 = vshrl.u32 %v11046, 7
    %v11048 = vsub.s32 %v4005, %v11047
    %v11049 = vrot.slane %v8636, %v11048
    %v11050 = vlaneseq
    %v11051 = vshrl.u32 %v11050, 7
    %v11052 = vsub.s32 %v4010, %v11051
    %v11053 = vrot.slane %v8639, %v11052
    %v11054 = vsel %vm4015, %v11053, %v11049
    %v11055 = vlaneseq
    %v11056 = vshrl.u32 %v11055, 7
    %v11057 = vsub.s32 %v4017, %v11056
    %v11058 = vrot.slane %v8642, %v11057
    %v11059 = vsel %vm4022, %v11058, %v11054
    %v11060 = vlaneseq
    %v11061 = vshrl.u32 %v11060, 7
    %v11062 = vsub.s32 %v4024, %v11061
    %v11063 = vrot.slane %v8645, %v11062
    %v11064 = vsel %vm4029, %v11063, %v11059
    %v11065 = vlaneseq
    %v11066 = vshrl.u32 %v11065, 7
    %v11067 = vsub.s32 %v4005, %v11066
    %v11068 = vrot.slane %v8648, %v11067
    %v11069 = vlaneseq
    %v11070 = vshrl.u32 %v11069, 7
    %v11071 = vsub.s32 %v4010, %v11070
    %v11072 = vrot.slane %v8651, %v11071
    %v11073 = vsel %vm4015, %v11072, %v11068
    %v11074 = vlaneseq
    %v11075 = vshrl.u32 %v11074, 7
    %v11076 = vsub.s32 %v4017, %v11075
    %v11077 = vrot.slane %v8654, %v11076
    %v11078 = vsel %vm4022, %v11077, %v11073
    %v11079 = vlaneseq
    %v11080 = vshrl.u32 %v11079, 7
    %v11081 = vsub.s32 %v4024, %v11080
    %v11082 = vrot.slane %v8657, %v11081
    %v11083 = vsel %vm4029, %v11082, %v11078
    %v11084 = vlaneseq
    %v11085 = vshrl.u32 %v11084, 7
    %v11086 = vsub.s32 %v4005, %v11085
    %v11087 = vrot.slane %v8660, %v11086
    %v11088 = vlaneseq
    %v11089 = vshrl.u32 %v11088, 7
    %v11090 = vsub.s32 %v4010, %v11089
    %v11091 = vrot.slane %v8663, %v11090
    %v11092 = vsel %vm4015, %v11091, %v11087
    %v11093 = vlaneseq
    %v11094 = vshrl.u32 %v11093, 7
    %v11095 = vsub.s32 %v4017, %v11094
    %v11096 = vrot.slane %v8666, %v11095
    %v11097 = vsel %vm4022, %v11096, %v11092
    %v11098 = vlaneseq
    %v11099 = vshrl.u32 %v11098, 7
    %v11100 = vsub.s32 %v4024, %v11099
    %v11101 = vrot.slane %v8669, %v11100
    %v11102 = vsel %vm4029, %v11101, %v11097
    %v11103 = vlaneseq
    %v11104 = vshrl.u32 %v11103, 7
    %v11105 = vsub.s32 %v4005, %v11104
    %v11106 = vrot.slane %v8672, %v11105
    %v11107 = vlaneseq
    %v11108 = vshrl.u32 %v11107, 7
    %v11109 = vsub.s32 %v4010, %v11108
    %v11110 = vrot.slane %v8675, %v11109
    %v11111 = vsel %vm4015, %v11110, %v11106
    %v11112 = vlaneseq
    %v11113 = vshrl.u32 %v11112, 7
    %v11114 = vsub.s32 %v4017, %v11113
    %v11115 = vrot.slane %v8678, %v11114
    %v11116 = vsel %vm4022, %v11115, %v11111
    %v11117 = vlaneseq
    %v11118 = vshrl.u32 %v11117, 7
    %v11119 = vsub.s32 %v4024, %v11118
    %v11120 = vrot.slane %v8681, %v11119
    %v11121 = vsel %vm4029, %v11120, %v11116
    %v11122 = vlaneseq
    %v11123 = vshrl.u32 %v11122, 7
    %v11124 = vsub.s32 %v4005, %v11123
    %v11125 = vrot.slane %v8684, %v11124
    %v11126 = vlaneseq
    %v11127 = vshrl.u32 %v11126, 7
    %v11128 = vsub.s32 %v4010, %v11127
    %v11129 = vrot.slane %v8687, %v11128
    %v11130 = vsel %vm4015, %v11129, %v11125
    %v11131 = vlaneseq
    %v11132 = vshrl.u32 %v11131, 7
    %v11133 = vsub.s32 %v4017, %v11132
    %v11134 = vrot.slane %v8690, %v11133
    %v11135 = vsel %vm4022, %v11134, %v11130
    %v11136 = vlaneseq
    %v11137 = vshrl.u32 %v11136, 7
    %v11138 = vsub.s32 %v4024, %v11137
    %v11139 = vrot.slane %v8693, %v11138
    %v11140 = vsel %vm4029, %v11139, %v11135
    %v11141 = vlaneseq
    %v11142 = vshrl.u32 %v11141, 7
    %v11143 = vsub.s32 %v4005, %v11142
    %v11144 = vrot.slane %v8696, %v11143
    %v11145 = vlaneseq
    %v11146 = vshrl.u32 %v11145, 7
    %v11147 = vsub.s32 %v4010, %v11146
    %v11148 = vrot.slane %v8699, %v11147
    %v11149 = vsel %vm4015, %v11148, %v11144
    %v11150 = vlaneseq
    %v11151 = vshrl.u32 %v11150, 7
    %v11152 = vsub.s32 %v4017, %v11151
    %v11153 = vrot.slane %v8702, %v11152
    %v11154 = vsel %vm4022, %v11153, %v11149
    %v11155 = vlaneseq
    %v11156 = vshrl.u32 %v11155, 7
    %v11157 = vsub.s32 %v4024, %v11156
    %v11158 = vrot.slane %v8705, %v11157
    %v11159 = vsel %vm4029, %v11158, %v11154
    %v11160 = vlaneseq
    %v11161 = vshrl.u32 %v11160, 7
    %v11162 = vsub.s32 %v4005, %v11161
    %v11163 = vrot.slane %v8708, %v11162
    %v11164 = vlaneseq
    %v11165 = vshrl.u32 %v11164, 7
    %v11166 = vsub.s32 %v4010, %v11165
    %v11167 = vrot.slane %v8711, %v11166
    %v11168 = vsel %vm4015, %v11167, %v11163
    %v11169 = vlaneseq
    %v11170 = vshrl.u32 %v11169, 7
    %v11171 = vsub.s32 %v4017, %v11170
    %v11172 = vrot.slane %v8714, %v11171
    %v11173 = vsel %vm4022, %v11172, %v11168
    %v11174 = vlaneseq
    %v11175 = vshrl.u32 %v11174, 7
    %v11176 = vsub.s32 %v4024, %v11175
    %v11177 = vrot.slane %v8717, %v11176
    %v11178 = vsel %vm4029, %v11177, %v11173
    %v11179 = vlaneseq
    %v11180 = vshrl.u32 %v11179, 7
    %v11181 = vsub.s32 %v4005, %v11180
    %v11182 = vrot.slane %v8720, %v11181
    %v11183 = vlaneseq
    %v11184 = vshrl.u32 %v11183, 7
    %v11185 = vsub.s32 %v4010, %v11184
    %v11186 = vrot.slane %v8723, %v11185
    %v11187 = vsel %vm4015, %v11186, %v11182
    %v11188 = vlaneseq
    %v11189 = vshrl.u32 %v11188, 7
    %v11190 = vsub.s32 %v4017, %v11189
    %v11191 = vrot.slane %v8726, %v11190
    %v11192 = vsel %vm4022, %v11191, %v11187
    %v11193 = vlaneseq
    %v11194 = vshrl.u32 %v11193, 7
    %v11195 = vsub.s32 %v4024, %v11194
    %v11196 = vrot.slane %v8729, %v11195
    %v11197 = vsel %vm4029, %v11196, %v11192
    %v11198 = vlaneseq
    %v11199 = vshrl.u32 %v11198, 7
    %v11200 = vsub.s32 %v4005, %v11199
    %v11201 = vrot.slane %v8732, %v11200
    %v11202 = vlaneseq
    %v11203 = vshrl.u32 %v11202, 7
    %v11204 = vsub.s32 %v4010, %v11203
    %v11205 = vrot.slane %v8735, %v11204
    %v11206 = vsel %vm4015, %v11205, %v11201
    %v11207 = vlaneseq
    %v11208 = vshrl.u32 %v11207, 7
    %v11209 = vsub.s32 %v4017, %v11208
    %v11210 = vrot.slane %v8738, %v11209
    %v11211 = vsel %vm4022, %v11210, %v11206
    %v11212 = vlaneseq
    %v11213 = vshrl.u32 %v11212, 7
    %v11214 = vsub.s32 %v4024, %v11213
    %v11215 = vrot.slane %v8741, %v11214
    %v11216 = vsel %vm4029, %v11215, %v11211
    %v11217 = vlaneseq
    %v11218 = vshrl.u32 %v11217, 7
    %v11219 = vsub.s32 %v4005, %v11218
    %v11220 = vrot.slane %v8744, %v11219
    %v11221 = vlaneseq
    %v11222 = vshrl.u32 %v11221, 7
    %v11223 = vsub.s32 %v4010, %v11222
    %v11224 = vrot.slane %v8747, %v11223
    %v11225 = vsel %vm4015, %v11224, %v11220
    %v11226 = vlaneseq
    %v11227 = vshrl.u32 %v11226, 7
    %v11228 = vsub.s32 %v4017, %v11227
    %v11229 = vrot.slane %v8750, %v11228
    %v11230 = vsel %vm4022, %v11229, %v11225
    %v11231 = vlaneseq
    %v11232 = vshrl.u32 %v11231, 7
    %v11233 = vsub.s32 %v4024, %v11232
    %v11234 = vrot.slane %v8753, %v11233
    %v11235 = vsel %vm4029, %v11234, %v11230
    %v11236 = vlaneseq
    %v11237 = vshrl.u32 %v11236, 7
    %v11238 = vsub.s32 %v4005, %v11237
    %v11239 = vrot.slane %v8756, %v11238
    %v11240 = vlaneseq
    %v11241 = vshrl.u32 %v11240, 7
    %v11242 = vsub.s32 %v4010, %v11241
    %v11243 = vrot.slane %v8759, %v11242
    %v11244 = vsel %vm4015, %v11243, %v11239
    %v11245 = vlaneseq
    %v11246 = vshrl.u32 %v11245, 7
    %v11247 = vsub.s32 %v4017, %v11246
    %v11248 = vrot.slane %v8762, %v11247
    %v11249 = vsel %vm4022, %v11248, %v11244
    %v11250 = vlaneseq
    %v11251 = vshrl.u32 %v11250, 7
    %v11252 = vsub.s32 %v4024, %v11251
    %v11253 = vrot.slane %v8765, %v11252
    %v11254 = vsel %vm4029, %v11253, %v11249
    %v11255 = vlaneseq
    %v11256 = vshrl.u32 %v11255, 7
    %v11257 = vsub.s32 %v4005, %v11256
    %v11258 = vrot.slane %v8768, %v11257
    %v11259 = vlaneseq
    %v11260 = vshrl.u32 %v11259, 7
    %v11261 = vsub.s32 %v4010, %v11260
    %v11262 = vrot.slane %v8771, %v11261
    %v11263 = vsel %vm4015, %v11262, %v11258
    %v11264 = vlaneseq
    %v11265 = vshrl.u32 %v11264, 7
    %v11266 = vsub.s32 %v4017, %v11265
    %v11267 = vrot.slane %v8774, %v11266
    %v11268 = vsel %vm4022, %v11267, %v11263
    %v11269 = vlaneseq
    %v11270 = vshrl.u32 %v11269, 7
    %v11271 = vsub.s32 %v4024, %v11270
    %v11272 = vrot.slane %v8777, %v11271
    %v11273 = vsel %vm4029, %v11272, %v11268
    %v11274 = vsel %vm5228, %v10095, %v10076
    %v11275 = vsel %vm5230, %v10114, %v11274
    %v11276 = vsel %vm5232, %v10133, %v11275
    %v11277 = vsel %vm5234, %v10152, %v11276
    %v11278 = vsel %vm5236, %v10171, %v11277
    %v11279 = vsel %vm5238, %v10190, %v11278
    %v11280 = vsel %vm5240, %v10209, %v11279
    %v11281 = vsel %vm5228, %v10247, %v10228
    %v11282 = vsel %vm5230, %v10266, %v11281
    %v11283 = vsel %vm5232, %v10285, %v11282
    %v11284 = vsel %vm5234, %v10304, %v11283
    %v11285 = vsel %vm5236, %v10323, %v11284
    %v11286 = vsel %vm5238, %v10342, %v11285
    %v11287 = vsel %vm5240, %v10361, %v11286
    %v11288 = vsel %vm5228, %v10399, %v10380
    %v11289 = vsel %vm5230, %v10418, %v11288
    %v11290 = vsel %vm5232, %v10437, %v11289
    %v11291 = vsel %vm5234, %v10456, %v11290
    %v11292 = vsel %vm5236, %v10475, %v11291
    %v11293 = vsel %vm5238, %v10494, %v11292
    %v11294 = vsel %vm5240, %v10513, %v11293
    %v11295 = vsel %vm5228, %v10551, %v10532
    %v11296 = vsel %vm5230, %v10570, %v11295
    %v11297 = vsel %vm5232, %v10589, %v11296
    %v11298 = vsel %vm5234, %v10608, %v11297
    %v11299 = vsel %vm5236, %v10627, %v11298
    %v11300 = vsel %vm5238, %v10646, %v11299
    %v11301 = vsel %vm5240, %v10665, %v11300
    %v11302 = vsel %vm5228, %v10703, %v10684
    %v11303 = vsel %vm5230, %v10722, %v11302
    %v11304 = vsel %vm5232, %v10741, %v11303
    %v11305 = vsel %vm5234, %v10760, %v11304
    %v11306 = vsel %vm5236, %v10779, %v11305
    %v11307 = vsel %vm5238, %v10798, %v11306
    %v11308 = vsel %vm5240, %v10817, %v11307
    %v11309 = vsel %vm5228, %v10855, %v10836
    %v11310 = vsel %vm5230, %v10874, %v11309
    %v11311 = vsel %vm5232, %v10893, %v11310
    %v11312 = vsel %vm5234, %v10912, %v11311
    %v11313 = vsel %vm5236, %v10931, %v11312
    %v11314 = vsel %vm5238, %v10950, %v11313
    %v11315 = vsel %vm5240, %v10969, %v11314
    %v11316 = vsel %vm5228, %v11007, %v10988
    %v11317 = vsel %vm5230, %v11026, %v11316
    %v11318 = vsel %vm5232, %v11045, %v11317
    %v11319 = vsel %vm5234, %v11064, %v11318
    %v11320 = vsel %vm5236, %v11083, %v11319
    %v11321 = vsel %vm5238, %v11102, %v11320
    %v11322 = vsel %vm5240, %v11121, %v11321
    %v11323 = vsel %vm5228, %v11159, %v11140
    %v11324 = vsel %vm5230, %v11178, %v11323
    %v11325 = vsel %vm5232, %v11197, %v11324
    %v11326 = vsel %vm5234, %v11216, %v11325
    %v11327 = vsel %vm5236, %v11235, %v11326
    %v11328 = vsel %vm5238, %v11254, %v11327
    %v11329 = vsel %vm5240, %v11273, %v11328
    %v11338 = vsel %vm3740, %v11280, 0.0
    %v11339 = vsel %vm3741, %v11287, 0.0
    %v11340 = vsel %vm3742, %v11294, 0.0
    %v11341 = vsel %vm3743, %v11301, 0.0
    %v11342 = vsel %vm3744, %v11308, 0.0
    %v11343 = vsel %vm3745, %v11315, 0.0
    %v11344 = vsel %vm3746, %v11322, 0.0
    %v11345 = vsel %vm3747, %v11329, 0.0
    %v11602 = vlaneseq
    %v11603 = vshrl.u32 %v11602, 7
    %v11604 = vsub.s32 %v4005, %v11603
    %v11605 = vrot.slane %v9036, %v11604
    %v11606 = vlaneseq
    %v11607 = vshrl.u32 %v11606, 7
    %v11608 = vsub.s32 %v4010, %v11607
    %v11609 = vrot.slane %v9039, %v11608
    %v11610 = vsel %vm4015, %v11609, %v11605
    %v11611 = vlaneseq
    %v11612 = vshrl.u32 %v11611, 7
    %v11613 = vsub.s32 %v4017, %v11612
    %v11614 = vrot.slane %v9042, %v11613
    %v11615 = vsel %vm4022, %v11614, %v11610
    %v11616 = vlaneseq
    %v11617 = vshrl.u32 %v11616, 7
    %v11618 = vsub.s32 %v4024, %v11617
    %v11619 = vrot.slane %v9045, %v11618
    %v11620 = vsel %vm4029, %v11619, %v11615
    %v11621 = vlaneseq
    %v11622 = vshrl.u32 %v11621, 7
    %v11623 = vsub.s32 %v4005, %v11622
    %v11624 = vrot.slane %v9048, %v11623
    %v11625 = vlaneseq
    %v11626 = vshrl.u32 %v11625, 7
    %v11627 = vsub.s32 %v4010, %v11626
    %v11628 = vrot.slane %v9051, %v11627
    %v11629 = vsel %vm4015, %v11628, %v11624
    %v11630 = vlaneseq
    %v11631 = vshrl.u32 %v11630, 7
    %v11632 = vsub.s32 %v4017, %v11631
    %v11633 = vrot.slane %v9054, %v11632
    %v11634 = vsel %vm4022, %v11633, %v11629
    %v11635 = vlaneseq
    %v11636 = vshrl.u32 %v11635, 7
    %v11637 = vsub.s32 %v4024, %v11636
    %v11638 = vrot.slane %v9057, %v11637
    %v11639 = vsel %vm4029, %v11638, %v11634
    %v11640 = vlaneseq
    %v11641 = vshrl.u32 %v11640, 7
    %v11642 = vsub.s32 %v4005, %v11641
    %v11643 = vrot.slane %v9060, %v11642
    %v11644 = vlaneseq
    %v11645 = vshrl.u32 %v11644, 7
    %v11646 = vsub.s32 %v4010, %v11645
    %v11647 = vrot.slane %v9063, %v11646
    %v11648 = vsel %vm4015, %v11647, %v11643
    %v11649 = vlaneseq
    %v11650 = vshrl.u32 %v11649, 7
    %v11651 = vsub.s32 %v4017, %v11650
    %v11652 = vrot.slane %v9066, %v11651
    %v11653 = vsel %vm4022, %v11652, %v11648
    %v11654 = vlaneseq
    %v11655 = vshrl.u32 %v11654, 7
    %v11656 = vsub.s32 %v4024, %v11655
    %v11657 = vrot.slane %v9069, %v11656
    %v11658 = vsel %vm4029, %v11657, %v11653
    %v11659 = vlaneseq
    %v11660 = vshrl.u32 %v11659, 7
    %v11661 = vsub.s32 %v4005, %v11660
    %v11662 = vrot.slane %v9072, %v11661
    %v11663 = vlaneseq
    %v11664 = vshrl.u32 %v11663, 7
    %v11665 = vsub.s32 %v4010, %v11664
    %v11666 = vrot.slane %v9075, %v11665
    %v11667 = vsel %vm4015, %v11666, %v11662
    %v11668 = vlaneseq
    %v11669 = vshrl.u32 %v11668, 7
    %v11670 = vsub.s32 %v4017, %v11669
    %v11671 = vrot.slane %v9078, %v11670
    %v11672 = vsel %vm4022, %v11671, %v11667
    %v11673 = vlaneseq
    %v11674 = vshrl.u32 %v11673, 7
    %v11675 = vsub.s32 %v4024, %v11674
    %v11676 = vrot.slane %v9081, %v11675
    %v11677 = vsel %vm4029, %v11676, %v11672
    %v11678 = vlaneseq
    %v11679 = vshrl.u32 %v11678, 7
    %v11680 = vsub.s32 %v4005, %v11679
    %v11681 = vrot.slane %v9084, %v11680
    %v11682 = vlaneseq
    %v11683 = vshrl.u32 %v11682, 7
    %v11684 = vsub.s32 %v4010, %v11683
    %v11685 = vrot.slane %v9087, %v11684
    %v11686 = vsel %vm4015, %v11685, %v11681
    %v11687 = vlaneseq
    %v11688 = vshrl.u32 %v11687, 7
    %v11689 = vsub.s32 %v4017, %v11688
    %v11690 = vrot.slane %v9090, %v11689
    %v11691 = vsel %vm4022, %v11690, %v11686
    %v11692 = vlaneseq
    %v11693 = vshrl.u32 %v11692, 7
    %v11694 = vsub.s32 %v4024, %v11693
    %v11695 = vrot.slane %v9093, %v11694
    %v11696 = vsel %vm4029, %v11695, %v11691
    %v11697 = vlaneseq
    %v11698 = vshrl.u32 %v11697, 7
    %v11699 = vsub.s32 %v4005, %v11698
    %v11700 = vrot.slane %v9096, %v11699
    %v11701 = vlaneseq
    %v11702 = vshrl.u32 %v11701, 7
    %v11703 = vsub.s32 %v4010, %v11702
    %v11704 = vrot.slane %v9099, %v11703
    %v11705 = vsel %vm4015, %v11704, %v11700
    %v11706 = vlaneseq
    %v11707 = vshrl.u32 %v11706, 7
    %v11708 = vsub.s32 %v4017, %v11707
    %v11709 = vrot.slane %v9102, %v11708
    %v11710 = vsel %vm4022, %v11709, %v11705
    %v11711 = vlaneseq
    %v11712 = vshrl.u32 %v11711, 7
    %v11713 = vsub.s32 %v4024, %v11712
    %v11714 = vrot.slane %v9105, %v11713
    %v11715 = vsel %vm4029, %v11714, %v11710
    %v11716 = vlaneseq
    %v11717 = vshrl.u32 %v11716, 7
    %v11718 = vsub.s32 %v4005, %v11717
    %v11719 = vrot.slane %v9108, %v11718
    %v11720 = vlaneseq
    %v11721 = vshrl.u32 %v11720, 7
    %v11722 = vsub.s32 %v4010, %v11721
    %v11723 = vrot.slane %v9111, %v11722
    %v11724 = vsel %vm4015, %v11723, %v11719
    %v11725 = vlaneseq
    %v11726 = vshrl.u32 %v11725, 7
    %v11727 = vsub.s32 %v4017, %v11726
    %v11728 = vrot.slane %v9114, %v11727
    %v11729 = vsel %vm4022, %v11728, %v11724
    %v11730 = vlaneseq
    %v11731 = vshrl.u32 %v11730, 7
    %v11732 = vsub.s32 %v4024, %v11731
    %v11733 = vrot.slane %v9117, %v11732
    %v11734 = vsel %vm4029, %v11733, %v11729
    %v11735 = vlaneseq
    %v11736 = vshrl.u32 %v11735, 7
    %v11737 = vsub.s32 %v4005, %v11736
    %v11738 = vrot.slane %v9120, %v11737
    %v11739 = vlaneseq
    %v11740 = vshrl.u32 %v11739, 7
    %v11741 = vsub.s32 %v4010, %v11740
    %v11742 = vrot.slane %v9123, %v11741
    %v11743 = vsel %vm4015, %v11742, %v11738
    %v11744 = vlaneseq
    %v11745 = vshrl.u32 %v11744, 7
    %v11746 = vsub.s32 %v4017, %v11745
    %v11747 = vrot.slane %v9126, %v11746
    %v11748 = vsel %vm4022, %v11747, %v11743
    %v11749 = vlaneseq
    %v11750 = vshrl.u32 %v11749, 7
    %v11751 = vsub.s32 %v4024, %v11750
    %v11752 = vrot.slane %v9129, %v11751
    %v11753 = vsel %vm4029, %v11752, %v11748
    %v11754 = vlaneseq
    %v11755 = vshrl.u32 %v11754, 7
    %v11756 = vsub.s32 %v4005, %v11755
    %v11757 = vrot.slane %v9132, %v11756
    %v11758 = vlaneseq
    %v11759 = vshrl.u32 %v11758, 7
    %v11760 = vsub.s32 %v4010, %v11759
    %v11761 = vrot.slane %v9135, %v11760
    %v11762 = vsel %vm4015, %v11761, %v11757
    %v11763 = vlaneseq
    %v11764 = vshrl.u32 %v11763, 7
    %v11765 = vsub.s32 %v4017, %v11764
    %v11766 = vrot.slane %v9138, %v11765
    %v11767 = vsel %vm4022, %v11766, %v11762
    %v11768 = vlaneseq
    %v11769 = vshrl.u32 %v11768, 7
    %v11770 = vsub.s32 %v4024, %v11769
    %v11771 = vrot.slane %v9141, %v11770
    %v11772 = vsel %vm4029, %v11771, %v11767
    %v11773 = vlaneseq
    %v11774 = vshrl.u32 %v11773, 7
    %v11775 = vsub.s32 %v4005, %v11774
    %v11776 = vrot.slane %v9144, %v11775
    %v11777 = vlaneseq
    %v11778 = vshrl.u32 %v11777, 7
    %v11779 = vsub.s32 %v4010, %v11778
    %v11780 = vrot.slane %v9147, %v11779
    %v11781 = vsel %vm4015, %v11780, %v11776
    %v11782 = vlaneseq
    %v11783 = vshrl.u32 %v11782, 7
    %v11784 = vsub.s32 %v4017, %v11783
    %v11785 = vrot.slane %v9150, %v11784
    %v11786 = vsel %vm4022, %v11785, %v11781
    %v11787 = vlaneseq
    %v11788 = vshrl.u32 %v11787, 7
    %v11789 = vsub.s32 %v4024, %v11788
    %v11790 = vrot.slane %v9153, %v11789
    %v11791 = vsel %vm4029, %v11790, %v11786
    %v11792 = vlaneseq
    %v11793 = vshrl.u32 %v11792, 7
    %v11794 = vsub.s32 %v4005, %v11793
    %v11795 = vrot.slane %v9156, %v11794
    %v11796 = vlaneseq
    %v11797 = vshrl.u32 %v11796, 7
    %v11798 = vsub.s32 %v4010, %v11797
    %v11799 = vrot.slane %v9159, %v11798
    %v11800 = vsel %vm4015, %v11799, %v11795
    %v11801 = vlaneseq
    %v11802 = vshrl.u32 %v11801, 7
    %v11803 = vsub.s32 %v4017, %v11802
    %v11804 = vrot.slane %v9162, %v11803
    %v11805 = vsel %vm4022, %v11804, %v11800
    %v11806 = vlaneseq
    %v11807 = vshrl.u32 %v11806, 7
    %v11808 = vsub.s32 %v4024, %v11807
    %v11809 = vrot.slane %v9165, %v11808
    %v11810 = vsel %vm4029, %v11809, %v11805
    %v11811 = vlaneseq
    %v11812 = vshrl.u32 %v11811, 7
    %v11813 = vsub.s32 %v4005, %v11812
    %v11814 = vrot.slane %v9168, %v11813
    %v11815 = vlaneseq
    %v11816 = vshrl.u32 %v11815, 7
    %v11817 = vsub.s32 %v4010, %v11816
    %v11818 = vrot.slane %v9171, %v11817
    %v11819 = vsel %vm4015, %v11818, %v11814
    %v11820 = vlaneseq
    %v11821 = vshrl.u32 %v11820, 7
    %v11822 = vsub.s32 %v4017, %v11821
    %v11823 = vrot.slane %v9174, %v11822
    %v11824 = vsel %vm4022, %v11823, %v11819
    %v11825 = vlaneseq
    %v11826 = vshrl.u32 %v11825, 7
    %v11827 = vsub.s32 %v4024, %v11826
    %v11828 = vrot.slane %v9177, %v11827
    %v11829 = vsel %vm4029, %v11828, %v11824
    %v11830 = vlaneseq
    %v11831 = vshrl.u32 %v11830, 7
    %v11832 = vsub.s32 %v4005, %v11831
    %v11833 = vrot.slane %v9180, %v11832
    %v11834 = vlaneseq
    %v11835 = vshrl.u32 %v11834, 7
    %v11836 = vsub.s32 %v4010, %v11835
    %v11837 = vrot.slane %v9183, %v11836
    %v11838 = vsel %vm4015, %v11837, %v11833
    %v11839 = vlaneseq
    %v11840 = vshrl.u32 %v11839, 7
    %v11841 = vsub.s32 %v4017, %v11840
    %v11842 = vrot.slane %v9186, %v11841
    %v11843 = vsel %vm4022, %v11842, %v11838
    %v11844 = vlaneseq
    %v11845 = vshrl.u32 %v11844, 7
    %v11846 = vsub.s32 %v4024, %v11845
    %v11847 = vrot.slane %v9189, %v11846
    %v11848 = vsel %vm4029, %v11847, %v11843
    %v11849 = vlaneseq
    %v11850 = vshrl.u32 %v11849, 7
    %v11851 = vsub.s32 %v4005, %v11850
    %v11852 = vrot.slane %v9192, %v11851
    %v11853 = vlaneseq
    %v11854 = vshrl.u32 %v11853, 7
    %v11855 = vsub.s32 %v4010, %v11854
    %v11856 = vrot.slane %v9195, %v11855
    %v11857 = vsel %vm4015, %v11856, %v11852
    %v11858 = vlaneseq
    %v11859 = vshrl.u32 %v11858, 7
    %v11860 = vsub.s32 %v4017, %v11859
    %v11861 = vrot.slane %v9198, %v11860
    %v11862 = vsel %vm4022, %v11861, %v11857
    %v11863 = vlaneseq
    %v11864 = vshrl.u32 %v11863, 7
    %v11865 = vsub.s32 %v4024, %v11864
    %v11866 = vrot.slane %v9201, %v11865
    %v11867 = vsel %vm4029, %v11866, %v11862
    %v11868 = vlaneseq
    %v11869 = vshrl.u32 %v11868, 7
    %v11870 = vsub.s32 %v4005, %v11869
    %v11871 = vrot.slane %v9204, %v11870
    %v11872 = vlaneseq
    %v11873 = vshrl.u32 %v11872, 7
    %v11874 = vsub.s32 %v4010, %v11873
    %v11875 = vrot.slane %v9207, %v11874
    %v11876 = vsel %vm4015, %v11875, %v11871
    %v11877 = vlaneseq
    %v11878 = vshrl.u32 %v11877, 7
    %v11879 = vsub.s32 %v4017, %v11878
    %v11880 = vrot.slane %v9210, %v11879
    %v11881 = vsel %vm4022, %v11880, %v11876
    %v11882 = vlaneseq
    %v11883 = vshrl.u32 %v11882, 7
    %v11884 = vsub.s32 %v4024, %v11883
    %v11885 = vrot.slane %v9213, %v11884
    %v11886 = vsel %vm4029, %v11885, %v11881
    %v11887 = vlaneseq
    %v11888 = vshrl.u32 %v11887, 7
    %v11889 = vsub.s32 %v4005, %v11888
    %v11890 = vrot.slane %v9216, %v11889
    %v11891 = vlaneseq
    %v11892 = vshrl.u32 %v11891, 7
    %v11893 = vsub.s32 %v4010, %v11892
    %v11894 = vrot.slane %v9219, %v11893
    %v11895 = vsel %vm4015, %v11894, %v11890
    %v11896 = vlaneseq
    %v11897 = vshrl.u32 %v11896, 7
    %v11898 = vsub.s32 %v4017, %v11897
    %v11899 = vrot.slane %v9222, %v11898
    %v11900 = vsel %vm4022, %v11899, %v11895
    %v11901 = vlaneseq
    %v11902 = vshrl.u32 %v11901, 7
    %v11903 = vsub.s32 %v4024, %v11902
    %v11904 = vrot.slane %v9225, %v11903
    %v11905 = vsel %vm4029, %v11904, %v11900
    %v11906 = vlaneseq
    %v11907 = vshrl.u32 %v11906, 7
    %v11908 = vsub.s32 %v4005, %v11907
    %v11909 = vrot.slane %v9228, %v11908
    %v11910 = vlaneseq
    %v11911 = vshrl.u32 %v11910, 7
    %v11912 = vsub.s32 %v4010, %v11911
    %v11913 = vrot.slane %v9231, %v11912
    %v11914 = vsel %vm4015, %v11913, %v11909
    %v11915 = vlaneseq
    %v11916 = vshrl.u32 %v11915, 7
    %v11917 = vsub.s32 %v4017, %v11916
    %v11918 = vrot.slane %v9234, %v11917
    %v11919 = vsel %vm4022, %v11918, %v11914
    %v11920 = vlaneseq
    %v11921 = vshrl.u32 %v11920, 7
    %v11922 = vsub.s32 %v4024, %v11921
    %v11923 = vrot.slane %v9237, %v11922
    %v11924 = vsel %vm4029, %v11923, %v11919
    %v11925 = vlaneseq
    %v11926 = vshrl.u32 %v11925, 7
    %v11927 = vsub.s32 %v4005, %v11926
    %v11928 = vrot.slane %v9240, %v11927
    %v11929 = vlaneseq
    %v11930 = vshrl.u32 %v11929, 7
    %v11931 = vsub.s32 %v4010, %v11930
    %v11932 = vrot.slane %v9243, %v11931
    %v11933 = vsel %vm4015, %v11932, %v11928
    %v11934 = vlaneseq
    %v11935 = vshrl.u32 %v11934, 7
    %v11936 = vsub.s32 %v4017, %v11935
    %v11937 = vrot.slane %v9246, %v11936
    %v11938 = vsel %vm4022, %v11937, %v11933
    %v11939 = vlaneseq
    %v11940 = vshrl.u32 %v11939, 7
    %v11941 = vsub.s32 %v4024, %v11940
    %v11942 = vrot.slane %v9249, %v11941
    %v11943 = vsel %vm4029, %v11942, %v11938
    %v11944 = vlaneseq
    %v11945 = vshrl.u32 %v11944, 7
    %v11946 = vsub.s32 %v4005, %v11945
    %v11947 = vrot.slane %v9252, %v11946
    %v11948 = vlaneseq
    %v11949 = vshrl.u32 %v11948, 7
    %v11950 = vsub.s32 %v4010, %v11949
    %v11951 = vrot.slane %v9255, %v11950
    %v11952 = vsel %vm4015, %v11951, %v11947
    %v11953 = vlaneseq
    %v11954 = vshrl.u32 %v11953, 7
    %v11955 = vsub.s32 %v4017, %v11954
    %v11956 = vrot.slane %v9258, %v11955
    %v11957 = vsel %vm4022, %v11956, %v11952
    %v11958 = vlaneseq
    %v11959 = vshrl.u32 %v11958, 7
    %v11960 = vsub.s32 %v4024, %v11959
    %v11961 = vrot.slane %v9261, %v11960
    %v11962 = vsel %vm4029, %v11961, %v11957
    %v11963 = vlaneseq
    %v11964 = vshrl.u32 %v11963, 7
    %v11965 = vsub.s32 %v4005, %v11964
    %v11966 = vrot.slane %v9264, %v11965
    %v11967 = vlaneseq
    %v11968 = vshrl.u32 %v11967, 7
    %v11969 = vsub.s32 %v4010, %v11968
    %v11970 = vrot.slane %v9267, %v11969
    %v11971 = vsel %vm4015, %v11970, %v11966
    %v11972 = vlaneseq
    %v11973 = vshrl.u32 %v11972, 7
    %v11974 = vsub.s32 %v4017, %v11973
    %v11975 = vrot.slane %v9270, %v11974
    %v11976 = vsel %vm4022, %v11975, %v11971
    %v11977 = vlaneseq
    %v11978 = vshrl.u32 %v11977, 7
    %v11979 = vsub.s32 %v4024, %v11978
    %v11980 = vrot.slane %v9273, %v11979
    %v11981 = vsel %vm4029, %v11980, %v11976
    %v11982 = vlaneseq
    %v11983 = vshrl.u32 %v11982, 7
    %v11984 = vsub.s32 %v4005, %v11983
    %v11985 = vrot.slane %v9276, %v11984
    %v11986 = vlaneseq
    %v11987 = vshrl.u32 %v11986, 7
    %v11988 = vsub.s32 %v4010, %v11987
    %v11989 = vrot.slane %v9279, %v11988
    %v11990 = vsel %vm4015, %v11989, %v11985
    %v11991 = vlaneseq
    %v11992 = vshrl.u32 %v11991, 7
    %v11993 = vsub.s32 %v4017, %v11992
    %v11994 = vrot.slane %v9282, %v11993
    %v11995 = vsel %vm4022, %v11994, %v11990
    %v11996 = vlaneseq
    %v11997 = vshrl.u32 %v11996, 7
    %v11998 = vsub.s32 %v4024, %v11997
    %v11999 = vrot.slane %v9285, %v11998
    %v12000 = vsel %vm4029, %v11999, %v11995
    %v12001 = vlaneseq
    %v12002 = vshrl.u32 %v12001, 7
    %v12003 = vsub.s32 %v4005, %v12002
    %v12004 = vrot.slane %v9288, %v12003
    %v12005 = vlaneseq
    %v12006 = vshrl.u32 %v12005, 7
    %v12007 = vsub.s32 %v4010, %v12006
    %v12008 = vrot.slane %v9291, %v12007
    %v12009 = vsel %vm4015, %v12008, %v12004
    %v12010 = vlaneseq
    %v12011 = vshrl.u32 %v12010, 7
    %v12012 = vsub.s32 %v4017, %v12011
    %v12013 = vrot.slane %v9294, %v12012
    %v12014 = vsel %vm4022, %v12013, %v12009
    %v12015 = vlaneseq
    %v12016 = vshrl.u32 %v12015, 7
    %v12017 = vsub.s32 %v4024, %v12016
    %v12018 = vrot.slane %v9297, %v12017
    %v12019 = vsel %vm4029, %v12018, %v12014
    %v12020 = vlaneseq
    %v12021 = vshrl.u32 %v12020, 7
    %v12022 = vsub.s32 %v4005, %v12021
    %v12023 = vrot.slane %v9300, %v12022
    %v12024 = vlaneseq
    %v12025 = vshrl.u32 %v12024, 7
    %v12026 = vsub.s32 %v4010, %v12025
    %v12027 = vrot.slane %v9303, %v12026
    %v12028 = vsel %vm4015, %v12027, %v12023
    %v12029 = vlaneseq
    %v12030 = vshrl.u32 %v12029, 7
    %v12031 = vsub.s32 %v4017, %v12030
    %v12032 = vrot.slane %v9306, %v12031
    %v12033 = vsel %vm4022, %v12032, %v12028
    %v12034 = vlaneseq
    %v12035 = vshrl.u32 %v12034, 7
    %v12036 = vsub.s32 %v4024, %v12035
    %v12037 = vrot.slane %v9309, %v12036
    %v12038 = vsel %vm4029, %v12037, %v12033
    %v12039 = vlaneseq
    %v12040 = vshrl.u32 %v12039, 7
    %v12041 = vsub.s32 %v4005, %v12040
    %v12042 = vrot.slane %v9312, %v12041
    %v12043 = vlaneseq
    %v12044 = vshrl.u32 %v12043, 7
    %v12045 = vsub.s32 %v4010, %v12044
    %v12046 = vrot.slane %v9315, %v12045
    %v12047 = vsel %vm4015, %v12046, %v12042
    %v12048 = vlaneseq
    %v12049 = vshrl.u32 %v12048, 7
    %v12050 = vsub.s32 %v4017, %v12049
    %v12051 = vrot.slane %v9318, %v12050
    %v12052 = vsel %vm4022, %v12051, %v12047
    %v12053 = vlaneseq
    %v12054 = vshrl.u32 %v12053, 7
    %v12055 = vsub.s32 %v4024, %v12054
    %v12056 = vrot.slane %v9321, %v12055
    %v12057 = vsel %vm4029, %v12056, %v12052
    %v12058 = vlaneseq
    %v12059 = vshrl.u32 %v12058, 7
    %v12060 = vsub.s32 %v4005, %v12059
    %v12061 = vrot.slane %v9324, %v12060
    %v12062 = vlaneseq
    %v12063 = vshrl.u32 %v12062, 7
    %v12064 = vsub.s32 %v4010, %v12063
    %v12065 = vrot.slane %v9327, %v12064
    %v12066 = vsel %vm4015, %v12065, %v12061
    %v12067 = vlaneseq
    %v12068 = vshrl.u32 %v12067, 7
    %v12069 = vsub.s32 %v4017, %v12068
    %v12070 = vrot.slane %v9330, %v12069
    %v12071 = vsel %vm4022, %v12070, %v12066
    %v12072 = vlaneseq
    %v12073 = vshrl.u32 %v12072, 7
    %v12074 = vsub.s32 %v4024, %v12073
    %v12075 = vrot.slane %v9333, %v12074
    %v12076 = vsel %vm4029, %v12075, %v12071
    %v12077 = vlaneseq
    %v12078 = vshrl.u32 %v12077, 7
    %v12079 = vsub.s32 %v4005, %v12078
    %v12080 = vrot.slane %v9336, %v12079
    %v12081 = vlaneseq
    %v12082 = vshrl.u32 %v12081, 7
    %v12083 = vsub.s32 %v4010, %v12082
    %v12084 = vrot.slane %v9339, %v12083
    %v12085 = vsel %vm4015, %v12084, %v12080
    %v12086 = vlaneseq
    %v12087 = vshrl.u32 %v12086, 7
    %v12088 = vsub.s32 %v4017, %v12087
    %v12089 = vrot.slane %v9342, %v12088
    %v12090 = vsel %vm4022, %v12089, %v12085
    %v12091 = vlaneseq
    %v12092 = vshrl.u32 %v12091, 7
    %v12093 = vsub.s32 %v4024, %v12092
    %v12094 = vrot.slane %v9345, %v12093
    %v12095 = vsel %vm4029, %v12094, %v12090
    %v12096 = vlaneseq
    %v12097 = vshrl.u32 %v12096, 7
    %v12098 = vsub.s32 %v4005, %v12097
    %v12099 = vrot.slane %v9348, %v12098
    %v12100 = vlaneseq
    %v12101 = vshrl.u32 %v12100, 7
    %v12102 = vsub.s32 %v4010, %v12101
    %v12103 = vrot.slane %v9351, %v12102
    %v12104 = vsel %vm4015, %v12103, %v12099
    %v12105 = vlaneseq
    %v12106 = vshrl.u32 %v12105, 7
    %v12107 = vsub.s32 %v4017, %v12106
    %v12108 = vrot.slane %v9354, %v12107
    %v12109 = vsel %vm4022, %v12108, %v12104
    %v12110 = vlaneseq
    %v12111 = vshrl.u32 %v12110, 7
    %v12112 = vsub.s32 %v4024, %v12111
    %v12113 = vrot.slane %v9357, %v12112
    %v12114 = vsel %vm4029, %v12113, %v12109
    %v12115 = vlaneseq
    %v12116 = vshrl.u32 %v12115, 7
    %v12117 = vsub.s32 %v4005, %v12116
    %v12118 = vrot.slane %v9360, %v12117
    %v12119 = vlaneseq
    %v12120 = vshrl.u32 %v12119, 7
    %v12121 = vsub.s32 %v4010, %v12120
    %v12122 = vrot.slane %v9363, %v12121
    %v12123 = vsel %vm4015, %v12122, %v12118
    %v12124 = vlaneseq
    %v12125 = vshrl.u32 %v12124, 7
    %v12126 = vsub.s32 %v4017, %v12125
    %v12127 = vrot.slane %v9366, %v12126
    %v12128 = vsel %vm4022, %v12127, %v12123
    %v12129 = vlaneseq
    %v12130 = vshrl.u32 %v12129, 7
    %v12131 = vsub.s32 %v4024, %v12130
    %v12132 = vrot.slane %v9369, %v12131
    %v12133 = vsel %vm4029, %v12132, %v12128
    %v12134 = vlaneseq
    %v12135 = vshrl.u32 %v12134, 7
    %v12136 = vsub.s32 %v4005, %v12135
    %v12137 = vrot.slane %v9372, %v12136
    %v12138 = vlaneseq
    %v12139 = vshrl.u32 %v12138, 7
    %v12140 = vsub.s32 %v4010, %v12139
    %v12141 = vrot.slane %v9375, %v12140
    %v12142 = vsel %vm4015, %v12141, %v12137
    %v12143 = vlaneseq
    %v12144 = vshrl.u32 %v12143, 7
    %v12145 = vsub.s32 %v4017, %v12144
    %v12146 = vrot.slane %v9378, %v12145
    %v12147 = vsel %vm4022, %v12146, %v12142
    %v12148 = vlaneseq
    %v12149 = vshrl.u32 %v12148, 7
    %v12150 = vsub.s32 %v4024, %v12149
    %v12151 = vrot.slane %v9381, %v12150
    %v12152 = vsel %vm4029, %v12151, %v12147
    %v12153 = vlaneseq
    %v12154 = vshrl.u32 %v12153, 7
    %v12155 = vsub.s32 %v4005, %v12154
    %v12156 = vrot.slane %v9384, %v12155
    %v12157 = vlaneseq
    %v12158 = vshrl.u32 %v12157, 7
    %v12159 = vsub.s32 %v4010, %v12158
    %v12160 = vrot.slane %v9387, %v12159
    %v12161 = vsel %vm4015, %v12160, %v12156
    %v12162 = vlaneseq
    %v12163 = vshrl.u32 %v12162, 7
    %v12164 = vsub.s32 %v4017, %v12163
    %v12165 = vrot.slane %v9390, %v12164
    %v12166 = vsel %vm4022, %v12165, %v12161
    %v12167 = vlaneseq
    %v12168 = vshrl.u32 %v12167, 7
    %v12169 = vsub.s32 %v4024, %v12168
    %v12170 = vrot.slane %v9393, %v12169
    %v12171 = vsel %vm4029, %v12170, %v12166
    %v12172 = vlaneseq
    %v12173 = vshrl.u32 %v12172, 7
    %v12174 = vsub.s32 %v4005, %v12173
    %v12175 = vrot.slane %v9396, %v12174
    %v12176 = vlaneseq
    %v12177 = vshrl.u32 %v12176, 7
    %v12178 = vsub.s32 %v4010, %v12177
    %v12179 = vrot.slane %v9399, %v12178
    %v12180 = vsel %vm4015, %v12179, %v12175
    %v12181 = vlaneseq
    %v12182 = vshrl.u32 %v12181, 7
    %v12183 = vsub.s32 %v4017, %v12182
    %v12184 = vrot.slane %v9402, %v12183
    %v12185 = vsel %vm4022, %v12184, %v12180
    %v12186 = vlaneseq
    %v12187 = vshrl.u32 %v12186, 7
    %v12188 = vsub.s32 %v4024, %v12187
    %v12189 = vrot.slane %v9405, %v12188
    %v12190 = vsel %vm4029, %v12189, %v12185
    %v12191 = vlaneseq
    %v12192 = vshrl.u32 %v12191, 7
    %v12193 = vsub.s32 %v4005, %v12192
    %v12194 = vrot.slane %v9408, %v12193
    %v12195 = vlaneseq
    %v12196 = vshrl.u32 %v12195, 7
    %v12197 = vsub.s32 %v4010, %v12196
    %v12198 = vrot.slane %v9411, %v12197
    %v12199 = vsel %vm4015, %v12198, %v12194
    %v12200 = vlaneseq
    %v12201 = vshrl.u32 %v12200, 7
    %v12202 = vsub.s32 %v4017, %v12201
    %v12203 = vrot.slane %v9414, %v12202
    %v12204 = vsel %vm4022, %v12203, %v12199
    %v12205 = vlaneseq
    %v12206 = vshrl.u32 %v12205, 7
    %v12207 = vsub.s32 %v4024, %v12206
    %v12208 = vrot.slane %v9417, %v12207
    %v12209 = vsel %vm4029, %v12208, %v12204
    %v12210 = vlaneseq
    %v12211 = vshrl.u32 %v12210, 7
    %v12212 = vsub.s32 %v4005, %v12211
    %v12213 = vrot.slane %v9420, %v12212
    %v12214 = vlaneseq
    %v12215 = vshrl.u32 %v12214, 7
    %v12216 = vsub.s32 %v4010, %v12215
    %v12217 = vrot.slane %v9423, %v12216
    %v12218 = vsel %vm4015, %v12217, %v12213
    %v12219 = vlaneseq
    %v12220 = vshrl.u32 %v12219, 7
    %v12221 = vsub.s32 %v4017, %v12220
    %v12222 = vrot.slane %v9426, %v12221
    %v12223 = vsel %vm4022, %v12222, %v12218
    %v12224 = vlaneseq
    %v12225 = vshrl.u32 %v12224, 7
    %v12226 = vsub.s32 %v4024, %v12225
    %v12227 = vrot.slane %v9429, %v12226
    %v12228 = vsel %vm4029, %v12227, %v12223
    %v12229 = vlaneseq
    %v12230 = vshrl.u32 %v12229, 7
    %v12231 = vsub.s32 %v4005, %v12230
    %v12232 = vrot.slane %v9432, %v12231
    %v12233 = vlaneseq
    %v12234 = vshrl.u32 %v12233, 7
    %v12235 = vsub.s32 %v4010, %v12234
    %v12236 = vrot.slane %v9435, %v12235
    %v12237 = vsel %vm4015, %v12236, %v12232
    %v12238 = vlaneseq
    %v12239 = vshrl.u32 %v12238, 7
    %v12240 = vsub.s32 %v4017, %v12239
    %v12241 = vrot.slane %v9438, %v12240
    %v12242 = vsel %vm4022, %v12241, %v12237
    %v12243 = vlaneseq
    %v12244 = vshrl.u32 %v12243, 7
    %v12245 = vsub.s32 %v4024, %v12244
    %v12246 = vrot.slane %v9441, %v12245
    %v12247 = vsel %vm4029, %v12246, %v12242
    %v12248 = vlaneseq
    %v12249 = vshrl.u32 %v12248, 7
    %v12250 = vsub.s32 %v4005, %v12249
    %v12251 = vrot.slane %v9444, %v12250
    %v12252 = vlaneseq
    %v12253 = vshrl.u32 %v12252, 7
    %v12254 = vsub.s32 %v4010, %v12253
    %v12255 = vrot.slane %v9447, %v12254
    %v12256 = vsel %vm4015, %v12255, %v12251
    %v12257 = vlaneseq
    %v12258 = vshrl.u32 %v12257, 7
    %v12259 = vsub.s32 %v4017, %v12258
    %v12260 = vrot.slane %v9450, %v12259
    %v12261 = vsel %vm4022, %v12260, %v12256
    %v12262 = vlaneseq
    %v12263 = vshrl.u32 %v12262, 7
    %v12264 = vsub.s32 %v4024, %v12263
    %v12265 = vrot.slane %v9453, %v12264
    %v12266 = vsel %vm4029, %v12265, %v12261
    %v12267 = vlaneseq
    %v12268 = vshrl.u32 %v12267, 7
    %v12269 = vsub.s32 %v4005, %v12268
    %v12270 = vrot.slane %v9456, %v12269
    %v12271 = vlaneseq
    %v12272 = vshrl.u32 %v12271, 7
    %v12273 = vsub.s32 %v4010, %v12272
    %v12274 = vrot.slane %v9459, %v12273
    %v12275 = vsel %vm4015, %v12274, %v12270
    %v12276 = vlaneseq
    %v12277 = vshrl.u32 %v12276, 7
    %v12278 = vsub.s32 %v4017, %v12277
    %v12279 = vrot.slane %v9462, %v12278
    %v12280 = vsel %vm4022, %v12279, %v12275
    %v12281 = vlaneseq
    %v12282 = vshrl.u32 %v12281, 7
    %v12283 = vsub.s32 %v4024, %v12282
    %v12284 = vrot.slane %v9465, %v12283
    %v12285 = vsel %vm4029, %v12284, %v12280
    %v12286 = vlaneseq
    %v12287 = vshrl.u32 %v12286, 7
    %v12288 = vsub.s32 %v4005, %v12287
    %v12289 = vrot.slane %v9468, %v12288
    %v12290 = vlaneseq
    %v12291 = vshrl.u32 %v12290, 7
    %v12292 = vsub.s32 %v4010, %v12291
    %v12293 = vrot.slane %v9471, %v12292
    %v12294 = vsel %vm4015, %v12293, %v12289
    %v12295 = vlaneseq
    %v12296 = vshrl.u32 %v12295, 7
    %v12297 = vsub.s32 %v4017, %v12296
    %v12298 = vrot.slane %v9474, %v12297
    %v12299 = vsel %vm4022, %v12298, %v12294
    %v12300 = vlaneseq
    %v12301 = vshrl.u32 %v12300, 7
    %v12302 = vsub.s32 %v4024, %v12301
    %v12303 = vrot.slane %v9477, %v12302
    %v12304 = vsel %vm4029, %v12303, %v12299
    %v12305 = vlaneseq
    %v12306 = vshrl.u32 %v12305, 7
    %v12307 = vsub.s32 %v4005, %v12306
    %v12308 = vrot.slane %v9480, %v12307
    %v12309 = vlaneseq
    %v12310 = vshrl.u32 %v12309, 7
    %v12311 = vsub.s32 %v4010, %v12310
    %v12312 = vrot.slane %v9483, %v12311
    %v12313 = vsel %vm4015, %v12312, %v12308
    %v12314 = vlaneseq
    %v12315 = vshrl.u32 %v12314, 7
    %v12316 = vsub.s32 %v4017, %v12315
    %v12317 = vrot.slane %v9486, %v12316
    %v12318 = vsel %vm4022, %v12317, %v12313
    %v12319 = vlaneseq
    %v12320 = vshrl.u32 %v12319, 7
    %v12321 = vsub.s32 %v4024, %v12320
    %v12322 = vrot.slane %v9489, %v12321
    %v12323 = vsel %vm4029, %v12322, %v12318
    %v12324 = vlaneseq
    %v12325 = vshrl.u32 %v12324, 7
    %v12326 = vsub.s32 %v4005, %v12325
    %v12327 = vrot.slane %v9492, %v12326
    %v12328 = vlaneseq
    %v12329 = vshrl.u32 %v12328, 7
    %v12330 = vsub.s32 %v4010, %v12329
    %v12331 = vrot.slane %v9495, %v12330
    %v12332 = vsel %vm4015, %v12331, %v12327
    %v12333 = vlaneseq
    %v12334 = vshrl.u32 %v12333, 7
    %v12335 = vsub.s32 %v4017, %v12334
    %v12336 = vrot.slane %v9498, %v12335
    %v12337 = vsel %vm4022, %v12336, %v12332
    %v12338 = vlaneseq
    %v12339 = vshrl.u32 %v12338, 7
    %v12340 = vsub.s32 %v4024, %v12339
    %v12341 = vrot.slane %v9501, %v12340
    %v12342 = vsel %vm4029, %v12341, %v12337
    %v12343 = vlaneseq
    %v12344 = vshrl.u32 %v12343, 7
    %v12345 = vsub.s32 %v4005, %v12344
    %v12346 = vrot.slane %v9504, %v12345
    %v12347 = vlaneseq
    %v12348 = vshrl.u32 %v12347, 7
    %v12349 = vsub.s32 %v4010, %v12348
    %v12350 = vrot.slane %v9507, %v12349
    %v12351 = vsel %vm4015, %v12350, %v12346
    %v12352 = vlaneseq
    %v12353 = vshrl.u32 %v12352, 7
    %v12354 = vsub.s32 %v4017, %v12353
    %v12355 = vrot.slane %v9510, %v12354
    %v12356 = vsel %vm4022, %v12355, %v12351
    %v12357 = vlaneseq
    %v12358 = vshrl.u32 %v12357, 7
    %v12359 = vsub.s32 %v4024, %v12358
    %v12360 = vrot.slane %v9513, %v12359
    %v12361 = vsel %vm4029, %v12360, %v12356
    %v12362 = vlaneseq
    %v12363 = vshrl.u32 %v12362, 7
    %v12364 = vsub.s32 %v4005, %v12363
    %v12365 = vrot.slane %v9516, %v12364
    %v12366 = vlaneseq
    %v12367 = vshrl.u32 %v12366, 7
    %v12368 = vsub.s32 %v4010, %v12367
    %v12369 = vrot.slane %v9519, %v12368
    %v12370 = vsel %vm4015, %v12369, %v12365
    %v12371 = vlaneseq
    %v12372 = vshrl.u32 %v12371, 7
    %v12373 = vsub.s32 %v4017, %v12372
    %v12374 = vrot.slane %v9522, %v12373
    %v12375 = vsel %vm4022, %v12374, %v12370
    %v12376 = vlaneseq
    %v12377 = vshrl.u32 %v12376, 7
    %v12378 = vsub.s32 %v4024, %v12377
    %v12379 = vrot.slane %v9525, %v12378
    %v12380 = vsel %vm4029, %v12379, %v12375
    %v12381 = vlaneseq
    %v12382 = vshrl.u32 %v12381, 7
    %v12383 = vsub.s32 %v4005, %v12382
    %v12384 = vrot.slane %v9528, %v12383
    %v12385 = vlaneseq
    %v12386 = vshrl.u32 %v12385, 7
    %v12387 = vsub.s32 %v4010, %v12386
    %v12388 = vrot.slane %v9531, %v12387
    %v12389 = vsel %vm4015, %v12388, %v12384
    %v12390 = vlaneseq
    %v12391 = vshrl.u32 %v12390, 7
    %v12392 = vsub.s32 %v4017, %v12391
    %v12393 = vrot.slane %v9534, %v12392
    %v12394 = vsel %vm4022, %v12393, %v12389
    %v12395 = vlaneseq
    %v12396 = vshrl.u32 %v12395, 7
    %v12397 = vsub.s32 %v4024, %v12396
    %v12398 = vrot.slane %v9537, %v12397
    %v12399 = vsel %vm4029, %v12398, %v12394
    %v12400 = vlaneseq
    %v12401 = vshrl.u32 %v12400, 7
    %v12402 = vsub.s32 %v4005, %v12401
    %v12403 = vrot.slane %v9540, %v12402
    %v12404 = vlaneseq
    %v12405 = vshrl.u32 %v12404, 7
    %v12406 = vsub.s32 %v4010, %v12405
    %v12407 = vrot.slane %v9543, %v12406
    %v12408 = vsel %vm4015, %v12407, %v12403
    %v12409 = vlaneseq
    %v12410 = vshrl.u32 %v12409, 7
    %v12411 = vsub.s32 %v4017, %v12410
    %v12412 = vrot.slane %v9546, %v12411
    %v12413 = vsel %vm4022, %v12412, %v12408
    %v12414 = vlaneseq
    %v12415 = vshrl.u32 %v12414, 7
    %v12416 = vsub.s32 %v4024, %v12415
    %v12417 = vrot.slane %v9549, %v12416
    %v12418 = vsel %vm4029, %v12417, %v12413
    %v12419 = vlaneseq
    %v12420 = vshrl.u32 %v12419, 7
    %v12421 = vsub.s32 %v4005, %v12420
    %v12422 = vrot.slane %v9552, %v12421
    %v12423 = vlaneseq
    %v12424 = vshrl.u32 %v12423, 7
    %v12425 = vsub.s32 %v4010, %v12424
    %v12426 = vrot.slane %v9555, %v12425
    %v12427 = vsel %vm4015, %v12426, %v12422
    %v12428 = vlaneseq
    %v12429 = vshrl.u32 %v12428, 7
    %v12430 = vsub.s32 %v4017, %v12429
    %v12431 = vrot.slane %v9558, %v12430
    %v12432 = vsel %vm4022, %v12431, %v12427
    %v12433 = vlaneseq
    %v12434 = vshrl.u32 %v12433, 7
    %v12435 = vsub.s32 %v4024, %v12434
    %v12436 = vrot.slane %v9561, %v12435
    %v12437 = vsel %vm4029, %v12436, %v12432
    %v12438 = vlaneseq
    %v12439 = vshrl.u32 %v12438, 7
    %v12440 = vsub.s32 %v4005, %v12439
    %v12441 = vrot.slane %v9564, %v12440
    %v12442 = vlaneseq
    %v12443 = vshrl.u32 %v12442, 7
    %v12444 = vsub.s32 %v4010, %v12443
    %v12445 = vrot.slane %v9567, %v12444
    %v12446 = vsel %vm4015, %v12445, %v12441
    %v12447 = vlaneseq
    %v12448 = vshrl.u32 %v12447, 7
    %v12449 = vsub.s32 %v4017, %v12448
    %v12450 = vrot.slane %v9570, %v12449
    %v12451 = vsel %vm4022, %v12450, %v12446
    %v12452 = vlaneseq
    %v12453 = vshrl.u32 %v12452, 7
    %v12454 = vsub.s32 %v4024, %v12453
    %v12455 = vrot.slane %v9573, %v12454
    %v12456 = vsel %vm4029, %v12455, %v12451
    %v12457 = vlaneseq
    %v12458 = vshrl.u32 %v12457, 7
    %v12459 = vsub.s32 %v4005, %v12458
    %v12460 = vrot.slane %v9576, %v12459
    %v12461 = vlaneseq
    %v12462 = vshrl.u32 %v12461, 7
    %v12463 = vsub.s32 %v4010, %v12462
    %v12464 = vrot.slane %v9579, %v12463
    %v12465 = vsel %vm4015, %v12464, %v12460
    %v12466 = vlaneseq
    %v12467 = vshrl.u32 %v12466, 7
    %v12468 = vsub.s32 %v4017, %v12467
    %v12469 = vrot.slane %v9582, %v12468
    %v12470 = vsel %vm4022, %v12469, %v12465
    %v12471 = vlaneseq
    %v12472 = vshrl.u32 %v12471, 7
    %v12473 = vsub.s32 %v4024, %v12472
    %v12474 = vrot.slane %v9585, %v12473
    %v12475 = vsel %vm4029, %v12474, %v12470
    %v12476 = vlaneseq
    %v12477 = vshrl.u32 %v12476, 7
    %v12478 = vsub.s32 %v4005, %v12477
    %v12479 = vrot.slane %v9588, %v12478
    %v12480 = vlaneseq
    %v12481 = vshrl.u32 %v12480, 7
    %v12482 = vsub.s32 %v4010, %v12481
    %v12483 = vrot.slane %v9591, %v12482
    %v12484 = vsel %vm4015, %v12483, %v12479
    %v12485 = vlaneseq
    %v12486 = vshrl.u32 %v12485, 7
    %v12487 = vsub.s32 %v4017, %v12486
    %v12488 = vrot.slane %v9594, %v12487
    %v12489 = vsel %vm4022, %v12488, %v12484
    %v12490 = vlaneseq
    %v12491 = vshrl.u32 %v12490, 7
    %v12492 = vsub.s32 %v4024, %v12491
    %v12493 = vrot.slane %v9597, %v12492
    %v12494 = vsel %vm4029, %v12493, %v12489
    %v12495 = vlaneseq
    %v12496 = vshrl.u32 %v12495, 7
    %v12497 = vsub.s32 %v4005, %v12496
    %v12498 = vrot.slane %v9600, %v12497
    %v12499 = vlaneseq
    %v12500 = vshrl.u32 %v12499, 7
    %v12501 = vsub.s32 %v4010, %v12500
    %v12502 = vrot.slane %v9603, %v12501
    %v12503 = vsel %vm4015, %v12502, %v12498
    %v12504 = vlaneseq
    %v12505 = vshrl.u32 %v12504, 7
    %v12506 = vsub.s32 %v4017, %v12505
    %v12507 = vrot.slane %v9606, %v12506
    %v12508 = vsel %vm4022, %v12507, %v12503
    %v12509 = vlaneseq
    %v12510 = vshrl.u32 %v12509, 7
    %v12511 = vsub.s32 %v4024, %v12510
    %v12512 = vrot.slane %v9609, %v12511
    %v12513 = vsel %vm4029, %v12512, %v12508
    %v12514 = vlaneseq
    %v12515 = vshrl.u32 %v12514, 7
    %v12516 = vsub.s32 %v4005, %v12515
    %v12517 = vrot.slane %v9612, %v12516
    %v12518 = vlaneseq
    %v12519 = vshrl.u32 %v12518, 7
    %v12520 = vsub.s32 %v4010, %v12519
    %v12521 = vrot.slane %v9615, %v12520
    %v12522 = vsel %vm4015, %v12521, %v12517
    %v12523 = vlaneseq
    %v12524 = vshrl.u32 %v12523, 7
    %v12525 = vsub.s32 %v4017, %v12524
    %v12526 = vrot.slane %v9618, %v12525
    %v12527 = vsel %vm4022, %v12526, %v12522
    %v12528 = vlaneseq
    %v12529 = vshrl.u32 %v12528, 7
    %v12530 = vsub.s32 %v4024, %v12529
    %v12531 = vrot.slane %v9621, %v12530
    %v12532 = vsel %vm4029, %v12531, %v12527
    %v12533 = vlaneseq
    %v12534 = vshrl.u32 %v12533, 7
    %v12535 = vsub.s32 %v4005, %v12534
    %v12536 = vrot.slane %v9624, %v12535
    %v12537 = vlaneseq
    %v12538 = vshrl.u32 %v12537, 7
    %v12539 = vsub.s32 %v4010, %v12538
    %v12540 = vrot.slane %v9627, %v12539
    %v12541 = vsel %vm4015, %v12540, %v12536
    %v12542 = vlaneseq
    %v12543 = vshrl.u32 %v12542, 7
    %v12544 = vsub.s32 %v4017, %v12543
    %v12545 = vrot.slane %v9630, %v12544
    %v12546 = vsel %vm4022, %v12545, %v12541
    %v12547 = vlaneseq
    %v12548 = vshrl.u32 %v12547, 7
    %v12549 = vsub.s32 %v4024, %v12548
    %v12550 = vrot.slane %v9633, %v12549
    %v12551 = vsel %vm4029, %v12550, %v12546
    %v12552 = vlaneseq
    %v12553 = vshrl.u32 %v12552, 7
    %v12554 = vsub.s32 %v4005, %v12553
    %v12555 = vrot.slane %v9636, %v12554
    %v12556 = vlaneseq
    %v12557 = vshrl.u32 %v12556, 7
    %v12558 = vsub.s32 %v4010, %v12557
    %v12559 = vrot.slane %v9639, %v12558
    %v12560 = vsel %vm4015, %v12559, %v12555
    %v12561 = vlaneseq
    %v12562 = vshrl.u32 %v12561, 7
    %v12563 = vsub.s32 %v4017, %v12562
    %v12564 = vrot.slane %v9642, %v12563
    %v12565 = vsel %vm4022, %v12564, %v12560
    %v12566 = vlaneseq
    %v12567 = vshrl.u32 %v12566, 7
    %v12568 = vsub.s32 %v4024, %v12567
    %v12569 = vrot.slane %v9645, %v12568
    %v12570 = vsel %vm4029, %v12569, %v12565
    %v12571 = vlaneseq
    %v12572 = vshrl.u32 %v12571, 7
    %v12573 = vsub.s32 %v4005, %v12572
    %v12574 = vrot.slane %v9648, %v12573
    %v12575 = vlaneseq
    %v12576 = vshrl.u32 %v12575, 7
    %v12577 = vsub.s32 %v4010, %v12576
    %v12578 = vrot.slane %v9651, %v12577
    %v12579 = vsel %vm4015, %v12578, %v12574
    %v12580 = vlaneseq
    %v12581 = vshrl.u32 %v12580, 7
    %v12582 = vsub.s32 %v4017, %v12581
    %v12583 = vrot.slane %v9654, %v12582
    %v12584 = vsel %vm4022, %v12583, %v12579
    %v12585 = vlaneseq
    %v12586 = vshrl.u32 %v12585, 7
    %v12587 = vsub.s32 %v4024, %v12586
    %v12588 = vrot.slane %v9657, %v12587
    %v12589 = vsel %vm4029, %v12588, %v12584
    %v12590 = vlaneseq
    %v12591 = vshrl.u32 %v12590, 7
    %v12592 = vsub.s32 %v4005, %v12591
    %v12593 = vrot.slane %v9660, %v12592
    %v12594 = vlaneseq
    %v12595 = vshrl.u32 %v12594, 7
    %v12596 = vsub.s32 %v4010, %v12595
    %v12597 = vrot.slane %v9663, %v12596
    %v12598 = vsel %vm4015, %v12597, %v12593
    %v12599 = vlaneseq
    %v12600 = vshrl.u32 %v12599, 7
    %v12601 = vsub.s32 %v4017, %v12600
    %v12602 = vrot.slane %v9666, %v12601
    %v12603 = vsel %vm4022, %v12602, %v12598
    %v12604 = vlaneseq
    %v12605 = vshrl.u32 %v12604, 7
    %v12606 = vsub.s32 %v4024, %v12605
    %v12607 = vrot.slane %v9669, %v12606
    %v12608 = vsel %vm4029, %v12607, %v12603
    %v12609 = vlaneseq
    %v12610 = vshrl.u32 %v12609, 7
    %v12611 = vsub.s32 %v4005, %v12610
    %v12612 = vrot.slane %v9672, %v12611
    %v12613 = vlaneseq
    %v12614 = vshrl.u32 %v12613, 7
    %v12615 = vsub.s32 %v4010, %v12614
    %v12616 = vrot.slane %v9675, %v12615
    %v12617 = vsel %vm4015, %v12616, %v12612
    %v12618 = vlaneseq
    %v12619 = vshrl.u32 %v12618, 7
    %v12620 = vsub.s32 %v4017, %v12619
    %v12621 = vrot.slane %v9678, %v12620
    %v12622 = vsel %vm4022, %v12621, %v12617
    %v12623 = vlaneseq
    %v12624 = vshrl.u32 %v12623, 7
    %v12625 = vsub.s32 %v4024, %v12624
    %v12626 = vrot.slane %v9681, %v12625
    %v12627 = vsel %vm4029, %v12626, %v12622
    %v12628 = vlaneseq
    %v12629 = vshrl.u32 %v12628, 7
    %v12630 = vsub.s32 %v4005, %v12629
    %v12631 = vrot.slane %v9684, %v12630
    %v12632 = vlaneseq
    %v12633 = vshrl.u32 %v12632, 7
    %v12634 = vsub.s32 %v4010, %v12633
    %v12635 = vrot.slane %v9687, %v12634
    %v12636 = vsel %vm4015, %v12635, %v12631
    %v12637 = vlaneseq
    %v12638 = vshrl.u32 %v12637, 7
    %v12639 = vsub.s32 %v4017, %v12638
    %v12640 = vrot.slane %v9690, %v12639
    %v12641 = vsel %vm4022, %v12640, %v12636
    %v12642 = vlaneseq
    %v12643 = vshrl.u32 %v12642, 7
    %v12644 = vsub.s32 %v4024, %v12643
    %v12645 = vrot.slane %v9693, %v12644
    %v12646 = vsel %vm4029, %v12645, %v12641
    %v12647 = vlaneseq
    %v12648 = vshrl.u32 %v12647, 7
    %v12649 = vsub.s32 %v4005, %v12648
    %v12650 = vrot.slane %v9696, %v12649
    %v12651 = vlaneseq
    %v12652 = vshrl.u32 %v12651, 7
    %v12653 = vsub.s32 %v4010, %v12652
    %v12654 = vrot.slane %v9699, %v12653
    %v12655 = vsel %vm4015, %v12654, %v12650
    %v12656 = vlaneseq
    %v12657 = vshrl.u32 %v12656, 7
    %v12658 = vsub.s32 %v4017, %v12657
    %v12659 = vrot.slane %v9702, %v12658
    %v12660 = vsel %vm4022, %v12659, %v12655
    %v12661 = vlaneseq
    %v12662 = vshrl.u32 %v12661, 7
    %v12663 = vsub.s32 %v4024, %v12662
    %v12664 = vrot.slane %v9705, %v12663
    %v12665 = vsel %vm4029, %v12664, %v12660
    %v12666 = vlaneseq
    %v12667 = vshrl.u32 %v12666, 7
    %v12668 = vsub.s32 %v4005, %v12667
    %v12669 = vrot.slane %v9708, %v12668
    %v12670 = vlaneseq
    %v12671 = vshrl.u32 %v12670, 7
    %v12672 = vsub.s32 %v4010, %v12671
    %v12673 = vrot.slane %v9711, %v12672
    %v12674 = vsel %vm4015, %v12673, %v12669
    %v12675 = vlaneseq
    %v12676 = vshrl.u32 %v12675, 7
    %v12677 = vsub.s32 %v4017, %v12676
    %v12678 = vrot.slane %v9714, %v12677
    %v12679 = vsel %vm4022, %v12678, %v12674
    %v12680 = vlaneseq
    %v12681 = vshrl.u32 %v12680, 7
    %v12682 = vsub.s32 %v4024, %v12681
    %v12683 = vrot.slane %v9717, %v12682
    %v12684 = vsel %vm4029, %v12683, %v12679
    %v12685 = vlaneseq
    %v12686 = vshrl.u32 %v12685, 7
    %v12687 = vsub.s32 %v4005, %v12686
    %v12688 = vrot.slane %v9720, %v12687
    %v12689 = vlaneseq
    %v12690 = vshrl.u32 %v12689, 7
    %v12691 = vsub.s32 %v4010, %v12690
    %v12692 = vrot.slane %v9723, %v12691
    %v12693 = vsel %vm4015, %v12692, %v12688
    %v12694 = vlaneseq
    %v12695 = vshrl.u32 %v12694, 7
    %v12696 = vsub.s32 %v4017, %v12695
    %v12697 = vrot.slane %v9726, %v12696
    %v12698 = vsel %vm4022, %v12697, %v12693
    %v12699 = vlaneseq
    %v12700 = vshrl.u32 %v12699, 7
    %v12701 = vsub.s32 %v4024, %v12700
    %v12702 = vrot.slane %v9729, %v12701
    %v12703 = vsel %vm4029, %v12702, %v12698
    %v12704 = vlaneseq
    %v12705 = vshrl.u32 %v12704, 7
    %v12706 = vsub.s32 %v4005, %v12705
    %v12707 = vrot.slane %v9732, %v12706
    %v12708 = vlaneseq
    %v12709 = vshrl.u32 %v12708, 7
    %v12710 = vsub.s32 %v4010, %v12709
    %v12711 = vrot.slane %v9735, %v12710
    %v12712 = vsel %vm4015, %v12711, %v12707
    %v12713 = vlaneseq
    %v12714 = vshrl.u32 %v12713, 7
    %v12715 = vsub.s32 %v4017, %v12714
    %v12716 = vrot.slane %v9738, %v12715
    %v12717 = vsel %vm4022, %v12716, %v12712
    %v12718 = vlaneseq
    %v12719 = vshrl.u32 %v12718, 7
    %v12720 = vsub.s32 %v4024, %v12719
    %v12721 = vrot.slane %v9741, %v12720
    %v12722 = vsel %vm4029, %v12721, %v12717
    %v12723 = vlaneseq
    %v12724 = vshrl.u32 %v12723, 7
    %v12725 = vsub.s32 %v4005, %v12724
    %v12726 = vrot.slane %v9744, %v12725
    %v12727 = vlaneseq
    %v12728 = vshrl.u32 %v12727, 7
    %v12729 = vsub.s32 %v4010, %v12728
    %v12730 = vrot.slane %v9747, %v12729
    %v12731 = vsel %vm4015, %v12730, %v12726
    %v12732 = vlaneseq
    %v12733 = vshrl.u32 %v12732, 7
    %v12734 = vsub.s32 %v4017, %v12733
    %v12735 = vrot.slane %v9750, %v12734
    %v12736 = vsel %vm4022, %v12735, %v12731
    %v12737 = vlaneseq
    %v12738 = vshrl.u32 %v12737, 7
    %v12739 = vsub.s32 %v4024, %v12738
    %v12740 = vrot.slane %v9753, %v12739
    %v12741 = vsel %vm4029, %v12740, %v12736
    %v12742 = vlaneseq
    %v12743 = vshrl.u32 %v12742, 7
    %v12744 = vsub.s32 %v4005, %v12743
    %v12745 = vrot.slane %v9756, %v12744
    %v12746 = vlaneseq
    %v12747 = vshrl.u32 %v12746, 7
    %v12748 = vsub.s32 %v4010, %v12747
    %v12749 = vrot.slane %v9759, %v12748
    %v12750 = vsel %vm4015, %v12749, %v12745
    %v12751 = vlaneseq
    %v12752 = vshrl.u32 %v12751, 7
    %v12753 = vsub.s32 %v4017, %v12752
    %v12754 = vrot.slane %v9762, %v12753
    %v12755 = vsel %vm4022, %v12754, %v12750
    %v12756 = vlaneseq
    %v12757 = vshrl.u32 %v12756, 7
    %v12758 = vsub.s32 %v4024, %v12757
    %v12759 = vrot.slane %v9765, %v12758
    %v12760 = vsel %vm4029, %v12759, %v12755
    %v12761 = vlaneseq
    %v12762 = vshrl.u32 %v12761, 7
    %v12763 = vsub.s32 %v4005, %v12762
    %v12764 = vrot.slane %v9768, %v12763
    %v12765 = vlaneseq
    %v12766 = vshrl.u32 %v12765, 7
    %v12767 = vsub.s32 %v4010, %v12766
    %v12768 = vrot.slane %v9771, %v12767
    %v12769 = vsel %vm4015, %v12768, %v12764
    %v12770 = vlaneseq
    %v12771 = vshrl.u32 %v12770, 7
    %v12772 = vsub.s32 %v4017, %v12771
    %v12773 = vrot.slane %v9774, %v12772
    %v12774 = vsel %vm4022, %v12773, %v12769
    %v12775 = vlaneseq
    %v12776 = vshrl.u32 %v12775, 7
    %v12777 = vsub.s32 %v4024, %v12776
    %v12778 = vrot.slane %v9777, %v12777
    %v12779 = vsel %vm4029, %v12778, %v12774
    %v12780 = vlaneseq
    %v12781 = vshrl.u32 %v12780, 7
    %v12782 = vsub.s32 %v4005, %v12781
    %v12783 = vrot.slane %v9780, %v12782
    %v12784 = vlaneseq
    %v12785 = vshrl.u32 %v12784, 7
    %v12786 = vsub.s32 %v4010, %v12785
    %v12787 = vrot.slane %v9783, %v12786
    %v12788 = vsel %vm4015, %v12787, %v12783
    %v12789 = vlaneseq
    %v12790 = vshrl.u32 %v12789, 7
    %v12791 = vsub.s32 %v4017, %v12790
    %v12792 = vrot.slane %v9786, %v12791
    %v12793 = vsel %vm4022, %v12792, %v12788
    %v12794 = vlaneseq
    %v12795 = vshrl.u32 %v12794, 7
    %v12796 = vsub.s32 %v4024, %v12795
    %v12797 = vrot.slane %v9789, %v12796
    %v12798 = vsel %vm4029, %v12797, %v12793
    %v12799 = vlaneseq
    %v12800 = vshrl.u32 %v12799, 7
    %v12801 = vsub.s32 %v4005, %v12800
    %v12802 = vrot.slane %v9792, %v12801
    %v12803 = vlaneseq
    %v12804 = vshrl.u32 %v12803, 7
    %v12805 = vsub.s32 %v4010, %v12804
    %v12806 = vrot.slane %v9795, %v12805
    %v12807 = vsel %vm4015, %v12806, %v12802
    %v12808 = vlaneseq
    %v12809 = vshrl.u32 %v12808, 7
    %v12810 = vsub.s32 %v4017, %v12809
    %v12811 = vrot.slane %v9798, %v12810
    %v12812 = vsel %vm4022, %v12811, %v12807
    %v12813 = vlaneseq
    %v12814 = vshrl.u32 %v12813, 7
    %v12815 = vsub.s32 %v4024, %v12814
    %v12816 = vrot.slane %v9801, %v12815
    %v12817 = vsel %vm4029, %v12816, %v12812
    %v12818 = vsel %vm5228, %v11639, %v11620
    %v12819 = vsel %vm5230, %v11658, %v12818
    %v12820 = vsel %vm5232, %v11677, %v12819
    %v12821 = vsel %vm5234, %v11696, %v12820
    %v12822 = vsel %vm5236, %v11715, %v12821
    %v12823 = vsel %vm5238, %v11734, %v12822
    %v12824 = vsel %vm5240, %v11753, %v12823
    %v12825 = vsel %vm5228, %v11791, %v11772
    %v12826 = vsel %vm5230, %v11810, %v12825
    %v12827 = vsel %vm5232, %v11829, %v12826
    %v12828 = vsel %vm5234, %v11848, %v12827
    %v12829 = vsel %vm5236, %v11867, %v12828
    %v12830 = vsel %vm5238, %v11886, %v12829
    %v12831 = vsel %vm5240, %v11905, %v12830
    %v12832 = vsel %vm5228, %v11943, %v11924
    %v12833 = vsel %vm5230, %v11962, %v12832
    %v12834 = vsel %vm5232, %v11981, %v12833
    %v12835 = vsel %vm5234, %v12000, %v12834
    %v12836 = vsel %vm5236, %v12019, %v12835
    %v12837 = vsel %vm5238, %v12038, %v12836
    %v12838 = vsel %vm5240, %v12057, %v12837
    %v12839 = vsel %vm5228, %v12095, %v12076
    %v12840 = vsel %vm5230, %v12114, %v12839
    %v12841 = vsel %vm5232, %v12133, %v12840
    %v12842 = vsel %vm5234, %v12152, %v12841
    %v12843 = vsel %vm5236, %v12171, %v12842
    %v12844 = vsel %vm5238, %v12190, %v12843
    %v12845 = vsel %vm5240, %v12209, %v12844
    %v12846 = vsel %vm5228, %v12247, %v12228
    %v12847 = vsel %vm5230, %v12266, %v12846
    %v12848 = vsel %vm5232, %v12285, %v12847
    %v12849 = vsel %vm5234, %v12304, %v12848
    %v12850 = vsel %vm5236, %v12323, %v12849
    %v12851 = vsel %vm5238, %v12342, %v12850
    %v12852 = vsel %vm5240, %v12361, %v12851
    %v12853 = vsel %vm5228, %v12399, %v12380
    %v12854 = vsel %vm5230, %v12418, %v12853
    %v12855 = vsel %vm5232, %v12437, %v12854
    %v12856 = vsel %vm5234, %v12456, %v12855
    %v12857 = vsel %vm5236, %v12475, %v12856
    %v12858 = vsel %vm5238, %v12494, %v12857
    %v12859 = vsel %vm5240, %v12513, %v12858
    %v12860 = vsel %vm5228, %v12551, %v12532
    %v12861 = vsel %vm5230, %v12570, %v12860
    %v12862 = vsel %vm5232, %v12589, %v12861
    %v12863 = vsel %vm5234, %v12608, %v12862
    %v12864 = vsel %vm5236, %v12627, %v12863
    %v12865 = vsel %vm5238, %v12646, %v12864
    %v12866 = vsel %vm5240, %v12665, %v12865
    %v12867 = vsel %vm5228, %v12703, %v12684
    %v12868 = vsel %vm5230, %v12722, %v12867
    %v12869 = vsel %vm5232, %v12741, %v12868
    %v12870 = vsel %vm5234, %v12760, %v12869
    %v12871 = vsel %vm5236, %v12779, %v12870
    %v12872 = vsel %vm5238, %v12798, %v12871
    %v12873 = vsel %vm5240, %v12817, %v12872
    %v12882 = vsel %vm3740, %v12824, 0.0
    %v12883 = vsel %vm3741, %v12831, 0.0
    %v12884 = vsel %vm3742, %v12838, 0.0
    %v12885 = vsel %vm3743, %v12845, 0.0
    %v12886 = vsel %vm3744, %v12852, 0.0
    %v12887 = vsel %vm3745, %v12859, 0.0
    %v12888 = vsel %vm3746, %v12866, 0.0
    %v12889 = vsel %vm3747, %v12873, 0.0
    %v12890 = vld [vmem:[#allocation7] sm:$0xff]
    %v12891 = vld [vmem:[#allocation7 + $0x8] sm:$0xff]
    %v12892 = vld [vmem:[#allocation7 + $0x10] sm:$0xff]
    %v12893 = vld [vmem:[#allocation7 + $0x18] sm:$0xff]
    %s12894 = scalar_lea.vmem [#allocation7], 32
    %v12895 = vld [vmem:[%s12894] sm:$0xff]
    %v12896 = vld [vmem:[%s12894 + $0x8] sm:$0xff]
    %v12897 = vld [vmem:[%s12894 + $0x10] sm:$0xff]
    %v12898 = vld [vmem:[%s12894 + $0x18] sm:$0xff]
    %v12900 = vsel %vm962, %v11338, 0
    %v12903 = vsel %vm962, %v11339, 0
    %v12906 = vsel %vm962, %v11340, 0
    %v12909 = vsel %vm962, %v11341, 0
    %v12912 = vsel %vm962, %v11342, 0
    %v12915 = vsel %vm962, %v11343, 0
    %v12918 = vsel %vm962, %v11344, 0
    %v12921 = vsel %vm962, %v11345, 0
    %12923 = vmatprep.subr.mxu0 0.0
    %12924 = vmatpush1.msra.mxu0 %v12895
    %12925 = vmatprep.subr.mxu0 0.0
    %12926 = vmatpush1.msra.mxu0 %v12896
    %12927 = vmatprep.subr.mxu0 0.0
    %12928 = vmatpush1.msra.mxu0 %v12897
    %12929 = vmatprep.subr.mxu0 0.0
    %12930 = vmatpush1.msra.mxu0 %v12898
    %12931 = vmatprep.subr.mxu0 0.0
    %12932 = vmatpush1.msra.mxu0 0.0
    %12933 = vmatprep.subr.mxu0 0.0
    %12934 = vmatpush1.msra.mxu0 0.0
    %12935 = vmatprep.subr.mxu0 0.0
    %12936 = vmatpush1.msra.mxu0 0.0
    %12937 = vmatprep.subr.mxu0 0.0
    %12938 = vmatpush1.msra.mxu0 0.0
    %12939 = vmatprep.subr.mxu0 0.0
    %12940 = vmatpush1.msra.mxu0 0.0
    %12941 = vmatprep.subr.mxu0 0.0
    %12942 = vmatpush1.msra.mxu0 0.0
    %12943 = vmatprep.subr.mxu0 0.0
    %12944 = vmatpush1.msra.mxu0 0.0
    %12945 = vmatprep.subr.mxu0 0.0
    %12946 = vmatpush1.msra.mxu0 0.0
    %12947 = vmatprep.subr.mxu0 0.0
    %12948 = vmatpush1.msra.mxu0 0.0
    %12949 = vmatprep.subr.mxu0 0.0
    %12950 = vmatpush1.msra.mxu0 0.0
    %12951 = vmatprep.subr.mxu0 0.0
    %12952 = vmatpush1.msra.mxu0 0.0
    %12953 = vmatprep.subr.mxu0 0.0
    %12954 = vmatpush1.msra.mxu0 0.0
    %12955 = vmatprep.subr.mxu0 0.0
    %12956 = vmatpush1.msra.mxu0 0.0
    %12957 = vmatprep.subr.mxu0 0.0
    %12958 = vmatpush1.msra.mxu0 0.0
    %12959 = vmatprep.subr.mxu0 0.0
    %12960 = vmatpush1.msra.mxu0 0.0
    %12961 = vmatprep.subr.mxu0 0.0
    %12962 = vmatpush1.msra.mxu0 0.0
    %12963 = vmatprep.subr.mxu0 0.0
    %12964 = vmatpush1.msra.mxu0 0.0
    %12965 = vmatprep.subr.mxu0 0.0
    %12966 = vmatpush1.msra.mxu0 0.0
    %12967 = vmatprep.subr.mxu0 0.0
    %12968 = vmatpush1.msra.mxu0 0.0
    %12969 = vmatprep.subr.mxu0 0.0
    %12970 = vmatpush1.msra.mxu0 0.0
    %12971 = vmatprep.subr.mxu0 0.0
    %12972 = vmatpush1.msra.mxu0 0.0
    %12973 = vmatprep.subr.mxu0 0.0
    %12974 = vmatpush1.msra.mxu0 0.0
    %12975 = vmatprep.subr.mxu0 0.0
    %12976 = vmatpush1.msra.mxu0 0.0
    %12977 = vmatprep.subr.mxu0 0.0
    %12978 = vmatpush1.msra.mxu0 0.0
    %12979 = vmatprep.subr.mxu0 0.0
    %12980 = vmatpush1.msra.mxu0 0.0
    %12981 = vmatprep.subr.mxu0 0.0
    %12982 = vmatpush1.msra.mxu0 0.0
    %12983 = vmatprep.subr.mxu0 0.0
    %12984 = vmatpush1.msra.mxu0 0.0
    %12985 = vmatprep.subr.mxu0 0.0
    %12986 = vmatpush1.msra.mxu0 0.0
    %12987 = vmatprep.mubr.f32.mxu0 0.0
    %12988 = vmatmul.mubr.f32.gmra.mrb[0].mxu0 %v12900
    %v12989 = vpop.f32.mrb[0].mxu0
    %v12990 = vadd.f32 0.0, %v12989
    %v12991 = vpop.f32.mrb[0].mxu0
    %12992 = vmatprep.mubr.f32.mxu0 0.0
    %12993 = vmatmul.mubr.f32.gmra.mrb[0].mxu0 %v12903
    %v12994 = vpop.f32.mrb[0].mxu0
    %v12995 = vadd.f32 0.0, %v12994
    %v12996 = vpop.f32.mrb[0].mxu0
    %12997 = vmatprep.mubr.f32.mxu0 0.0
    %12998 = vmatmul.mubr.f32.gmra.mrb[0].mxu0 %v12906
    %v12999 = vpop.f32.mrb[0].mxu0
    %v13000 = vadd.f32 0.0, %v12999
    %v13001 = vpop.f32.mrb[0].mxu0
    %13002 = vmatprep.mubr.f32.mxu0 0.0
    %13003 = vmatmul.mubr.f32.gmra.mrb[0].mxu0 %v12909
    %v13004 = vpop.f32.mrb[0].mxu0
    %v13005 = vadd.f32 0.0, %v13004
    %v13006 = vpop.f32.mrb[0].mxu0
    %13007 = vmatprep.mubr.f32.mxu0 0.0
    %13008 = vmatmul.mubr.f32.gmra.mrb[0].mxu0 %v12912
    %v13009 = vpop.f32.mrb[0].mxu0
    %v13010 = vadd.f32 0.0, %v13009
    %v13011 = vpop.f32.mrb[0].mxu0
    %13012 = vmatprep.mubr.f32.mxu0 0.0
    %13013 = vmatmul.mubr.f32.gmra.mrb[0].mxu0 %v12915
    %v13014 = vpop.f32.mrb[0].mxu0
    %v13015 = vadd.f32 0.0, %v13014
    %v13016 = vpop.f32.mrb[0].mxu0
    %13017 = vmatprep.mubr.f32.mxu0 0.0
    %13018 = vmatmul.mubr.f32.gmra.mrb[0].mxu0 %v12918
    %v13019 = vpop.f32.mrb[0].mxu0
    %v13020 = vadd.f32 0.0, %v13019
    %v13021 = vpop.f32.mrb[0].mxu0
    %13022 = vmatprep.mubr.f32.mxu0 0.0
    %13023 = vmatmul.mubr.f32.gmra.mrb[0].mxu0 %v12921
    %v13024 = vpop.f32.mrb[0].mxu0
    %v13025 = vadd.f32 0.0, %v13024
    %v13026 = vpop.f32.mrb[0].mxu0
    %13027 = vdwg.mxu0
    %v13029 = vsel %vm962, %v7594, 0
    %v13032 = vsel %vm962, %v7595, 0
    %v13035 = vsel %vm962, %v7596, 0
    %v13038 = vsel %vm962, %v7597, 0
    %v13041 = vsel %vm962, %v7598, 0
    %v13044 = vsel %vm962, %v7599, 0
    %v13047 = vsel %vm962, %v7600, 0
    %v13050 = vsel %vm962, %v7601, 0
    %13052 = vmatprep.subr.mxu0 0.0
    %13053 = vmatpush1.msra.mxu0 %v12890
    %13054 = vmatprep.subr.mxu0 0.0
    %13055 = vmatpush1.msra.mxu0 %v12891
    %13056 = vmatprep.subr.mxu0 0.0
    %13057 = vmatpush1.msra.mxu0 %v12892
    %13058 = vmatprep.subr.mxu0 0.0
    %13059 = vmatpush1.msra.mxu0 %v12893
    %13060 = vmatprep.subr.mxu0 0.0
    %13061 = vmatpush1.msra.mxu0 0.0
    %13062 = vmatprep.subr.mxu0 0.0
    %13063 = vmatpush1.msra.mxu0 0.0
    %13064 = vmatprep.subr.mxu0 0.0
    %13065 = vmatpush1.msra.mxu0 0.0
    %13066 = vmatprep.subr.mxu0 0.0
    %13067 = vmatpush1.msra.mxu0 0.0
    %13068 = vmatprep.subr.mxu0 0.0
    %13069 = vmatpush1.msra.mxu0 0.0
    %13070 = vmatprep.subr.mxu0 0.0
    %13071 = vmatpush1.msra.mxu0 0.0
    %13072 = vmatprep.subr.mxu0 0.0
    %13073 = vmatpush1.msra.mxu0 0.0
    %13074 = vmatprep.subr.mxu0 0.0
    %13075 = vmatpush1.msra.mxu0 0.0
    %13076 = vmatprep.subr.mxu0 0.0
    %13077 = vmatpush1.msra.mxu0 0.0
    %13078 = vmatprep.subr.mxu0 0.0
    %13079 = vmatpush1.msra.mxu0 0.0
    %13080 = vmatprep.subr.mxu0 0.0
    %13081 = vmatpush1.msra.mxu0 0.0
    %13082 = vmatprep.subr.mxu0 0.0
    %13083 = vmatpush1.msra.mxu0 0.0
    %13084 = vmatprep.subr.mxu0 0.0
    %13085 = vmatpush1.msra.mxu0 0.0
    %13086 = vmatprep.subr.mxu0 0.0
    %13087 = vmatpush1.msra.mxu0 0.0
    %13088 = vmatprep.subr.mxu0 0.0
    %13089 = vmatpush1.msra.mxu0 0.0
    %13090 = vmatprep.subr.mxu0 0.0
    %13091 = vmatpush1.msra.mxu0 0.0
    %13092 = vmatprep.subr.mxu0 0.0
    %13093 = vmatpush1.msra.mxu0 0.0
    %13094 = vmatprep.subr.mxu0 0.0
    %13095 = vmatpush1.msra.mxu0 0.0
    %13096 = vmatprep.subr.mxu0 0.0
    %13097 = vmatpush1.msra.mxu0 0.0
    %13098 = vmatprep.subr.mxu0 0.0
    %13099 = vmatpush1.msra.mxu0 0.0
    %13100 = vmatprep.subr.mxu0 0.0
    %13101 = vmatpush1.msra.mxu0 0.0
    %13102 = vmatprep.subr.mxu0 0.0
    %13103 = vmatpush1.msra.mxu0 0.0
    %13104 = vmatprep.subr.mxu0 0.0
    %13105 = vmatpush1.msra.mxu0 0.0
    %13106 = vmatprep.subr.mxu0 0.0
    %13107 = vmatpush1.msra.mxu0 0.0
    %13108 = vmatprep.subr.mxu0 0.0
    %13109 = vmatpush1.msra.mxu0 0.0
    %13110 = vmatprep.subr.mxu0 0.0
    %13111 = vmatpush1.msra.mxu0 0.0
    %13112 = vmatprep.subr.mxu0 0.0
    %13113 = vmatpush1.msra.mxu0 0.0
    %13114 = vmatprep.subr.mxu0 0.0
    %13115 = vmatpush1.msra.mxu0 0.0
    %13116 = vmatprep.mubr.f32.mxu0 0.0
    %13117 = vmatmul.mubr.f32.gmra.mrb[0].mxu0 %v13029
    %v13118 = vpop.f32.mrb[0].mxu0
    %v13119 = vadd.f32 %v12990, %v13118
    %v13120 = vpop.f32.mrb[0].mxu0
    %13121 = vmatprep.mubr.f32.mxu0 0.0
    %13122 = vmatmul.mubr.f32.gmra.mrb[0].mxu0 %v13032
    %v13123 = vpop.f32.mrb[0].mxu0
    %v13124 = vadd.f32 %v12995, %v13123
    %v13125 = vpop.f32.mrb[0].mxu0
    %13126 = vmatprep.mubr.f32.mxu0 0.0
    %13127 = vmatmul.mubr.f32.gmra.mrb[0].mxu0 %v13035
    %v13128 = vpop.f32.mrb[0].mxu0
    %v13129 = vadd.f32 %v13000, %v13128
    %v13130 = vpop.f32.mrb[0].mxu0
    %13131 = vmatprep.mubr.f32.mxu0 0.0
    %13132 = vmatmul.mubr.f32.gmra.mrb[0].mxu0 %v13038
    %v13133 = vpop.f32.mrb[0].mxu0
    %v13134 = vadd.f32 %v13005, %v13133
    %v13135 = vpop.f32.mrb[0].mxu0
    %13136 = vmatprep.mubr.f32.mxu0 0.0
    %13137 = vmatmul.mubr.f32.gmra.mrb[0].mxu0 %v13041
    %v13138 = vpop.f32.mrb[0].mxu0
    %v13139 = vadd.f32 %v13010, %v13138
    %v13140 = vpop.f32.mrb[0].mxu0
    %13141 = vmatprep.mubr.f32.mxu0 0.0
    %13142 = vmatmul.mubr.f32.gmra.mrb[0].mxu0 %v13044
    %v13143 = vpop.f32.mrb[0].mxu0
    %v13144 = vadd.f32 %v13015, %v13143
    %v13145 = vpop.f32.mrb[0].mxu0
    %13146 = vmatprep.mubr.f32.mxu0 0.0
    %13147 = vmatmul.mubr.f32.gmra.mrb[0].mxu0 %v13047
    %v13148 = vpop.f32.mrb[0].mxu0
    %v13149 = vadd.f32 %v13020, %v13148
    %v13150 = vpop.f32.mrb[0].mxu0
    %13151 = vmatprep.mubr.f32.mxu0 0.0
    %13152 = vmatmul.mubr.f32.gmra.mrb[0].mxu0 %v13050
    %v13153 = vpop.f32.mrb[0].mxu0
    %v13154 = vadd.f32 %v13025, %v13153
    %v13155 = vpop.f32.mrb[0].mxu0
    %13156 = vdwg.mxu0
    %s13157 = scalar_lea.vmem [#allocation7], 64
    %v13158 = vld [vmem:[%s13157] sm:$0xff]
    %v13159 = vld [vmem:[%s13157 + $0x8] sm:$0xff]
    %v13160 = vld [vmem:[%s13157 + $0x10] sm:$0xff]
    %v13161 = vld [vmem:[%s13157 + $0x18] sm:$0xff]
    %v13163 = vsel %vm962, %v12882, 0
    %v13166 = vsel %vm962, %v12883, 0
    %v13169 = vsel %vm962, %v12884, 0
    %v13172 = vsel %vm962, %v12885, 0
    %v13175 = vsel %vm962, %v12886, 0
    %v13178 = vsel %vm962, %v12887, 0
    %v13181 = vsel %vm962, %v12888, 0
    %v13184 = vsel %vm962, %v12889, 0
    %13186 = vmatprep.subr.mxu0 0.0
    %13187 = vmatpush1.msra.mxu0 %v13158
    %13188 = vmatprep.subr.mxu0 0.0
    %13189 = vmatpush1.msra.mxu0 %v13159
    %13190 = vmatprep.subr.mxu0 0.0
    %13191 = vmatpush1.msra.mxu0 %v13160
    %13192 = vmatprep.subr.mxu0 0.0
    %13193 = vmatpush1.msra.mxu0 %v13161
    %13194 = vmatprep.subr.mxu0 0.0
    %13195 = vmatpush1.msra.mxu0 0.0
    %13196 = vmatprep.subr.mxu0 0.0
    %13197 = vmatpush1.msra.mxu0 0.0
    %13198 = vmatprep.subr.mxu0 0.0
    %13199 = vmatpush1.msra.mxu0 0.0
    %13200 = vmatprep.subr.mxu0 0.0
    %13201 = vmatpush1.msra.mxu0 0.0
    %13202 = vmatprep.subr.mxu0 0.0
    %13203 = vmatpush1.msra.mxu0 0.0
    %13204 = vmatprep.subr.mxu0 0.0
    %13205 = vmatpush1.msra.mxu0 0.0
    %13206 = vmatprep.subr.mxu0 0.0
    %13207 = vmatpush1.msra.mxu0 0.0
    %13208 = vmatprep.subr.mxu0 0.0
    %13209 = vmatpush1.msra.mxu0 0.0
    %13210 = vmatprep.subr.mxu0 0.0
    %13211 = vmatpush1.msra.mxu0 0.0
    %13212 = vmatprep.subr.mxu0 0.0
    %13213 = vmatpush1.msra.mxu0 0.0
    %13214 = vmatprep.subr.mxu0 0.0
    %13215 = vmatpush1.msra.mxu0 0.0
    %13216 = vmatprep.subr.mxu0 0.0
    %13217 = vmatpush1.msra.mxu0 0.0
    %13218 = vmatprep.subr.mxu0 0.0
    %13219 = vmatpush1.msra.mxu0 0.0
    %13220 = vmatprep.subr.mxu0 0.0
    %13221 = vmatpush1.msra.mxu0 0.0
    %13222 = vmatprep.subr.mxu0 0.0
    %13223 = vmatpush1.msra.mxu0 0.0
    %13224 = vmatprep.subr.mxu0 0.0
    %13225 = vmatpush1.msra.mxu0 0.0
    %13226 = vmatprep.subr.mxu0 0.0
    %13227 = vmatpush1.msra.mxu0 0.0
    %13228 = vmatprep.subr.mxu0 0.0
    %13229 = vmatpush1.msra.mxu0 0.0
    %13230 = vmatprep.subr.mxu0 0.0
    %13231 = vmatpush1.msra.mxu0 0.0
    %13232 = vmatprep.subr.mxu0 0.0
    %13233 = vmatpush1.msra.mxu0 0.0
    %13234 = vmatprep.subr.mxu0 0.0
    %13235 = vmatpush1.msra.mxu0 0.0
    %13236 = vmatprep.subr.mxu0 0.0
    %13237 = vmatpush1.msra.mxu0 0.0
    %13238 = vmatprep.subr.mxu0 0.0
    %13239 = vmatpush1.msra.mxu0 0.0
    %13240 = vmatprep.subr.mxu0 0.0
    %13241 = vmatpush1.msra.mxu0 0.0
    %13242 = vmatprep.subr.mxu0 0.0
    %13243 = vmatpush1.msra.mxu0 0.0
    %13244 = vmatprep.subr.mxu0 0.0
    %13245 = vmatpush1.msra.mxu0 0.0
    %13246 = vmatprep.subr.mxu0 0.0
    %13247 = vmatpush1.msra.mxu0 0.0
    %13248 = vmatprep.subr.mxu0 0.0
    %13249 = vmatpush1.msra.mxu0 0.0
    %13250 = vmatprep.mubr.f32.mxu0 0.0
    %13251 = vmatmul.mubr.f32.gmra.mrb[0].mxu0 %v13163
    %v13252 = vpop.f32.mrb[0].mxu0
    %v13253 = vadd.f32 0.0, %v13252
    %v13254 = vpop.f32.mrb[0].mxu0
    %13255 = vmatprep.mubr.f32.mxu0 0.0
    %13256 = vmatmul.mubr.f32.gmra.mrb[0].mxu0 %v13166
    %v13257 = vpop.f32.mrb[0].mxu0
    %v13258 = vadd.f32 0.0, %v13257
    %v13259 = vpop.f32.mrb[0].mxu0
    %13260 = vmatprep.mubr.f32.mxu0 0.0
    %13261 = vmatmul.mubr.f32.gmra.mrb[0].mxu0 %v13169
    %v13262 = vpop.f32.mrb[0].mxu0
    %v13263 = vadd.f32 0.0, %v13262
    %v13264 = vpop.f32.mrb[0].mxu0
    %13265 = vmatprep.mubr.f32.mxu0 0.0
    %13266 = vmatmul.mubr.f32.gmra.mrb[0].mxu0 %v13172
    %v13267 = vpop.f32.mrb[0].mxu0
    %v13268 = vadd.f32 0.0, %v13267
    %v13269 = vpop.f32.mrb[0].mxu0
    %13270 = vmatprep.mubr.f32.mxu0 0.0
    %13271 = vmatmul.mubr.f32.gmra.mrb[0].mxu0 %v13175
    %v13272 = vpop.f32.mrb[0].mxu0
    %v13273 = vadd.f32 0.0, %v13272
    %v13274 = vpop.f32.mrb[0].mxu0
    %13275 = vmatprep.mubr.f32.mxu0 0.0
    %13276 = vmatmul.mubr.f32.gmra.mrb[0].mxu0 %v13178
    %v13277 = vpop.f32.mrb[0].mxu0
    %v13278 = vadd.f32 0.0, %v13277
    %v13279 = vpop.f32.mrb[0].mxu0
    %13280 = vmatprep.mubr.f32.mxu0 0.0
    %13281 = vmatmul.mubr.f32.gmra.mrb[0].mxu0 %v13181
    %v13282 = vpop.f32.mrb[0].mxu0
    %v13283 = vadd.f32 0.0, %v13282
    %v13284 = vpop.f32.mrb[0].mxu0
    %13285 = vmatprep.mubr.f32.mxu0 0.0
    %13286 = vmatmul.mubr.f32.gmra.mrb[0].mxu0 %v13184
    %v13287 = vpop.f32.mrb[0].mxu0
    %v13288 = vadd.f32 0.0, %v13287
    %v13289 = vpop.f32.mrb[0].mxu0
    %13290 = vdwg.mxu0
    %v13291 = vadd.f32 %v13119, %v13253
    %v13292 = vadd.f32 %v13124, %v13258
    %v13293 = vadd.f32 %v13129, %v13263
    %v13294 = vadd.f32 %v13134, %v13268
    %v13295 = vadd.f32 %v13139, %v13273
    %v13296 = vadd.f32 %v13144, %v13278
    %v13297 = vadd.f32 %v13149, %v13283
    %v13298 = vadd.f32 %v13154, %v13288
    %s13299 = scalar_lea.vmem [#allocation7], 96
    %v13300 = vld [vmem:[%s13299] sm:$0xff]
    %v13301 = vld [vmem:[%s13299 + $0x8] sm:$0xff]
    %v13302 = vld [vmem:[%s13299 + $0x10] sm:$0xff]
    %v13303 = vld [vmem:[%s13299 + $0x18] sm:$0xff]
    %13312 = vrot.lane.b32.xlu0 %v7672, 96
    %v13313 = vpop.permute.xlu0 %13312
    %13314 = vrot.lane.b32.xlu0 %v7679, 96
    %v13315 = vpop.permute.xlu0 %13314
    %13316 = vrot.lane.b32.xlu0 %v7686, 96
    %v13317 = vpop.permute.xlu0 %13316
    %13318 = vrot.lane.b32.xlu0 %v7693, 96
    %v13319 = vpop.permute.xlu0 %13318
    %13320 = vrot.lane.b32.xlu0 %v7700, 96
    %v13321 = vpop.permute.xlu0 %13320
    %13322 = vrot.lane.b32.xlu0 %v7707, 96
    %v13323 = vpop.permute.xlu0 %13322
    %13324 = vrot.lane.b32.xlu0 %v7714, 96
    %v13325 = vpop.permute.xlu0 %13324
    %13326 = vrot.lane.b32.xlu0 %v7721, 96
    %v13327 = vpop.permute.xlu0 %13326
    %v13328 = vsel %vm962, %v13313, 0
    %v13330 = vsel %vm962, %v13315, 0
    %v13332 = vsel %vm962, %v13317, 0
    %v13334 = vsel %vm962, %v13319, 0
    %v13336 = vsel %vm962, %v13321, 0
    %v13338 = vsel %vm962, %v13323, 0
    %v13340 = vsel %vm962, %v13325, 0
    %v13342 = vsel %vm962, %v13327, 0
    %13344 = vmatprep.subr.mxu0 0.0
    %13345 = vmatpush1.msra.mxu0 %v13300
    %13346 = vmatprep.subr.mxu0 0.0
    %13347 = vmatpush1.msra.mxu0 %v13301
    %13348 = vmatprep.subr.mxu0 0.0
    %13349 = vmatpush1.msra.mxu0 %v13302
    %13350 = vmatprep.subr.mxu0 0.0
    %13351 = vmatpush1.msra.mxu0 %v13303
    %13352 = vmatprep.subr.mxu0 0.0
    %13353 = vmatpush1.msra.mxu0 0.0
    %13354 = vmatprep.subr.mxu0 0.0
    %13355 = vmatpush1.msra.mxu0 0.0
    %13356 = vmatprep.subr.mxu0 0.0
    %13357 = vmatpush1.msra.mxu0 0.0
    %13358 = vmatprep.subr.mxu0 0.0
    %13359 = vmatpush1.msra.mxu0 0.0
    %13360 = vmatprep.subr.mxu0 0.0
    %13361 = vmatpush1.msra.mxu0 0.0
    %13362 = vmatprep.subr.mxu0 0.0
    %13363 = vmatpush1.msra.mxu0 0.0
    %13364 = vmatprep.subr.mxu0 0.0
    %13365 = vmatpush1.msra.mxu0 0.0
    %13366 = vmatprep.subr.mxu0 0.0
    %13367 = vmatpush1.msra.mxu0 0.0
    %13368 = vmatprep.subr.mxu0 0.0
    %13369 = vmatpush1.msra.mxu0 0.0
    %13370 = vmatprep.subr.mxu0 0.0
    %13371 = vmatpush1.msra.mxu0 0.0
    %13372 = vmatprep.subr.mxu0 0.0
    %13373 = vmatpush1.msra.mxu0 0.0
    %13374 = vmatprep.subr.mxu0 0.0
    %13375 = vmatpush1.msra.mxu0 0.0
    %13376 = vmatprep.subr.mxu0 0.0
    %13377 = vmatpush1.msra.mxu0 0.0
    %13378 = vmatprep.subr.mxu0 0.0
    %13379 = vmatpush1.msra.mxu0 0.0
    %13380 = vmatprep.subr.mxu0 0.0
    %13381 = vmatpush1.msra.mxu0 0.0
    %13382 = vmatprep.subr.mxu0 0.0
    %13383 = vmatpush1.msra.mxu0 0.0
    %13384 = vmatprep.subr.mxu0 0.0
    %13385 = vmatpush1.msra.mxu0 0.0
    %13386 = vmatprep.subr.mxu0 0.0
    %13387 = vmatpush1.msra.mxu0 0.0
    %13388 = vmatprep.subr.mxu0 0.0
    %13389 = vmatpush1.msra.mxu0 0.0
    %13390 = vmatprep.subr.mxu0 0.0
    %13391 = vmatpush1.msra.mxu0 0.0
    %13392 = vmatprep.subr.mxu0 0.0
    %13393 = vmatpush1.msra.mxu0 0.0
    %13394 = vmatprep.subr.mxu0 0.0
    %13395 = vmatpush1.msra.mxu0 0.0
    %13396 = vmatprep.subr.mxu0 0.0
    %13397 = vmatpush1.msra.mxu0 0.0
    %13398 = vmatprep.subr.mxu0 0.0
    %13399 = vmatpush1.msra.mxu0 0.0
    %13400 = vmatprep.subr.mxu0 0.0
    %13401 = vmatpush1.msra.mxu0 0.0
    %13402 = vmatprep.subr.mxu0 0.0
    %13403 = vmatpush1.msra.mxu0 0.0
    %13404 = vmatprep.subr.mxu0 0.0
    %13405 = vmatpush1.msra.mxu0 0.0
    %13406 = vmatprep.subr.mxu0 0.0
    %13407 = vmatpush1.msra.mxu0 0.0
    %13408 = vmatprep.mubr.f32.mxu0 0.0
    %13409 = vmatmul.mubr.f32.gmra.mrb[0].mxu0 %v13328
    %v13410 = vpop.f32.mrb[0].mxu0
    %v13411 = vadd.f32 0.0, %v13410
    %v13412 = vpop.f32.mrb[0].mxu0
    %13413 = vmatprep.mubr.f32.mxu0 0.0
    %13414 = vmatmul.mubr.f32.gmra.mrb[0].mxu0 %v13330
    %v13415 = vpop.f32.mrb[0].mxu0
    %v13416 = vadd.f32 0.0, %v13415
    %v13417 = vpop.f32.mrb[0].mxu0
    %13418 = vmatprep.mubr.f32.mxu0 0.0
    %13419 = vmatmul.mubr.f32.gmra.mrb[0].mxu0 %v13332
    %v13420 = vpop.f32.mrb[0].mxu0
    %v13421 = vadd.f32 0.0, %v13420
    %v13422 = vpop.f32.mrb[0].mxu0
    %13423 = vmatprep.mubr.f32.mxu0 0.0
    %13424 = vmatmul.mubr.f32.gmra.mrb[0].mxu0 %v13334
    %v13425 = vpop.f32.mrb[0].mxu0
    %v13426 = vadd.f32 0.0, %v13425
    %v13427 = vpop.f32.mrb[0].mxu0
    %13428 = vmatprep.mubr.f32.mxu0 0.0
    %13429 = vmatmul.mubr.f32.gmra.mrb[0].mxu0 %v13336
    %v13430 = vpop.f32.mrb[0].mxu0
    %v13431 = vadd.f32 0.0, %v13430
    %v13432 = vpop.f32.mrb[0].mxu0
    %13433 = vmatprep.mubr.f32.mxu0 0.0
    %13434 = vmatmul.mubr.f32.gmra.mrb[0].mxu0 %v13338
    %v13435 = vpop.f32.mrb[0].mxu0
    %v13436 = vadd.f32 0.0, %v13435
    %v13437 = vpop.f32.mrb[0].mxu0
    %13438 = vmatprep.mubr.f32.mxu0 0.0
    %13439 = vmatmul.mubr.f32.gmra.mrb[0].mxu0 %v13340
    %v13440 = vpop.f32.mrb[0].mxu0
    %v13441 = vadd.f32 0.0, %v13440
    %v13442 = vpop.f32.mrb[0].mxu0
    %13443 = vmatprep.mubr.f32.mxu0 0.0
    %13444 = vmatmul.mubr.f32.gmra.mrb[0].mxu0 %v13342
    %v13445 = vpop.f32.mrb[0].mxu0
    %v13446 = vadd.f32 0.0, %v13445
    %v13447 = vpop.f32.mrb[0].mxu0
    %13448 = vdwg.mxu0
    %v13449 = vadd.f32 %v13291, %v13411
    %v13450 = vadd.f32 %v13292, %v13416
    %v13451 = vadd.f32 %v13293, %v13421
    %v13452 = vadd.f32 %v13294, %v13426
    %v13453 = vadd.f32 %v13295, %v13431
    %v13454 = vadd.f32 %v13296, %v13436
    %v13455 = vadd.f32 %v13297, %v13441
    %v13456 = vadd.f32 %v13298, %v13446
    %v13457 = vld [vmem:[%s7] sm:$0x1]
    %v13459 = vlaneseq
    %v13460 = vshrl.u32 %v13459, 7
    %v13461 = vsub.s32 0, %v13460
    %v13462 = vrot.slane %v13457, %v13461
    %v13464 = vadd.f32 %v13449, %v13462
    %v13465 = vadd.f32 %v13450, %v13462
    %v13466 = vadd.f32 %v13451, %v13462
    %v13467 = vadd.f32 %v13452, %v13462
    %v13468 = vadd.f32 %v13453, %v13462
    %v13469 = vadd.f32 %v13454, %v13462
    %v13470 = vadd.f32 %v13455, %v13462
    %v13471 = vadd.f32 %v13456, %v13462
    %v13472 = vmax.f32 %v13464, 0.0
    %v13473 = vmax.f32 %v13465, 0.0
    %v13474 = vmax.f32 %v13466, 0.0
    %v13475 = vmax.f32 %v13467, 0.0
    %v13476 = vmax.f32 %v13468, 0.0
    %v13477 = vmax.f32 %v13469, 0.0
    %v13478 = vmax.f32 %v13470, 0.0
    %v13479 = vmax.f32 %v13471, 0.0
    %v13480 = vld [vmem:[%s8] sm:$0xff]
    %v13481 = vld [vmem:[%s8 + $0x8] sm:$0xff]
    %v13482 = vld [vmem:[%s8 + $0x10] sm:$0xff]
    %v13483 = vld [vmem:[%s8 + $0x18] sm:$0xff]
    %v13484 = vld [vmem:[%s9] sm:$0x1]
    %v13486 = vlaneseq
    %v13487 = vshrl.u32 %v13486, 7
    %v13488 = vsub.s32 0, %v13487
    %v13489 = vrot.slane %v13484, %v13488
    %v13492 = vsel %vm962, %v13472, 0
    %v13495 = vsel %vm962, %v13473, 0
    %v13498 = vsel %vm962, %v13474, 0
    %v13501 = vsel %vm962, %v13475, 0
    %v13504 = vsel %vm962, %v13476, 0
    %v13507 = vsel %vm962, %v13477, 0
    %v13510 = vsel %vm962, %v13478, 0
    %v13513 = vsel %vm962, %v13479, 0
    %13515 = vmatprep.subr.mxu0 0.0
    %13516 = vmatpush1.msra.mxu0 %v13480
    %13517 = vmatprep.subr.mxu0 0.0
    %13518 = vmatpush1.msra.mxu0 %v13481
    %13519 = vmatprep.subr.mxu0 0.0
    %13520 = vmatpush1.msra.mxu0 %v13482
    %13521 = vmatprep.subr.mxu0 0.0
    %13522 = vmatpush1.msra.mxu0 %v13483
    %13523 = vmatprep.subr.mxu0 0.0
    %13524 = vmatpush1.msra.mxu0 0.0
    %13525 = vmatprep.subr.mxu0 0.0
    %13526 = vmatpush1.msra.mxu0 0.0
    %13527 = vmatprep.subr.mxu0 0.0
    %13528 = vmatpush1.msra.mxu0 0.0
    %13529 = vmatprep.subr.mxu0 0.0
    %13530 = vmatpush1.msra.mxu0 0.0
    %13531 = vmatprep.subr.mxu0 0.0
    %13532 = vmatpush1.msra.mxu0 0.0
    %13533 = vmatprep.subr.mxu0 0.0
    %13534 = vmatpush1.msra.mxu0 0.0
    %13535 = vmatprep.subr.mxu0 0.0
    %13536 = vmatpush1.msra.mxu0 0.0
    %13537 = vmatprep.subr.mxu0 0.0
    %13538 = vmatpush1.msra.mxu0 0.0
    %13539 = vmatprep.subr.mxu0 0.0
    %13540 = vmatpush1.msra.mxu0 0.0
    %13541 = vmatprep.subr.mxu0 0.0
    %13542 = vmatpush1.msra.mxu0 0.0
    %13543 = vmatprep.subr.mxu0 0.0
    %13544 = vmatpush1.msra.mxu0 0.0
    %13545 = vmatprep.subr.mxu0 0.0
    %13546 = vmatpush1.msra.mxu0 0.0
    %13547 = vmatprep.subr.mxu0 0.0
    %13548 = vmatpush1.msra.mxu0 0.0
    %13549 = vmatprep.subr.mxu0 0.0
    %13550 = vmatpush1.msra.mxu0 0.0
    %13551 = vmatprep.subr.mxu0 0.0
    %13552 = vmatpush1.msra.mxu0 0.0
    %13553 = vmatprep.subr.mxu0 0.0
    %13554 = vmatpush1.msra.mxu0 0.0
    %13555 = vmatprep.subr.mxu0 0.0
    %13556 = vmatpush1.msra.mxu0 0.0
    %13557 = vmatprep.subr.mxu0 0.0
    %13558 = vmatpush1.msra.mxu0 0.0
    %13559 = vmatprep.subr.mxu0 0.0
    %13560 = vmatpush1.msra.mxu0 0.0
    %13561 = vmatprep.subr.mxu0 0.0
    %13562 = vmatpush1.msra.mxu0 0.0
    %13563 = vmatprep.subr.mxu0 0.0
    %13564 = vmatpush1.msra.mxu0 0.0
    %13565 = vmatprep.subr.mxu0 0.0
    %13566 = vmatpush1.msra.mxu0 0.0
    %13567 = vmatprep.subr.mxu0 0.0
    %13568 = vmatpush1.msra.mxu0 0.0
    %13569 = vmatprep.subr.mxu0 0.0
    %13570 = vmatpush1.msra.mxu0 0.0
    %13571 = vmatprep.subr.mxu0 0.0
    %13572 = vmatpush1.msra.mxu0 0.0
    %13573 = vmatprep.subr.mxu0 0.0
    %13574 = vmatpush1.msra.mxu0 0.0
    %13575 = vmatprep.subr.mxu0 0.0
    %13576 = vmatpush1.msra.mxu0 0.0
    %13577 = vmatprep.subr.mxu0 0.0
    %13578 = vmatpush1.msra.mxu0 0.0
    %13579 = vmatprep.mubr.f32.mxu0 0.0
    %13580 = vmatmul.mubr.f32.gmra.mrb[0].mxu0 %v13492
    %v13581 = vpop.f32.mrb[0].mxu0
    %v13582 = vadd.f32 %v13489, %v13581
    %v13583 = vpop.f32.mrb[0].mxu0
    %13584 = vmatprep.mubr.f32.mxu0 0.0
    %13585 = vmatmul.mubr.f32.gmra.mrb[0].mxu0 %v13495
    %v13586 = vpop.f32.mrb[0].mxu0
    %v13587 = vadd.f32 %v13489, %v13586
    %v13588 = vpop.f32.mrb[0].mxu0
    %13589 = vmatprep.mubr.f32.mxu0 0.0
    %13590 = vmatmul.mubr.f32.gmra.mrb[0].mxu0 %v13498
    %v13591 = vpop.f32.mrb[0].mxu0
    %v13592 = vadd.f32 %v13489, %v13591
    %v13593 = vpop.f32.mrb[0].mxu0
    %13594 = vmatprep.mubr.f32.mxu0 0.0
    %13595 = vmatmul.mubr.f32.gmra.mrb[0].mxu0 %v13501
    %v13596 = vpop.f32.mrb[0].mxu0
    %v13597 = vadd.f32 %v13489, %v13596
    %v13598 = vpop.f32.mrb[0].mxu0
    %13599 = vmatprep.mubr.f32.mxu0 0.0
    %13600 = vmatmul.mubr.f32.gmra.mrb[0].mxu0 %v13504
    %v13601 = vpop.f32.mrb[0].mxu0
    %v13602 = vadd.f32 %v13489, %v13601
    %v13603 = vpop.f32.mrb[0].mxu0
    %13604 = vmatprep.mubr.f32.mxu0 0.0
    %13605 = vmatmul.mubr.f32.gmra.mrb[0].mxu0 %v13507
    %v13606 = vpop.f32.mrb[0].mxu0
    %v13607 = vadd.f32 %v13489, %v13606
    %v13608 = vpop.f32.mrb[0].mxu0
    %13609 = vmatprep.mubr.f32.mxu0 0.0
    %13610 = vmatmul.mubr.f32.gmra.mrb[0].mxu0 %v13510
    %v13611 = vpop.f32.mrb[0].mxu0
    %v13612 = vadd.f32 %v13489, %v13611
    %v13613 = vpop.f32.mrb[0].mxu0
    %13614 = vmatprep.mubr.f32.mxu0 0.0
    %13615 = vmatmul.mubr.f32.gmra.mrb[0].mxu0 %v13513
    %v13616 = vpop.f32.mrb[0].mxu0
    %v13617 = vadd.f32 %v13489, %v13616
    %v13618 = vpop.f32.mrb[0].mxu0
    %13619 = vdwg.mxu0
    %13620 = vst [vmem:[#allocation8] sm:$0xff] %v13582
    %13621 = vst [vmem:[#allocation8 + $0x8] sm:$0xff] %v13587
    %13622 = vst [vmem:[#allocation8 + $0x10] sm:$0xff] %v13592
    %13623 = vst [vmem:[#allocation8 + $0x18] sm:$0xff] %v13597
    %13624 = vst [vmem:[#allocation8 + $0x20] sm:$0xff] %v13602
    %13625 = vst [vmem:[#allocation8 + $0x28] sm:$0xff] %v13607
    %13626 = vst [vmem:[#allocation8 + $0x30] sm:$0xff] %v13612
    %13627 = vst [vmem:[#allocation8 + $0x38] sm:$0xff] %v13617
    // Predicated region
    $region54: #{tpu_custom_call.1} parent=1 // pred_check
      _
    $region55: #{tpu_custom_call.1} parent=1 // pred_check_branch
      %13629 = sbr.rel (0) target = $region57
    $region56: #{tpu_custom_call.1} parent=1 // pred_region
      %s13631 = ssub.s32 1024, 1024
      %13632 = vsyncadd [#allocation4], %s13631
      %s13633 = sshll.u32 [#allocation8], 4
      %s13634 = int_to_ptr.vmem [resolvable:$true] %s13633
      %13639 = dma.vmem_to_hbm [thread:$0]  %s13634, 1024, %s10, [#allocation4], 128, 128, 8
    $region57: #{tpu_custom_call.1} parent=1 // pred_fallthru
      _
    // Predicated region
    $region58: #{tpu_custom_call.1} parent=1 // pred_check
      _
    $region59: #{tpu_custom_call.1} parent=1 // pred_check_branch
      %13641 = sbr.rel (0) target = $region61
    $region60: #{tpu_custom_call.1} parent=1 // pred_region
      %13642 = dma.done [#allocation4], 1024
    $region61: #{tpu_custom_call.1} parent=1 // pred_fallthru
      _
    %13643 = vsyncpa [#allocation3], 1
    %13644 = vsyncpa [#allocation6], 1
    %13645 = vsyncpa [#allocation4], 1

</llo_original>
